<compile_context>
chip_gen: v7x
topology: tpu7x:2x2x1
jax: 0.10.0
libtpu: 0.0.40
codegen_flags: <defaults>
</compile_context>

<pallas_src>
import functools
import numpy as np
import jax
import jax.numpy as jnp
from jax.experimental import pallas as pl
from jax.experimental.pallas import tpu as pltpu


_VMEM_SPEC = pl.BlockSpec(memory_space=pltpu.MemorySpace.VMEM)


# --------------------------- in-kernel helpers ---------------------------

def _layer_norm(x, g, b, eps=1e-5):
    mu = jnp.mean(x, axis=-1, keepdims=True)
    var = jnp.mean(jnp.square(x - mu), axis=-1, keepdims=True)
    return (x - mu) * jax.lax.rsqrt(var + eps) * g + b


def _erf_approx(x):
    # Abramowitz & Stegun 7.1.26 (max abs err ~1.5e-7) -- uses only exp/mul/div,
    # all of which have guaranteed Mosaic lowerings (exact erf GELU semantics).
    p = 0.3275911
    a1, a2, a3, a4, a5 = (0.254829592, -0.284496736, 1.421413741,
                          -1.453152027, 1.061405429)
    ax = jnp.abs(x)
    t = 1.0 / (1.0 + p * ax)
    poly = ((((a5 * t + a4) * t + a3) * t + a2) * t + a1) * t
    e = 1.0 - poly * jnp.exp(-ax * ax)
    return jnp.where(x >= 0, e, -e)


def _gelu_exact(x):
    return 0.5 * x * (1.0 + _erf_approx(x * 0.7071067811865476))


# ----------------------------- Pallas kernels -----------------------------

def _ln_qkv_kernel(x_ref, g_ref, b_ref, w_ref, wb_ref, o_ref):
    """LayerNorm(eps=1e-5) + single fused (M,C)x(C,3C) QKV matmul."""
    xn = _layer_norm(x_ref[...], g_ref[...], b_ref[...])
    y = jnp.dot(xn.astype(jnp.bfloat16), w_ref[...],
                preferred_element_type=jnp.float32) + wb_ref[...]
    o_ref[...] = y.astype(o_ref.dtype)


def ln_qkv(x2d, g, b, w, wb):
    M, _ = x2d.shape
    C3 = w.shape[1]
    return pl.pallas_call(
        _ln_qkv_kernel,
        out_shape=jax.ShapeDtypeStruct((M, C3), jnp.bfloat16),
        in_specs=[_VMEM_SPEC] * 5,
        out_specs=_VMEM_SPEC,
    )(x2d, g, b, w, wb)


def _dual_attn_kernel(*refs, nh, B, nW, has_mask):
    """Window MHA for both channel halves, all heads, all windows in one call."""
    if has_mask:
        qkv_ref, bias_ref, mask_ref, o_ref = refs
    else:
        qkv_ref, bias_ref, o_ref = refs
        mask_ref = None

    _, _, _, B_, N, _ = qkv_ref.shape
    mask = mask_ref[...] if has_mask else None        # (nW, N, N) f32, read once

    outs = []
    for half in range(2):                             # 0: branch1 (no mask), 1: branch2
        for h in range(nh):                           # heads on a leading axis: pure views
            q = qkv_ref[half, 0, h]                   # (B_, N, hd) bf16
            k = qkv_ref[half, 1, h]
            v = qkv_ref[half, 2, h]
            s = jnp.einsum('bqd,bkd->bqk', q, k,
                           preferred_element_type=jnp.float32)   # (B_, N, N) f32
            s = s + bias_ref[half, h]                 # (N, N) bcast over windows
            if has_mask and half == 1:
                # window index is the fast axis of B_ (= B * nW): leading-dim reshape only
                s = (s.reshape(B, nW, N, N) + mask[None]).reshape(B_, N, N)
            m = jnp.max(s, axis=-1, keepdims=True)
            e = jnp.exp(s - m)
            p = e * pl.reciprocal(jnp.sum(e, axis=-1, keepdims=True), approx=True)
            outs.append(jnp.einsum('bqk,bkd->bqd', p.astype(v.dtype), v,
                                   preferred_element_type=jnp.float32))
    # single lane-dense (B_, N, C) store: [half1 heads | half2 heads]
    o_ref[...] = jnp.concatenate(outs, axis=-1).astype(o_ref.dtype)


def dual_window_attention(qkv6, bias, mask, *, nh, B, nW):
    # qkv6: (2, 3, nh, B_, N, hd) bf16; bias: (2, nh, N, N) f32; mask: (nW, N, N) or None
    _, _, _, B_, N, hd = qkv6.shape
    C = 2 * nh * hd
    has_mask = mask is not None
    kern = functools.partial(_dual_attn_kernel, nh=nh, B=B, nW=nW, has_mask=has_mask)
    args = [qkv6, bias] + ([mask] if has_mask else [])
    return pl.pallas_call(
        kern,
        out_shape=jax.ShapeDtypeStruct((B_, N, C), jnp.bfloat16),
        in_specs=[_VMEM_SPEC] * len(args),
        out_specs=_VMEM_SPEC,
    )(*args)


def _proj_mlp_kernel(xcat_ref, sc_ref, pw_ref, pb_ref, g2_ref, b2_ref,
                     f1w_ref, f1b_ref, f2w_ref, f2b_ref, o_ref):
    """proj linear + residual + LayerNorm2 + MLP (exact GELU) + residual."""
    proj = jnp.dot(xcat_ref[...], pw_ref[...],
                   preferred_element_type=jnp.float32) + pb_ref[...]
    x = sc_ref[...] + proj                                        # residual 1 (f32)
    xn = _layer_norm(x, g2_ref[...], b2_ref[...])
    h = jnp.dot(xn.astype(jnp.bfloat16), f1w_ref[...],
                preferred_element_type=jnp.float32) + f1b_ref[...]
    h = _gelu_exact(h)
    y = jnp.dot(h.astype(jnp.bfloat16), f2w_ref[...],
                preferred_element_type=jnp.float32) + f2b_ref[...]
    o_ref[...] = x + y                                            # residual 2


def proj_mlp(xcat, shortcut, p):
    M, C = xcat.shape
    return pl.pallas_call(
        _proj_mlp_kernel,
        out_shape=jax.ShapeDtypeStruct((M, C), jnp.float32),
        in_specs=[_VMEM_SPEC] * 10,
        out_specs=_VMEM_SPEC,
    )(xcat, shortcut, p['proj_w'], p['proj_b'], p['norm2_w'], p['norm2_b'],
      p['fc1_w'], p['fc1_b'], p['fc2_w'], p['fc2_b'])


# ------------------- JAX glue (window layout plumbing) -------------------

def window_partition(x, ws):
    B, H, W, C = x.shape
    x = x.reshape(B, H // ws, ws, W // ws, ws, C)
    return x.transpose(0, 1, 3, 2, 4, 5).reshape(-1, ws, ws, C)


def window_reverse(windows, ws, H, W):
    B = windows.shape[0] // (H * W // ws // ws)
    x = windows.reshape(B, H // ws, W // ws, ws, ws, -1)
    return x.transpose(0, 1, 3, 2, 4, 5).reshape(B, H, W, -1)


def relative_position_index(ws):
    coords = np.stack(np.meshgrid(np.arange(ws), np.arange(ws), indexing='ij'))
    cf = coords.reshape(2, -1)
    rel = cf[:, :, None] - cf[:, None, :]
    rel = rel.transpose(1, 2, 0).copy()
    rel[:, :, 0] += ws - 1
    rel[:, :, 1] += ws - 1
    rel[:, :, 0] *= 2 * ws - 1
    return rel.sum(-1)                                            # (N, N) numpy int


def compute_attn_mask_np(H, W, ws, ss):
    img_mask = np.zeros((1, H, W, 1), np.float32)
    h_slices = (slice(0, -ws), slice(-ws, -ss), slice(-ss, None))
    w_slices = (slice(0, -ws), slice(-ws, -ss), slice(-ss, None))
    cnt = 0
    for hs in h_slices:
        for wsl in w_slices:
            img_mask[:, hs, wsl, :] = cnt
            cnt += 1
    x = img_mask.reshape(1, H // ws, ws, W // ws, ws, 1)
    mw = x.transpose(0, 1, 3, 2, 4, 5).reshape(-1, ws * ws)
    am = mw[:, None, :] - mw[:, :, None]                          # (nW, N, N)
    return np.where(am != 0, -100.0, 0.0).astype(np.float32)


def block_forward(p, x, mask, H, W, window_size, shift_size, num_heads):
    B, L, C = x.shape
    C2 = C // 2
    nh2 = num_heads // 2
    hd = C2 // nh2
    ws = window_size
    N = ws * ws
    nW = (H // ws) * (W // ws)
    M = B * L

    x2d = x.reshape(M, C)
    qkv = ln_qkv(x2d, p['norm1_w'], p['norm1_b'], p['qkv_w'], p['qkv_b'])   # (M,3C) bf16

    # layout glue: branch channel blocks were already ordered at prep time, so
    # half1 == branch1 (attn[0], unshifted), half2 == branch2 (attn[1], shifted).
    qkv = qkv.reshape(B, H, W, 3, C).transpose(3, 0, 1, 2, 4)               # (3,B,H,W,C)
    half1 = qkv[..., :C2]
    half2 = qkv[..., C2:]
    if shift_size > 0:
        half2 = jnp.roll(half2, (-shift_size, -shift_size), axis=(2, 3))

    def to_windows_heads(t):                       # (3,B,H,W,C2) -> (3, nh2, B_, N, hd)
        w = window_partition(t.reshape(3 * B, H, W, C2), ws)
        w = w.reshape(3, B * nW, N, nh2, hd)
        return w.transpose(0, 3, 1, 2, 4)

    qkv6 = jnp.stack([to_windows_heads(half1), to_windows_heads(half2)], axis=0)

    attn_out = dual_window_attention(
        qkv6, p['bias'], mask if shift_size > 0 else None,
        nh=nh2, B=B, nW=nW)                                                 # (B_, N, C)

    x_sp = window_reverse(attn_out, ws, H, W)                               # (B, H, W, C)
    if shift_size > 0:
        x_sp = jnp.concatenate(
            [x_sp[..., :C2],
             jnp.roll(x_sp[..., C2:], (shift_size, shift_size), axis=(1, 2))],
            axis=-1)
    xcat = x_sp.reshape(M, C)                                               # bf16

    out = proj_mlp(xcat, x2d, p)                                            # (M, C) f32
    return out.reshape(B, L, C)


def basic_layer_forward(params_list, x, mask, *, H, W, window_size, shift_size,
                        num_heads):
    for p in params_list:                          # 'alternate' is folded into params
        x = block_forward(p, x, mask, H, W, window_size, shift_size, num_heads)
    return x


# ----------------------------- Parameters -----------------------------

def init_block_params(key, dim, num_heads, window_size, mlp_ratio=4.0):
    C = dim
    hidden = int(C * mlp_ratio)
    nh2 = num_heads // 2
    nbias = (2 * window_size - 1) ** 2
    ks = jax.random.split(key, 14)
    n = lambda k, shape, s: jax.random.normal(k, shape, jnp.float32) * s
    return {
        'norm1_w': 1.0 + n(ks[0], (C,), 0.1),
        'norm1_b': n(ks[1], (C,), 0.1),
        'qkv_w': n(ks[2], (C, 3 * C), 0.1),
        'qkv_b': n(ks[3], (3 * C,), 0.05),
        'proj_w': n(ks[4], (C, C), 0.1),
        'proj_b': n(ks[5], (C,), 0.05),
        'norm2_w': 1.0 + n(ks[6], (C,), 0.1),
        'norm2_b': n(ks[7], (C,), 0.1),
        'fc1_w': n(ks[8], (C, hidden), 0.1),
        'fc1_b': n(ks[9], (hidden,), 0.05),
        'fc2_w': n(ks[10], (hidden, C), 0.1),
        'fc2_b': n(ks[11], (C,), 0.05),
        'rpb0': n(ks[12], (nbias, nh2), 0.1),
        'rpb1': n(ks[13], (nbias, nh2), 0.1),
    }


def prepare_block_params(raw, num_heads, window_size, rpi, alternate):
    """One-time prep: fold qk scale + 'alternate' channel ordering into the QKV
    weight columns and the proj weight rows, gather the relative-position bias,
    cast matmul weights to bf16."""
    C = raw['qkv_w'].shape[0]
    C2 = C // 2
    nh2 = num_heads // 2
    hd = C2 // nh2
    scale = hd ** -0.5
    N = window_size * window_size

    w3 = raw['qkv_w'].reshape(C, 3, C)             # last axis = output channel per q/k/v
    b3 = raw['qkv_b'].reshape(3, C)
    if alternate == 1:                             # branch1 <- original channels [C2:C]
        w3 = jnp.concatenate([w3[..., C2:], w3[..., :C2]], axis=-1)
        b3 = jnp.concatenate([b3[..., C2:], b3[..., :C2]], axis=-1)
    w3 = w3.at[:, 0, :].multiply(scale)            # fold qk scale into q columns
    b3 = b3.at[0, :].multiply(scale)

    def gather_bias(tbl):
        return tbl[rpi.reshape(-1)].reshape(N, N, nh2).transpose(2, 0, 1)
    bias = jnp.stack([gather_bias(raw['rpb0']), gather_bias(raw['rpb1'])], axis=0)

    pw = raw['proj_w']
    if alternate == 1:                             # kernel emits [x1, x2]; torch uses [x2, x1]
        pw = jnp.concatenate([pw[C2:], pw[:C2]], axis=0)

    hidden = raw['fc1_w'].shape[1]
    return {
        'norm1_w': raw['norm1_w'].reshape(1, C),
        'norm1_b': raw['norm1_b'].reshape(1, C),
        'qkv_w': w3.reshape(C, 3 * C).astype(jnp.bfloat16),
        'qkv_b': b3.reshape(1, 3 * C),
        'bias': bias,                              # (2, nh2, N, N) f32
        'proj_w': pw.astype(jnp.bfloat16),
        'proj_b': raw['proj_b'].reshape(1, C),
        'norm2_w': raw['norm2_w'].reshape(1, C),
        'norm2_b': raw['norm2_b'].reshape(1, C),
        'fc1_w': raw['fc1_w'].astype(jnp.bfloat16),
        'fc1_b': raw['fc1_b'].reshape(1, hidden),
        'fc2_w': raw['fc2_w'].astype(jnp.bfloat16),
        'fc2_b': raw['fc2_b'].reshape(1, C),
    }


# --------------------- pure-JAX reference (f32, exact) ---------------------

def _ln_ref(x, g, b):
    mu = x.mean(-1, keepdims=True)
    var = ((x - mu) ** 2).mean(-1, keepdims=True)
    return (x - mu) / jnp.sqrt(var + 1e-5) * g + b


def reference_block(p, x, H, W, alternate, ws, ss, num_heads, rpi, mask2):
    B, L, C = x.shape
    C2 = C // 2
    nh2 = num_heads // 2
    hd = C2 // nh2
    N = ws * ws
    scale = hd ** -0.5
    shortcut = x
    xn = _ln_ref(x, p['norm1_w'], p['norm1_b'])
    qkv = (xn @ p['qkv_w'] + p['qkv_b']).reshape(B, L, 3, C)
    qkv = qkv.transpose(2, 0, 1, 3).reshape(3 * B, H, W, C)
    if alternate == 0:
        qkv1, qkv2 = qkv[..., :C2], qkv[..., C2:]
    else:
        qkv1, qkv2 = qkv[..., C2:], qkv[..., :C2]
    if ss > 0:
        qkv2 = jnp.roll(qkv2, (-ss, -ss), axis=(1, 2))
    qkv1 = qkv1.reshape(3, B, H, W, C2)
    qkv2 = qkv2.reshape(3, B, H, W, C2)

    def win_qkv(t):
        return [window_partition(t[j], ws).reshape(-1, N, C2) for j in range(3)]

    q1, k1, v1 = win_qkv(qkv1)
    q2, k2, v2 = win_qkv(qkv2)

    def attn(q, k, v, tbl, mask):
        B_ = q.shape[0]
        qh = q.reshape(B_, N, nh2, hd).transpose(0, 2, 1, 3) * scale
        kh = k.reshape(B_, N, nh2, hd).transpose(0, 2, 1, 3)
        vh = v.reshape(B_, N, nh2, hd).transpose(0, 2, 1, 3)
        a = qh @ jnp.swapaxes(kh, -1, -2)
        rpb = tbl[rpi.reshape(-1)].reshape(N, N, nh2).transpose(2, 0, 1)
        a = a + rpb[None]
        if mask is not None:
            nW = mask.shape[0]
            a = (a.reshape(B_ // nW, nW, nh2, N, N) + mask[None, :, None]
                 ).reshape(B_, nh2, N, N)
        a = jax.nn.softmax(a, axis=-1)
        return (a @ vh).transpose(0, 2, 1, 3).reshape(B_, N, C2)

    x1 = attn(q1, k1, v1, p['rpb0'], None)
    x2 = attn(q2, k2, v2, p['rpb1'], mask2 if ss > 0 else None)
    x1 = window_reverse(x1, ws, H, W)
    x2 = window_reverse(x2, ws, H, W)
    if ss > 0:
        x2 = jnp.roll(x2, (ss, ss), axis=(1, 2))
    if alternate == 0:
        xc = jnp.concatenate([x1, x2], axis=-1).reshape(B, L, C)
    else:
        xc = jnp.concatenate([x2, x1], axis=-1).reshape(B, L, C)
    x = shortcut + xc @ p['proj_w'] + p['proj_b']
    x = x + (jax.nn.gelu(_ln_ref(x, p['norm2_w'], p['norm2_b']) @ p['fc1_w']
                         + p['fc1_b'], approximate=False) @ p['fc2_w'] + p['fc2_b'])
    return x


def reference_forward(raw_list, x, H, W, ws, ss, num_heads, rpi, mask2):
    for i, raw in enumerate(raw_list):
        x = reference_block(raw, x, H, W, i % 2, ws, ss, num_heads, rpi, mask2)
    return x


# ----------------------------- Main -----------------------------

if __name__ == "__main__":
    dim = 32
    depth = 2                      # exercises alternate = 0 and 1
    num_heads = 4
    window_size = 4
    shift_size = 2
    B, H, W = 2, 8, 8
    L = H * W

    key = jax.random.PRNGKey(0)
    kx, *kblocks = jax.random.split(key, depth + 1)
    x = jax.random.normal(kx, (B, L, dim), jnp.float32)

    raw_params = [init_block_params(kblocks[i], dim, num_heads, window_size)
                  for i in range(depth)]
    rpi = relative_position_index(window_size)
    prepared = [prepare_block_params(raw_params[i], num_heads, window_size, rpi, i % 2)
                for i in range(depth)]

    # shift mask kept at (nW, N, N); broadcast over batch inside the kernel.
    mask = jnp.asarray(compute_attn_mask_np(H, W, window_size, shift_size))

    fwd = jax.jit(functools.partial(
        basic_layer_forward, H=H, W=W, window_size=window_size,
        shift_size=shift_size, num_heads=num_heads))

    out = jax.block_until_ready(fwd(prepared, x, mask))
    assert out.shape == (B, L, dim)
    assert bool(jnp.all(jnp.isfinite(out)))

    # correctness check vs exact f32 reference (bf16 matmuls + approx reciprocal
    # in the Pallas path => loose tolerance).
    ref = reference_forward(raw_params, x, H, W, window_size, shift_size,
                            num_heads, rpi, mask)
    err = float(jnp.max(jnp.abs(out - ref)))
    assert err < 5e-2, f"max abs error vs reference: {err}"

    print("KERNEL_OK")
</pallas_src>

<mosaic_0001>
module attributes {stable_mosaic.version = 11 : i64} {
  func.func @_ln_qkv_kernel(%arg0: memref<128x32xf32, #tpu.memory_space<vmem>>, %arg1: memref<1x32xf32, #tpu.memory_space<vmem>>, %arg2: memref<1x32xf32, #tpu.memory_space<vmem>>, %arg3: memref<32x96xbf16, #tpu.memory_space<vmem>>, %arg4: memref<1x96xf32, #tpu.memory_space<vmem>>, %arg5: memref<128x96xbf16, #tpu.memory_space<vmem>>) attributes {dimension_semantics = [], scalar_prefetch = 0 : i64, scratch_operands = 0 : i64, tpu.core_type = #tpu.core_type<tc>} {
    %c0 = arith.constant 0 : index
    %c0_0 = arith.constant 0 : index
    %0 = vector.load %arg0[%c0, %c0_0] : memref<128x32xf32, #tpu.memory_space<vmem>>, vector<128x32xf32>
    %c0_1 = arith.constant 0 : index
    %c0_2 = arith.constant 0 : index
    %1 = vector.load %arg1[%c0_1, %c0_2] : memref<1x32xf32, #tpu.memory_space<vmem>>, vector<1x32xf32>
    %c0_3 = arith.constant 0 : index
    %c0_4 = arith.constant 0 : index
    %2 = vector.load %arg2[%c0_3, %c0_4] : memref<1x32xf32, #tpu.memory_space<vmem>>, vector<1x32xf32>
    %cst = arith.constant dense<0.000000e+00> : vector<128xf32>
    %3 = vector.multi_reduction <add>, %0, %cst [1] : vector<128x32xf32> to vector<128xf32>
    %4 = vector.shape_cast %3 : vector<128xf32> to vector<128x1xf32>
    %cst_5 = arith.constant 3.200000e+01 : f32
    %5 = vector.broadcast %cst_5 : f32 to vector<128x1xf32>
    %6 = arith.divf %4, %5 : vector<128x1xf32>
    %7 = vector.broadcast %6 : vector<128x1xf32> to vector<128x32xf32>
    %8 = arith.subf %0, %7 : vector<128x32xf32>
    %9 = arith.mulf %8, %8 : vector<128x32xf32>
    %cst_6 = arith.constant dense<0.000000e+00> : vector<128xf32>
    %10 = vector.multi_reduction <add>, %9, %cst_6 [1] : vector<128x32xf32> to vector<128xf32>
    %11 = vector.shape_cast %10 : vector<128xf32> to vector<128x1xf32>
    %cst_7 = arith.constant 3.200000e+01 : f32
    %12 = vector.broadcast %cst_7 : f32 to vector<128x1xf32>
    %13 = arith.divf %11, %12 : vector<128x1xf32>
    %14 = vector.broadcast %6 : vector<128x1xf32> to vector<128x32xf32>
    %15 = arith.subf %0, %14 : vector<128x32xf32>
    %cst_8 = arith.constant 9.99999974E-6 : f32
    %16 = vector.broadcast %cst_8 : f32 to vector<128x1xf32>
    %17 = arith.addf %13, %16 : vector<128x1xf32>
    %18 = math.rsqrt %17 : vector<128x1xf32>
    %19 = vector.broadcast %18 : vector<128x1xf32> to vector<128x32xf32>
    %20 = arith.mulf %15, %19 : vector<128x32xf32>
    %21 = vector.broadcast %1 : vector<1x32xf32> to vector<128x32xf32>
    %22 = arith.mulf %20, %21 : vector<128x32xf32>
    %23 = vector.broadcast %2 : vector<1x32xf32> to vector<128x32xf32>
    %24 = arith.addf %22, %23 : vector<128x32xf32>
    %25 = arith.truncf %24 : vector<128x32xf32> to vector<128x32xbf16>
    %c0_9 = arith.constant 0 : index
    %c0_10 = arith.constant 0 : index
    %26 = vector.load %arg3[%c0_9, %c0_10] : memref<32x96xbf16, #tpu.memory_space<vmem>>, vector<32x96xbf16>
    %cst_11 = arith.constant dense<0.000000e+00> : vector<128x96xf32>
    %27 = tpu.matmul %25, %26, %cst_11 {dimension_numbers = #tpu.dot_dimension_numbers<[1], [0], [0], [1], [0, 0, 1, 1], [], []>} : vector<128x32xbf16>, vector<32x96xbf16>, vector<128x96xf32> -> vector<128x96xf32>
    %c0_12 = arith.constant 0 : index
    %c0_13 = arith.constant 0 : index
    %28 = vector.load %arg4[%c0_12, %c0_13] : memref<1x96xf32, #tpu.memory_space<vmem>>, vector<1x96xf32>
    %29 = vector.broadcast %28 : vector<1x96xf32> to vector<128x96xf32>
    %30 = arith.addf %27, %29 : vector<128x96xf32>
    %31 = arith.truncf %30 : vector<128x96xf32> to vector<128x96xbf16>
    %c0_14 = arith.constant 0 : index
    %c0_15 = arith.constant 0 : index
    %32 = vector.load %arg5[%c0_14, %c0_15] : memref<128x96xbf16, #tpu.memory_space<vmem>>, vector<128x96xbf16>
    tpu.vector_store %arg5[%c0_14, %c0_15], %31 {strides = array<i32>} : memref<128x96xbf16, #tpu.memory_space<vmem>>, vector<128x96xbf16>,
    return
  }
}

module attributes {stable_mosaic.version = 11 : i64} {
  func.func @_dual_attn_kernel(%arg0: memref<2x3x2x8x16x8xbf16, #tpu.memory_space<vmem>>, %arg1: memref<2x2x16x16xf32, #tpu.memory_space<vmem>>, %arg2: memref<4x16x16xf32, #tpu.memory_space<vmem>>, %arg3: memref<8x16x32xbf16, #tpu.memory_space<vmem>>) attributes {dimension_semantics = [], scalar_prefetch = 0 : i64, scratch_operands = 0 : i64, tpu.core_type = #tpu.core_type<tc>} {
    %c0 = arith.constant 0 : index
    %c0_0 = arith.constant 0 : index
    %c0_1 = arith.constant 0 : index
    %0 = vector.load %arg2[%c0, %c0_0, %c0_1] : memref<4x16x16xf32, #tpu.memory_space<vmem>>, vector<4x16x16xf32>
    %c0_2 = arith.constant 0 : index
    %c0_3 = arith.constant 0 : index
    %c0_4 = arith.constant 0 : index
    %c0_5 = arith.constant 0 : index
    %c0_6 = arith.constant 0 : index
    %c0_7 = arith.constant 0 : index
    %1 = vector.load %arg0[%c0_2, %c0_3, %c0_4, %c0_5, %c0_6, %c0_7] : memref<2x3x2x8x16x8xbf16, #tpu.memory_space<vmem>>, vector<1x1x1x8x16x8xbf16>
    %2 = vector.shape_cast %1 : vector<1x1x1x8x16x8xbf16> to vector<8x16x8xbf16>
    %c0_8 = arith.constant 0 : index
    %c1 = arith.constant 1 : index
    %c0_9 = arith.constant 0 : index
    %c0_10 = arith.constant 0 : index
    %c0_11 = arith.constant 0 : index
    %c0_12 = arith.constant 0 : index
    %3 = vector.load %arg0[%c0_8, %c1, %c0_9, %c0_10, %c0_11, %c0_12] : memref<2x3x2x8x16x8xbf16, #tpu.memory_space<vmem>>, vector<1x1x1x8x16x8xbf16>
    %4 = vector.shape_cast %3 : vector<1x1x1x8x16x8xbf16> to vector<8x16x8xbf16>
    %c0_13 = arith.constant 0 : index
    %c2 = arith.constant 2 : index
    %c0_14 = arith.constant 0 : index
    %c0_15 = arith.constant 0 : index
    %c0_16 = arith.constant 0 : index
    %c0_17 = arith.constant 0 : index
    %5 = vector.load %arg0[%c0_13, %c2, %c0_14, %c0_15, %c0_16, %c0_17] : memref<2x3x2x8x16x8xbf16, #tpu.memory_space<vmem>>, vector<1x1x1x8x16x8xbf16>
    %6 = vector.shape_cast %5 : vector<1x1x1x8x16x8xbf16> to vector<8x16x8xbf16>
    "tpu.trace_start"() <{level = 10 : i32, message = "bqd,bkd->bqk"}> : () -> ()
    %cst = arith.constant dense<0.000000e+00> : vector<8x16x16xf32>
    %7 = tpu.matmul %2, %4, %cst {dimension_numbers = #tpu.dot_dimension_numbers<[2], [2], [1], [1], [0, 0, 0, 1, 1, 1], [0], [0]>} : vector<8x16x8xbf16>, vector<8x16x8xbf16>, vector<8x16x16xf32> -> vector<8x16x16xf32>
    "tpu.trace_stop"() : () -> ()
    %c0_18 = arith.constant 0 : index
    %c0_19 = arith.constant 0 : index
    %c0_20 = arith.constant 0 : index
    %c0_21 = arith.constant 0 : index
    %8 = vector.load %arg1[%c0_18, %c0_19, %c0_20, %c0_21] : memref<2x2x16x16xf32, #tpu.memory_space<vmem>>, vector<1x1x16x16xf32>
    %9 = vector.shape_cast %8 : vector<1x1x16x16xf32> to vector<16x16xf32>
    %10 = vector.shape_cast %9 : vector<16x16xf32> to vector<1x16x16xf32>
    %11 = vector.broadcast %10 : vector<1x16x16xf32> to vector<8x16x16xf32>
    %12 = arith.addf %7, %11 : vector<8x16x16xf32>
    %cst_22 = arith.constant dense<0xFF800000> : vector<8x16xf32>
    %13 = vector.multi_reduction <maximumf>, %12, %cst_22 [2] : vector<8x16x16xf32> to vector<8x16xf32>
    %14 = vector.shape_cast %13 : vector<8x16xf32> to vector<8x16x1xf32>
    %15 = vector.broadcast %14 : vector<8x16x1xf32> to vector<8x16x16xf32>
    %16 = arith.subf %12, %15 : vector<8x16x16xf32>
    %17 = math.exp %16 : vector<8x16x16xf32>
    %cst_23 = arith.constant dense<0.000000e+00> : vector<8x16xf32>
    %18 = vector.multi_reduction <add>, %17, %cst_23 [2] : vector<8x16x16xf32> to vector<8x16xf32>
    %19 = vector.shape_cast %18 : vector<8x16xf32> to vector<8x16x1xf32>
    %20 = tpu.reciprocal %19 {approx = true} : vector<8x16x1xf32> -> vector<8x16x1xf32>
    %21 = vector.broadcast %20 : vector<8x16x1xf32> to vector<8x16x16xf32>
    %22 = arith.mulf %17, %21 : vector<8x16x16xf32>
    %23 = arith.truncf %22 : vector<8x16x16xf32> to vector<8x16x16xbf16>
    "tpu.trace_start"() <{level = 10 : i32, message = "bqk,bkd->bqd"}> : () -> ()
    %cst_24 = arith.constant dense<0.000000e+00> : vector<8x16x8xf32>
    %24 = tpu.matmul %23, %6, %cst_24 {dimension_numbers = #tpu.dot_dimension_numbers<[2], [1], [1], [2], [0, 0, 0, 1, 1, 2], [0], [0]>} : vector<8x16x16xbf16>, vector<8x16x8xbf16>, vector<8x16x8xf32> -> vector<8x16x8xf32>
    "tpu.trace_stop"() : () -> ()
    %c0_25 = arith.constant 0 : index
    %c0_26 = arith.constant 0 : index
    %c1_27 = arith.constant 1 : index
    %c0_28 = arith.constant 0 : index
    %c0_29 = arith.constant 0 : index
    %c0_30 = arith.constant 0 : index
    %25 = vector.load %arg0[%c0_25, %c0_26, %c1_27, %c0_28, %c0_29, %c0_30] : memref<2x3x2x8x16x8xbf16, #tpu.memory_space<vmem>>, vector<1x1x1x8x16x8xbf16>
    %26 = vector.shape_cast %25 : vector<1x1x1x8x16x8xbf16> to vector<8x16x8xbf16>
    %c0_31 = arith.constant 0 : index
    %c1_32 = arith.constant 1 : index
    %c1_33 = arith.constant 1 : index
    %c0_34 = arith.constant 0 : index
    %c0_35 = arith.constant 0 : index
    %c0_36 = arith.constant 0 : index
    %27 = vector.load %arg0[%c0_31, %c1_32, %c1_33, %c0_34, %c0_35, %c0_36] : memref<2x3x2x8x16x8xbf16, #tpu.memory_space<vmem>>, vector<1x1x1x8x16x8xbf16>
    %28 = vector.shape_cast %27 : vector<1x1x1x8x16x8xbf16> to vector<8x16x8xbf16>
    %c0_37 = arith.constant 0 : index
    %c2_38 = arith.constant 2 : index
    %c1_39 = arith.constant 1 : index
    %c0_40 = arith.constant 0 : index
    %c0_41 = arith.constant 0 : index
    %c0_42 = arith.constant 0 : index
    %29 = vector.load %arg0[%c0_37, %c2_38, %c1_39, %c0_40, %c0_41, %c0_42] : memref<2x3x2x8x16x8xbf16, #tpu.memory_space<vmem>>, vector<1x1x1x8x16x8xbf16>
    %30 = vector.shape_cast %29 : vector<1x1x1x8x16x8xbf16> to vector<8x16x8xbf16>
    "tpu.trace_start"() <{level = 10 : i32, message = "bqd,bkd->bqk"}> : () -> ()
    %cst_43 = arith.constant dense<0.000000e+00> : vector<8x16x16xf32>
    %31 = tpu.matmul %26, %28, %cst_43 {dimension_numbers = #tpu.dot_dimension_numbers<[2], [2], [1], [1], [0, 0, 0, 1, 1, 1], [0], [0]>} : vector<8x16x8xbf16>, vector<8x16x8xbf16>, vector<8x16x16xf32> -> vector<8x16x16xf32>
    "tpu.trace_stop"() : () -> ()
    %c0_44 = arith.constant 0 : index
    %c1_45 = arith.constant 1 : index
    %c0_46 = arith.constant 0 : index
    %c0_47 = arith.constant 0 : index
    %32 = vector.load %arg1[%c0_44, %c1_45, %c0_46, %c0_47] : memref<2x2x16x16xf32, #tpu.memory_space<vmem>>, vector<1x1x16x16xf32>
    %33 = vector.shape_cast %32 : vector<1x1x16x16xf32> to vector<16x16xf32>
    %34 = vector.shape_cast %33 : vector<16x16xf32> to vector<1x16x16xf32>
    %35 = vector.broadcast %34 : vector<1x16x16xf32> to vector<8x16x16xf32>
    %36 = arith.addf %31, %35 : vector<8x16x16xf32>
    %cst_48 = arith.constant dense<0xFF800000> : vector<8x16xf32>
    %37 = vector.multi_reduction <maximumf>, %36, %cst_48 [2] : vector<8x16x16xf32> to vector<8x16xf32>
    %38 = vector.shape_cast %37 : vector<8x16xf32> to vector<8x16x1xf32>
    %39 = vector.broadcast %38 : vector<8x16x1xf32> to vector<8x16x16xf32>
    %40 = arith.subf %36, %39 : vector<8x16x16xf32>
    %41 = math.exp %40 : vector<8x16x16xf32>
    %cst_49 = arith.constant dense<0.000000e+00> : vector<8x16xf32>
    %42 = vector.multi_reduction <add>, %41, %cst_49 [2] : vector<8x16x16xf32> to vector<8x16xf32>
    %43 = vector.shape_cast %42 : vector<8x16xf32> to vector<8x16x1xf32>
    %44 = tpu.reciprocal %43 {approx = true} : vector<8x16x1xf32> -> vector<8x16x1xf32>
    %45 = vector.broadcast %44 : vector<8x16x1xf32> to vector<8x16x16xf32>
    %46 = arith.mulf %41, %45 : vector<8x16x16xf32>
    %47 = arith.truncf %46 : vector<8x16x16xf32> to vector<8x16x16xbf16>
    "tpu.trace_start"() <{level = 10 : i32, message = "bqk,bkd->bqd"}> : () -> ()
    %cst_50 = arith.constant dense<0.000000e+00> : vector<8x16x8xf32>
    %48 = tpu.matmul %47, %30, %cst_50 {dimension_numbers = #tpu.dot_dimension_numbers<[2], [1], [1], [2], [0, 0, 0, 1, 1, 2], [0], [0]>} : vector<8x16x16xbf16>, vector<8x16x8xbf16>, vector<8x16x8xf32> -> vector<8x16x8xf32>
    "tpu.trace_stop"() : () -> ()
    %c1_51 = arith.constant 1 : index
    %c0_52 = arith.constant 0 : index
    %c0_53 = arith.constant 0 : index
    %c0_54 = arith.constant 0 : index
    %c0_55 = arith.constant 0 : index
    %c0_56 = arith.constant 0 : index
    %49 = vector.load %arg0[%c1_51, %c0_52, %c0_53, %c0_54, %c0_55, %c0_56] : memref<2x3x2x8x16x8xbf16, #tpu.memory_space<vmem>>, vector<1x1x1x8x16x8xbf16>
    %50 = vector.shape_cast %49 : vector<1x1x1x8x16x8xbf16> to vector<8x16x8xbf16>
    %c1_57 = arith.constant 1 : index
    %c1_58 = arith.constant 1 : index
    %c0_59 = arith.constant 0 : index
    %c0_60 = arith.constant 0 : index
    %c0_61 = arith.constant 0 : index
    %c0_62 = arith.constant 0 : index
    %51 = vector.load %arg0[%c1_57, %c1_58, %c0_59, %c0_60, %c0_61, %c0_62] : memref<2x3x2x8x16x8xbf16, #tpu.memory_space<vmem>>, vector<1x1x1x8x16x8xbf16>
    %52 = vector.shape_cast %51 : vector<1x1x1x8x16x8xbf16> to vector<8x16x8xbf16>
    %c1_63 = arith.constant 1 : index
    %c2_64 = arith.constant 2 : index
    %c0_65 = arith.constant 0 : index
    %c0_66 = arith.constant 0 : index
    %c0_67 = arith.constant 0 : index
    %c0_68 = arith.constant 0 : index
    %53 = vector.load %arg0[%c1_63, %c2_64, %c0_65, %c0_66, %c0_67, %c0_68] : memref<2x3x2x8x16x8xbf16, #tpu.memory_space<vmem>>, vector<1x1x1x8x16x8xbf16>
    %54 = vector.shape_cast %53 : vector<1x1x1x8x16x8xbf16> to vector<8x16x8xbf16>
    "tpu.trace_start"() <{level = 10 : i32, message = "bqd,bkd->bqk"}> : () -> ()
    %cst_69 = arith.constant dense<0.000000e+00> : vector<8x16x16xf32>
    %55 = tpu.matmul %50, %52, %cst_69 {dimension_numbers = #tpu.dot_dimension_numbers<[2], [2], [1], [1], [0, 0, 0, 1, 1, 1], [0], [0]>} : vector<8x16x8xbf16>, vector<8x16x8xbf16>, vector<8x16x16xf32> -> vector<8x16x16xf32>
    "tpu.trace_stop"() : () -> ()
    %c1_70 = arith.constant 1 : index
    %c0_71 = arith.constant 0 : index
    %c0_72 = arith.constant 0 : index
    %c0_73 = arith.constant 0 : index
    %56 = vector.load %arg1[%c1_70, %c0_71, %c0_72, %c0_73] : memref<2x2x16x16xf32, #tpu.memory_space<vmem>>, vector<1x1x16x16xf32>
    %57 = vector.shape_cast %56 : vector<1x1x16x16xf32> to vector<16x16xf32>
    %58 = vector.shape_cast %57 : vector<16x16xf32> to vector<1x16x16xf32>
    %59 = vector.broadcast %58 : vector<1x16x16xf32> to vector<8x16x16xf32>
    %60 = arith.addf %55, %59 : vector<8x16x16xf32>
    %61 = vector.shape_cast %60 : vector<8x16x16xf32> to vector<2x4x16x16xf32>
    %62 = vector.shape_cast %0 : vector<4x16x16xf32> to vector<1x4x16x16xf32>
    %63 = vector.broadcast %62 : vector<1x4x16x16xf32> to vector<2x4x16x16xf32>
    %64 = arith.addf %61, %63 : vector<2x4x16x16xf32>
    %65 = vector.shape_cast %64 : vector<2x4x16x16xf32> to vector<8x16x16xf32>
    %cst_74 = arith.constant dense<0xFF800000> : vector<8x16xf32>
    %66 = vector.multi_reduction <maximumf>, %65, %cst_74 [2] : vector<8x16x16xf32> to vector<8x16xf32>
    %67 = vector.shape_cast %66 : vector<8x16xf32> to vector<8x16x1xf32>
    %68 = vector.broadcast %67 : vector<8x16x1xf32> to vector<8x16x16xf32>
    %69 = arith.subf %65, %68 : vector<8x16x16xf32>
    %70 = math.exp %69 : vector<8x16x16xf32>
    %cst_75 = arith.constant dense<0.000000e+00> : vector<8x16xf32>
    %71 = vector.multi_reduction <add>, %70, %cst_75 [2] : vector<8x16x16xf32> to vector<8x16xf32>
    %72 = vector.shape_cast %71 : vector<8x16xf32> to vector<8x16x1xf32>
    %73 = tpu.reciprocal %72 {approx = true} : vector<8x16x1xf32> -> vector<8x16x1xf32>
    %74 = vector.broadcast %73 : vector<8x16x1xf32> to vector<8x16x16xf32>
    %75 = arith.mulf %70, %74 : vector<8x16x16xf32>
    %76 = arith.truncf %75 : vector<8x16x16xf32> to vector<8x16x16xbf16>
    "tpu.trace_start"() <{level = 10 : i32, message = "bqk,bkd->bqd"}> : () -> ()
    %cst_76 = arith.constant dense<0.000000e+00> : vector<8x16x8xf32>
    %77 = tpu.matmul %76, %54, %cst_76 {dimension_numbers = #tpu.dot_dimension_numbers<[2], [1], [1], [2], [0, 0, 0, 1, 1, 2], [0], [0]>} : vector<8x16x16xbf16>, vector<8x16x8xbf16>, vector<8x16x8xf32> -> vector<8x16x8xf32>
    "tpu.trace_stop"() : () -> ()
    %c1_77 = arith.constant 1 : index
    %c0_78 = arith.constant 0 : index
    %c1_79 = arith.constant 1 : index
    %c0_80 = arith.constant 0 : index
    %c0_81 = arith.constant 0 : index
    %c0_82 = arith.constant 0 : index
    %78 = vector.load %arg0[%c1_77, %c0_78, %c1_79, %c0_80, %c0_81, %c0_82] : memref<2x3x2x8x16x8xbf16, #tpu.memory_space<vmem>>, vector<1x1x1x8x16x8xbf16>
    %79 = vector.shape_cast %78 : vector<1x1x1x8x16x8xbf16> to vector<8x16x8xbf16>
    %c1_83 = arith.constant 1 : index
    %c1_84 = arith.constant 1 : index
    %c1_85 = arith.constant 1 : index
    %c0_86 = arith.constant 0 : index
    %c0_87 = arith.constant 0 : index
    %c0_88 = arith.constant 0 : index
    %80 = vector.load %arg0[%c1_83, %c1_84, %c1_85, %c0_86, %c0_87, %c0_88] : memref<2x3x2x8x16x8xbf16, #tpu.memory_space<vmem>>, vector<1x1x1x8x16x8xbf16>
    %81 = vector.shape_cast %80 : vector<1x1x1x8x16x8xbf16> to vector<8x16x8xbf16>
    %c1_89 = arith.constant 1 : index
    %c2_90 = arith.constant 2 : index
    %c1_91 = arith.constant 1 : index
    %c0_92 = arith.constant 0 : index
    %c0_93 = arith.constant 0 : index
    %c0_94 = arith.constant 0 : index
    %82 = vector.load %arg0[%c1_89, %c2_90, %c1_91, %c0_92, %c0_93, %c0_94] : memref<2x3x2x8x16x8xbf16, #tpu.memory_space<vmem>>, vector<1x1x1x8x16x8xbf16>
    %83 = vector.shape_cast %82 : vector<1x1x1x8x16x8xbf16> to vector<8x16x8xbf16>
    "tpu.trace_start"() <{level = 10 : i32, message = "bqd,bkd->bqk"}> : () -> ()
    %cst_95 = arith.constant dense<0.000000e+00> : vector<8x16x16xf32>
    %84 = tpu.matmul %79, %81, %cst_95 {dimension_numbers = #tpu.dot_dimension_numbers<[2], [2], [1], [1], [0, 0, 0, 1, 1, 1], [0], [0]>} : vector<8x16x8xbf16>, vector<8x16x8xbf16>, vector<8x16x16xf32> -> vector<8x16x16xf32>
    "tpu.trace_stop"() : () -> ()
    %c1_96 = arith.constant 1 : index
    %c1_97 = arith.constant 1 : index
    %c0_98 = arith.constant 0 : index
    %c0_99 = arith.constant 0 : index
    %85 = vector.load %arg1[%c1_96, %c1_97, %c0_98, %c0_99] : memref<2x2x16x16xf32, #tpu.memory_space<vmem>>, vector<1x1x16x16xf32>
    %86 = vector.shape_cast %85 : vector<1x1x16x16xf32> to vector<16x16xf32>
    %87 = vector.shape_cast %86 : vector<16x16xf32> to vector<1x16x16xf32>
    %88 = vector.broadcast %87 : vector<1x16x16xf32> to vector<8x16x16xf32>
    %89 = arith.addf %84, %88 : vector<8x16x16xf32>
    %90 = vector.shape_cast %89 : vector<8x16x16xf32> to vector<2x4x16x16xf32>
    %91 = vector.shape_cast %0 : vector<4x16x16xf32> to vector<1x4x16x16xf32>
    %92 = vector.broadcast %91 : vector<1x4x16x16xf32> to vector<2x4x16x16xf32>
    %93 = arith.addf %90, %92 : vector<2x4x16x16xf32>
    %94 = vector.shape_cast %93 : vector<2x4x16x16xf32> to vector<8x16x16xf32>
    %cst_100 = arith.constant dense<0xFF800000> : vector<8x16xf32>
    %95 = vector.multi_reduction <maximumf>, %94, %cst_100 [2] : vector<8x16x16xf32> to vector<8x16xf32>
    %96 = vector.shape_cast %95 : vector<8x16xf32> to vector<8x16x1xf32>
    %97 = vector.broadcast %96 : vector<8x16x1xf32> to vector<8x16x16xf32>
    %98 = arith.subf %94, %97 : vector<8x16x16xf32>
    %99 = math.exp %98 : vector<8x16x16xf32>
    %cst_101 = arith.constant dense<0.000000e+00> : vector<8x16xf32>
    %100 = vector.multi_reduction <add>, %99, %cst_101 [2] : vector<8x16x16xf32> to vector<8x16xf32>
    %101 = vector.shape_cast %100 : vector<8x16xf32> to vector<8x16x1xf32>
    %102 = tpu.reciprocal %101 {approx = true} : vector<8x16x1xf32> -> vector<8x16x1xf32>
    %103 = vector.broadcast %102 : vector<8x16x1xf32> to vector<8x16x16xf32>
    %104 = arith.mulf %99, %103 : vector<8x16x16xf32>
    %105 = arith.truncf %104 : vector<8x16x16xf32> to vector<8x16x16xbf16>
    "tpu.trace_start"() <{level = 10 : i32, message = "bqk,bkd->bqd"}> : () -> ()
    %cst_102 = arith.constant dense<0.000000e+00> : vector<8x16x8xf32>
    %106 = tpu.matmul %105, %83, %cst_102 {dimension_numbers = #tpu.dot_dimension_numbers<[2], [1], [1], [2], [0, 0, 0, 1, 1, 2], [0], [0]>} : vector<8x16x16xbf16>, vector<8x16x8xbf16>, vector<8x16x8xf32> -> vector<8x16x8xf32>
    "tpu.trace_stop"() : () -> ()
    %107 = tpu.concatenate %24, %48, %77, %106 in 2 : vector<8x16x8xf32>, vector<8x16x8xf32>, vector<8x16x8xf32>, vector<8x16x8xf32> -> vector<8x16x32xf32>
    %108 = arith.truncf %107 : vector<8x16x32xf32> to vector<8x16x32xbf16>
    %c0_103 = arith.constant 0 : index
    %c0_104 = arith.constant 0 : index
    %c0_105 = arith.constant 0 : index
    %109 = vector.load %arg3[%c0_103, %c0_104, %c0_105] : memref<8x16x32xbf16, #tpu.memory_space<vmem>>, vector<8x16x32xbf16>
    tpu.vector_store %arg3[%c0_103, %c0_104, %c0_105], %108 {strides = array<i32>} : memref<8x16x32xbf16, #tpu.memory_space<vmem>>, vector<8x16x32xbf16>,
    return
  }
}

module attributes {stable_mosaic.version = 11 : i64} {
  func.func @_proj_mlp_kernel(%arg0: memref<128x32xbf16, #tpu.memory_space<vmem>>, %arg1: memref<128x32xf32, #tpu.memory_space<vmem>>, %arg2: memref<32x32xbf16, #tpu.memory_space<vmem>>, %arg3: memref<1x32xf32, #tpu.memory_space<vmem>>, %arg4: memref<1x32xf32, #tpu.memory_space<vmem>>, %arg5: memref<1x32xf32, #tpu.memory_space<vmem>>, %arg6: memref<32x128xbf16, #tpu.memory_space<vmem>>, %arg7: memref<1x128xf32, #tpu.memory_space<vmem>>, %arg8: memref<128x32xbf16, #tpu.memory_space<vmem>>, %arg9: memref<1x32xf32, #tpu.memory_space<vmem>>, %arg10: memref<128x32xf32, #tpu.memory_space<vmem>>) attributes {dimension_semantics = [], scalar_prefetch = 0 : i64, scratch_operands = 0 : i64, tpu.core_type = #tpu.core_type<tc>} {
    %c0 = arith.constant 0 : index
    %c0_0 = arith.constant 0 : index
    %0 = vector.load %arg0[%c0, %c0_0] : memref<128x32xbf16, #tpu.memory_space<vmem>>, vector<128x32xbf16>
    %c0_1 = arith.constant 0 : index
    %c0_2 = arith.constant 0 : index
    %1 = vector.load %arg2[%c0_1, %c0_2] : memref<32x32xbf16, #tpu.memory_space<vmem>>, vector<32x32xbf16>
    %cst = arith.constant dense<0.000000e+00> : vector<128x32xf32>
    %2 = tpu.matmul %0, %1, %cst {dimension_numbers = #tpu.dot_dimension_numbers<[1], [0], [0], [1], [0, 0, 1, 1], [], []>} : vector<128x32xbf16>, vector<32x32xbf16>, vector<128x32xf32> -> vector<128x32xf32>
    %c0_3 = arith.constant 0 : index
    %c0_4 = arith.constant 0 : index
    %3 = vector.load %arg3[%c0_3, %c0_4] : memref<1x32xf32, #tpu.memory_space<vmem>>, vector<1x32xf32>
    %4 = vector.broadcast %3 : vector<1x32xf32> to vector<128x32xf32>
    %5 = arith.addf %2, %4 : vector<128x32xf32>
    %c0_5 = arith.constant 0 : index
    %c0_6 = arith.constant 0 : index
    %6 = vector.load %arg1[%c0_5, %c0_6] : memref<128x32xf32, #tpu.memory_space<vmem>>, vector<128x32xf32>
    %7 = arith.addf %6, %5 : vector<128x32xf32>
    %c0_7 = arith.constant 0 : index
    %c0_8 = arith.constant 0 : index
    %8 = vector.load %arg4[%c0_7, %c0_8] : memref<1x32xf32, #tpu.memory_space<vmem>>, vector<1x32xf32>
    %c0_9 = arith.constant 0 : index
    %c0_10 = arith.constant 0 : index
    %9 = vector.load %arg5[%c0_9, %c0_10] : memref<1x32xf32, #tpu.memory_space<vmem>>, vector<1x32xf32>
    %cst_11 = arith.constant dense<0.000000e+00> : vector<128xf32>
    %10 = vector.multi_reduction <add>, %7, %cst_11 [1] : vector<128x32xf32> to vector<128xf32>
    %11 = vector.shape_cast %10 : vector<128xf32> to vector<128x1xf32>
    %cst_12 = arith.constant 3.200000e+01 : f32
    %12 = vector.broadcast %cst_12 : f32 to vector<128x1xf32>
    %13 = arith.divf %11, %12 : vector<128x1xf32>
    %14 = vector.broadcast %13 : vector<128x1xf32> to vector<128x32xf32>
    %15 = arith.subf %7, %14 : vector<128x32xf32>
    %16 = arith.mulf %15, %15 : vector<128x32xf32>
    %cst_13 = arith.constant dense<0.000000e+00> : vector<128xf32>
    %17 = vector.multi_reduction <add>, %16, %cst_13 [1] : vector<128x32xf32> to vector<128xf32>
    %18 = vector.shape_cast %17 : vector<128xf32> to vector<128x1xf32>
    %cst_14 = arith.constant 3.200000e+01 : f32
    %19 = vector.broadcast %cst_14 : f32 to vector<128x1xf32>
    %20 = arith.divf %18, %19 : vector<128x1xf32>
    %21 = vector.broadcast %13 : vector<128x1xf32> to vector<128x32xf32>
    %22 = arith.subf %7, %21 : vector<128x32xf32>
    %cst_15 = arith.constant 9.99999974E-6 : f32
    %23 = vector.broadcast %cst_15 : f32 to vector<128x1xf32>
    %24 = arith.addf %20, %23 : vector<128x1xf32>
    %25 = math.rsqrt %24 : vector<128x1xf32>
    %26 = vector.broadcast %25 : vector<128x1xf32> to vector<128x32xf32>
    %27 = arith.mulf %22, %26 : vector<128x32xf32>
    %28 = vector.broadcast %8 : vector<1x32xf32> to vector<128x32xf32>
    %29 = arith.mulf %27, %28 : vector<128x32xf32>
    %30 = vector.broadcast %9 : vector<1x32xf32> to vector<128x32xf32>
    %31 = arith.addf %29, %30 : vector<128x32xf32>
    %32 = arith.truncf %31 : vector<128x32xf32> to vector<128x32xbf16>
    %c0_16 = arith.constant 0 : index
    %c0_17 = arith.constant 0 : index
    %33 = vector.load %arg6[%c0_16, %c0_17] : memref<32x128xbf16, #tpu.memory_space<vmem>>, vector<32x128xbf16>
    %cst_18 = arith.constant dense<0.000000e+00> : vector<128x128xf32>
    %34 = tpu.matmul %32, %33, %cst_18 {dimension_numbers = #tpu.dot_dimension_numbers<[1], [0], [0], [1], [0, 0, 1, 1], [], []>} : vector<128x32xbf16>, vector<32x128xbf16>, vector<128x128xf32> -> vector<128x128xf32>
    %c0_19 = arith.constant 0 : index
    %c0_20 = arith.constant 0 : index
    %35 = vector.load %arg7[%c0_19, %c0_20] : memref<1x128xf32, #tpu.memory_space<vmem>>, vector<1x128xf32>
    %36 = vector.broadcast %35 : vector<1x128xf32> to vector<128x128xf32>
    %37 = arith.addf %34, %36 : vector<128x128xf32>
    %cst_21 = arith.constant 5.000000e-01 : f32
    %38 = vector.broadcast %cst_21 : f32 to vector<128x128xf32>
    %39 = arith.mulf %38, %37 : vector<128x128xf32>
    %cst_22 = arith.constant 0.707106769 : f32
    %40 = vector.broadcast %cst_22 : f32 to vector<128x128xf32>
    %41 = arith.mulf %37, %40 : vector<128x128xf32>
    %42 = math.absf %41 : vector<128x128xf32>
    %cst_23 = arith.constant 0.327591091 : f32
    %43 = vector.broadcast %cst_23 : f32 to vector<128x128xf32>
    %44 = arith.mulf %43, %42 : vector<128x128xf32>
    %cst_24 = arith.constant 1.000000e+00 : f32
    %45 = vector.broadcast %cst_24 : f32 to vector<128x128xf32>
    %46 = arith.addf %45, %44 : vector<128x128xf32>
    %cst_25 = arith.constant 1.000000e+00 : f32
    %47 = vector.broadcast %cst_25 : f32 to vector<128x128xf32>
    %48 = arith.divf %47, %46 : vector<128x128xf32>
    %cst_26 = arith.constant 1.06140542 : f32
    %49 = vector.broadcast %cst_26 : f32 to vector<128x128xf32>
    %50 = arith.mulf %49, %48 : vector<128x128xf32>
    %cst_27 = arith.constant -1.45315206 : f32
    %51 = vector.broadcast %cst_27 : f32 to vector<128x128xf32>
    %52 = arith.addf %50, %51 : vector<128x128xf32>
    %53 = arith.mulf %52, %48 : vector<128x128xf32>
    %cst_28 = arith.constant 1.42141378 : f32
    %54 = vector.broadcast %cst_28 : f32 to vector<128x128xf32>
    %55 = arith.addf %53, %54 : vector<128x128xf32>
    %56 = arith.mulf %55, %48 : vector<128x128xf32>
    %cst_29 = arith.constant -0.284496725 : f32
    %57 = vector.broadcast %cst_29 : f32 to vector<128x128xf32>
    %58 = arith.addf %56, %57 : vector<128x128xf32>
    %59 = arith.mulf %58, %48 : vector<128x128xf32>
    %cst_30 = arith.constant 0.254829586 : f32
    %60 = vector.broadcast %cst_30 : f32 to vector<128x128xf32>
    %61 = arith.addf %59, %60 : vector<128x128xf32>
    %62 = arith.mulf %61, %48 : vector<128x128xf32>
    %cst_31 = arith.constant 0.000000e+00 : f32
    %63 = vector.broadcast %cst_31 : f32 to vector<128x128xf32>
    %64 = arith.subf %63, %42 : vector<128x128xf32>
    %65 = arith.mulf %64, %42 : vector<128x128xf32>
    %66 = math.exp %65 : vector<128x128xf32>
    %67 = arith.mulf %62, %66 : vector<128x128xf32>
    %cst_32 = arith.constant 1.000000e+00 : f32
    %68 = vector.broadcast %cst_32 : f32 to vector<128x128xf32>
    %69 = arith.subf %68, %67 : vector<128x128xf32>
    %cst_33 = arith.constant 0.000000e+00 : f32
    %70 = vector.broadcast %cst_33 : f32 to vector<128x128xf32>
    %71 = arith.cmpf oge, %41, %70 : vector<128x128xf32>
    %cst_34 = arith.constant 0.000000e+00 : f32
    %72 = vector.broadcast %cst_34 : f32 to vector<128x128xf32>
    %73 = arith.subf %72, %69 : vector<128x128xf32>
    %74 = arith.select %71, %69, %73 : vector<128x128xi1>, vector<128x128xf32>
    %cst_35 = arith.constant 1.000000e+00 : f32
    %75 = vector.broadcast %cst_35 : f32 to vector<128x128xf32>
    %76 = arith.addf %75, %74 : vector<128x128xf32>
    %77 = arith.mulf %39, %76 : vector<128x128xf32>
    %78 = arith.truncf %77 : vector<128x128xf32> to vector<128x128xbf16>
    %c0_36 = arith.constant 0 : index
    %c0_37 = arith.constant 0 : index
    %79 = vector.load %arg8[%c0_36, %c0_37] : memref<128x32xbf16, #tpu.memory_space<vmem>>, vector<128x32xbf16>
    %cst_38 = arith.constant dense<0.000000e+00> : vector<128x32xf32>
    %80 = tpu.matmul %78, %79, %cst_38 {dimension_numbers = #tpu.dot_dimension_numbers<[1], [0], [0], [1], [0, 0, 1, 1], [], []>} : vector<128x128xbf16>, vector<128x32xbf16>, vector<128x32xf32> -> vector<128x32xf32>
    %c0_39 = arith.constant 0 : index
    %c0_40 = arith.constant 0 : index
    %81 = vector.load %arg9[%c0_39, %c0_40] : memref<1x32xf32, #tpu.memory_space<vmem>>, vector<1x32xf32>
    %82 = vector.broadcast %81 : vector<1x32xf32> to vector<128x32xf32>
    %83 = arith.addf %80, %82 : vector<128x32xf32>
    %84 = arith.addf %7, %83 : vector<128x32xf32>
    %c0_41 = arith.constant 0 : index
    %c0_42 = arith.constant 0 : index
    %85 = vector.load %arg10[%c0_41, %c0_42] : memref<128x32xf32, #tpu.memory_space<vmem>>, vector<128x32xf32>
    tpu.vector_store %arg10[%c0_41, %c0_42], %84 {strides = array<i32>} : memref<128x32xf32, #tpu.memory_space<vmem>>, vector<128x32xf32>,
    return
  }
}

</mosaic_0001>

<llo_original>
// kernel: basic_layer_forward.6
$region0: #{basic_layer_forward.6}
  #allocation0 [shape = 'u32[]', space=smem, size = 0x4, offset = 0x4, fixed_abs, tag = 'smem constant byte address 0x4 - core index']
  #allocation1 [shape = 'u32[144,128]{1,0:T(1,128)}', space=vmem, size = 0x12000, scoped, tag = 'internal scratch']
  %s0 = inlined_call_operand.vmem [shape: f32[128,32], index: 0, kind: input, shape index: {}]
  %s1 = inlined_call_operand.vmem [shape: f32[1,32], index: 1, kind: input, shape index: {}]
  %s2 = inlined_call_operand.vmem [shape: f32[1,32], index: 2, kind: input, shape index: {}]
  %s3 = inlined_call_operand.vmem [shape: bf16[32,96], index: 3, kind: input, shape index: {}]
  %s4 = inlined_call_operand.vmem [shape: f32[1,96], index: 4, kind: input, shape index: {}]
  %s5 = inlined_call_operand.vmem [shape: bf16[128,96], index: 5, kind: output, shape index: {}]
  %s6 = sld [smem:[#allocation0]]
  $region30: #{basic_layer_forward.6} parent=0
    _
  %s8 = ssub.s32 1, %s6
  %s9 = scalar_select 0, %s8, %s6
  // Predicated region
  $region2: #{basic_layer_forward.6} parent=0 // pred_check
    _
  $region3: #{basic_layer_forward.6} parent=0 // pred_check_branch
    %11 = sbr.rel (0) target = $region5
  $region4: #{basic_layer_forward.6} parent=0 // pred_region
    _
  $region5: #{basic_layer_forward.6} parent=0 // pred_fallthru
    _
  // Predicated region
  $region6: #{basic_layer_forward.6} parent=0 // pred_check
    _
  $region7: #{basic_layer_forward.6} parent=0 // pred_check_branch
    %13 = sbr.rel (0) target = $region9
  $region8: #{basic_layer_forward.6} parent=0 // pred_region
    _
  $region9: #{basic_layer_forward.6} parent=0 // pred_fallthru
    _
  // Predicated region
  $region10: #{basic_layer_forward.6} parent=0 // pred_check
    _
  $region11: #{basic_layer_forward.6} parent=0 // pred_check_branch
    %15 = sbr.rel (0) target = $region13
  $region12: #{basic_layer_forward.6} parent=0 // pred_region
    _
  $region13: #{basic_layer_forward.6} parent=0 // pred_fallthru
    _
  // Predicated region
  $region14: #{basic_layer_forward.6} parent=0 // pred_check
    _
  $region15: #{basic_layer_forward.6} parent=0 // pred_check_branch
    %17 = sbr.rel (0) target = $region17
  $region16: #{basic_layer_forward.6} parent=0 // pred_region
    _
  $region17: #{basic_layer_forward.6} parent=0 // pred_fallthru
    _
  // Predicated region
  $region18: #{basic_layer_forward.6} parent=0 // pred_check
    _
  $region19: #{basic_layer_forward.6} parent=0 // pred_check_branch
    %19 = sbr.rel (0) target = $region21
  $region20: #{basic_layer_forward.6} parent=0 // pred_region
    _
  $region21: #{basic_layer_forward.6} parent=0 // pred_fallthru
    _
  %v21 = vld [vmem:[%s0] sm:$0xff]
  %v22 = vld [vmem:[%s0 + $0x8] sm:$0xff]
  %v23 = vld [vmem:[%s0 + $0x10] sm:$0xff]
  %v24 = vld [vmem:[%s0 + $0x18] sm:$0xff]
  %v25 = vld [vmem:[%s0 + $0x20] sm:$0xff]
  %v26 = vld [vmem:[%s0 + $0x28] sm:$0xff]
  %v27 = vld [vmem:[%s0 + $0x30] sm:$0xff]
  %v28 = vld [vmem:[%s0 + $0x38] sm:$0xff]
  %v29 = vld [vmem:[%s0 + $0x40] sm:$0xff]
  %v30 = vld [vmem:[%s0 + $0x48] sm:$0xff]
  %v31 = vld [vmem:[%s0 + $0x50] sm:$0xff]
  %v32 = vld [vmem:[%s0 + $0x58] sm:$0xff]
  %v33 = vld [vmem:[%s0 + $0x60] sm:$0xff]
  %v34 = vld [vmem:[%s0 + $0x68] sm:$0xff]
  %v35 = vld [vmem:[%s0 + $0x70] sm:$0xff]
  %v36 = vld [vmem:[%s0 + $0x78] sm:$0xff]
  %v37 = vld [vmem:[%s1] sm:$0x1]
  %v38 = vld [vmem:[%s2] sm:$0x1]
  %vm39 = vcmask 261120
  %v40 = vsel %vm39, %v21, 0.0
  %41 = vadd.xlane.f32.xlu0 %v40
  %v42 = vpop.xlane.xlu0 %41
  %v43 = vsel %vm39, %v22, 0.0
  %44 = vadd.xlane.f32.xlu0 %v43
  %v45 = vpop.xlane.xlu0 %44
  %v46 = vsel %vm39, %v23, 0.0
  %47 = vadd.xlane.f32.xlu0 %v46
  %v48 = vpop.xlane.xlu0 %47
  %v49 = vsel %vm39, %v24, 0.0
  %50 = vadd.xlane.f32.xlu0 %v49
  %v51 = vpop.xlane.xlu0 %50
  %v52 = vsel %vm39, %v25, 0.0
  %53 = vadd.xlane.f32.xlu0 %v52
  %v54 = vpop.xlane.xlu0 %53
  %v55 = vsel %vm39, %v26, 0.0
  %56 = vadd.xlane.f32.xlu0 %v55
  %v57 = vpop.xlane.xlu0 %56
  %v58 = vsel %vm39, %v27, 0.0
  %59 = vadd.xlane.f32.xlu0 %v58
  %v60 = vpop.xlane.xlu0 %59
  %v61 = vsel %vm39, %v28, 0.0
  %62 = vadd.xlane.f32.xlu0 %v61
  %v63 = vpop.xlane.xlu0 %62
  %v64 = vsel %vm39, %v29, 0.0
  %65 = vadd.xlane.f32.xlu0 %v64
  %v66 = vpop.xlane.xlu0 %65
  %v67 = vsel %vm39, %v30, 0.0
  %68 = vadd.xlane.f32.xlu0 %v67
  %v69 = vpop.xlane.xlu0 %68
  %v70 = vsel %vm39, %v31, 0.0
  %71 = vadd.xlane.f32.xlu0 %v70
  %v72 = vpop.xlane.xlu0 %71
  %v73 = vsel %vm39, %v32, 0.0
  %74 = vadd.xlane.f32.xlu0 %v73
  %v75 = vpop.xlane.xlu0 %74
  %v76 = vsel %vm39, %v33, 0.0
  %77 = vadd.xlane.f32.xlu0 %v76
  %v78 = vpop.xlane.xlu0 %77
  %v79 = vsel %vm39, %v34, 0.0
  %80 = vadd.xlane.f32.xlu0 %v79
  %v81 = vpop.xlane.xlu0 %80
  %v82 = vsel %vm39, %v35, 0.0
  %83 = vadd.xlane.f32.xlu0 %v82
  %v84 = vpop.xlane.xlu0 %83
  %v85 = vsel %vm39, %v36, 0.0
  %86 = vadd.xlane.f32.xlu0 %v85
  %v87 = vpop.xlane.xlu0 %86
  %v88 = vrcp.pop 32.0
  %v89 = vmul.f32 %v42, %v88
  %v90 = vmul.f32 %v45, %v88
  %v91 = vmul.f32 %v48, %v88
  %v92 = vmul.f32 %v51, %v88
  %v93 = vmul.f32 %v54, %v88
  %v94 = vmul.f32 %v57, %v88
  %v95 = vmul.f32 %v60, %v88
  %v96 = vmul.f32 %v63, %v88
  %v97 = vmul.f32 %v66, %v88
  %v98 = vmul.f32 %v69, %v88
  %v99 = vmul.f32 %v72, %v88
  %v100 = vmul.f32 %v75, %v88
  %v101 = vmul.f32 %v78, %v88
  %v102 = vmul.f32 %v81, %v88
  %v103 = vmul.f32 %v84, %v88
  %v104 = vmul.f32 %v87, %v88
  %v105 = vsub.f32 %v21, %v89
  %v106 = vsub.f32 %v22, %v90
  %v107 = vsub.f32 %v23, %v91
  %v108 = vsub.f32 %v24, %v92
  %v109 = vsub.f32 %v25, %v93
  %v110 = vsub.f32 %v26, %v94
  %v111 = vsub.f32 %v27, %v95
  %v112 = vsub.f32 %v28, %v96
  %v113 = vsub.f32 %v29, %v97
  %v114 = vsub.f32 %v30, %v98
  %v115 = vsub.f32 %v31, %v99
  %v116 = vsub.f32 %v32, %v100
  %v117 = vsub.f32 %v33, %v101
  %v118 = vsub.f32 %v34, %v102
  %v119 = vsub.f32 %v35, %v103
  %v120 = vsub.f32 %v36, %v104
  %v121 = vmul.f32 %v105, %v105
  %v122 = vmul.f32 %v106, %v106
  %v123 = vmul.f32 %v107, %v107
  %v124 = vmul.f32 %v108, %v108
  %v125 = vmul.f32 %v109, %v109
  %v126 = vmul.f32 %v110, %v110
  %v127 = vmul.f32 %v111, %v111
  %v128 = vmul.f32 %v112, %v112
  %v129 = vmul.f32 %v113, %v113
  %v130 = vmul.f32 %v114, %v114
  %v131 = vmul.f32 %v115, %v115
  %v132 = vmul.f32 %v116, %v116
  %v133 = vmul.f32 %v117, %v117
  %v134 = vmul.f32 %v118, %v118
  %v135 = vmul.f32 %v119, %v119
  %v136 = vmul.f32 %v120, %v120
  %v137 = vsel %vm39, %v121, 0.0
  %138 = vadd.xlane.f32.xlu0 %v137
  %v139 = vpop.xlane.xlu0 %138
  %v140 = vsel %vm39, %v122, 0.0
  %141 = vadd.xlane.f32.xlu0 %v140
  %v142 = vpop.xlane.xlu0 %141
  %v143 = vsel %vm39, %v123, 0.0
  %144 = vadd.xlane.f32.xlu0 %v143
  %v145 = vpop.xlane.xlu0 %144
  %v146 = vsel %vm39, %v124, 0.0
  %147 = vadd.xlane.f32.xlu0 %v146
  %v148 = vpop.xlane.xlu0 %147
  %v149 = vsel %vm39, %v125, 0.0
  %150 = vadd.xlane.f32.xlu0 %v149
  %v151 = vpop.xlane.xlu0 %150
  %v152 = vsel %vm39, %v126, 0.0
  %153 = vadd.xlane.f32.xlu0 %v152
  %v154 = vpop.xlane.xlu0 %153
  %v155 = vsel %vm39, %v127, 0.0
  %156 = vadd.xlane.f32.xlu0 %v155
  %v157 = vpop.xlane.xlu0 %156
  %v158 = vsel %vm39, %v128, 0.0
  %159 = vadd.xlane.f32.xlu0 %v158
  %v160 = vpop.xlane.xlu0 %159
  %v161 = vsel %vm39, %v129, 0.0
  %162 = vadd.xlane.f32.xlu0 %v161
  %v163 = vpop.xlane.xlu0 %162
  %v164 = vsel %vm39, %v130, 0.0
  %165 = vadd.xlane.f32.xlu0 %v164
  %v166 = vpop.xlane.xlu0 %165
  %v167 = vsel %vm39, %v131, 0.0
  %168 = vadd.xlane.f32.xlu0 %v167
  %v169 = vpop.xlane.xlu0 %168
  %v170 = vsel %vm39, %v132, 0.0
  %171 = vadd.xlane.f32.xlu0 %v170
  %v172 = vpop.xlane.xlu0 %171
  %v173 = vsel %vm39, %v133, 0.0
  %174 = vadd.xlane.f32.xlu0 %v173
  %v175 = vpop.xlane.xlu0 %174
  %v176 = vsel %vm39, %v134, 0.0
  %177 = vadd.xlane.f32.xlu0 %v176
  %v178 = vpop.xlane.xlu0 %177
  %v179 = vsel %vm39, %v135, 0.0
  %180 = vadd.xlane.f32.xlu0 %v179
  %v181 = vpop.xlane.xlu0 %180
  %v182 = vsel %vm39, %v136, 0.0
  %183 = vadd.xlane.f32.xlu0 %v182
  %v184 = vpop.xlane.xlu0 %183
  %v185 = vmul.f32 %v139, %v88
  %v186 = vmul.f32 %v142, %v88
  %v187 = vmul.f32 %v145, %v88
  %v188 = vmul.f32 %v148, %v88
  %v189 = vmul.f32 %v151, %v88
  %v190 = vmul.f32 %v154, %v88
  %v191 = vmul.f32 %v157, %v88
  %v192 = vmul.f32 %v160, %v88
  %v193 = vmul.f32 %v163, %v88
  %v194 = vmul.f32 %v166, %v88
  %v195 = vmul.f32 %v169, %v88
  %v196 = vmul.f32 %v172, %v88
  %v197 = vmul.f32 %v175, %v88
  %v198 = vmul.f32 %v178, %v88
  %v199 = vmul.f32 %v181, %v88
  %v200 = vmul.f32 %v184, %v88
  %v201 = vadd.f32 %v185, 1e-05
  %v202 = vadd.f32 %v186, 1e-05
  %v203 = vadd.f32 %v187, 1e-05
  %v204 = vadd.f32 %v188, 1e-05
  %v205 = vadd.f32 %v189, 1e-05
  %v206 = vadd.f32 %v190, 1e-05
  %v207 = vadd.f32 %v191, 1e-05
  %v208 = vadd.f32 %v192, 1e-05
  %v209 = vadd.f32 %v193, 1e-05
  %v210 = vadd.f32 %v194, 1e-05
  %v211 = vadd.f32 %v195, 1e-05
  %v212 = vadd.f32 %v196, 1e-05
  %v213 = vadd.f32 %v197, 1e-05
  %v214 = vadd.f32 %v198, 1e-05
  %v215 = vadd.f32 %v199, 1e-05
  %v216 = vadd.f32 %v200, 1e-05
  %v217 = vrsqrt.pop %v201
  %v218 = vrsqrt.pop %v202
  %v219 = vrsqrt.pop %v203
  %v220 = vrsqrt.pop %v204
  %v221 = vrsqrt.pop %v205
  %v222 = vrsqrt.pop %v206
  %v223 = vrsqrt.pop %v207
  %v224 = vrsqrt.pop %v208
  %v225 = vrsqrt.pop %v209
  %v226 = vrsqrt.pop %v210
  %v227 = vrsqrt.pop %v211
  %v228 = vrsqrt.pop %v212
  %v229 = vrsqrt.pop %v213
  %v230 = vrsqrt.pop %v214
  %v231 = vrsqrt.pop %v215
  %v232 = vrsqrt.pop %v216
  %v233 = vmul.f32 %v105, %v217
  %v234 = vmul.f32 %v106, %v218
  %v235 = vmul.f32 %v107, %v219
  %v236 = vmul.f32 %v108, %v220
  %v237 = vmul.f32 %v109, %v221
  %v238 = vmul.f32 %v110, %v222
  %v239 = vmul.f32 %v111, %v223
  %v240 = vmul.f32 %v112, %v224
  %v241 = vmul.f32 %v113, %v225
  %v242 = vmul.f32 %v114, %v226
  %v243 = vmul.f32 %v115, %v227
  %v244 = vmul.f32 %v116, %v228
  %v245 = vmul.f32 %v117, %v229
  %v246 = vmul.f32 %v118, %v230
  %v247 = vmul.f32 %v119, %v231
  %v248 = vmul.f32 %v120, %v232
  %v250 = vlaneseq
  %v251 = vshrl.u32 %v250, 7
  %v252 = vsub.s32 0, %v251
  %v253 = vrot.slane %v37, %v252
  %v255 = vmul.f32 %v233, %v253
  %v256 = vmul.f32 %v234, %v253
  %v257 = vmul.f32 %v235, %v253
  %v258 = vmul.f32 %v236, %v253
  %v259 = vmul.f32 %v237, %v253
  %v260 = vmul.f32 %v238, %v253
  %v261 = vmul.f32 %v239, %v253
  %v262 = vmul.f32 %v240, %v253
  %v263 = vmul.f32 %v241, %v253
  %v264 = vmul.f32 %v242, %v253
  %v265 = vmul.f32 %v243, %v253
  %v266 = vmul.f32 %v244, %v253
  %v267 = vmul.f32 %v245, %v253
  %v268 = vmul.f32 %v246, %v253
  %v269 = vmul.f32 %v247, %v253
  %v270 = vmul.f32 %v248, %v253
  %v272 = vlaneseq
  %v273 = vshrl.u32 %v272, 7
  %v274 = vsub.s32 0, %v273
  %v275 = vrot.slane %v38, %v274
  %v277 = vadd.f32 %v255, %v275
  %v278 = vadd.f32 %v256, %v275
  %v279 = vadd.f32 %v257, %v275
  %v280 = vadd.f32 %v258, %v275
  %v281 = vadd.f32 %v259, %v275
  %v282 = vadd.f32 %v260, %v275
  %v283 = vadd.f32 %v261, %v275
  %v284 = vadd.f32 %v262, %v275
  %v285 = vadd.f32 %v263, %v275
  %v286 = vadd.f32 %v264, %v275
  %v287 = vadd.f32 %v265, %v275
  %v288 = vadd.f32 %v266, %v275
  %v289 = vadd.f32 %v267, %v275
  %v290 = vadd.f32 %v268, %v275
  %v291 = vadd.f32 %v269, %v275
  %v292 = vadd.f32 %v270, %v275
  %v293 = vpack.c.bf16 %v278, %v277
  %v294 = vpack.c.bf16 %v280, %v279
  %v295 = vpack.c.bf16 %v282, %v281
  %v296 = vpack.c.bf16 %v284, %v283
  %v297 = vpack.c.bf16 %v286, %v285
  %v298 = vpack.c.bf16 %v288, %v287
  %v299 = vpack.c.bf16 %v290, %v289
  %v300 = vpack.c.bf16 %v292, %v291
  %v301 = vld [vmem:[%s3] sm:$0xf]
  %v302 = vld [vmem:[%s3 + $0x4] sm:$0xf]
  %v303 = vld [vmem:[%s3 + $0x8] sm:$0xf]
  %v304 = vld [vmem:[%s3 + $0xc] sm:$0xf]
  %v305 = vld [vmem:[%s4] sm:$0x1]
  %v307 = vlaneseq
  %v308 = vshrl.u32 %v307, 7
  %v309 = vsub.s32 0, %v308
  %v310 = vrot.slane %v305, %v309
  %v316 = vunpack.c.l.b16 %v301
  %v317 = vunpack.c.l.b16 %v302
  %v318 = vunpack.c.l.b16 %v303
  %v319 = vunpack.c.l.b16 %v304
  %v320 = vpack.c.b16 %v317, %v316
  %v321 = vpack.c.b16 %v319, %v318
  %v325 = vsel %vm39, %v293, 0
  %v328 = vsel %vm39, %v294, 0
  %v331 = vsel %vm39, %v295, 0
  %v334 = vsel %vm39, %v296, 0
  %v337 = vsel %vm39, %v297, 0
  %v340 = vsel %vm39, %v298, 0
  %v343 = vsel %vm39, %v299, 0
  %v346 = vsel %vm39, %v300, 0
  %348 = vmatprep.subr.bf16.mxu0 0
  %349 = vmatpush1.bf16.msra.mxu0 %v320
  %350 = vmatprep.subr.bf16.mxu0 0
  %351 = vmatpush1.bf16.msra.mxu0 %v321
  %352 = vmatprep.subr.bf16.mxu0 0
  %353 = vmatpush1.bf16.msra.mxu0 0
  %354 = vmatprep.subr.bf16.mxu0 0
  %355 = vmatpush1.bf16.msra.mxu0 0
  %356 = vmatprep.subr.bf16.mxu0 0
  %357 = vmatpush1.bf16.msra.mxu0 0
  %358 = vmatprep.subr.bf16.mxu0 0
  %359 = vmatpush1.bf16.msra.mxu0 0
  %360 = vmatprep.subr.bf16.mxu0 0
  %361 = vmatpush1.bf16.msra.mxu0 0
  %362 = vmatprep.subr.bf16.mxu0 0
  %363 = vmatpush1.bf16.msra.mxu0 0
  %364 = vmatprep.subr.bf16.mxu0 0
  %365 = vmatpush1.bf16.msra.mxu0 0
  %366 = vmatprep.subr.bf16.mxu0 0
  %367 = vmatpush1.bf16.msra.mxu0 0
  %368 = vmatprep.subr.bf16.mxu0 0
  %369 = vmatpush1.bf16.msra.mxu0 0
  %370 = vmatprep.subr.bf16.mxu0 0
  %371 = vmatpush1.bf16.msra.mxu0 0
  %372 = vmatprep.subr.bf16.mxu0 0
  %373 = vmatpush1.bf16.msra.mxu0 0
  %374 = vmatprep.subr.bf16.mxu0 0
  %375 = vmatpush1.bf16.msra.mxu0 0
  %376 = vmatprep.subr.bf16.mxu0 0
  %377 = vmatpush1.bf16.msra.mxu0 0
  %378 = vmatprep.subr.bf16.mxu0 0
  %379 = vmatpush1.bf16.msra.mxu0 0
  %380 = vmatprep.mubr.bf16.mxu0 0
  %381 = vmatmul.mubr.bf16.gmra.mrb[0].mxu0 %v325
  %v382 = vpop.f32.mrb[0].mxu0
  %v383 = vadd.f32 %v310, %v382
  %v384 = vpop.f32.mrb[0].mxu0
  %v385 = vpop.f32.mrb[0].mxu0
  %v386 = vadd.f32 %v310, %v385
  %v387 = vpop.f32.mrb[0].mxu0
  %388 = vmatprep.mubr.bf16.mxu0 0
  %389 = vmatmul.mubr.bf16.gmra.mrb[0].mxu0 %v328
  %v390 = vpop.f32.mrb[0].mxu0
  %v391 = vadd.f32 %v310, %v390
  %v392 = vpop.f32.mrb[0].mxu0
  %v393 = vpop.f32.mrb[0].mxu0
  %v394 = vadd.f32 %v310, %v393
  %v395 = vpop.f32.mrb[0].mxu0
  %396 = vmatprep.mubr.bf16.mxu0 0
  %397 = vmatmul.mubr.bf16.gmra.mrb[0].mxu0 %v331
  %v398 = vpop.f32.mrb[0].mxu0
  %v399 = vadd.f32 %v310, %v398
  %v400 = vpop.f32.mrb[0].mxu0
  %v401 = vpop.f32.mrb[0].mxu0
  %v402 = vadd.f32 %v310, %v401
  %v403 = vpop.f32.mrb[0].mxu0
  %404 = vmatprep.mubr.bf16.mxu0 0
  %405 = vmatmul.mubr.bf16.gmra.mrb[0].mxu0 %v334
  %v406 = vpop.f32.mrb[0].mxu0
  %v407 = vadd.f32 %v310, %v406
  %v408 = vpop.f32.mrb[0].mxu0
  %v409 = vpop.f32.mrb[0].mxu0
  %v410 = vadd.f32 %v310, %v409
  %v411 = vpop.f32.mrb[0].mxu0
  %412 = vmatprep.mubr.bf16.mxu0 0
  %413 = vmatmul.mubr.bf16.gmra.mrb[0].mxu0 %v337
  %v414 = vpop.f32.mrb[0].mxu0
  %v415 = vadd.f32 %v310, %v414
  %v416 = vpop.f32.mrb[0].mxu0
  %v417 = vpop.f32.mrb[0].mxu0
  %v418 = vadd.f32 %v310, %v417
  %v419 = vpop.f32.mrb[0].mxu0
  %420 = vmatprep.mubr.bf16.mxu0 0
  %421 = vmatmul.mubr.bf16.gmra.mrb[0].mxu0 %v340
  %v422 = vpop.f32.mrb[0].mxu0
  %v423 = vadd.f32 %v310, %v422
  %v424 = vpop.f32.mrb[0].mxu0
  %v425 = vpop.f32.mrb[0].mxu0
  %v426 = vadd.f32 %v310, %v425
  %v427 = vpop.f32.mrb[0].mxu0
  %428 = vmatprep.mubr.bf16.mxu0 0
  %429 = vmatmul.mubr.bf16.gmra.mrb[0].mxu0 %v343
  %v430 = vpop.f32.mrb[0].mxu0
  %v431 = vadd.f32 %v310, %v430
  %v432 = vpop.f32.mrb[0].mxu0
  %v433 = vpop.f32.mrb[0].mxu0
  %v434 = vadd.f32 %v310, %v433
  %v435 = vpop.f32.mrb[0].mxu0
  %436 = vmatprep.mubr.bf16.mxu0 0
  %437 = vmatmul.mubr.bf16.gmra.mrb[0].mxu0 %v346
  %v438 = vpop.f32.mrb[0].mxu0
  %v439 = vadd.f32 %v310, %v438
  %v440 = vpop.f32.mrb[0].mxu0
  %v441 = vpop.f32.mrb[0].mxu0
  %v442 = vadd.f32 %v310, %v441
  %v443 = vpop.f32.mrb[0].mxu0
  %444 = vdwg.mxu0
  %v445 = vpack.c.bf16 %v386, %v383
  %v446 = vpack.c.bf16 %v394, %v391
  %v447 = vpack.c.bf16 %v402, %v399
  %v448 = vpack.c.bf16 %v410, %v407
  %v449 = vpack.c.bf16 %v418, %v415
  %v450 = vpack.c.bf16 %v426, %v423
  %v451 = vpack.c.bf16 %v434, %v431
  %v452 = vpack.c.bf16 %v442, %v439
  %v461 = vunpack.c.l.b16 %v445
  %v462 = vunpack.c.h.b16 %v445
  %v463 = vunpack.c.l.b16 %v446
  %v464 = vunpack.c.h.b16 %v446
  %v465 = vunpack.c.l.b16 %v447
  %v466 = vunpack.c.h.b16 %v447
  %v467 = vunpack.c.l.b16 %v448
  %v468 = vunpack.c.h.b16 %v448
  %v469 = vunpack.c.l.b16 %v449
  %v470 = vunpack.c.h.b16 %v449
  %v471 = vunpack.c.l.b16 %v450
  %v472 = vunpack.c.h.b16 %v450
  %v473 = vunpack.c.l.b16 %v451
  %v474 = vunpack.c.h.b16 %v451
  %v475 = vunpack.c.l.b16 %v452
  %v476 = vunpack.c.h.b16 %v452
  %v477 = vpack.c.b16 %v461, %v461
  %v478 = vpack.c.b16 %v462, %v462
  %v479 = vpack.c.b16 %v463, %v463
  %v480 = vpack.c.b16 %v464, %v464
  %v481 = vpack.c.b16 %v465, %v465
  %v482 = vpack.c.b16 %v466, %v466
  %v483 = vpack.c.b16 %v467, %v467
  %v484 = vpack.c.b16 %v468, %v468
  %v485 = vpack.c.b16 %v469, %v469
  %v486 = vpack.c.b16 %v470, %v470
  %v487 = vpack.c.b16 %v471, %v471
  %v488 = vpack.c.b16 %v472, %v472
  %v489 = vpack.c.b16 %v473, %v473
  %v490 = vpack.c.b16 %v474, %v474
  %v491 = vpack.c.b16 %v475, %v475
  %v492 = vpack.c.b16 %v476, %v476
  %vm509 = vcmask 781312
  %510 = vst.msk [vmem:[%s5] sm:$0xf] %vm509, %v477
  %511 = vst.msk [vmem:[%s5 + $0x4] sm:$0xf] %vm509, %v478
  %512 = vst.msk [vmem:[%s5 + $0x8] sm:$0xf] %vm509, %v479
  %513 = vst.msk [vmem:[%s5 + $0xc] sm:$0xf] %vm509, %v480
  %514 = vst.msk [vmem:[%s5 + $0x10] sm:$0xf] %vm509, %v481
  %515 = vst.msk [vmem:[%s5 + $0x14] sm:$0xf] %vm509, %v482
  %516 = vst.msk [vmem:[%s5 + $0x18] sm:$0xf] %vm509, %v483
  %517 = vst.msk [vmem:[%s5 + $0x1c] sm:$0xf] %vm509, %v484
  %518 = vst.msk [vmem:[%s5 + $0x20] sm:$0xf] %vm509, %v485
  %519 = vst.msk [vmem:[%s5 + $0x24] sm:$0xf] %vm509, %v486
  %520 = vst.msk [vmem:[%s5 + $0x28] sm:$0xf] %vm509, %v487
  %521 = vst.msk [vmem:[%s5 + $0x2c] sm:$0xf] %vm509, %v488
  %522 = vst.msk [vmem:[%s5 + $0x30] sm:$0xf] %vm509, %v489
  %523 = vst.msk [vmem:[%s5 + $0x34] sm:$0xf] %vm509, %v490
  %524 = vst.msk [vmem:[%s5 + $0x38] sm:$0xf] %vm509, %v491
  %525 = vst.msk [vmem:[%s5 + $0x3c] sm:$0xf] %vm509, %v492
  // Predicated region
  $region22: #{basic_layer_forward.6} parent=0 // pred_check
    _
  $region23: #{basic_layer_forward.6} parent=0 // pred_check_branch
    %527 = sbr.rel (0) target = $region25
  $region24: #{basic_layer_forward.6} parent=0 // pred_region
    _
  $region25: #{basic_layer_forward.6} parent=0 // pred_fallthru
    _
  // Predicated region
  $region26: #{basic_layer_forward.6} parent=0 // pred_check
    _
  $region27: #{basic_layer_forward.6} parent=0 // pred_check_branch
    %529 = sbr.rel (0) target = $region29
  $region28: #{basic_layer_forward.6} parent=0 // pred_region
    _
  $region29: #{basic_layer_forward.6} parent=0 // pred_fallthru
    _

// kernel: basic_layer_forward.8
$region0: #{basic_layer_forward.8}
  #allocation0 [shape = 'u32[]', space=smem, size = 0x4, offset = 0x4, fixed_abs, tag = 'smem constant byte address 0x4 - core index']
  #allocation1 [shape = 'u32[144,128]{1,0:T(1,128)}', space=vmem, size = 0x12000, scoped, tag = 'internal scratch']
  %s0 = inlined_call_operand.vmem [shape: bf16[128,32], index: 0, kind: input, shape index: {}]
  %s1 = inlined_call_operand.vmem [shape: f32[128,32], index: 1, kind: input, shape index: {}]
  %s2 = inlined_call_operand.vmem [shape: bf16[32,32], index: 2, kind: input, shape index: {}]
  %s3 = inlined_call_operand.vmem [shape: f32[1,32], index: 3, kind: input, shape index: {}]
  %s4 = inlined_call_operand.vmem [shape: f32[1,32], index: 4, kind: input, shape index: {}]
  %s5 = inlined_call_operand.vmem [shape: f32[1,32], index: 5, kind: input, shape index: {}]
  %s6 = inlined_call_operand.vmem [shape: bf16[32,128], index: 6, kind: input, shape index: {}]
  %s7 = inlined_call_operand.vmem [shape: f32[1,128], index: 7, kind: input, shape index: {}]
  %s8 = inlined_call_operand.vmem [shape: bf16[128,32], index: 8, kind: input, shape index: {}]
  %s9 = inlined_call_operand.vmem [shape: f32[1,32], index: 9, kind: input, shape index: {}]
  %s10 = inlined_call_operand.vmem [shape: f32[128,32], index: 10, kind: output, shape index: {}]
  %s11 = sld [smem:[#allocation0]]
  $region50: #{basic_layer_forward.8} parent=0
    _
  %s13 = ssub.s32 1, %s11
  %s14 = scalar_select 0, %s13, %s11
  // Predicated region
  $region2: #{basic_layer_forward.8} parent=0 // pred_check
    _
  $region3: #{basic_layer_forward.8} parent=0 // pred_check_branch
    %16 = sbr.rel (0) target = $region5
  $region4: #{basic_layer_forward.8} parent=0 // pred_region
    _
  $region5: #{basic_layer_forward.8} parent=0 // pred_fallthru
    _
  // Predicated region
  $region6: #{basic_layer_forward.8} parent=0 // pred_check
    _
  $region7: #{basic_layer_forward.8} parent=0 // pred_check_branch
    %18 = sbr.rel (0) target = $region9
  $region8: #{basic_layer_forward.8} parent=0 // pred_region
    _
  $region9: #{basic_layer_forward.8} parent=0 // pred_fallthru
    _
  // Predicated region
  $region10: #{basic_layer_forward.8} parent=0 // pred_check
    _
  $region11: #{basic_layer_forward.8} parent=0 // pred_check_branch
    %20 = sbr.rel (0) target = $region13
  $region12: #{basic_layer_forward.8} parent=0 // pred_region
    _
  $region13: #{basic_layer_forward.8} parent=0 // pred_fallthru
    _
  // Predicated region
  $region14: #{basic_layer_forward.8} parent=0 // pred_check
    _
  $region15: #{basic_layer_forward.8} parent=0 // pred_check_branch
    %22 = sbr.rel (0) target = $region17
  $region16: #{basic_layer_forward.8} parent=0 // pred_region
    _
  $region17: #{basic_layer_forward.8} parent=0 // pred_fallthru
    _
  // Predicated region
  $region18: #{basic_layer_forward.8} parent=0 // pred_check
    _
  $region19: #{basic_layer_forward.8} parent=0 // pred_check_branch
    %24 = sbr.rel (0) target = $region21
  $region20: #{basic_layer_forward.8} parent=0 // pred_region
    _
  $region21: #{basic_layer_forward.8} parent=0 // pred_fallthru
    _
  // Predicated region
  $region22: #{basic_layer_forward.8} parent=0 // pred_check
    _
  $region23: #{basic_layer_forward.8} parent=0 // pred_check_branch
    %26 = sbr.rel (0) target = $region25
  $region24: #{basic_layer_forward.8} parent=0 // pred_region
    _
  $region25: #{basic_layer_forward.8} parent=0 // pred_fallthru
    _
  // Predicated region
  $region26: #{basic_layer_forward.8} parent=0 // pred_check
    _
  $region27: #{basic_layer_forward.8} parent=0 // pred_check_branch
    %28 = sbr.rel (0) target = $region29
  $region28: #{basic_layer_forward.8} parent=0 // pred_region
    _
  $region29: #{basic_layer_forward.8} parent=0 // pred_fallthru
    _
  // Predicated region
  $region30: #{basic_layer_forward.8} parent=0 // pred_check
    _
  $region31: #{basic_layer_forward.8} parent=0 // pred_check_branch
    %30 = sbr.rel (0) target = $region33
  $region32: #{basic_layer_forward.8} parent=0 // pred_region
    _
  $region33: #{basic_layer_forward.8} parent=0 // pred_fallthru
    _
  // Predicated region
  $region34: #{basic_layer_forward.8} parent=0 // pred_check
    _
  $region35: #{basic_layer_forward.8} parent=0 // pred_check_branch
    %32 = sbr.rel (0) target = $region37
  $region36: #{basic_layer_forward.8} parent=0 // pred_region
    _
  $region37: #{basic_layer_forward.8} parent=0 // pred_fallthru
    _
  // Predicated region
  $region38: #{basic_layer_forward.8} parent=0 // pred_check
    _
  $region39: #{basic_layer_forward.8} parent=0 // pred_check_branch
    %34 = sbr.rel (0) target = $region41
  $region40: #{basic_layer_forward.8} parent=0 // pred_region
    _
  $region41: #{basic_layer_forward.8} parent=0 // pred_fallthru
    _
  %v36 = vld [vmem:[%s0] sm:$0xf]
  %v37 = vld [vmem:[%s0 + $0x4] sm:$0xf]
  %v38 = vld [vmem:[%s0 + $0x8] sm:$0xf]
  %v39 = vld [vmem:[%s0 + $0xc] sm:$0xf]
  %v40 = vld [vmem:[%s0 + $0x10] sm:$0xf]
  %v41 = vld [vmem:[%s0 + $0x14] sm:$0xf]
  %v42 = vld [vmem:[%s0 + $0x18] sm:$0xf]
  %v43 = vld [vmem:[%s0 + $0x1c] sm:$0xf]
  %v44 = vld [vmem:[%s0 + $0x20] sm:$0xf]
  %v45 = vld [vmem:[%s0 + $0x24] sm:$0xf]
  %v46 = vld [vmem:[%s0 + $0x28] sm:$0xf]
  %v47 = vld [vmem:[%s0 + $0x2c] sm:$0xf]
  %v48 = vld [vmem:[%s0 + $0x30] sm:$0xf]
  %v49 = vld [vmem:[%s0 + $0x34] sm:$0xf]
  %v50 = vld [vmem:[%s0 + $0x38] sm:$0xf]
  %v51 = vld [vmem:[%s0 + $0x3c] sm:$0xf]
  %v52 = vld [vmem:[%s2] sm:$0xf]
  %v53 = vld [vmem:[%s2 + $0x4] sm:$0xf]
  %v54 = vld [vmem:[%s2 + $0x8] sm:$0xf]
  %v55 = vld [vmem:[%s2 + $0xc] sm:$0xf]
  %v56 = vld [vmem:[%s3] sm:$0x1]
  %v58 = vlaneseq
  %v59 = vshrl.u32 %v58, 7
  %v60 = vsub.s32 0, %v59
  %v61 = vrot.slane %v56, %v60
  %v79 = vunpack.c.l.b16 %v36
  %v80 = vunpack.c.l.b16 %v37
  %v81 = vunpack.c.l.b16 %v38
  %v82 = vunpack.c.l.b16 %v39
  %v83 = vunpack.c.l.b16 %v40
  %v84 = vunpack.c.l.b16 %v41
  %v85 = vunpack.c.l.b16 %v42
  %v86 = vunpack.c.l.b16 %v43
  %v87 = vunpack.c.l.b16 %v44
  %v88 = vunpack.c.l.b16 %v45
  %v89 = vunpack.c.l.b16 %v46
  %v90 = vunpack.c.l.b16 %v47
  %v91 = vunpack.c.l.b16 %v48
  %v92 = vunpack.c.l.b16 %v49
  %v93 = vunpack.c.l.b16 %v50
  %v94 = vunpack.c.l.b16 %v51
  %v95 = vpack.c.b16 %v80, %v79
  %v96 = vpack.c.b16 %v82, %v81
  %v97 = vpack.c.b16 %v84, %v83
  %v98 = vpack.c.b16 %v86, %v85
  %v99 = vpack.c.b16 %v88, %v87
  %v100 = vpack.c.b16 %v90, %v89
  %v101 = vpack.c.b16 %v92, %v91
  %v102 = vpack.c.b16 %v94, %v93
  %v107 = vunpack.c.l.b16 %v52
  %v108 = vunpack.c.l.b16 %v53
  %v109 = vunpack.c.l.b16 %v54
  %v110 = vunpack.c.l.b16 %v55
  %v111 = vpack.c.b16 %v108, %v107
  %v112 = vpack.c.b16 %v110, %v109
  %vm115 = vcmask 261120
  %v117 = vsel %vm115, %v95, 0
  %v120 = vsel %vm115, %v96, 0
  %v123 = vsel %vm115, %v97, 0
  %v126 = vsel %vm115, %v98, 0
  %v129 = vsel %vm115, %v99, 0
  %v132 = vsel %vm115, %v100, 0
  %v135 = vsel %vm115, %v101, 0
  %v138 = vsel %vm115, %v102, 0
  %140 = vmatprep.subr.bf16.mxu0 0
  %141 = vmatpush1.bf16.msra.mxu0 %v111
  %142 = vmatprep.subr.bf16.mxu0 0
  %143 = vmatpush1.bf16.msra.mxu0 %v112
  %144 = vmatprep.subr.bf16.mxu0 0
  %145 = vmatpush1.bf16.msra.mxu0 0
  %146 = vmatprep.subr.bf16.mxu0 0
  %147 = vmatpush1.bf16.msra.mxu0 0
  %148 = vmatprep.subr.bf16.mxu0 0
  %149 = vmatpush1.bf16.msra.mxu0 0
  %150 = vmatprep.subr.bf16.mxu0 0
  %151 = vmatpush1.bf16.msra.mxu0 0
  %152 = vmatprep.subr.bf16.mxu0 0
  %153 = vmatpush1.bf16.msra.mxu0 0
  %154 = vmatprep.subr.bf16.mxu0 0
  %155 = vmatpush1.bf16.msra.mxu0 0
  %156 = vmatprep.subr.bf16.mxu0 0
  %157 = vmatpush1.bf16.msra.mxu0 0
  %158 = vmatprep.subr.bf16.mxu0 0
  %159 = vmatpush1.bf16.msra.mxu0 0
  %160 = vmatprep.subr.bf16.mxu0 0
  %161 = vmatpush1.bf16.msra.mxu0 0
  %162 = vmatprep.subr.bf16.mxu0 0
  %163 = vmatpush1.bf16.msra.mxu0 0
  %164 = vmatprep.subr.bf16.mxu0 0
  %165 = vmatpush1.bf16.msra.mxu0 0
  %166 = vmatprep.subr.bf16.mxu0 0
  %167 = vmatpush1.bf16.msra.mxu0 0
  %168 = vmatprep.subr.bf16.mxu0 0
  %169 = vmatpush1.bf16.msra.mxu0 0
  %170 = vmatprep.subr.bf16.mxu0 0
  %171 = vmatpush1.bf16.msra.mxu0 0
  %172 = vmatprep.mubr.bf16.mxu0 0
  %173 = vmatmul.mubr.bf16.gmra.mrb[0].mxu0 %v117
  %v174 = vpop.f32.mrb[0].mxu0
  %v175 = vadd.f32 %v61, %v174
  %v176 = vpop.f32.mrb[0].mxu0
  %v177 = vpop.f32.mrb[0].mxu0
  %v178 = vadd.f32 %v61, %v177
  %v179 = vpop.f32.mrb[0].mxu0
  %180 = vmatprep.mubr.bf16.mxu0 0
  %181 = vmatmul.mubr.bf16.gmra.mrb[0].mxu0 %v120
  %v182 = vpop.f32.mrb[0].mxu0
  %v183 = vadd.f32 %v61, %v182
  %v184 = vpop.f32.mrb[0].mxu0
  %v185 = vpop.f32.mrb[0].mxu0
  %v186 = vadd.f32 %v61, %v185
  %v187 = vpop.f32.mrb[0].mxu0
  %188 = vmatprep.mubr.bf16.mxu0 0
  %189 = vmatmul.mubr.bf16.gmra.mrb[0].mxu0 %v123
  %v190 = vpop.f32.mrb[0].mxu0
  %v191 = vadd.f32 %v61, %v190
  %v192 = vpop.f32.mrb[0].mxu0
  %v193 = vpop.f32.mrb[0].mxu0
  %v194 = vadd.f32 %v61, %v193
  %v195 = vpop.f32.mrb[0].mxu0
  %196 = vmatprep.mubr.bf16.mxu0 0
  %197 = vmatmul.mubr.bf16.gmra.mrb[0].mxu0 %v126
  %v198 = vpop.f32.mrb[0].mxu0
  %v199 = vadd.f32 %v61, %v198
  %v200 = vpop.f32.mrb[0].mxu0
  %v201 = vpop.f32.mrb[0].mxu0
  %v202 = vadd.f32 %v61, %v201
  %v203 = vpop.f32.mrb[0].mxu0
  %204 = vmatprep.mubr.bf16.mxu0 0
  %205 = vmatmul.mubr.bf16.gmra.mrb[0].mxu0 %v129
  %v206 = vpop.f32.mrb[0].mxu0
  %v207 = vadd.f32 %v61, %v206
  %v208 = vpop.f32.mrb[0].mxu0
  %v209 = vpop.f32.mrb[0].mxu0
  %v210 = vadd.f32 %v61, %v209
  %v211 = vpop.f32.mrb[0].mxu0
  %212 = vmatprep.mubr.bf16.mxu0 0
  %213 = vmatmul.mubr.bf16.gmra.mrb[0].mxu0 %v132
  %v214 = vpop.f32.mrb[0].mxu0
  %v215 = vadd.f32 %v61, %v214
  %v216 = vpop.f32.mrb[0].mxu0
  %v217 = vpop.f32.mrb[0].mxu0
  %v218 = vadd.f32 %v61, %v217
  %v219 = vpop.f32.mrb[0].mxu0
  %220 = vmatprep.mubr.bf16.mxu0 0
  %221 = vmatmul.mubr.bf16.gmra.mrb[0].mxu0 %v135
  %v222 = vpop.f32.mrb[0].mxu0
  %v223 = vadd.f32 %v61, %v222
  %v224 = vpop.f32.mrb[0].mxu0
  %v225 = vpop.f32.mrb[0].mxu0
  %v226 = vadd.f32 %v61, %v225
  %v227 = vpop.f32.mrb[0].mxu0
  %228 = vmatprep.mubr.bf16.mxu0 0
  %229 = vmatmul.mubr.bf16.gmra.mrb[0].mxu0 %v138
  %v230 = vpop.f32.mrb[0].mxu0
  %v231 = vadd.f32 %v61, %v230
  %v232 = vpop.f32.mrb[0].mxu0
  %v233 = vpop.f32.mrb[0].mxu0
  %v234 = vadd.f32 %v61, %v233
  %v235 = vpop.f32.mrb[0].mxu0
  %236 = vdwg.mxu0
  %v237 = vld [vmem:[%s1] sm:$0xff]
  %v238 = vld [vmem:[%s1 + $0x8] sm:$0xff]
  %v239 = vld [vmem:[%s1 + $0x10] sm:$0xff]
  %v240 = vld [vmem:[%s1 + $0x18] sm:$0xff]
  %v241 = vld [vmem:[%s1 + $0x20] sm:$0xff]
  %v242 = vld [vmem:[%s1 + $0x28] sm:$0xff]
  %v243 = vld [vmem:[%s1 + $0x30] sm:$0xff]
  %v244 = vld [vmem:[%s1 + $0x38] sm:$0xff]
  %v245 = vld [vmem:[%s1 + $0x40] sm:$0xff]
  %v246 = vld [vmem:[%s1 + $0x48] sm:$0xff]
  %v247 = vld [vmem:[%s1 + $0x50] sm:$0xff]
  %v248 = vld [vmem:[%s1 + $0x58] sm:$0xff]
  %v249 = vld [vmem:[%s1 + $0x60] sm:$0xff]
  %v250 = vld [vmem:[%s1 + $0x68] sm:$0xff]
  %v251 = vld [vmem:[%s1 + $0x70] sm:$0xff]
  %v252 = vld [vmem:[%s1 + $0x78] sm:$0xff]
  %v253 = vadd.f32 %v237, %v175
  %v254 = vadd.f32 %v238, %v178
  %v255 = vadd.f32 %v239, %v183
  %v256 = vadd.f32 %v240, %v186
  %v257 = vadd.f32 %v241, %v191
  %v258 = vadd.f32 %v242, %v194
  %v259 = vadd.f32 %v243, %v199
  %v260 = vadd.f32 %v244, %v202
  %v261 = vadd.f32 %v245, %v207
  %v262 = vadd.f32 %v246, %v210
  %v263 = vadd.f32 %v247, %v215
  %v264 = vadd.f32 %v248, %v218
  %v265 = vadd.f32 %v249, %v223
  %v266 = vadd.f32 %v250, %v226
  %v267 = vadd.f32 %v251, %v231
  %v268 = vadd.f32 %v252, %v234
  %v269 = vld [vmem:[%s4] sm:$0x1]
  %v270 = vld [vmem:[%s5] sm:$0x1]
  %v271 = vsel %vm115, %v253, 0.0
  %272 = vadd.xlane.f32.xlu0 %v271
  %v273 = vpop.xlane.xlu0 %272
  %v274 = vsel %vm115, %v254, 0.0
  %275 = vadd.xlane.f32.xlu0 %v274
  %v276 = vpop.xlane.xlu0 %275
  %v277 = vsel %vm115, %v255, 0.0
  %278 = vadd.xlane.f32.xlu0 %v277
  %v279 = vpop.xlane.xlu0 %278
  %v280 = vsel %vm115, %v256, 0.0
  %281 = vadd.xlane.f32.xlu0 %v280
  %v282 = vpop.xlane.xlu0 %281
  %v283 = vsel %vm115, %v257, 0.0
  %284 = vadd.xlane.f32.xlu0 %v283
  %v285 = vpop.xlane.xlu0 %284
  %v286 = vsel %vm115, %v258, 0.0
  %287 = vadd.xlane.f32.xlu0 %v286
  %v288 = vpop.xlane.xlu0 %287
  %v289 = vsel %vm115, %v259, 0.0
  %290 = vadd.xlane.f32.xlu0 %v289
  %v291 = vpop.xlane.xlu0 %290
  %v292 = vsel %vm115, %v260, 0.0
  %293 = vadd.xlane.f32.xlu0 %v292
  %v294 = vpop.xlane.xlu0 %293
  %v295 = vsel %vm115, %v261, 0.0
  %296 = vadd.xlane.f32.xlu0 %v295
  %v297 = vpop.xlane.xlu0 %296
  %v298 = vsel %vm115, %v262, 0.0
  %299 = vadd.xlane.f32.xlu0 %v298
  %v300 = vpop.xlane.xlu0 %299
  %v301 = vsel %vm115, %v263, 0.0
  %302 = vadd.xlane.f32.xlu0 %v301
  %v303 = vpop.xlane.xlu0 %302
  %v304 = vsel %vm115, %v264, 0.0
  %305 = vadd.xlane.f32.xlu0 %v304
  %v306 = vpop.xlane.xlu0 %305
  %v307 = vsel %vm115, %v265, 0.0
  %308 = vadd.xlane.f32.xlu0 %v307
  %v309 = vpop.xlane.xlu0 %308
  %v310 = vsel %vm115, %v266, 0.0
  %311 = vadd.xlane.f32.xlu0 %v310
  %v312 = vpop.xlane.xlu0 %311
  %v313 = vsel %vm115, %v267, 0.0
  %314 = vadd.xlane.f32.xlu0 %v313
  %v315 = vpop.xlane.xlu0 %314
  %v316 = vsel %vm115, %v268, 0.0
  %317 = vadd.xlane.f32.xlu0 %v316
  %v318 = vpop.xlane.xlu0 %317
  %v319 = vrcp.pop 32.0
  %v320 = vmul.f32 %v273, %v319
  %v321 = vmul.f32 %v276, %v319
  %v322 = vmul.f32 %v279, %v319
  %v323 = vmul.f32 %v282, %v319
  %v324 = vmul.f32 %v285, %v319
  %v325 = vmul.f32 %v288, %v319
  %v326 = vmul.f32 %v291, %v319
  %v327 = vmul.f32 %v294, %v319
  %v328 = vmul.f32 %v297, %v319
  %v329 = vmul.f32 %v300, %v319
  %v330 = vmul.f32 %v303, %v319
  %v331 = vmul.f32 %v306, %v319
  %v332 = vmul.f32 %v309, %v319
  %v333 = vmul.f32 %v312, %v319
  %v334 = vmul.f32 %v315, %v319
  %v335 = vmul.f32 %v318, %v319
  %v336 = vsub.f32 %v253, %v320
  %v337 = vsub.f32 %v254, %v321
  %v338 = vsub.f32 %v255, %v322
  %v339 = vsub.f32 %v256, %v323
  %v340 = vsub.f32 %v257, %v324
  %v341 = vsub.f32 %v258, %v325
  %v342 = vsub.f32 %v259, %v326
  %v343 = vsub.f32 %v260, %v327
  %v344 = vsub.f32 %v261, %v328
  %v345 = vsub.f32 %v262, %v329
  %v346 = vsub.f32 %v263, %v330
  %v347 = vsub.f32 %v264, %v331
  %v348 = vsub.f32 %v265, %v332
  %v349 = vsub.f32 %v266, %v333
  %v350 = vsub.f32 %v267, %v334
  %v351 = vsub.f32 %v268, %v335
  %v352 = vmul.f32 %v336, %v336
  %v353 = vmul.f32 %v337, %v337
  %v354 = vmul.f32 %v338, %v338
  %v355 = vmul.f32 %v339, %v339
  %v356 = vmul.f32 %v340, %v340
  %v357 = vmul.f32 %v341, %v341
  %v358 = vmul.f32 %v342, %v342
  %v359 = vmul.f32 %v343, %v343
  %v360 = vmul.f32 %v344, %v344
  %v361 = vmul.f32 %v345, %v345
  %v362 = vmul.f32 %v346, %v346
  %v363 = vmul.f32 %v347, %v347
  %v364 = vmul.f32 %v348, %v348
  %v365 = vmul.f32 %v349, %v349
  %v366 = vmul.f32 %v350, %v350
  %v367 = vmul.f32 %v351, %v351
  %v368 = vsel %vm115, %v352, 0.0
  %369 = vadd.xlane.f32.xlu0 %v368
  %v370 = vpop.xlane.xlu0 %369
  %v371 = vsel %vm115, %v353, 0.0
  %372 = vadd.xlane.f32.xlu0 %v371
  %v373 = vpop.xlane.xlu0 %372
  %v374 = vsel %vm115, %v354, 0.0
  %375 = vadd.xlane.f32.xlu0 %v374
  %v376 = vpop.xlane.xlu0 %375
  %v377 = vsel %vm115, %v355, 0.0
  %378 = vadd.xlane.f32.xlu0 %v377
  %v379 = vpop.xlane.xlu0 %378
  %v380 = vsel %vm115, %v356, 0.0
  %381 = vadd.xlane.f32.xlu0 %v380
  %v382 = vpop.xlane.xlu0 %381
  %v383 = vsel %vm115, %v357, 0.0
  %384 = vadd.xlane.f32.xlu0 %v383
  %v385 = vpop.xlane.xlu0 %384
  %v386 = vsel %vm115, %v358, 0.0
  %387 = vadd.xlane.f32.xlu0 %v386
  %v388 = vpop.xlane.xlu0 %387
  %v389 = vsel %vm115, %v359, 0.0
  %390 = vadd.xlane.f32.xlu0 %v389
  %v391 = vpop.xlane.xlu0 %390
  %v392 = vsel %vm115, %v360, 0.0
  %393 = vadd.xlane.f32.xlu0 %v392
  %v394 = vpop.xlane.xlu0 %393
  %v395 = vsel %vm115, %v361, 0.0
  %396 = vadd.xlane.f32.xlu0 %v395
  %v397 = vpop.xlane.xlu0 %396
  %v398 = vsel %vm115, %v362, 0.0
  %399 = vadd.xlane.f32.xlu0 %v398
  %v400 = vpop.xlane.xlu0 %399
  %v401 = vsel %vm115, %v363, 0.0
  %402 = vadd.xlane.f32.xlu0 %v401
  %v403 = vpop.xlane.xlu0 %402
  %v404 = vsel %vm115, %v364, 0.0
  %405 = vadd.xlane.f32.xlu0 %v404
  %v406 = vpop.xlane.xlu0 %405
  %v407 = vsel %vm115, %v365, 0.0
  %408 = vadd.xlane.f32.xlu0 %v407
  %v409 = vpop.xlane.xlu0 %408
  %v410 = vsel %vm115, %v366, 0.0
  %411 = vadd.xlane.f32.xlu0 %v410
  %v412 = vpop.xlane.xlu0 %411
  %v413 = vsel %vm115, %v367, 0.0
  %414 = vadd.xlane.f32.xlu0 %v413
  %v415 = vpop.xlane.xlu0 %414
  %v416 = vmul.f32 %v370, %v319
  %v417 = vmul.f32 %v373, %v319
  %v418 = vmul.f32 %v376, %v319
  %v419 = vmul.f32 %v379, %v319
  %v420 = vmul.f32 %v382, %v319
  %v421 = vmul.f32 %v385, %v319
  %v422 = vmul.f32 %v388, %v319
  %v423 = vmul.f32 %v391, %v319
  %v424 = vmul.f32 %v394, %v319
  %v425 = vmul.f32 %v397, %v319
  %v426 = vmul.f32 %v400, %v319
  %v427 = vmul.f32 %v403, %v319
  %v428 = vmul.f32 %v406, %v319
  %v429 = vmul.f32 %v409, %v319
  %v430 = vmul.f32 %v412, %v319
  %v431 = vmul.f32 %v415, %v319
  %v432 = vadd.f32 %v416, 1e-05
  %v433 = vadd.f32 %v417, 1e-05
  %v434 = vadd.f32 %v418, 1e-05
  %v435 = vadd.f32 %v419, 1e-05
  %v436 = vadd.f32 %v420, 1e-05
  %v437 = vadd.f32 %v421, 1e-05
  %v438 = vadd.f32 %v422, 1e-05
  %v439 = vadd.f32 %v423, 1e-05
  %v440 = vadd.f32 %v424, 1e-05
  %v441 = vadd.f32 %v425, 1e-05
  %v442 = vadd.f32 %v426, 1e-05
  %v443 = vadd.f32 %v427, 1e-05
  %v444 = vadd.f32 %v428, 1e-05
  %v445 = vadd.f32 %v429, 1e-05
  %v446 = vadd.f32 %v430, 1e-05
  %v447 = vadd.f32 %v431, 1e-05
  %v448 = vrsqrt.pop %v432
  %v449 = vrsqrt.pop %v433
  %v450 = vrsqrt.pop %v434
  %v451 = vrsqrt.pop %v435
  %v452 = vrsqrt.pop %v436
  %v453 = vrsqrt.pop %v437
  %v454 = vrsqrt.pop %v438
  %v455 = vrsqrt.pop %v439
  %v456 = vrsqrt.pop %v440
  %v457 = vrsqrt.pop %v441
  %v458 = vrsqrt.pop %v442
  %v459 = vrsqrt.pop %v443
  %v460 = vrsqrt.pop %v444
  %v461 = vrsqrt.pop %v445
  %v462 = vrsqrt.pop %v446
  %v463 = vrsqrt.pop %v447
  %v464 = vmul.f32 %v336, %v448
  %v465 = vmul.f32 %v337, %v449
  %v466 = vmul.f32 %v338, %v450
  %v467 = vmul.f32 %v339, %v451
  %v468 = vmul.f32 %v340, %v452
  %v469 = vmul.f32 %v341, %v453
  %v470 = vmul.f32 %v342, %v454
  %v471 = vmul.f32 %v343, %v455
  %v472 = vmul.f32 %v344, %v456
  %v473 = vmul.f32 %v345, %v457
  %v474 = vmul.f32 %v346, %v458
  %v475 = vmul.f32 %v347, %v459
  %v476 = vmul.f32 %v348, %v460
  %v477 = vmul.f32 %v349, %v461
  %v478 = vmul.f32 %v350, %v462
  %v479 = vmul.f32 %v351, %v463
  %v481 = vlaneseq
  %v482 = vshrl.u32 %v481, 7
  %v483 = vsub.s32 0, %v482
  %v484 = vrot.slane %v269, %v483
  %v486 = vmul.f32 %v464, %v484
  %v487 = vmul.f32 %v465, %v484
  %v488 = vmul.f32 %v466, %v484
  %v489 = vmul.f32 %v467, %v484
  %v490 = vmul.f32 %v468, %v484
  %v491 = vmul.f32 %v469, %v484
  %v492 = vmul.f32 %v470, %v484
  %v493 = vmul.f32 %v471, %v484
  %v494 = vmul.f32 %v472, %v484
  %v495 = vmul.f32 %v473, %v484
  %v496 = vmul.f32 %v474, %v484
  %v497 = vmul.f32 %v475, %v484
  %v498 = vmul.f32 %v476, %v484
  %v499 = vmul.f32 %v477, %v484
  %v500 = vmul.f32 %v478, %v484
  %v501 = vmul.f32 %v479, %v484
  %v503 = vlaneseq
  %v504 = vshrl.u32 %v503, 7
  %v505 = vsub.s32 0, %v504
  %v506 = vrot.slane %v270, %v505
  %v508 = vadd.f32 %v486, %v506
  %v509 = vadd.f32 %v487, %v506
  %v510 = vadd.f32 %v488, %v506
  %v511 = vadd.f32 %v489, %v506
  %v512 = vadd.f32 %v490, %v506
  %v513 = vadd.f32 %v491, %v506
  %v514 = vadd.f32 %v492, %v506
  %v515 = vadd.f32 %v493, %v506
  %v516 = vadd.f32 %v494, %v506
  %v517 = vadd.f32 %v495, %v506
  %v518 = vadd.f32 %v496, %v506
  %v519 = vadd.f32 %v497, %v506
  %v520 = vadd.f32 %v498, %v506
  %v521 = vadd.f32 %v499, %v506
  %v522 = vadd.f32 %v500, %v506
  %v523 = vadd.f32 %v501, %v506
  %v524 = vpack.c.bf16 %v509, %v508
  %v525 = vpack.c.bf16 %v511, %v510
  %v526 = vpack.c.bf16 %v513, %v512
  %v527 = vpack.c.bf16 %v515, %v514
  %v528 = vpack.c.bf16 %v517, %v516
  %v529 = vpack.c.bf16 %v519, %v518
  %v530 = vpack.c.bf16 %v521, %v520
  %v531 = vpack.c.bf16 %v523, %v522
  %v532 = vld [vmem:[%s6] sm:$0xf]
  %v533 = vld [vmem:[%s6 + $0x4] sm:$0xf]
  %v534 = vld [vmem:[%s6 + $0x8] sm:$0xf]
  %v535 = vld [vmem:[%s6 + $0xc] sm:$0xf]
  %v536 = vld [vmem:[%s7] sm:$0x1]
  %v538 = vlaneseq
  %v539 = vshrl.u32 %v538, 7
  %v540 = vsub.s32 0, %v539
  %v541 = vrot.slane %v536, %v540
  %v547 = vunpack.c.l.b16 %v532
  %v548 = vunpack.c.l.b16 %v533
  %v549 = vunpack.c.l.b16 %v534
  %v550 = vunpack.c.l.b16 %v535
  %v551 = vpack.c.b16 %v548, %v547
  %v552 = vpack.c.b16 %v550, %v549
  %v556 = vsel %vm115, %v524, 0
  %v559 = vsel %vm115, %v525, 0
  %v562 = vsel %vm115, %v526, 0
  %v565 = vsel %vm115, %v527, 0
  %v568 = vsel %vm115, %v528, 0
  %v571 = vsel %vm115, %v529, 0
  %v574 = vsel %vm115, %v530, 0
  %v577 = vsel %vm115, %v531, 0
  %579 = vmatprep.subr.bf16.mxu0 0
  %580 = vmatpush1.bf16.msra.mxu0 %v551
  %581 = vmatprep.subr.bf16.mxu0 0
  %582 = vmatpush1.bf16.msra.mxu0 %v552
  %583 = vmatprep.subr.bf16.mxu0 0
  %584 = vmatpush1.bf16.msra.mxu0 0
  %585 = vmatprep.subr.bf16.mxu0 0
  %586 = vmatpush1.bf16.msra.mxu0 0
  %587 = vmatprep.subr.bf16.mxu0 0
  %588 = vmatpush1.bf16.msra.mxu0 0
  %589 = vmatprep.subr.bf16.mxu0 0
  %590 = vmatpush1.bf16.msra.mxu0 0
  %591 = vmatprep.subr.bf16.mxu0 0
  %592 = vmatpush1.bf16.msra.mxu0 0
  %593 = vmatprep.subr.bf16.mxu0 0
  %594 = vmatpush1.bf16.msra.mxu0 0
  %595 = vmatprep.subr.bf16.mxu0 0
  %596 = vmatpush1.bf16.msra.mxu0 0
  %597 = vmatprep.subr.bf16.mxu0 0
  %598 = vmatpush1.bf16.msra.mxu0 0
  %599 = vmatprep.subr.bf16.mxu0 0
  %600 = vmatpush1.bf16.msra.mxu0 0
  %601 = vmatprep.subr.bf16.mxu0 0
  %602 = vmatpush1.bf16.msra.mxu0 0
  %603 = vmatprep.subr.bf16.mxu0 0
  %604 = vmatpush1.bf16.msra.mxu0 0
  %605 = vmatprep.subr.bf16.mxu0 0
  %606 = vmatpush1.bf16.msra.mxu0 0
  %607 = vmatprep.subr.bf16.mxu0 0
  %608 = vmatpush1.bf16.msra.mxu0 0
  %609 = vmatprep.subr.bf16.mxu0 0
  %610 = vmatpush1.bf16.msra.mxu0 0
  %611 = vmatprep.mubr.bf16.mxu0 0
  %612 = vmatmul.mubr.bf16.gmra.mrb[0].mxu0 %v556
  %v613 = vpop.f32.mrb[0].mxu0
  %v614 = vadd.f32 %v541, %v613
  %v615 = vpop.f32.mrb[0].mxu0
  %v616 = vpop.f32.mrb[0].mxu0
  %v617 = vadd.f32 %v541, %v616
  %v618 = vpop.f32.mrb[0].mxu0
  %619 = vmatprep.mubr.bf16.mxu0 0
  %620 = vmatmul.mubr.bf16.gmra.mrb[0].mxu0 %v559
  %v621 = vpop.f32.mrb[0].mxu0
  %v622 = vadd.f32 %v541, %v621
  %v623 = vpop.f32.mrb[0].mxu0
  %v624 = vpop.f32.mrb[0].mxu0
  %v625 = vadd.f32 %v541, %v624
  %v626 = vpop.f32.mrb[0].mxu0
  %627 = vmatprep.mubr.bf16.mxu0 0
  %628 = vmatmul.mubr.bf16.gmra.mrb[0].mxu0 %v562
  %v629 = vpop.f32.mrb[0].mxu0
  %v630 = vadd.f32 %v541, %v629
  %v631 = vpop.f32.mrb[0].mxu0
  %v632 = vpop.f32.mrb[0].mxu0
  %v633 = vadd.f32 %v541, %v632
  %v634 = vpop.f32.mrb[0].mxu0
  %635 = vmatprep.mubr.bf16.mxu0 0
  %636 = vmatmul.mubr.bf16.gmra.mrb[0].mxu0 %v565
  %v637 = vpop.f32.mrb[0].mxu0
  %v638 = vadd.f32 %v541, %v637
  %v639 = vpop.f32.mrb[0].mxu0
  %v640 = vpop.f32.mrb[0].mxu0
  %v641 = vadd.f32 %v541, %v640
  %v642 = vpop.f32.mrb[0].mxu0
  %643 = vmatprep.mubr.bf16.mxu0 0
  %644 = vmatmul.mubr.bf16.gmra.mrb[0].mxu0 %v568
  %v645 = vpop.f32.mrb[0].mxu0
  %v646 = vadd.f32 %v541, %v645
  %v647 = vpop.f32.mrb[0].mxu0
  %v648 = vpop.f32.mrb[0].mxu0
  %v649 = vadd.f32 %v541, %v648
  %v650 = vpop.f32.mrb[0].mxu0
  %651 = vmatprep.mubr.bf16.mxu0 0
  %652 = vmatmul.mubr.bf16.gmra.mrb[0].mxu0 %v571
  %v653 = vpop.f32.mrb[0].mxu0
  %v654 = vadd.f32 %v541, %v653
  %v655 = vpop.f32.mrb[0].mxu0
  %v656 = vpop.f32.mrb[0].mxu0
  %v657 = vadd.f32 %v541, %v656
  %v658 = vpop.f32.mrb[0].mxu0
  %659 = vmatprep.mubr.bf16.mxu0 0
  %660 = vmatmul.mubr.bf16.gmra.mrb[0].mxu0 %v574
  %v661 = vpop.f32.mrb[0].mxu0
  %v662 = vadd.f32 %v541, %v661
  %v663 = vpop.f32.mrb[0].mxu0
  %v664 = vpop.f32.mrb[0].mxu0
  %v665 = vadd.f32 %v541, %v664
  %v666 = vpop.f32.mrb[0].mxu0
  %667 = vmatprep.mubr.bf16.mxu0 0
  %668 = vmatmul.mubr.bf16.gmra.mrb[0].mxu0 %v577
  %v669 = vpop.f32.mrb[0].mxu0
  %v670 = vadd.f32 %v541, %v669
  %v671 = vpop.f32.mrb[0].mxu0
  %v672 = vpop.f32.mrb[0].mxu0
  %v673 = vadd.f32 %v541, %v672
  %v674 = vpop.f32.mrb[0].mxu0
  %675 = vdwg.mxu0
  %v676 = vmul.f32 %v614, 0.5
  %v677 = vmul.f32 %v617, 0.5
  %v678 = vmul.f32 %v622, 0.5
  %v679 = vmul.f32 %v625, 0.5
  %v680 = vmul.f32 %v630, 0.5
  %v681 = vmul.f32 %v633, 0.5
  %v682 = vmul.f32 %v638, 0.5
  %v683 = vmul.f32 %v641, 0.5
  %v684 = vmul.f32 %v646, 0.5
  %v685 = vmul.f32 %v649, 0.5
  %v686 = vmul.f32 %v654, 0.5
  %v687 = vmul.f32 %v657, 0.5
  %v688 = vmul.f32 %v662, 0.5
  %v689 = vmul.f32 %v665, 0.5
  %v690 = vmul.f32 %v670, 0.5
  %v691 = vmul.f32 %v673, 0.5
  %v692 = vmul.f32 %v614, 0.70710677
  %v693 = vmul.f32 %v617, 0.70710677
  %v694 = vmul.f32 %v622, 0.70710677
  %v695 = vmul.f32 %v625, 0.70710677
  %v696 = vmul.f32 %v630, 0.70710677
  %v697 = vmul.f32 %v633, 0.70710677
  %v698 = vmul.f32 %v638, 0.70710677
  %v699 = vmul.f32 %v641, 0.70710677
  %v700 = vmul.f32 %v646, 0.70710677
  %v701 = vmul.f32 %v649, 0.70710677
  %v702 = vmul.f32 %v654, 0.70710677
  %v703 = vmul.f32 %v657, 0.70710677
  %v704 = vmul.f32 %v662, 0.70710677
  %v705 = vmul.f32 %v665, 0.70710677
  %v706 = vmul.f32 %v670, 0.70710677
  %v707 = vmul.f32 %v673, 0.70710677
  %v708 = vand.u32 2147483647, %v692
  %v709 = vand.u32 2147483647, %v693
  %v710 = vand.u32 2147483647, %v694
  %v711 = vand.u32 2147483647, %v695
  %v712 = vand.u32 2147483647, %v696
  %v713 = vand.u32 2147483647, %v697
  %v714 = vand.u32 2147483647, %v698
  %v715 = vand.u32 2147483647, %v699
  %v716 = vand.u32 2147483647, %v700
  %v717 = vand.u32 2147483647, %v701
  %v718 = vand.u32 2147483647, %v702
  %v719 = vand.u32 2147483647, %v703
  %v720 = vand.u32 2147483647, %v704
  %v721 = vand.u32 2147483647, %v705
  %v722 = vand.u32 2147483647, %v706
  %v723 = vand.u32 2147483647, %v707
  %v724 = vmul.f32 %v708, 0.3275911
  %v725 = vmul.f32 %v709, 0.3275911
  %v726 = vmul.f32 %v710, 0.3275911
  %v727 = vmul.f32 %v711, 0.3275911
  %v728 = vmul.f32 %v712, 0.3275911
  %v729 = vmul.f32 %v713, 0.3275911
  %v730 = vmul.f32 %v714, 0.3275911
  %v731 = vmul.f32 %v715, 0.3275911
  %v732 = vmul.f32 %v716, 0.3275911
  %v733 = vmul.f32 %v717, 0.3275911
  %v734 = vmul.f32 %v718, 0.3275911
  %v735 = vmul.f32 %v719, 0.3275911
  %v736 = vmul.f32 %v720, 0.3275911
  %v737 = vmul.f32 %v721, 0.3275911
  %v738 = vmul.f32 %v722, 0.3275911
  %v739 = vmul.f32 %v723, 0.3275911
  %v740 = vadd.f32 %v724, 1.0
  %v741 = vadd.f32 %v725, 1.0
  %v742 = vadd.f32 %v726, 1.0
  %v743 = vadd.f32 %v727, 1.0
  %v744 = vadd.f32 %v728, 1.0
  %v745 = vadd.f32 %v729, 1.0
  %v746 = vadd.f32 %v730, 1.0
  %v747 = vadd.f32 %v731, 1.0
  %v748 = vadd.f32 %v732, 1.0
  %v749 = vadd.f32 %v733, 1.0
  %v750 = vadd.f32 %v734, 1.0
  %v751 = vadd.f32 %v735, 1.0
  %v752 = vadd.f32 %v736, 1.0
  %v753 = vadd.f32 %v737, 1.0
  %v754 = vadd.f32 %v738, 1.0
  %v755 = vadd.f32 %v739, 1.0
  %v756 = vrcp.pop %v740
  %v757 = vmul.f32 1.0, %v756
  %v758 = vrcp.pop %v741
  %v759 = vmul.f32 1.0, %v758
  %v760 = vrcp.pop %v742
  %v761 = vmul.f32 1.0, %v760
  %v762 = vrcp.pop %v743
  %v763 = vmul.f32 1.0, %v762
  %v764 = vrcp.pop %v744
  %v765 = vmul.f32 1.0, %v764
  %v766 = vrcp.pop %v745
  %v767 = vmul.f32 1.0, %v766
  %v768 = vrcp.pop %v746
  %v769 = vmul.f32 1.0, %v768
  %v770 = vrcp.pop %v747
  %v771 = vmul.f32 1.0, %v770
  %v772 = vrcp.pop %v748
  %v773 = vmul.f32 1.0, %v772
  %v774 = vrcp.pop %v749
  %v775 = vmul.f32 1.0, %v774
  %v776 = vrcp.pop %v750
  %v777 = vmul.f32 1.0, %v776
  %v778 = vrcp.pop %v751
  %v779 = vmul.f32 1.0, %v778
  %v780 = vrcp.pop %v752
  %v781 = vmul.f32 1.0, %v780
  %v782 = vrcp.pop %v753
  %v783 = vmul.f32 1.0, %v782
  %v784 = vrcp.pop %v754
  %v785 = vmul.f32 1.0, %v784
  %v786 = vrcp.pop %v755
  %v787 = vmul.f32 1.0, %v786
  %v788 = vmul.f32 %v757, 1.0614054
  %v789 = vmul.f32 %v759, 1.0614054
  %v790 = vmul.f32 %v761, 1.0614054
  %v791 = vmul.f32 %v763, 1.0614054
  %v792 = vmul.f32 %v765, 1.0614054
  %v793 = vmul.f32 %v767, 1.0614054
  %v794 = vmul.f32 %v769, 1.0614054
  %v795 = vmul.f32 %v771, 1.0614054
  %v796 = vmul.f32 %v773, 1.0614054
  %v797 = vmul.f32 %v775, 1.0614054
  %v798 = vmul.f32 %v777, 1.0614054
  %v799 = vmul.f32 %v779, 1.0614054
  %v800 = vmul.f32 %v781, 1.0614054
  %v801 = vmul.f32 %v783, 1.0614054
  %v802 = vmul.f32 %v785, 1.0614054
  %v803 = vmul.f32 %v787, 1.0614054
  %v804 = vadd.f32 %v788, -1.4531521
  %v805 = vadd.f32 %v789, -1.4531521
  %v806 = vadd.f32 %v790, -1.4531521
  %v807 = vadd.f32 %v791, -1.4531521
  %v808 = vadd.f32 %v792, -1.4531521
  %v809 = vadd.f32 %v793, -1.4531521
  %v810 = vadd.f32 %v794, -1.4531521
  %v811 = vadd.f32 %v795, -1.4531521
  %v812 = vadd.f32 %v796, -1.4531521
  %v813 = vadd.f32 %v797, -1.4531521
  %v814 = vadd.f32 %v798, -1.4531521
  %v815 = vadd.f32 %v799, -1.4531521
  %v816 = vadd.f32 %v800, -1.4531521
  %v817 = vadd.f32 %v801, -1.4531521
  %v818 = vadd.f32 %v802, -1.4531521
  %v819 = vadd.f32 %v803, -1.4531521
  %v820 = vmul.f32 %v804, %v757
  %v821 = vmul.f32 %v805, %v759
  %v822 = vmul.f32 %v806, %v761
  %v823 = vmul.f32 %v807, %v763
  %v824 = vmul.f32 %v808, %v765
  %v825 = vmul.f32 %v809, %v767
  %v826 = vmul.f32 %v810, %v769
  %v827 = vmul.f32 %v811, %v771
  %v828 = vmul.f32 %v812, %v773
  %v829 = vmul.f32 %v813, %v775
  %v830 = vmul.f32 %v814, %v777
  %v831 = vmul.f32 %v815, %v779
  %v832 = vmul.f32 %v816, %v781
  %v833 = vmul.f32 %v817, %v783
  %v834 = vmul.f32 %v818, %v785
  %v835 = vmul.f32 %v819, %v787
  %v836 = vadd.f32 %v820, 1.4214138
  %v837 = vadd.f32 %v821, 1.4214138
  %v838 = vadd.f32 %v822, 1.4214138
  %v839 = vadd.f32 %v823, 1.4214138
  %v840 = vadd.f32 %v824, 1.4214138
  %v841 = vadd.f32 %v825, 1.4214138
  %v842 = vadd.f32 %v826, 1.4214138
  %v843 = vadd.f32 %v827, 1.4214138
  %v844 = vadd.f32 %v828, 1.4214138
  %v845 = vadd.f32 %v829, 1.4214138
  %v846 = vadd.f32 %v830, 1.4214138
  %v847 = vadd.f32 %v831, 1.4214138
  %v848 = vadd.f32 %v832, 1.4214138
  %v849 = vadd.f32 %v833, 1.4214138
  %v850 = vadd.f32 %v834, 1.4214138
  %v851 = vadd.f32 %v835, 1.4214138
  %v852 = vmul.f32 %v836, %v757
  %v853 = vmul.f32 %v837, %v759
  %v854 = vmul.f32 %v838, %v761
  %v855 = vmul.f32 %v839, %v763
  %v856 = vmul.f32 %v840, %v765
  %v857 = vmul.f32 %v841, %v767
  %v858 = vmul.f32 %v842, %v769
  %v859 = vmul.f32 %v843, %v771
  %v860 = vmul.f32 %v844, %v773
  %v861 = vmul.f32 %v845, %v775
  %v862 = vmul.f32 %v846, %v777
  %v863 = vmul.f32 %v847, %v779
  %v864 = vmul.f32 %v848, %v781
  %v865 = vmul.f32 %v849, %v783
  %v866 = vmul.f32 %v850, %v785
  %v867 = vmul.f32 %v851, %v787
  %v868 = vadd.f32 %v852, -0.28449672
  %v869 = vadd.f32 %v853, -0.28449672
  %v870 = vadd.f32 %v854, -0.28449672
  %v871 = vadd.f32 %v855, -0.28449672
  %v872 = vadd.f32 %v856, -0.28449672
  %v873 = vadd.f32 %v857, -0.28449672
  %v874 = vadd.f32 %v858, -0.28449672
  %v875 = vadd.f32 %v859, -0.28449672
  %v876 = vadd.f32 %v860, -0.28449672
  %v877 = vadd.f32 %v861, -0.28449672
  %v878 = vadd.f32 %v862, -0.28449672
  %v879 = vadd.f32 %v863, -0.28449672
  %v880 = vadd.f32 %v864, -0.28449672
  %v881 = vadd.f32 %v865, -0.28449672
  %v882 = vadd.f32 %v866, -0.28449672
  %v883 = vadd.f32 %v867, -0.28449672
  %v884 = vmul.f32 %v868, %v757
  %v885 = vmul.f32 %v869, %v759
  %v886 = vmul.f32 %v870, %v761
  %v887 = vmul.f32 %v871, %v763
  %v888 = vmul.f32 %v872, %v765
  %v889 = vmul.f32 %v873, %v767
  %v890 = vmul.f32 %v874, %v769
  %v891 = vmul.f32 %v875, %v771
  %v892 = vmul.f32 %v876, %v773
  %v893 = vmul.f32 %v877, %v775
  %v894 = vmul.f32 %v878, %v777
  %v895 = vmul.f32 %v879, %v779
  %v896 = vmul.f32 %v880, %v781
  %v897 = vmul.f32 %v881, %v783
  %v898 = vmul.f32 %v882, %v785
  %v899 = vmul.f32 %v883, %v787
  %v900 = vadd.f32 %v884, 0.2548296
  %v901 = vadd.f32 %v885, 0.2548296
  %v902 = vadd.f32 %v886, 0.2548296
  %v903 = vadd.f32 %v887, 0.2548296
  %v904 = vadd.f32 %v888, 0.2548296
  %v905 = vadd.f32 %v889, 0.2548296
  %v906 = vadd.f32 %v890, 0.2548296
  %v907 = vadd.f32 %v891, 0.2548296
  %v908 = vadd.f32 %v892, 0.2548296
  %v909 = vadd.f32 %v893, 0.2548296
  %v910 = vadd.f32 %v894, 0.2548296
  %v911 = vadd.f32 %v895, 0.2548296
  %v912 = vadd.f32 %v896, 0.2548296
  %v913 = vadd.f32 %v897, 0.2548296
  %v914 = vadd.f32 %v898, 0.2548296
  %v915 = vadd.f32 %v899, 0.2548296
  %v916 = vmul.f32 %v900, %v757
  %v917 = vmul.f32 %v901, %v759
  %v918 = vmul.f32 %v902, %v761
  %v919 = vmul.f32 %v903, %v763
  %v920 = vmul.f32 %v904, %v765
  %v921 = vmul.f32 %v905, %v767
  %v922 = vmul.f32 %v906, %v769
  %v923 = vmul.f32 %v907, %v771
  %v924 = vmul.f32 %v908, %v773
  %v925 = vmul.f32 %v909, %v775
  %v926 = vmul.f32 %v910, %v777
  %v927 = vmul.f32 %v911, %v779
  %v928 = vmul.f32 %v912, %v781
  %v929 = vmul.f32 %v913, %v783
  %v930 = vmul.f32 %v914, %v785
  %v931 = vmul.f32 %v915, %v787
  %v932 = vsub.f32 0.0, %v708
  %v933 = vsub.f32 0.0, %v709
  %v934 = vsub.f32 0.0, %v710
  %v935 = vsub.f32 0.0, %v711
  %v936 = vsub.f32 0.0, %v712
  %v937 = vsub.f32 0.0, %v713
  %v938 = vsub.f32 0.0, %v714
  %v939 = vsub.f32 0.0, %v715
  %v940 = vsub.f32 0.0, %v716
  %v941 = vsub.f32 0.0, %v717
  %v942 = vsub.f32 0.0, %v718
  %v943 = vsub.f32 0.0, %v719
  %v944 = vsub.f32 0.0, %v720
  %v945 = vsub.f32 0.0, %v721
  %v946 = vsub.f32 0.0, %v722
  %v947 = vsub.f32 0.0, %v723
  %v948 = vmul.f32 %v932, %v708
  %v949 = vmul.f32 %v933, %v709
  %v950 = vmul.f32 %v934, %v710
  %v951 = vmul.f32 %v935, %v711
  %v952 = vmul.f32 %v936, %v712
  %v953 = vmul.f32 %v937, %v713
  %v954 = vmul.f32 %v938, %v714
  %v955 = vmul.f32 %v939, %v715
  %v956 = vmul.f32 %v940, %v716
  %v957 = vmul.f32 %v941, %v717
  %v958 = vmul.f32 %v942, %v718
  %v959 = vmul.f32 %v943, %v719
  %v960 = vmul.f32 %v944, %v720
  %v961 = vmul.f32 %v945, %v721
  %v962 = vmul.f32 %v946, %v722
  %v963 = vmul.f32 %v947, %v723
  %v964 = vmul.f32 %v948, 1.442695
  %v965 = vpow.pop %v964
  %v966 = vmul.f32 %v949, 1.442695
  %v967 = vpow.pop %v966
  %v968 = vmul.f32 %v950, 1.442695
  %v969 = vpow.pop %v968
  %v970 = vmul.f32 %v951, 1.442695
  %v971 = vpow.pop %v970
  %v972 = vmul.f32 %v952, 1.442695
  %v973 = vpow.pop %v972
  %v974 = vmul.f32 %v953, 1.442695
  %v975 = vpow.pop %v974
  %v976 = vmul.f32 %v954, 1.442695
  %v977 = vpow.pop %v976
  %v978 = vmul.f32 %v955, 1.442695
  %v979 = vpow.pop %v978
  %v980 = vmul.f32 %v956, 1.442695
  %v981 = vpow.pop %v980
  %v982 = vmul.f32 %v957, 1.442695
  %v983 = vpow.pop %v982
  %v984 = vmul.f32 %v958, 1.442695
  %v985 = vpow.pop %v984
  %v986 = vmul.f32 %v959, 1.442695
  %v987 = vpow.pop %v986
  %v988 = vmul.f32 %v960, 1.442695
  %v989 = vpow.pop %v988
  %v990 = vmul.f32 %v961, 1.442695
  %v991 = vpow.pop %v990
  %v992 = vmul.f32 %v962, 1.442695
  %v993 = vpow.pop %v992
  %v994 = vmul.f32 %v963, 1.442695
  %v995 = vpow.pop %v994
  %v996 = vmul.f32 %v916, %v965
  %v997 = vmul.f32 %v917, %v967
  %v998 = vmul.f32 %v918, %v969
  %v999 = vmul.f32 %v919, %v971
  %v1000 = vmul.f32 %v920, %v973
  %v1001 = vmul.f32 %v921, %v975
  %v1002 = vmul.f32 %v922, %v977
  %v1003 = vmul.f32 %v923, %v979
  %v1004 = vmul.f32 %v924, %v981
  %v1005 = vmul.f32 %v925, %v983
  %v1006 = vmul.f32 %v926, %v985
  %v1007 = vmul.f32 %v927, %v987
  %v1008 = vmul.f32 %v928, %v989
  %v1009 = vmul.f32 %v929, %v991
  %v1010 = vmul.f32 %v930, %v993
  %v1011 = vmul.f32 %v931, %v995
  %v1012 = vsub.f32 1.0, %v996
  %v1013 = vsub.f32 1.0, %v997
  %v1014 = vsub.f32 1.0, %v998
  %v1015 = vsub.f32 1.0, %v999
  %v1016 = vsub.f32 1.0, %v1000
  %v1017 = vsub.f32 1.0, %v1001
  %v1018 = vsub.f32 1.0, %v1002
  %v1019 = vsub.f32 1.0, %v1003
  %v1020 = vsub.f32 1.0, %v1004
  %v1021 = vsub.f32 1.0, %v1005
  %v1022 = vsub.f32 1.0, %v1006
  %v1023 = vsub.f32 1.0, %v1007
  %v1024 = vsub.f32 1.0, %v1008
  %v1025 = vsub.f32 1.0, %v1009
  %v1026 = vsub.f32 1.0, %v1010
  %v1027 = vsub.f32 1.0, %v1011
  %vm1028 = vcmp.ge.f32.partialorder %v692, 0.0
  %vm1029 = vcmp.ge.f32.partialorder %v693, 0.0
  %vm1030 = vcmp.ge.f32.partialorder %v694, 0.0
  %vm1031 = vcmp.ge.f32.partialorder %v695, 0.0
  %vm1032 = vcmp.ge.f32.partialorder %v696, 0.0
  %vm1033 = vcmp.ge.f32.partialorder %v697, 0.0
  %vm1034 = vcmp.ge.f32.partialorder %v698, 0.0
  %vm1035 = vcmp.ge.f32.partialorder %v699, 0.0
  %vm1036 = vcmp.ge.f32.partialorder %v700, 0.0
  %vm1037 = vcmp.ge.f32.partialorder %v701, 0.0
  %vm1038 = vcmp.ge.f32.partialorder %v702, 0.0
  %vm1039 = vcmp.ge.f32.partialorder %v703, 0.0
  %vm1040 = vcmp.ge.f32.partialorder %v704, 0.0
  %vm1041 = vcmp.ge.f32.partialorder %v705, 0.0
  %vm1042 = vcmp.ge.f32.partialorder %v706, 0.0
  %vm1043 = vcmp.ge.f32.partialorder %v707, 0.0
  %v1044 = vsub.f32 0.0, %v1012
  %v1045 = vsub.f32 0.0, %v1013
  %v1046 = vsub.f32 0.0, %v1014
  %v1047 = vsub.f32 0.0, %v1015
  %v1048 = vsub.f32 0.0, %v1016
  %v1049 = vsub.f32 0.0, %v1017
  %v1050 = vsub.f32 0.0, %v1018
  %v1051 = vsub.f32 0.0, %v1019
  %v1052 = vsub.f32 0.0, %v1020
  %v1053 = vsub.f32 0.0, %v1021
  %v1054 = vsub.f32 0.0, %v1022
  %v1055 = vsub.f32 0.0, %v1023
  %v1056 = vsub.f32 0.0, %v1024
  %v1057 = vsub.f32 0.0, %v1025
  %v1058 = vsub.f32 0.0, %v1026
  %v1059 = vsub.f32 0.0, %v1027
  %v1060 = vsel %vm1028, %v1012, %v1044
  %v1061 = vsel %vm1029, %v1013, %v1045
  %v1062 = vsel %vm1030, %v1014, %v1046
  %v1063 = vsel %vm1031, %v1015, %v1047
  %v1064 = vsel %vm1032, %v1016, %v1048
  %v1065 = vsel %vm1033, %v1017, %v1049
  %v1066 = vsel %vm1034, %v1018, %v1050
  %v1067 = vsel %vm1035, %v1019, %v1051
  %v1068 = vsel %vm1036, %v1020, %v1052
  %v1069 = vsel %vm1037, %v1021, %v1053
  %v1070 = vsel %vm1038, %v1022, %v1054
  %v1071 = vsel %vm1039, %v1023, %v1055
  %v1072 = vsel %vm1040, %v1024, %v1056
  %v1073 = vsel %vm1041, %v1025, %v1057
  %v1074 = vsel %vm1042, %v1026, %v1058
  %v1075 = vsel %vm1043, %v1027, %v1059
  %v1076 = vadd.f32 %v1060, 1.0
  %v1077 = vadd.f32 %v1061, 1.0
  %v1078 = vadd.f32 %v1062, 1.0
  %v1079 = vadd.f32 %v1063, 1.0
  %v1080 = vadd.f32 %v1064, 1.0
  %v1081 = vadd.f32 %v1065, 1.0
  %v1082 = vadd.f32 %v1066, 1.0
  %v1083 = vadd.f32 %v1067, 1.0
  %v1084 = vadd.f32 %v1068, 1.0
  %v1085 = vadd.f32 %v1069, 1.0
  %v1086 = vadd.f32 %v1070, 1.0
  %v1087 = vadd.f32 %v1071, 1.0
  %v1088 = vadd.f32 %v1072, 1.0
  %v1089 = vadd.f32 %v1073, 1.0
  %v1090 = vadd.f32 %v1074, 1.0
  %v1091 = vadd.f32 %v1075, 1.0
  %v1092 = vmul.f32 %v676, %v1076
  %v1093 = vmul.f32 %v677, %v1077
  %v1094 = vmul.f32 %v678, %v1078
  %v1095 = vmul.f32 %v679, %v1079
  %v1096 = vmul.f32 %v680, %v1080
  %v1097 = vmul.f32 %v681, %v1081
  %v1098 = vmul.f32 %v682, %v1082
  %v1099 = vmul.f32 %v683, %v1083
  %v1100 = vmul.f32 %v684, %v1084
  %v1101 = vmul.f32 %v685, %v1085
  %v1102 = vmul.f32 %v686, %v1086
  %v1103 = vmul.f32 %v687, %v1087
  %v1104 = vmul.f32 %v688, %v1088
  %v1105 = vmul.f32 %v689, %v1089
  %v1106 = vmul.f32 %v690, %v1090
  %v1107 = vmul.f32 %v691, %v1091
  %v1108 = vpack.c.bf16 %v1093, %v1092
  %v1109 = vpack.c.bf16 %v1095, %v1094
  %v1110 = vpack.c.bf16 %v1097, %v1096
  %v1111 = vpack.c.bf16 %v1099, %v1098
  %v1112 = vpack.c.bf16 %v1101, %v1100
  %v1113 = vpack.c.bf16 %v1103, %v1102
  %v1114 = vpack.c.bf16 %v1105, %v1104
  %v1115 = vpack.c.bf16 %v1107, %v1106
  %v1116 = vld [vmem:[%s8] sm:$0xf]
  %v1117 = vld [vmem:[%s8 + $0x4] sm:$0xf]
  %v1118 = vld [vmem:[%s8 + $0x8] sm:$0xf]
  %v1119 = vld [vmem:[%s8 + $0xc] sm:$0xf]
  %v1120 = vld [vmem:[%s8 + $0x10] sm:$0xf]
  %v1121 = vld [vmem:[%s8 + $0x14] sm:$0xf]
  %v1122 = vld [vmem:[%s8 + $0x18] sm:$0xf]
  %v1123 = vld [vmem:[%s8 + $0x1c] sm:$0xf]
  %v1124 = vld [vmem:[%s8 + $0x20] sm:$0xf]
  %v1125 = vld [vmem:[%s8 + $0x24] sm:$0xf]
  %v1126 = vld [vmem:[%s8 + $0x28] sm:$0xf]
  %v1127 = vld [vmem:[%s8 + $0x2c] sm:$0xf]
  %v1128 = vld [vmem:[%s8 + $0x30] sm:$0xf]
  %v1129 = vld [vmem:[%s8 + $0x34] sm:$0xf]
  %v1130 = vld [vmem:[%s8 + $0x38] sm:$0xf]
  %v1131 = vld [vmem:[%s8 + $0x3c] sm:$0xf]
  %v1132 = vld [vmem:[%s9] sm:$0x1]
  %v1134 = vlaneseq
  %v1135 = vshrl.u32 %v1134, 7
  %v1136 = vsub.s32 0, %v1135
  %v1137 = vrot.slane %v1132, %v1136
  %v1155 = vunpack.c.l.b16 %v1116
  %v1156 = vunpack.c.l.b16 %v1117
  %v1157 = vunpack.c.l.b16 %v1118
  %v1158 = vunpack.c.l.b16 %v1119
  %v1159 = vunpack.c.l.b16 %v1120
  %v1160 = vunpack.c.l.b16 %v1121
  %v1161 = vunpack.c.l.b16 %v1122
  %v1162 = vunpack.c.l.b16 %v1123
  %v1163 = vunpack.c.l.b16 %v1124
  %v1164 = vunpack.c.l.b16 %v1125
  %v1165 = vunpack.c.l.b16 %v1126
  %v1166 = vunpack.c.l.b16 %v1127
  %v1167 = vunpack.c.l.b16 %v1128
  %v1168 = vunpack.c.l.b16 %v1129
  %v1169 = vunpack.c.l.b16 %v1130
  %v1170 = vunpack.c.l.b16 %v1131
  %v1171 = vpack.c.b16 %v1156, %v1155
  %v1172 = vpack.c.b16 %v1158, %v1157
  %v1173 = vpack.c.b16 %v1160, %v1159
  %v1174 = vpack.c.b16 %v1162, %v1161
  %v1175 = vpack.c.b16 %v1164, %v1163
  %v1176 = vpack.c.b16 %v1166, %v1165
  %v1177 = vpack.c.b16 %v1168, %v1167
  %v1178 = vpack.c.b16 %v1170, %v1169
  %1187 = vmatprep.subr.bf16.mxu0 0
  %1188 = vmatpush1.bf16.msra.mxu0 %v1171
  %1189 = vmatprep.subr.bf16.mxu0 0
  %1190 = vmatpush1.bf16.msra.mxu0 %v1172
  %1191 = vmatprep.subr.bf16.mxu0 0
  %1192 = vmatpush1.bf16.msra.mxu0 %v1173
  %1193 = vmatprep.subr.bf16.mxu0 0
  %1194 = vmatpush1.bf16.msra.mxu0 %v1174
  %1195 = vmatprep.subr.bf16.mxu0 0
  %1196 = vmatpush1.bf16.msra.mxu0 %v1175
  %1197 = vmatprep.subr.bf16.mxu0 0
  %1198 = vmatpush1.bf16.msra.mxu0 %v1176
  %1199 = vmatprep.subr.bf16.mxu0 0
  %1200 = vmatpush1.bf16.msra.mxu0 %v1177
  %1201 = vmatprep.subr.bf16.mxu0 0
  %1202 = vmatpush1.bf16.msra.mxu0 %v1178
  %1203 = vmatprep.subr.bf16.mxu0 0
  %1204 = vmatpush1.bf16.msra.mxu0 0
  %1205 = vmatprep.subr.bf16.mxu0 0
  %1206 = vmatpush1.bf16.msra.mxu0 0
  %1207 = vmatprep.subr.bf16.mxu0 0
  %1208 = vmatpush1.bf16.msra.mxu0 0
  %1209 = vmatprep.subr.bf16.mxu0 0
  %1210 = vmatpush1.bf16.msra.mxu0 0
  %1211 = vmatprep.subr.bf16.mxu0 0
  %1212 = vmatpush1.bf16.msra.mxu0 0
  %1213 = vmatprep.subr.bf16.mxu0 0
  %1214 = vmatpush1.bf16.msra.mxu0 0
  %1215 = vmatprep.subr.bf16.mxu0 0
  %1216 = vmatpush1.bf16.msra.mxu0 0
  %1217 = vmatprep.subr.bf16.mxu0 0
  %1218 = vmatpush1.bf16.msra.mxu0 0
  %1219 = vmatprep.mubr.bf16.mxu0 0
  %1220 = vmatmul.mubr.bf16.gmra.mrb[0].mxu0 %v1108
  %v1221 = vpop.f32.mrb[0].mxu0
  %v1222 = vadd.f32 %v1137, %v1221
  %v1223 = vpop.f32.mrb[0].mxu0
  %v1224 = vpop.f32.mrb[0].mxu0
  %v1225 = vadd.f32 %v1137, %v1224
  %v1226 = vpop.f32.mrb[0].mxu0
  %1227 = vmatprep.mubr.bf16.mxu0 0
  %1228 = vmatmul.mubr.bf16.gmra.mrb[0].mxu0 %v1109
  %v1229 = vpop.f32.mrb[0].mxu0
  %v1230 = vadd.f32 %v1137, %v1229
  %v1231 = vpop.f32.mrb[0].mxu0
  %v1232 = vpop.f32.mrb[0].mxu0
  %v1233 = vadd.f32 %v1137, %v1232
  %v1234 = vpop.f32.mrb[0].mxu0
  %1235 = vmatprep.mubr.bf16.mxu0 0
  %1236 = vmatmul.mubr.bf16.gmra.mrb[0].mxu0 %v1110
  %v1237 = vpop.f32.mrb[0].mxu0
  %v1238 = vadd.f32 %v1137, %v1237
  %v1239 = vpop.f32.mrb[0].mxu0
  %v1240 = vpop.f32.mrb[0].mxu0
  %v1241 = vadd.f32 %v1137, %v1240
  %v1242 = vpop.f32.mrb[0].mxu0
  %1243 = vmatprep.mubr.bf16.mxu0 0
  %1244 = vmatmul.mubr.bf16.gmra.mrb[0].mxu0 %v1111
  %v1245 = vpop.f32.mrb[0].mxu0
  %v1246 = vadd.f32 %v1137, %v1245
  %v1247 = vpop.f32.mrb[0].mxu0
  %v1248 = vpop.f32.mrb[0].mxu0
  %v1249 = vadd.f32 %v1137, %v1248
  %v1250 = vpop.f32.mrb[0].mxu0
  %1251 = vmatprep.mubr.bf16.mxu0 0
  %1252 = vmatmul.mubr.bf16.gmra.mrb[0].mxu0 %v1112
  %v1253 = vpop.f32.mrb[0].mxu0
  %v1254 = vadd.f32 %v1137, %v1253
  %v1255 = vpop.f32.mrb[0].mxu0
  %v1256 = vpop.f32.mrb[0].mxu0
  %v1257 = vadd.f32 %v1137, %v1256
  %v1258 = vpop.f32.mrb[0].mxu0
  %1259 = vmatprep.mubr.bf16.mxu0 0
  %1260 = vmatmul.mubr.bf16.gmra.mrb[0].mxu0 %v1113
  %v1261 = vpop.f32.mrb[0].mxu0
  %v1262 = vadd.f32 %v1137, %v1261
  %v1263 = vpop.f32.mrb[0].mxu0
  %v1264 = vpop.f32.mrb[0].mxu0
  %v1265 = vadd.f32 %v1137, %v1264
  %v1266 = vpop.f32.mrb[0].mxu0
  %1267 = vmatprep.mubr.bf16.mxu0 0
  %1268 = vmatmul.mubr.bf16.gmra.mrb[0].mxu0 %v1114
  %v1269 = vpop.f32.mrb[0].mxu0
  %v1270 = vadd.f32 %v1137, %v1269
  %v1271 = vpop.f32.mrb[0].mxu0
  %v1272 = vpop.f32.mrb[0].mxu0
  %v1273 = vadd.f32 %v1137, %v1272
  %v1274 = vpop.f32.mrb[0].mxu0
  %1275 = vmatprep.mubr.bf16.mxu0 0
  %1276 = vmatmul.mubr.bf16.gmra.mrb[0].mxu0 %v1115
  %v1277 = vpop.f32.mrb[0].mxu0
  %v1278 = vadd.f32 %v1137, %v1277
  %v1279 = vpop.f32.mrb[0].mxu0
  %v1280 = vpop.f32.mrb[0].mxu0
  %v1281 = vadd.f32 %v1137, %v1280
  %v1282 = vpop.f32.mrb[0].mxu0
  %1283 = vdwg.mxu0
  %v1284 = vadd.f32 %v253, %v1222
  %v1285 = vadd.f32 %v254, %v1225
  %v1286 = vadd.f32 %v255, %v1230
  %v1287 = vadd.f32 %v256, %v1233
  %v1288 = vadd.f32 %v257, %v1238
  %v1289 = vadd.f32 %v258, %v1241
  %v1290 = vadd.f32 %v259, %v1246
  %v1291 = vadd.f32 %v260, %v1249
  %v1292 = vadd.f32 %v261, %v1254
  %v1293 = vadd.f32 %v262, %v1257
  %v1294 = vadd.f32 %v263, %v1262
  %v1295 = vadd.f32 %v264, %v1265
  %v1296 = vadd.f32 %v265, %v1270
  %v1297 = vadd.f32 %v266, %v1273
  %v1298 = vadd.f32 %v267, %v1278
  %v1299 = vadd.f32 %v268, %v1281
  %1300 = vst.msk [vmem:[%s10] sm:$0xff] %vm115, %v1284
  %1301 = vst.msk [vmem:[%s10 + $0x8] sm:$0xff] %vm115, %v1285
  %1302 = vst.msk [vmem:[%s10 + $0x10] sm:$0xff] %vm115, %v1286
  %1303 = vst.msk [vmem:[%s10 + $0x18] sm:$0xff] %vm115, %v1287
  %1304 = vst.msk [vmem:[%s10 + $0x20] sm:$0xff] %vm115, %v1288
  %1305 = vst.msk [vmem:[%s10 + $0x28] sm:$0xff] %vm115, %v1289
  %1306 = vst.msk [vmem:[%s10 + $0x30] sm:$0xff] %vm115, %v1290
  %1307 = vst.msk [vmem:[%s10 + $0x38] sm:$0xff] %vm115, %v1291
  %1308 = vst.msk [vmem:[%s10 + $0x40] sm:$0xff] %vm115, %v1292
  %1309 = vst.msk [vmem:[%s10 + $0x48] sm:$0xff] %vm115, %v1293
  %1310 = vst.msk [vmem:[%s10 + $0x50] sm:$0xff] %vm115, %v1294
  %1311 = vst.msk [vmem:[%s10 + $0x58] sm:$0xff] %vm115, %v1295
  %1312 = vst.msk [vmem:[%s10 + $0x60] sm:$0xff] %vm115, %v1296
  %1313 = vst.msk [vmem:[%s10 + $0x68] sm:$0xff] %vm115, %v1297
  %1314 = vst.msk [vmem:[%s10 + $0x70] sm:$0xff] %vm115, %v1298
  %1315 = vst.msk [vmem:[%s10 + $0x78] sm:$0xff] %vm115, %v1299
  // Predicated region
  $region42: #{basic_layer_forward.8} parent=0 // pred_check
    _
  $region43: #{basic_layer_forward.8} parent=0 // pred_check_branch
    %1317 = sbr.rel (0) target = $region45
  $region44: #{basic_layer_forward.8} parent=0 // pred_region
    _
  $region45: #{basic_layer_forward.8} parent=0 // pred_fallthru
    _
  // Predicated region
  $region46: #{basic_layer_forward.8} parent=0 // pred_check
    _
  $region47: #{basic_layer_forward.8} parent=0 // pred_check_branch
    %1319 = sbr.rel (0) target = $region49
  $region48: #{basic_layer_forward.8} parent=0 // pred_region
    _
  $region49: #{basic_layer_forward.8} parent=0 // pred_fallthru
    _

// kernel: basic_layer_forward.7
$region0: #{basic_layer_forward.7}
  #allocation0 [shape = 'u32[]', space=smem, size = 0x4, offset = 0x4, fixed_abs, tag = 'smem constant byte address 0x4 - core index']
  #allocation1 [shape = 'u32[144,128]{1,0:T(1,128)}', space=vmem, size = 0x12000, scoped, tag = 'internal scratch']
  %s0 = inlined_call_operand.vmem [shape: bf16[2,3,2,8,16,8], index: 0, kind: input, shape index: {}]
  %s1 = inlined_call_operand.vmem [shape: f32[2,2,16,16], index: 1, kind: input, shape index: {}]
  %s2 = inlined_call_operand.vmem [shape: f32[4,16,16], index: 2, kind: input, shape index: {}]
  %s3 = inlined_call_operand.vmem [shape: bf16[8,16,32], index: 3, kind: output, shape index: {}]
  %s4 = sld [smem:[#allocation0]]
  $region22: #{basic_layer_forward.7} parent=0
    _
  %s6 = ssub.s32 1, %s4
  %s7 = scalar_select 0, %s6, %s4
  // Predicated region
  $region2: #{basic_layer_forward.7} parent=0 // pred_check
    _
  $region3: #{basic_layer_forward.7} parent=0 // pred_check_branch
    %9 = sbr.rel (0) target = $region5
  $region4: #{basic_layer_forward.7} parent=0 // pred_region
    _
  $region5: #{basic_layer_forward.7} parent=0 // pred_fallthru
    _
  // Predicated region
  $region6: #{basic_layer_forward.7} parent=0 // pred_check
    _
  $region7: #{basic_layer_forward.7} parent=0 // pred_check_branch
    %11 = sbr.rel (0) target = $region9
  $region8: #{basic_layer_forward.7} parent=0 // pred_region
    _
  $region9: #{basic_layer_forward.7} parent=0 // pred_fallthru
    _
  // Predicated region
  $region10: #{basic_layer_forward.7} parent=0 // pred_check
    _
  $region11: #{basic_layer_forward.7} parent=0 // pred_check_branch
    %13 = sbr.rel (0) target = $region13
  $region12: #{basic_layer_forward.7} parent=0 // pred_region
    _
  $region13: #{basic_layer_forward.7} parent=0 // pred_fallthru
    _
  %v15 = vld [vmem:[%s2] sm:$0xff]
  %v16 = vld [vmem:[%s2 + $0x8] sm:$0xff]
  %v17 = vld [vmem:[%s2 + $0x10] sm:$0xff]
  %v18 = vld [vmem:[%s2 + $0x18] sm:$0xff]
  %v19 = vld [vmem:[%s2 + $0x20] sm:$0xff]
  %v20 = vld [vmem:[%s2 + $0x28] sm:$0xff]
  %v21 = vld [vmem:[%s2 + $0x30] sm:$0xff]
  %v22 = vld [vmem:[%s2 + $0x38] sm:$0xff]
  %v23 = vld [vmem:[%s0] sm:$0xf]
  %v24 = vld [vmem:[%s0 + $0x4] sm:$0xf]
  %v25 = vld [vmem:[%s0 + $0x8] sm:$0xf]
  %v26 = vld [vmem:[%s0 + $0xc] sm:$0xf]
  %v27 = vld [vmem:[%s0 + $0x10] sm:$0xf]
  %v28 = vld [vmem:[%s0 + $0x14] sm:$0xf]
  %v29 = vld [vmem:[%s0 + $0x18] sm:$0xf]
  %v30 = vld [vmem:[%s0 + $0x1c] sm:$0xf]
  %v31 = vld [vmem:[%s0 + $0x20] sm:$0xf]
  %v32 = vld [vmem:[%s0 + $0x24] sm:$0xf]
  %v33 = vld [vmem:[%s0 + $0x28] sm:$0xf]
  %v34 = vld [vmem:[%s0 + $0x2c] sm:$0xf]
  %v35 = vld [vmem:[%s0 + $0x30] sm:$0xf]
  %v36 = vld [vmem:[%s0 + $0x34] sm:$0xf]
  %v37 = vld [vmem:[%s0 + $0x38] sm:$0xf]
  %v38 = vld [vmem:[%s0 + $0x3c] sm:$0xf]
  %s39 = scalar_lea.vmem %s0, 128
  %v40 = vld [vmem:[%s39] sm:$0xf]
  %v41 = vld [vmem:[%s39 + $0x4] sm:$0xf]
  %v42 = vld [vmem:[%s39 + $0x8] sm:$0xf]
  %v43 = vld [vmem:[%s39 + $0xc] sm:$0xf]
  %v44 = vld [vmem:[%s39 + $0x10] sm:$0xf]
  %v45 = vld [vmem:[%s39 + $0x14] sm:$0xf]
  %v46 = vld [vmem:[%s39 + $0x18] sm:$0xf]
  %v47 = vld [vmem:[%s39 + $0x1c] sm:$0xf]
  %v48 = vld [vmem:[%s39 + $0x20] sm:$0xf]
  %v49 = vld [vmem:[%s39 + $0x24] sm:$0xf]
  %v50 = vld [vmem:[%s39 + $0x28] sm:$0xf]
  %v51 = vld [vmem:[%s39 + $0x2c] sm:$0xf]
  %v52 = vld [vmem:[%s39 + $0x30] sm:$0xf]
  %v53 = vld [vmem:[%s39 + $0x34] sm:$0xf]
  %v54 = vld [vmem:[%s39 + $0x38] sm:$0xf]
  %v55 = vld [vmem:[%s39 + $0x3c] sm:$0xf]
  %s56 = scalar_lea.vmem %s0, 256
  %v57 = vld [vmem:[%s56] sm:$0xf]
  %v58 = vld [vmem:[%s56 + $0x4] sm:$0xf]
  %v59 = vld [vmem:[%s56 + $0x8] sm:$0xf]
  %v60 = vld [vmem:[%s56 + $0xc] sm:$0xf]
  %v61 = vld [vmem:[%s56 + $0x10] sm:$0xf]
  %v62 = vld [vmem:[%s56 + $0x14] sm:$0xf]
  %v63 = vld [vmem:[%s56 + $0x18] sm:$0xf]
  %v64 = vld [vmem:[%s56 + $0x1c] sm:$0xf]
  %v65 = vld [vmem:[%s56 + $0x20] sm:$0xf]
  %v66 = vld [vmem:[%s56 + $0x24] sm:$0xf]
  %v67 = vld [vmem:[%s56 + $0x28] sm:$0xf]
  %v68 = vld [vmem:[%s56 + $0x2c] sm:$0xf]
  %v69 = vld [vmem:[%s56 + $0x30] sm:$0xf]
  %v70 = vld [vmem:[%s56 + $0x34] sm:$0xf]
  %v71 = vld [vmem:[%s56 + $0x38] sm:$0xf]
  %v72 = vld [vmem:[%s56 + $0x3c] sm:$0xf]
  %v73 = vld [vmem:[%s1] sm:$0xff]
  %v74 = vld [vmem:[%s1 + $0x8] sm:$0xff]
  %v77 = vunpack.c.l.b16 %v23
  %v78 = vunpack.c.l.b16 %v24
  %v79 = vpack.c.b16 %v78, %v77
  %v82 = vunpack.c.l.b16 %v40
  %v83 = vunpack.c.l.b16 %v41
  %v84 = vpack.c.b16 %v83, %v82
  %vm85 = vcmask 64512
  %v87 = vsel %vm85, %v79, 0
  %v90 = vsel %vm85, %v84, 0
  %92 = vmatprep.subr.bf16.mxu0 0
  %93 = vmatpush1.bf16.xpose.msra.mxu0 %v90
  %94 = vmatprep.subr.bf16.mxu0 0
  %95 = vmatpush1.bf16.xpose.msra.mxu0 0
  %96 = vmatprep.subr.bf16.mxu0 0
  %97 = vmatpush1.bf16.xpose.msra.mxu0 0
  %98 = vmatprep.subr.bf16.mxu0 0
  %99 = vmatpush1.bf16.xpose.msra.mxu0 0
  %100 = vmatprep.subr.bf16.mxu0 0
  %101 = vmatpush1.bf16.xpose.msra.mxu0 0
  %102 = vmatprep.subr.bf16.mxu0 0
  %103 = vmatpush1.bf16.xpose.msra.mxu0 0
  %104 = vmatprep.subr.bf16.mxu0 0
  %105 = vmatpush1.bf16.xpose.msra.mxu0 0
  %106 = vmatprep.subr.bf16.mxu0 0
  %107 = vmatpush1.bf16.xpose.msra.mxu0 0
  %108 = vmatprep.subr.bf16.mxu0 0
  %109 = vmatpush1.bf16.xpose.msra.mxu0 0
  %110 = vmatprep.subr.bf16.mxu0 0
  %111 = vmatpush1.bf16.xpose.msra.mxu0 0
  %112 = vmatprep.subr.bf16.mxu0 0
  %113 = vmatpush1.bf16.xpose.msra.mxu0 0
  %114 = vmatprep.subr.bf16.mxu0 0
  %115 = vmatpush1.bf16.xpose.msra.mxu0 0
  %116 = vmatprep.subr.bf16.mxu0 0
  %117 = vmatpush1.bf16.xpose.msra.mxu0 0
  %118 = vmatprep.subr.bf16.mxu0 0
  %119 = vmatpush1.bf16.xpose.msra.mxu0 0
  %120 = vmatprep.subr.bf16.mxu0 0
  %121 = vmatpush1.bf16.xpose.msra.mxu0 0
  %122 = vmatprep.subr.bf16.mxu0 0
  %123 = vmatpush1.bf16.xpose.msra.mxu0 0
  %124 = vmatprep.mubr.bf16.mxu0 0
  %125 = vmatmul.mubr.bf16.gmra.mrb[0].mxu0 %v87
  %v126 = vpop.f32.mrb[0].mxu0
  %v127 = vadd.f32 %v73, %v126
  %v128 = vpop.f32.mrb[0].mxu0
  %v129 = vpop.f32.mrb[0].mxu0
  %v130 = vadd.f32 %v74, %v129
  %v131 = vpop.f32.mrb[0].mxu0
  %132 = vdwg.mxu0
  %v135 = vunpack.c.l.b16 %v25
  %v136 = vunpack.c.l.b16 %v26
  %v137 = vpack.c.b16 %v136, %v135
  %v140 = vunpack.c.l.b16 %v42
  %v141 = vunpack.c.l.b16 %v43
  %v142 = vpack.c.b16 %v141, %v140
  %v144 = vsel %vm85, %v137, 0
  %v147 = vsel %vm85, %v142, 0
  %149 = vmatprep.subr.bf16.mxu0 0
  %150 = vmatpush1.bf16.xpose.msra.mxu0 %v147
  %151 = vmatprep.subr.bf16.mxu0 0
  %152 = vmatpush1.bf16.xpose.msra.mxu0 0
  %153 = vmatprep.subr.bf16.mxu0 0
  %154 = vmatpush1.bf16.xpose.msra.mxu0 0
  %155 = vmatprep.subr.bf16.mxu0 0
  %156 = vmatpush1.bf16.xpose.msra.mxu0 0
  %157 = vmatprep.subr.bf16.mxu0 0
  %158 = vmatpush1.bf16.xpose.msra.mxu0 0
  %159 = vmatprep.subr.bf16.mxu0 0
  %160 = vmatpush1.bf16.xpose.msra.mxu0 0
  %161 = vmatprep.subr.bf16.mxu0 0
  %162 = vmatpush1.bf16.xpose.msra.mxu0 0
  %163 = vmatprep.subr.bf16.mxu0 0
  %164 = vmatpush1.bf16.xpose.msra.mxu0 0
  %165 = vmatprep.subr.bf16.mxu0 0
  %166 = vmatpush1.bf16.xpose.msra.mxu0 0
  %167 = vmatprep.subr.bf16.mxu0 0
  %168 = vmatpush1.bf16.xpose.msra.mxu0 0
  %169 = vmatprep.subr.bf16.mxu0 0
  %170 = vmatpush1.bf16.xpose.msra.mxu0 0
  %171 = vmatprep.subr.bf16.mxu0 0
  %172 = vmatpush1.bf16.xpose.msra.mxu0 0
  %173 = vmatprep.subr.bf16.mxu0 0
  %174 = vmatpush1.bf16.xpose.msra.mxu0 0
  %175 = vmatprep.subr.bf16.mxu0 0
  %176 = vmatpush1.bf16.xpose.msra.mxu0 0
  %177 = vmatprep.subr.bf16.mxu0 0
  %178 = vmatpush1.bf16.xpose.msra.mxu0 0
  %179 = vmatprep.subr.bf16.mxu0 0
  %180 = vmatpush1.bf16.xpose.msra.mxu0 0
  %181 = vmatprep.mubr.bf16.mxu0 0
  %182 = vmatmul.mubr.bf16.gmra.mrb[0].mxu0 %v144
  %v183 = vpop.f32.mrb[0].mxu0
  %v184 = vadd.f32 %v73, %v183
  %v185 = vpop.f32.mrb[0].mxu0
  %v186 = vpop.f32.mrb[0].mxu0
  %v187 = vadd.f32 %v74, %v186
  %v188 = vpop.f32.mrb[0].mxu0
  %189 = vdwg.mxu0
  %v192 = vunpack.c.l.b16 %v27
  %v193 = vunpack.c.l.b16 %v28
  %v194 = vpack.c.b16 %v193, %v192
  %v197 = vunpack.c.l.b16 %v44
  %v198 = vunpack.c.l.b16 %v45
  %v199 = vpack.c.b16 %v198, %v197
  %v201 = vsel %vm85, %v194, 0
  %v204 = vsel %vm85, %v199, 0
  %206 = vmatprep.subr.bf16.mxu0 0
  %207 = vmatpush1.bf16.xpose.msra.mxu0 %v204
  %208 = vmatprep.subr.bf16.mxu0 0
  %209 = vmatpush1.bf16.xpose.msra.mxu0 0
  %210 = vmatprep.subr.bf16.mxu0 0
  %211 = vmatpush1.bf16.xpose.msra.mxu0 0
  %212 = vmatprep.subr.bf16.mxu0 0
  %213 = vmatpush1.bf16.xpose.msra.mxu0 0
  %214 = vmatprep.subr.bf16.mxu0 0
  %215 = vmatpush1.bf16.xpose.msra.mxu0 0
  %216 = vmatprep.subr.bf16.mxu0 0
  %217 = vmatpush1.bf16.xpose.msra.mxu0 0
  %218 = vmatprep.subr.bf16.mxu0 0
  %219 = vmatpush1.bf16.xpose.msra.mxu0 0
  %220 = vmatprep.subr.bf16.mxu0 0
  %221 = vmatpush1.bf16.xpose.msra.mxu0 0
  %222 = vmatprep.subr.bf16.mxu0 0
  %223 = vmatpush1.bf16.xpose.msra.mxu0 0
  %224 = vmatprep.subr.bf16.mxu0 0
  %225 = vmatpush1.bf16.xpose.msra.mxu0 0
  %226 = vmatprep.subr.bf16.mxu0 0
  %227 = vmatpush1.bf16.xpose.msra.mxu0 0
  %228 = vmatprep.subr.bf16.mxu0 0
  %229 = vmatpush1.bf16.xpose.msra.mxu0 0
  %230 = vmatprep.subr.bf16.mxu0 0
  %231 = vmatpush1.bf16.xpose.msra.mxu0 0
  %232 = vmatprep.subr.bf16.mxu0 0
  %233 = vmatpush1.bf16.xpose.msra.mxu0 0
  %234 = vmatprep.subr.bf16.mxu0 0
  %235 = vmatpush1.bf16.xpose.msra.mxu0 0
  %236 = vmatprep.subr.bf16.mxu0 0
  %237 = vmatpush1.bf16.xpose.msra.mxu0 0
  %238 = vmatprep.mubr.bf16.mxu0 0
  %239 = vmatmul.mubr.bf16.gmra.mrb[0].mxu0 %v201
  %v240 = vpop.f32.mrb[0].mxu0
  %v241 = vadd.f32 %v73, %v240
  %v242 = vpop.f32.mrb[0].mxu0
  %v243 = vpop.f32.mrb[0].mxu0
  %v244 = vadd.f32 %v74, %v243
  %v245 = vpop.f32.mrb[0].mxu0
  %246 = vdwg.mxu0
  %v249 = vunpack.c.l.b16 %v29
  %v250 = vunpack.c.l.b16 %v30
  %v251 = vpack.c.b16 %v250, %v249
  %v254 = vunpack.c.l.b16 %v46
  %v255 = vunpack.c.l.b16 %v47
  %v256 = vpack.c.b16 %v255, %v254
  %v258 = vsel %vm85, %v251, 0
  %v261 = vsel %vm85, %v256, 0
  %263 = vmatprep.subr.bf16.mxu0 0
  %264 = vmatpush1.bf16.xpose.msra.mxu0 %v261
  %265 = vmatprep.subr.bf16.mxu0 0
  %266 = vmatpush1.bf16.xpose.msra.mxu0 0
  %267 = vmatprep.subr.bf16.mxu0 0
  %268 = vmatpush1.bf16.xpose.msra.mxu0 0
  %269 = vmatprep.subr.bf16.mxu0 0
  %270 = vmatpush1.bf16.xpose.msra.mxu0 0
  %271 = vmatprep.subr.bf16.mxu0 0
  %272 = vmatpush1.bf16.xpose.msra.mxu0 0
  %273 = vmatprep.subr.bf16.mxu0 0
  %274 = vmatpush1.bf16.xpose.msra.mxu0 0
  %275 = vmatprep.subr.bf16.mxu0 0
  %276 = vmatpush1.bf16.xpose.msra.mxu0 0
  %277 = vmatprep.subr.bf16.mxu0 0
  %278 = vmatpush1.bf16.xpose.msra.mxu0 0
  %279 = vmatprep.subr.bf16.mxu0 0
  %280 = vmatpush1.bf16.xpose.msra.mxu0 0
  %281 = vmatprep.subr.bf16.mxu0 0
  %282 = vmatpush1.bf16.xpose.msra.mxu0 0
  %283 = vmatprep.subr.bf16.mxu0 0
  %284 = vmatpush1.bf16.xpose.msra.mxu0 0
  %285 = vmatprep.subr.bf16.mxu0 0
  %286 = vmatpush1.bf16.xpose.msra.mxu0 0
  %287 = vmatprep.subr.bf16.mxu0 0
  %288 = vmatpush1.bf16.xpose.msra.mxu0 0
  %289 = vmatprep.subr.bf16.mxu0 0
  %290 = vmatpush1.bf16.xpose.msra.mxu0 0
  %291 = vmatprep.subr.bf16.mxu0 0
  %292 = vmatpush1.bf16.xpose.msra.mxu0 0
  %293 = vmatprep.subr.bf16.mxu0 0
  %294 = vmatpush1.bf16.xpose.msra.mxu0 0
  %295 = vmatprep.mubr.bf16.mxu0 0
  %296 = vmatmul.mubr.bf16.gmra.mrb[0].mxu0 %v258
  %v297 = vpop.f32.mrb[0].mxu0
  %v298 = vadd.f32 %v73, %v297
  %v299 = vpop.f32.mrb[0].mxu0
  %v300 = vpop.f32.mrb[0].mxu0
  %v301 = vadd.f32 %v74, %v300
  %v302 = vpop.f32.mrb[0].mxu0
  %303 = vdwg.mxu0
  %v306 = vunpack.c.l.b16 %v31
  %v307 = vunpack.c.l.b16 %v32
  %v308 = vpack.c.b16 %v307, %v306
  %v311 = vunpack.c.l.b16 %v48
  %v312 = vunpack.c.l.b16 %v49
  %v313 = vpack.c.b16 %v312, %v311
  %v315 = vsel %vm85, %v308, 0
  %v318 = vsel %vm85, %v313, 0
  %320 = vmatprep.subr.bf16.mxu0 0
  %321 = vmatpush1.bf16.xpose.msra.mxu0 %v318
  %322 = vmatprep.subr.bf16.mxu0 0
  %323 = vmatpush1.bf16.xpose.msra.mxu0 0
  %324 = vmatprep.subr.bf16.mxu0 0
  %325 = vmatpush1.bf16.xpose.msra.mxu0 0
  %326 = vmatprep.subr.bf16.mxu0 0
  %327 = vmatpush1.bf16.xpose.msra.mxu0 0
  %328 = vmatprep.subr.bf16.mxu0 0
  %329 = vmatpush1.bf16.xpose.msra.mxu0 0
  %330 = vmatprep.subr.bf16.mxu0 0
  %331 = vmatpush1.bf16.xpose.msra.mxu0 0
  %332 = vmatprep.subr.bf16.mxu0 0
  %333 = vmatpush1.bf16.xpose.msra.mxu0 0
  %334 = vmatprep.subr.bf16.mxu0 0
  %335 = vmatpush1.bf16.xpose.msra.mxu0 0
  %336 = vmatprep.subr.bf16.mxu0 0
  %337 = vmatpush1.bf16.xpose.msra.mxu0 0
  %338 = vmatprep.subr.bf16.mxu0 0
  %339 = vmatpush1.bf16.xpose.msra.mxu0 0
  %340 = vmatprep.subr.bf16.mxu0 0
  %341 = vmatpush1.bf16.xpose.msra.mxu0 0
  %342 = vmatprep.subr.bf16.mxu0 0
  %343 = vmatpush1.bf16.xpose.msra.mxu0 0
  %344 = vmatprep.subr.bf16.mxu0 0
  %345 = vmatpush1.bf16.xpose.msra.mxu0 0
  %346 = vmatprep.subr.bf16.mxu0 0
  %347 = vmatpush1.bf16.xpose.msra.mxu0 0
  %348 = vmatprep.subr.bf16.mxu0 0
  %349 = vmatpush1.bf16.xpose.msra.mxu0 0
  %350 = vmatprep.subr.bf16.mxu0 0
  %351 = vmatpush1.bf16.xpose.msra.mxu0 0
  %352 = vmatprep.mubr.bf16.mxu0 0
  %353 = vmatmul.mubr.bf16.gmra.mrb[0].mxu0 %v315
  %v354 = vpop.f32.mrb[0].mxu0
  %v355 = vadd.f32 %v73, %v354
  %v356 = vpop.f32.mrb[0].mxu0
  %v357 = vpop.f32.mrb[0].mxu0
  %v358 = vadd.f32 %v74, %v357
  %v359 = vpop.f32.mrb[0].mxu0
  %360 = vdwg.mxu0
  %v363 = vunpack.c.l.b16 %v33
  %v364 = vunpack.c.l.b16 %v34
  %v365 = vpack.c.b16 %v364, %v363
  %v368 = vunpack.c.l.b16 %v50
  %v369 = vunpack.c.l.b16 %v51
  %v370 = vpack.c.b16 %v369, %v368
  %v372 = vsel %vm85, %v365, 0
  %v375 = vsel %vm85, %v370, 0
  %377 = vmatprep.subr.bf16.mxu0 0
  %378 = vmatpush1.bf16.xpose.msra.mxu0 %v375
  %379 = vmatprep.subr.bf16.mxu0 0
  %380 = vmatpush1.bf16.xpose.msra.mxu0 0
  %381 = vmatprep.subr.bf16.mxu0 0
  %382 = vmatpush1.bf16.xpose.msra.mxu0 0
  %383 = vmatprep.subr.bf16.mxu0 0
  %384 = vmatpush1.bf16.xpose.msra.mxu0 0
  %385 = vmatprep.subr.bf16.mxu0 0
  %386 = vmatpush1.bf16.xpose.msra.mxu0 0
  %387 = vmatprep.subr.bf16.mxu0 0
  %388 = vmatpush1.bf16.xpose.msra.mxu0 0
  %389 = vmatprep.subr.bf16.mxu0 0
  %390 = vmatpush1.bf16.xpose.msra.mxu0 0
  %391 = vmatprep.subr.bf16.mxu0 0
  %392 = vmatpush1.bf16.xpose.msra.mxu0 0
  %393 = vmatprep.subr.bf16.mxu0 0
  %394 = vmatpush1.bf16.xpose.msra.mxu0 0
  %395 = vmatprep.subr.bf16.mxu0 0
  %396 = vmatpush1.bf16.xpose.msra.mxu0 0
  %397 = vmatprep.subr.bf16.mxu0 0
  %398 = vmatpush1.bf16.xpose.msra.mxu0 0
  %399 = vmatprep.subr.bf16.mxu0 0
  %400 = vmatpush1.bf16.xpose.msra.mxu0 0
  %401 = vmatprep.subr.bf16.mxu0 0
  %402 = vmatpush1.bf16.xpose.msra.mxu0 0
  %403 = vmatprep.subr.bf16.mxu0 0
  %404 = vmatpush1.bf16.xpose.msra.mxu0 0
  %405 = vmatprep.subr.bf16.mxu0 0
  %406 = vmatpush1.bf16.xpose.msra.mxu0 0
  %407 = vmatprep.subr.bf16.mxu0 0
  %408 = vmatpush1.bf16.xpose.msra.mxu0 0
  %409 = vmatprep.mubr.bf16.mxu0 0
  %410 = vmatmul.mubr.bf16.gmra.mrb[0].mxu0 %v372
  %v411 = vpop.f32.mrb[0].mxu0
  %v412 = vadd.f32 %v73, %v411
  %v413 = vpop.f32.mrb[0].mxu0
  %v414 = vpop.f32.mrb[0].mxu0
  %v415 = vadd.f32 %v74, %v414
  %v416 = vpop.f32.mrb[0].mxu0
  %417 = vdwg.mxu0
  %v420 = vunpack.c.l.b16 %v35
  %v421 = vunpack.c.l.b16 %v36
  %v422 = vpack.c.b16 %v421, %v420
  %v425 = vunpack.c.l.b16 %v52
  %v426 = vunpack.c.l.b16 %v53
  %v427 = vpack.c.b16 %v426, %v425
  %v429 = vsel %vm85, %v422, 0
  %v432 = vsel %vm85, %v427, 0
  %434 = vmatprep.subr.bf16.mxu0 0
  %435 = vmatpush1.bf16.xpose.msra.mxu0 %v432
  %436 = vmatprep.subr.bf16.mxu0 0
  %437 = vmatpush1.bf16.xpose.msra.mxu0 0
  %438 = vmatprep.subr.bf16.mxu0 0
  %439 = vmatpush1.bf16.xpose.msra.mxu0 0
  %440 = vmatprep.subr.bf16.mxu0 0
  %441 = vmatpush1.bf16.xpose.msra.mxu0 0
  %442 = vmatprep.subr.bf16.mxu0 0
  %443 = vmatpush1.bf16.xpose.msra.mxu0 0
  %444 = vmatprep.subr.bf16.mxu0 0
  %445 = vmatpush1.bf16.xpose.msra.mxu0 0
  %446 = vmatprep.subr.bf16.mxu0 0
  %447 = vmatpush1.bf16.xpose.msra.mxu0 0
  %448 = vmatprep.subr.bf16.mxu0 0
  %449 = vmatpush1.bf16.xpose.msra.mxu0 0
  %450 = vmatprep.subr.bf16.mxu0 0
  %451 = vmatpush1.bf16.xpose.msra.mxu0 0
  %452 = vmatprep.subr.bf16.mxu0 0
  %453 = vmatpush1.bf16.xpose.msra.mxu0 0
  %454 = vmatprep.subr.bf16.mxu0 0
  %455 = vmatpush1.bf16.xpose.msra.mxu0 0
  %456 = vmatprep.subr.bf16.mxu0 0
  %457 = vmatpush1.bf16.xpose.msra.mxu0 0
  %458 = vmatprep.subr.bf16.mxu0 0
  %459 = vmatpush1.bf16.xpose.msra.mxu0 0
  %460 = vmatprep.subr.bf16.mxu0 0
  %461 = vmatpush1.bf16.xpose.msra.mxu0 0
  %462 = vmatprep.subr.bf16.mxu0 0
  %463 = vmatpush1.bf16.xpose.msra.mxu0 0
  %464 = vmatprep.subr.bf16.mxu0 0
  %465 = vmatpush1.bf16.xpose.msra.mxu0 0
  %466 = vmatprep.mubr.bf16.mxu0 0
  %467 = vmatmul.mubr.bf16.gmra.mrb[0].mxu0 %v429
  %v468 = vpop.f32.mrb[0].mxu0
  %v469 = vadd.f32 %v73, %v468
  %v470 = vpop.f32.mrb[0].mxu0
  %v471 = vpop.f32.mrb[0].mxu0
  %v472 = vadd.f32 %v74, %v471
  %v473 = vpop.f32.mrb[0].mxu0
  %474 = vdwg.mxu0
  %v477 = vunpack.c.l.b16 %v37
  %v478 = vunpack.c.l.b16 %v38
  %v479 = vpack.c.b16 %v478, %v477
  %v482 = vunpack.c.l.b16 %v54
  %v483 = vunpack.c.l.b16 %v55
  %v484 = vpack.c.b16 %v483, %v482
  %v486 = vsel %vm85, %v479, 0
  %v489 = vsel %vm85, %v484, 0
  %491 = vmatprep.subr.bf16.mxu0 0
  %492 = vmatpush1.bf16.xpose.msra.mxu0 %v489
  %493 = vmatprep.subr.bf16.mxu0 0
  %494 = vmatpush1.bf16.xpose.msra.mxu0 0
  %495 = vmatprep.subr.bf16.mxu0 0
  %496 = vmatpush1.bf16.xpose.msra.mxu0 0
  %497 = vmatprep.subr.bf16.mxu0 0
  %498 = vmatpush1.bf16.xpose.msra.mxu0 0
  %499 = vmatprep.subr.bf16.mxu0 0
  %500 = vmatpush1.bf16.xpose.msra.mxu0 0
  %501 = vmatprep.subr.bf16.mxu0 0
  %502 = vmatpush1.bf16.xpose.msra.mxu0 0
  %503 = vmatprep.subr.bf16.mxu0 0
  %504 = vmatpush1.bf16.xpose.msra.mxu0 0
  %505 = vmatprep.subr.bf16.mxu0 0
  %506 = vmatpush1.bf16.xpose.msra.mxu0 0
  %507 = vmatprep.subr.bf16.mxu0 0
  %508 = vmatpush1.bf16.xpose.msra.mxu0 0
  %509 = vmatprep.subr.bf16.mxu0 0
  %510 = vmatpush1.bf16.xpose.msra.mxu0 0
  %511 = vmatprep.subr.bf16.mxu0 0
  %512 = vmatpush1.bf16.xpose.msra.mxu0 0
  %513 = vmatprep.subr.bf16.mxu0 0
  %514 = vmatpush1.bf16.xpose.msra.mxu0 0
  %515 = vmatprep.subr.bf16.mxu0 0
  %516 = vmatpush1.bf16.xpose.msra.mxu0 0
  %517 = vmatprep.subr.bf16.mxu0 0
  %518 = vmatpush1.bf16.xpose.msra.mxu0 0
  %519 = vmatprep.subr.bf16.mxu0 0
  %520 = vmatpush1.bf16.xpose.msra.mxu0 0
  %521 = vmatprep.subr.bf16.mxu0 0
  %522 = vmatpush1.bf16.xpose.msra.mxu0 0
  %523 = vmatprep.mubr.bf16.mxu0 0
  %524 = vmatmul.mubr.bf16.gmra.mrb[0].mxu0 %v486
  %v525 = vpop.f32.mrb[0].mxu0
  %v526 = vadd.f32 %v73, %v525
  %v527 = vpop.f32.mrb[0].mxu0
  %v528 = vpop.f32.mrb[0].mxu0
  %v529 = vadd.f32 %v74, %v528
  %v530 = vpop.f32.mrb[0].mxu0
  %531 = vdwg.mxu0
  %vm532 = vcmask 130048
  %v533 = vsel %vm532, %v127, -inf
  %534 = vmax.xlane.f32.xlu0 %v533
  %v535 = vpop.xlane.xlu0 %534
  %v536 = vsel %vm532, %v130, -inf
  %537 = vmax.xlane.f32.xlu0 %v536
  %v538 = vpop.xlane.xlu0 %537
  %v539 = vsel %vm532, %v184, -inf
  %540 = vmax.xlane.f32.xlu0 %v539
  %v541 = vpop.xlane.xlu0 %540
  %v542 = vsel %vm532, %v187, -inf
  %543 = vmax.xlane.f32.xlu0 %v542
  %v544 = vpop.xlane.xlu0 %543
  %v545 = vsel %vm532, %v241, -inf
  %546 = vmax.xlane.f32.xlu0 %v545
  %v547 = vpop.xlane.xlu0 %546
  %v548 = vsel %vm532, %v244, -inf
  %549 = vmax.xlane.f32.xlu0 %v548
  %v550 = vpop.xlane.xlu0 %549
  %v551 = vsel %vm532, %v298, -inf
  %552 = vmax.xlane.f32.xlu0 %v551
  %v553 = vpop.xlane.xlu0 %552
  %v554 = vsel %vm532, %v301, -inf
  %555 = vmax.xlane.f32.xlu0 %v554
  %v556 = vpop.xlane.xlu0 %555
  %v557 = vsel %vm532, %v355, -inf
  %558 = vmax.xlane.f32.xlu0 %v557
  %v559 = vpop.xlane.xlu0 %558
  %v560 = vsel %vm532, %v358, -inf
  %561 = vmax.xlane.f32.xlu0 %v560
  %v562 = vpop.xlane.xlu0 %561
  %v563 = vsel %vm532, %v412, -inf
  %564 = vmax.xlane.f32.xlu0 %v563
  %v565 = vpop.xlane.xlu0 %564
  %v566 = vsel %vm532, %v415, -inf
  %567 = vmax.xlane.f32.xlu0 %v566
  %v568 = vpop.xlane.xlu0 %567
  %v569 = vsel %vm532, %v469, -inf
  %570 = vmax.xlane.f32.xlu0 %v569
  %v571 = vpop.xlane.xlu0 %570
  %v572 = vsel %vm532, %v472, -inf
  %573 = vmax.xlane.f32.xlu0 %v572
  %v574 = vpop.xlane.xlu0 %573
  %v575 = vsel %vm532, %v526, -inf
  %576 = vmax.xlane.f32.xlu0 %v575
  %v577 = vpop.xlane.xlu0 %576
  %v578 = vsel %vm532, %v529, -inf
  %579 = vmax.xlane.f32.xlu0 %v578
  %v580 = vpop.xlane.xlu0 %579
  %v581 = vsub.f32 %v127, %v535
  %v582 = vsub.f32 %v130, %v538
  %v583 = vsub.f32 %v184, %v541
  %v584 = vsub.f32 %v187, %v544
  %v585 = vsub.f32 %v241, %v547
  %v586 = vsub.f32 %v244, %v550
  %v587 = vsub.f32 %v298, %v553
  %v588 = vsub.f32 %v301, %v556
  %v589 = vsub.f32 %v355, %v559
  %v590 = vsub.f32 %v358, %v562
  %v591 = vsub.f32 %v412, %v565
  %v592 = vsub.f32 %v415, %v568
  %v593 = vsub.f32 %v469, %v571
  %v594 = vsub.f32 %v472, %v574
  %v595 = vsub.f32 %v526, %v577
  %v596 = vsub.f32 %v529, %v580
  %v597 = vmul.f32 %v581, 1.442695
  %v598 = vpow.pop %v597
  %v599 = vmul.f32 %v582, 1.442695
  %v600 = vpow.pop %v599
  %v601 = vmul.f32 %v583, 1.442695
  %v602 = vpow.pop %v601
  %v603 = vmul.f32 %v584, 1.442695
  %v604 = vpow.pop %v603
  %v605 = vmul.f32 %v585, 1.442695
  %v606 = vpow.pop %v605
  %v607 = vmul.f32 %v586, 1.442695
  %v608 = vpow.pop %v607
  %v609 = vmul.f32 %v587, 1.442695
  %v610 = vpow.pop %v609
  %v611 = vmul.f32 %v588, 1.442695
  %v612 = vpow.pop %v611
  %v613 = vmul.f32 %v589, 1.442695
  %v614 = vpow.pop %v613
  %v615 = vmul.f32 %v590, 1.442695
  %v616 = vpow.pop %v615
  %v617 = vmul.f32 %v591, 1.442695
  %v618 = vpow.pop %v617
  %v619 = vmul.f32 %v592, 1.442695
  %v620 = vpow.pop %v619
  %v621 = vmul.f32 %v593, 1.442695
  %v622 = vpow.pop %v621
  %v623 = vmul.f32 %v594, 1.442695
  %v624 = vpow.pop %v623
  %v625 = vmul.f32 %v595, 1.442695
  %v626 = vpow.pop %v625
  %v627 = vmul.f32 %v596, 1.442695
  %v628 = vpow.pop %v627
  %v629 = vsel %vm532, %v598, 0.0
  %630 = vadd.xlane.f32.xlu0 %v629
  %v631 = vpop.xlane.xlu0 %630
  %v632 = vsel %vm532, %v600, 0.0
  %633 = vadd.xlane.f32.xlu0 %v632
  %v634 = vpop.xlane.xlu0 %633
  %v635 = vsel %vm532, %v602, 0.0
  %636 = vadd.xlane.f32.xlu0 %v635
  %v637 = vpop.xlane.xlu0 %636
  %v638 = vsel %vm532, %v604, 0.0
  %639 = vadd.xlane.f32.xlu0 %v638
  %v640 = vpop.xlane.xlu0 %639
  %v641 = vsel %vm532, %v606, 0.0
  %642 = vadd.xlane.f32.xlu0 %v641
  %v643 = vpop.xlane.xlu0 %642
  %v644 = vsel %vm532, %v608, 0.0
  %645 = vadd.xlane.f32.xlu0 %v644
  %v646 = vpop.xlane.xlu0 %645
  %v647 = vsel %vm532, %v610, 0.0
  %648 = vadd.xlane.f32.xlu0 %v647
  %v649 = vpop.xlane.xlu0 %648
  %v650 = vsel %vm532, %v612, 0.0
  %651 = vadd.xlane.f32.xlu0 %v650
  %v652 = vpop.xlane.xlu0 %651
  %v653 = vsel %vm532, %v614, 0.0
  %654 = vadd.xlane.f32.xlu0 %v653
  %v655 = vpop.xlane.xlu0 %654
  %v656 = vsel %vm532, %v616, 0.0
  %657 = vadd.xlane.f32.xlu0 %v656
  %v658 = vpop.xlane.xlu0 %657
  %v659 = vsel %vm532, %v618, 0.0
  %660 = vadd.xlane.f32.xlu0 %v659
  %v661 = vpop.xlane.xlu0 %660
  %v662 = vsel %vm532, %v620, 0.0
  %663 = vadd.xlane.f32.xlu0 %v662
  %v664 = vpop.xlane.xlu0 %663
  %v665 = vsel %vm532, %v622, 0.0
  %666 = vadd.xlane.f32.xlu0 %v665
  %v667 = vpop.xlane.xlu0 %666
  %v668 = vsel %vm532, %v624, 0.0
  %669 = vadd.xlane.f32.xlu0 %v668
  %v670 = vpop.xlane.xlu0 %669
  %v671 = vsel %vm532, %v626, 0.0
  %672 = vadd.xlane.f32.xlu0 %v671
  %v673 = vpop.xlane.xlu0 %672
  %v674 = vsel %vm532, %v628, 0.0
  %675 = vadd.xlane.f32.xlu0 %v674
  %v676 = vpop.xlane.xlu0 %675
  %v677 = vrcp.pop %v631
  %v678 = vrcp.pop %v634
  %v679 = vrcp.pop %v637
  %v680 = vrcp.pop %v640
  %v681 = vrcp.pop %v643
  %v682 = vrcp.pop %v646
  %v683 = vrcp.pop %v649
  %v684 = vrcp.pop %v652
  %v685 = vrcp.pop %v655
  %v686 = vrcp.pop %v658
  %v687 = vrcp.pop %v661
  %v688 = vrcp.pop %v664
  %v689 = vrcp.pop %v667
  %v690 = vrcp.pop %v670
  %v691 = vrcp.pop %v673
  %v692 = vrcp.pop %v676
  %v693 = vmul.f32 %v598, %v677
  %v694 = vmul.f32 %v600, %v678
  %v695 = vmul.f32 %v602, %v679
  %v696 = vmul.f32 %v604, %v680
  %v697 = vmul.f32 %v606, %v681
  %v698 = vmul.f32 %v608, %v682
  %v699 = vmul.f32 %v610, %v683
  %v700 = vmul.f32 %v612, %v684
  %v701 = vmul.f32 %v614, %v685
  %v702 = vmul.f32 %v616, %v686
  %v703 = vmul.f32 %v618, %v687
  %v704 = vmul.f32 %v620, %v688
  %v705 = vmul.f32 %v622, %v689
  %v706 = vmul.f32 %v624, %v690
  %v707 = vmul.f32 %v626, %v691
  %v708 = vmul.f32 %v628, %v692
  %v709 = vpack.c.bf16 %v694, %v693
  %v710 = vpack.c.bf16 %v696, %v695
  %v711 = vpack.c.bf16 %v698, %v697
  %v712 = vpack.c.bf16 %v700, %v699
  %v713 = vpack.c.bf16 %v702, %v701
  %v714 = vpack.c.bf16 %v704, %v703
  %v715 = vpack.c.bf16 %v706, %v705
  %v716 = vpack.c.bf16 %v708, %v707
  %v719 = vunpack.c.l.b16 %v57
  %v720 = vunpack.c.l.b16 %v58
  %v721 = vpack.c.b16 %v720, %v719
  %v724 = vsel %vm532, %v709, 0
  %726 = vmatprep.subr.bf16.mxu0 0
  %727 = vmatpush1.bf16.msra.mxu0 %v721
  %728 = vmatprep.subr.bf16.mxu0 0
  %729 = vmatpush1.bf16.msra.mxu0 0
  %730 = vmatprep.subr.bf16.mxu0 0
  %731 = vmatpush1.bf16.msra.mxu0 0
  %732 = vmatprep.subr.bf16.mxu0 0
  %733 = vmatpush1.bf16.msra.mxu0 0
  %734 = vmatprep.subr.bf16.mxu0 0
  %735 = vmatpush1.bf16.msra.mxu0 0
  %736 = vmatprep.subr.bf16.mxu0 0
  %737 = vmatpush1.bf16.msra.mxu0 0
  %738 = vmatprep.subr.bf16.mxu0 0
  %739 = vmatpush1.bf16.msra.mxu0 0
  %740 = vmatprep.subr.bf16.mxu0 0
  %741 = vmatpush1.bf16.msra.mxu0 0
  %742 = vmatprep.subr.bf16.mxu0 0
  %743 = vmatpush1.bf16.msra.mxu0 0
  %744 = vmatprep.subr.bf16.mxu0 0
  %745 = vmatpush1.bf16.msra.mxu0 0
  %746 = vmatprep.subr.bf16.mxu0 0
  %747 = vmatpush1.bf16.msra.mxu0 0
  %748 = vmatprep.subr.bf16.mxu0 0
  %749 = vmatpush1.bf16.msra.mxu0 0
  %750 = vmatprep.subr.bf16.mxu0 0
  %751 = vmatpush1.bf16.msra.mxu0 0
  %752 = vmatprep.subr.bf16.mxu0 0
  %753 = vmatpush1.bf16.msra.mxu0 0
  %754 = vmatprep.subr.bf16.mxu0 0
  %755 = vmatpush1.bf16.msra.mxu0 0
  %756 = vmatprep.subr.bf16.mxu0 0
  %757 = vmatpush1.bf16.msra.mxu0 0
  %758 = vmatprep.mubr.bf16.mxu0 0
  %759 = vmatmul.mubr.bf16.gmra.mrb[0].mxu0 %v724
  %v760 = vpop.f32.mrb[0].mxu0
  %v761 = vadd.f32 0.0, %v760
  %v762 = vpop.f32.mrb[0].mxu0
  %v763 = vpop.f32.mrb[0].mxu0
  %v764 = vadd.f32 0.0, %v763
  %v765 = vpop.f32.mrb[0].mxu0
  %766 = vdwg.mxu0
  %v769 = vunpack.c.l.b16 %v59
  %v770 = vunpack.c.l.b16 %v60
  %v771 = vpack.c.b16 %v770, %v769
  %v774 = vsel %vm532, %v710, 0
  %776 = vmatprep.subr.bf16.mxu0 0
  %777 = vmatpush1.bf16.msra.mxu0 %v771
  %778 = vmatprep.subr.bf16.mxu0 0
  %779 = vmatpush1.bf16.msra.mxu0 0
  %780 = vmatprep.subr.bf16.mxu0 0
  %781 = vmatpush1.bf16.msra.mxu0 0
  %782 = vmatprep.subr.bf16.mxu0 0
  %783 = vmatpush1.bf16.msra.mxu0 0
  %784 = vmatprep.subr.bf16.mxu0 0
  %785 = vmatpush1.bf16.msra.mxu0 0
  %786 = vmatprep.subr.bf16.mxu0 0
  %787 = vmatpush1.bf16.msra.mxu0 0
  %788 = vmatprep.subr.bf16.mxu0 0
  %789 = vmatpush1.bf16.msra.mxu0 0
  %790 = vmatprep.subr.bf16.mxu0 0
  %791 = vmatpush1.bf16.msra.mxu0 0
  %792 = vmatprep.subr.bf16.mxu0 0
  %793 = vmatpush1.bf16.msra.mxu0 0
  %794 = vmatprep.subr.bf16.mxu0 0
  %795 = vmatpush1.bf16.msra.mxu0 0
  %796 = vmatprep.subr.bf16.mxu0 0
  %797 = vmatpush1.bf16.msra.mxu0 0
  %798 = vmatprep.subr.bf16.mxu0 0
  %799 = vmatpush1.bf16.msra.mxu0 0
  %800 = vmatprep.subr.bf16.mxu0 0
  %801 = vmatpush1.bf16.msra.mxu0 0
  %802 = vmatprep.subr.bf16.mxu0 0
  %803 = vmatpush1.bf16.msra.mxu0 0
  %804 = vmatprep.subr.bf16.mxu0 0
  %805 = vmatpush1.bf16.msra.mxu0 0
  %806 = vmatprep.subr.bf16.mxu0 0
  %807 = vmatpush1.bf16.msra.mxu0 0
  %808 = vmatprep.mubr.bf16.mxu0 0
  %809 = vmatmul.mubr.bf16.gmra.mrb[0].mxu0 %v774
  %v810 = vpop.f32.mrb[0].mxu0
  %v811 = vadd.f32 0.0, %v810
  %v812 = vpop.f32.mrb[0].mxu0
  %v813 = vpop.f32.mrb[0].mxu0
  %v814 = vadd.f32 0.0, %v813
  %v815 = vpop.f32.mrb[0].mxu0
  %816 = vdwg.mxu0
  %v819 = vunpack.c.l.b16 %v61
  %v820 = vunpack.c.l.b16 %v62
  %v821 = vpack.c.b16 %v820, %v819
  %v824 = vsel %vm532, %v711, 0
  %826 = vmatprep.subr.bf16.mxu0 0
  %827 = vmatpush1.bf16.msra.mxu0 %v821
  %828 = vmatprep.subr.bf16.mxu0 0
  %829 = vmatpush1.bf16.msra.mxu0 0
  %830 = vmatprep.subr.bf16.mxu0 0
  %831 = vmatpush1.bf16.msra.mxu0 0
  %832 = vmatprep.subr.bf16.mxu0 0
  %833 = vmatpush1.bf16.msra.mxu0 0
  %834 = vmatprep.subr.bf16.mxu0 0
  %835 = vmatpush1.bf16.msra.mxu0 0
  %836 = vmatprep.subr.bf16.mxu0 0
  %837 = vmatpush1.bf16.msra.mxu0 0
  %838 = vmatprep.subr.bf16.mxu0 0
  %839 = vmatpush1.bf16.msra.mxu0 0
  %840 = vmatprep.subr.bf16.mxu0 0
  %841 = vmatpush1.bf16.msra.mxu0 0
  %842 = vmatprep.subr.bf16.mxu0 0
  %843 = vmatpush1.bf16.msra.mxu0 0
  %844 = vmatprep.subr.bf16.mxu0 0
  %845 = vmatpush1.bf16.msra.mxu0 0
  %846 = vmatprep.subr.bf16.mxu0 0
  %847 = vmatpush1.bf16.msra.mxu0 0
  %848 = vmatprep.subr.bf16.mxu0 0
  %849 = vmatpush1.bf16.msra.mxu0 0
  %850 = vmatprep.subr.bf16.mxu0 0
  %851 = vmatpush1.bf16.msra.mxu0 0
  %852 = vmatprep.subr.bf16.mxu0 0
  %853 = vmatpush1.bf16.msra.mxu0 0
  %854 = vmatprep.subr.bf16.mxu0 0
  %855 = vmatpush1.bf16.msra.mxu0 0
  %856 = vmatprep.subr.bf16.mxu0 0
  %857 = vmatpush1.bf16.msra.mxu0 0
  %858 = vmatprep.mubr.bf16.mxu0 0
  %859 = vmatmul.mubr.bf16.gmra.mrb[0].mxu0 %v824
  %v860 = vpop.f32.mrb[0].mxu0
  %v861 = vadd.f32 0.0, %v860
  %v862 = vpop.f32.mrb[0].mxu0
  %v863 = vpop.f32.mrb[0].mxu0
  %v864 = vadd.f32 0.0, %v863
  %v865 = vpop.f32.mrb[0].mxu0
  %866 = vdwg.mxu0
  %v869 = vunpack.c.l.b16 %v63
  %v870 = vunpack.c.l.b16 %v64
  %v871 = vpack.c.b16 %v870, %v869
  %v874 = vsel %vm532, %v712, 0
  %876 = vmatprep.subr.bf16.mxu0 0
  %877 = vmatpush1.bf16.msra.mxu0 %v871
  %878 = vmatprep.subr.bf16.mxu0 0
  %879 = vmatpush1.bf16.msra.mxu0 0
  %880 = vmatprep.subr.bf16.mxu0 0
  %881 = vmatpush1.bf16.msra.mxu0 0
  %882 = vmatprep.subr.bf16.mxu0 0
  %883 = vmatpush1.bf16.msra.mxu0 0
  %884 = vmatprep.subr.bf16.mxu0 0
  %885 = vmatpush1.bf16.msra.mxu0 0
  %886 = vmatprep.subr.bf16.mxu0 0
  %887 = vmatpush1.bf16.msra.mxu0 0
  %888 = vmatprep.subr.bf16.mxu0 0
  %889 = vmatpush1.bf16.msra.mxu0 0
  %890 = vmatprep.subr.bf16.mxu0 0
  %891 = vmatpush1.bf16.msra.mxu0 0
  %892 = vmatprep.subr.bf16.mxu0 0
  %893 = vmatpush1.bf16.msra.mxu0 0
  %894 = vmatprep.subr.bf16.mxu0 0
  %895 = vmatpush1.bf16.msra.mxu0 0
  %896 = vmatprep.subr.bf16.mxu0 0
  %897 = vmatpush1.bf16.msra.mxu0 0
  %898 = vmatprep.subr.bf16.mxu0 0
  %899 = vmatpush1.bf16.msra.mxu0 0
  %900 = vmatprep.subr.bf16.mxu0 0
  %901 = vmatpush1.bf16.msra.mxu0 0
  %902 = vmatprep.subr.bf16.mxu0 0
  %903 = vmatpush1.bf16.msra.mxu0 0
  %904 = vmatprep.subr.bf16.mxu0 0
  %905 = vmatpush1.bf16.msra.mxu0 0
  %906 = vmatprep.subr.bf16.mxu0 0
  %907 = vmatpush1.bf16.msra.mxu0 0
  %908 = vmatprep.mubr.bf16.mxu0 0
  %909 = vmatmul.mubr.bf16.gmra.mrb[0].mxu0 %v874
  %v910 = vpop.f32.mrb[0].mxu0
  %v911 = vadd.f32 0.0, %v910
  %v912 = vpop.f32.mrb[0].mxu0
  %v913 = vpop.f32.mrb[0].mxu0
  %v914 = vadd.f32 0.0, %v913
  %v915 = vpop.f32.mrb[0].mxu0
  %916 = vdwg.mxu0
  %v919 = vunpack.c.l.b16 %v65
  %v920 = vunpack.c.l.b16 %v66
  %v921 = vpack.c.b16 %v920, %v919
  %v924 = vsel %vm532, %v713, 0
  %926 = vmatprep.subr.bf16.mxu0 0
  %927 = vmatpush1.bf16.msra.mxu0 %v921
  %928 = vmatprep.subr.bf16.mxu0 0
  %929 = vmatpush1.bf16.msra.mxu0 0
  %930 = vmatprep.subr.bf16.mxu0 0
  %931 = vmatpush1.bf16.msra.mxu0 0
  %932 = vmatprep.subr.bf16.mxu0 0
  %933 = vmatpush1.bf16.msra.mxu0 0
  %934 = vmatprep.subr.bf16.mxu0 0
  %935 = vmatpush1.bf16.msra.mxu0 0
  %936 = vmatprep.subr.bf16.mxu0 0
  %937 = vmatpush1.bf16.msra.mxu0 0
  %938 = vmatprep.subr.bf16.mxu0 0
  %939 = vmatpush1.bf16.msra.mxu0 0
  %940 = vmatprep.subr.bf16.mxu0 0
  %941 = vmatpush1.bf16.msra.mxu0 0
  %942 = vmatprep.subr.bf16.mxu0 0
  %943 = vmatpush1.bf16.msra.mxu0 0
  %944 = vmatprep.subr.bf16.mxu0 0
  %945 = vmatpush1.bf16.msra.mxu0 0
  %946 = vmatprep.subr.bf16.mxu0 0
  %947 = vmatpush1.bf16.msra.mxu0 0
  %948 = vmatprep.subr.bf16.mxu0 0
  %949 = vmatpush1.bf16.msra.mxu0 0
  %950 = vmatprep.subr.bf16.mxu0 0
  %951 = vmatpush1.bf16.msra.mxu0 0
  %952 = vmatprep.subr.bf16.mxu0 0
  %953 = vmatpush1.bf16.msra.mxu0 0
  %954 = vmatprep.subr.bf16.mxu0 0
  %955 = vmatpush1.bf16.msra.mxu0 0
  %956 = vmatprep.subr.bf16.mxu0 0
  %957 = vmatpush1.bf16.msra.mxu0 0
  %958 = vmatprep.mubr.bf16.mxu0 0
  %959 = vmatmul.mubr.bf16.gmra.mrb[0].mxu0 %v924
  %v960 = vpop.f32.mrb[0].mxu0
  %v961 = vadd.f32 0.0, %v960
  %v962 = vpop.f32.mrb[0].mxu0
  %v963 = vpop.f32.mrb[0].mxu0
  %v964 = vadd.f32 0.0, %v963
  %v965 = vpop.f32.mrb[0].mxu0
  %966 = vdwg.mxu0
  %v969 = vunpack.c.l.b16 %v67
  %v970 = vunpack.c.l.b16 %v68
  %v971 = vpack.c.b16 %v970, %v969
  %v974 = vsel %vm532, %v714, 0
  %976 = vmatprep.subr.bf16.mxu0 0
  %977 = vmatpush1.bf16.msra.mxu0 %v971
  %978 = vmatprep.subr.bf16.mxu0 0
  %979 = vmatpush1.bf16.msra.mxu0 0
  %980 = vmatprep.subr.bf16.mxu0 0
  %981 = vmatpush1.bf16.msra.mxu0 0
  %982 = vmatprep.subr.bf16.mxu0 0
  %983 = vmatpush1.bf16.msra.mxu0 0
  %984 = vmatprep.subr.bf16.mxu0 0
  %985 = vmatpush1.bf16.msra.mxu0 0
  %986 = vmatprep.subr.bf16.mxu0 0
  %987 = vmatpush1.bf16.msra.mxu0 0
  %988 = vmatprep.subr.bf16.mxu0 0
  %989 = vmatpush1.bf16.msra.mxu0 0
  %990 = vmatprep.subr.bf16.mxu0 0
  %991 = vmatpush1.bf16.msra.mxu0 0
  %992 = vmatprep.subr.bf16.mxu0 0
  %993 = vmatpush1.bf16.msra.mxu0 0
  %994 = vmatprep.subr.bf16.mxu0 0
  %995 = vmatpush1.bf16.msra.mxu0 0
  %996 = vmatprep.subr.bf16.mxu0 0
  %997 = vmatpush1.bf16.msra.mxu0 0
  %998 = vmatprep.subr.bf16.mxu0 0
  %999 = vmatpush1.bf16.msra.mxu0 0
  %1000 = vmatprep.subr.bf16.mxu0 0
  %1001 = vmatpush1.bf16.msra.mxu0 0
  %1002 = vmatprep.subr.bf16.mxu0 0
  %1003 = vmatpush1.bf16.msra.mxu0 0
  %1004 = vmatprep.subr.bf16.mxu0 0
  %1005 = vmatpush1.bf16.msra.mxu0 0
  %1006 = vmatprep.subr.bf16.mxu0 0
  %1007 = vmatpush1.bf16.msra.mxu0 0
  %1008 = vmatprep.mubr.bf16.mxu0 0
  %1009 = vmatmul.mubr.bf16.gmra.mrb[0].mxu0 %v974
  %v1010 = vpop.f32.mrb[0].mxu0
  %v1011 = vadd.f32 0.0, %v1010
  %v1012 = vpop.f32.mrb[0].mxu0
  %v1013 = vpop.f32.mrb[0].mxu0
  %v1014 = vadd.f32 0.0, %v1013
  %v1015 = vpop.f32.mrb[0].mxu0
  %1016 = vdwg.mxu0
  %v1019 = vunpack.c.l.b16 %v69
  %v1020 = vunpack.c.l.b16 %v70
  %v1021 = vpack.c.b16 %v1020, %v1019
  %v1024 = vsel %vm532, %v715, 0
  %1026 = vmatprep.subr.bf16.mxu0 0
  %1027 = vmatpush1.bf16.msra.mxu0 %v1021
  %1028 = vmatprep.subr.bf16.mxu0 0
  %1029 = vmatpush1.bf16.msra.mxu0 0
  %1030 = vmatprep.subr.bf16.mxu0 0
  %1031 = vmatpush1.bf16.msra.mxu0 0
  %1032 = vmatprep.subr.bf16.mxu0 0
  %1033 = vmatpush1.bf16.msra.mxu0 0
  %1034 = vmatprep.subr.bf16.mxu0 0
  %1035 = vmatpush1.bf16.msra.mxu0 0
  %1036 = vmatprep.subr.bf16.mxu0 0
  %1037 = vmatpush1.bf16.msra.mxu0 0
  %1038 = vmatprep.subr.bf16.mxu0 0
  %1039 = vmatpush1.bf16.msra.mxu0 0
  %1040 = vmatprep.subr.bf16.mxu0 0
  %1041 = vmatpush1.bf16.msra.mxu0 0
  %1042 = vmatprep.subr.bf16.mxu0 0
  %1043 = vmatpush1.bf16.msra.mxu0 0
  %1044 = vmatprep.subr.bf16.mxu0 0
  %1045 = vmatpush1.bf16.msra.mxu0 0
  %1046 = vmatprep.subr.bf16.mxu0 0
  %1047 = vmatpush1.bf16.msra.mxu0 0
  %1048 = vmatprep.subr.bf16.mxu0 0
  %1049 = vmatpush1.bf16.msra.mxu0 0
  %1050 = vmatprep.subr.bf16.mxu0 0
  %1051 = vmatpush1.bf16.msra.mxu0 0
  %1052 = vmatprep.subr.bf16.mxu0 0
  %1053 = vmatpush1.bf16.msra.mxu0 0
  %1054 = vmatprep.subr.bf16.mxu0 0
  %1055 = vmatpush1.bf16.msra.mxu0 0
  %1056 = vmatprep.subr.bf16.mxu0 0
  %1057 = vmatpush1.bf16.msra.mxu0 0
  %1058 = vmatprep.mubr.bf16.mxu0 0
  %1059 = vmatmul.mubr.bf16.gmra.mrb[0].mxu0 %v1024
  %v1060 = vpop.f32.mrb[0].mxu0
  %v1061 = vadd.f32 0.0, %v1060
  %v1062 = vpop.f32.mrb[0].mxu0
  %v1063 = vpop.f32.mrb[0].mxu0
  %v1064 = vadd.f32 0.0, %v1063
  %v1065 = vpop.f32.mrb[0].mxu0
  %1066 = vdwg.mxu0
  %v1069 = vunpack.c.l.b16 %v71
  %v1070 = vunpack.c.l.b16 %v72
  %v1071 = vpack.c.b16 %v1070, %v1069
  %v1074 = vsel %vm532, %v716, 0
  %1076 = vmatprep.subr.bf16.mxu0 0
  %1077 = vmatpush1.bf16.msra.mxu0 %v1071
  %1078 = vmatprep.subr.bf16.mxu0 0
  %1079 = vmatpush1.bf16.msra.mxu0 0
  %1080 = vmatprep.subr.bf16.mxu0 0
  %1081 = vmatpush1.bf16.msra.mxu0 0
  %1082 = vmatprep.subr.bf16.mxu0 0
  %1083 = vmatpush1.bf16.msra.mxu0 0
  %1084 = vmatprep.subr.bf16.mxu0 0
  %1085 = vmatpush1.bf16.msra.mxu0 0
  %1086 = vmatprep.subr.bf16.mxu0 0
  %1087 = vmatpush1.bf16.msra.mxu0 0
  %1088 = vmatprep.subr.bf16.mxu0 0
  %1089 = vmatpush1.bf16.msra.mxu0 0
  %1090 = vmatprep.subr.bf16.mxu0 0
  %1091 = vmatpush1.bf16.msra.mxu0 0
  %1092 = vmatprep.subr.bf16.mxu0 0
  %1093 = vmatpush1.bf16.msra.mxu0 0
  %1094 = vmatprep.subr.bf16.mxu0 0
  %1095 = vmatpush1.bf16.msra.mxu0 0
  %1096 = vmatprep.subr.bf16.mxu0 0
  %1097 = vmatpush1.bf16.msra.mxu0 0
  %1098 = vmatprep.subr.bf16.mxu0 0
  %1099 = vmatpush1.bf16.msra.mxu0 0
  %1100 = vmatprep.subr.bf16.mxu0 0
  %1101 = vmatpush1.bf16.msra.mxu0 0
  %1102 = vmatprep.subr.bf16.mxu0 0
  %1103 = vmatpush1.bf16.msra.mxu0 0
  %1104 = vmatprep.subr.bf16.mxu0 0
  %1105 = vmatpush1.bf16.msra.mxu0 0
  %1106 = vmatprep.subr.bf16.mxu0 0
  %1107 = vmatpush1.bf16.msra.mxu0 0
  %1108 = vmatprep.mubr.bf16.mxu0 0
  %1109 = vmatmul.mubr.bf16.gmra.mrb[0].mxu0 %v1074
  %v1110 = vpop.f32.mrb[0].mxu0
  %v1111 = vadd.f32 0.0, %v1110
  %v1112 = vpop.f32.mrb[0].mxu0
  %v1113 = vpop.f32.mrb[0].mxu0
  %v1114 = vadd.f32 0.0, %v1113
  %v1115 = vpop.f32.mrb[0].mxu0
  %1116 = vdwg.mxu0
  %s1117 = scalar_lea.vmem %s0, 64
  %v1118 = vld [vmem:[%s1117] sm:$0xf]
  %v1119 = vld [vmem:[%s1117 + $0x4] sm:$0xf]
  %v1120 = vld [vmem:[%s1117 + $0x8] sm:$0xf]
  %v1121 = vld [vmem:[%s1117 + $0xc] sm:$0xf]
  %v1122 = vld [vmem:[%s1117 + $0x10] sm:$0xf]
  %v1123 = vld [vmem:[%s1117 + $0x14] sm:$0xf]
  %v1124 = vld [vmem:[%s1117 + $0x18] sm:$0xf]
  %v1125 = vld [vmem:[%s1117 + $0x1c] sm:$0xf]
  %v1126 = vld [vmem:[%s1117 + $0x20] sm:$0xf]
  %v1127 = vld [vmem:[%s1117 + $0x24] sm:$0xf]
  %v1128 = vld [vmem:[%s1117 + $0x28] sm:$0xf]
  %v1129 = vld [vmem:[%s1117 + $0x2c] sm:$0xf]
  %v1130 = vld [vmem:[%s1117 + $0x30] sm:$0xf]
  %v1131 = vld [vmem:[%s1117 + $0x34] sm:$0xf]
  %v1132 = vld [vmem:[%s1117 + $0x38] sm:$0xf]
  %v1133 = vld [vmem:[%s1117 + $0x3c] sm:$0xf]
  %s1134 = scalar_lea.vmem %s0, 192
  %v1135 = vld [vmem:[%s1134] sm:$0xf]
  %v1136 = vld [vmem:[%s1134 + $0x4] sm:$0xf]
  %v1137 = vld [vmem:[%s1134 + $0x8] sm:$0xf]
  %v1138 = vld [vmem:[%s1134 + $0xc] sm:$0xf]
  %v1139 = vld [vmem:[%s1134 + $0x10] sm:$0xf]
  %v1140 = vld [vmem:[%s1134 + $0x14] sm:$0xf]
  %v1141 = vld [vmem:[%s1134 + $0x18] sm:$0xf]
  %v1142 = vld [vmem:[%s1134 + $0x1c] sm:$0xf]
  %v1143 = vld [vmem:[%s1134 + $0x20] sm:$0xf]
  %v1144 = vld [vmem:[%s1134 + $0x24] sm:$0xf]
  %v1145 = vld [vmem:[%s1134 + $0x28] sm:$0xf]
  %v1146 = vld [vmem:[%s1134 + $0x2c] sm:$0xf]
  %v1147 = vld [vmem:[%s1134 + $0x30] sm:$0xf]
  %v1148 = vld [vmem:[%s1134 + $0x34] sm:$0xf]
  %v1149 = vld [vmem:[%s1134 + $0x38] sm:$0xf]
  %v1150 = vld [vmem:[%s1134 + $0x3c] sm:$0xf]
  %s1151 = scalar_lea.vmem %s0, 320
  %v1152 = vld [vmem:[%s1151] sm:$0xf]
  %v1153 = vld [vmem:[%s1151 + $0x4] sm:$0xf]
  %v1154 = vld [vmem:[%s1151 + $0x8] sm:$0xf]
  %v1155 = vld [vmem:[%s1151 + $0xc] sm:$0xf]
  %v1156 = vld [vmem:[%s1151 + $0x10] sm:$0xf]
  %v1157 = vld [vmem:[%s1151 + $0x14] sm:$0xf]
  %v1158 = vld [vmem:[%s1151 + $0x18] sm:$0xf]
  %v1159 = vld [vmem:[%s1151 + $0x1c] sm:$0xf]
  %v1160 = vld [vmem:[%s1151 + $0x20] sm:$0xf]
  %v1161 = vld [vmem:[%s1151 + $0x24] sm:$0xf]
  %v1162 = vld [vmem:[%s1151 + $0x28] sm:$0xf]
  %v1163 = vld [vmem:[%s1151 + $0x2c] sm:$0xf]
  %v1164 = vld [vmem:[%s1151 + $0x30] sm:$0xf]
  %v1165 = vld [vmem:[%s1151 + $0x34] sm:$0xf]
  %v1166 = vld [vmem:[%s1151 + $0x38] sm:$0xf]
  %v1167 = vld [vmem:[%s1151 + $0x3c] sm:$0xf]
  %s1168 = scalar_lea.vmem %s1, 16
  %v1169 = vld [vmem:[%s1168] sm:$0xff]
  %v1170 = vld [vmem:[%s1168 + $0x8] sm:$0xff]
  %v1173 = vunpack.c.l.b16 %v1118
  %v1174 = vunpack.c.l.b16 %v1119
  %v1175 = vpack.c.b16 %v1174, %v1173
  %v1178 = vunpack.c.l.b16 %v1135
  %v1179 = vunpack.c.l.b16 %v1136
  %v1180 = vpack.c.b16 %v1179, %v1178
  %v1182 = vsel %vm85, %v1175, 0
  %v1185 = vsel %vm85, %v1180, 0
  %1187 = vmatprep.subr.bf16.mxu0 0
  %1188 = vmatpush1.bf16.xpose.msra.mxu0 %v1185
  %1189 = vmatprep.subr.bf16.mxu0 0
  %1190 = vmatpush1.bf16.xpose.msra.mxu0 0
  %1191 = vmatprep.subr.bf16.mxu0 0
  %1192 = vmatpush1.bf16.xpose.msra.mxu0 0
  %1193 = vmatprep.subr.bf16.mxu0 0
  %1194 = vmatpush1.bf16.xpose.msra.mxu0 0
  %1195 = vmatprep.subr.bf16.mxu0 0
  %1196 = vmatpush1.bf16.xpose.msra.mxu0 0
  %1197 = vmatprep.subr.bf16.mxu0 0
  %1198 = vmatpush1.bf16.xpose.msra.mxu0 0
  %1199 = vmatprep.subr.bf16.mxu0 0
  %1200 = vmatpush1.bf16.xpose.msra.mxu0 0
  %1201 = vmatprep.subr.bf16.mxu0 0
  %1202 = vmatpush1.bf16.xpose.msra.mxu0 0
  %1203 = vmatprep.subr.bf16.mxu0 0
  %1204 = vmatpush1.bf16.xpose.msra.mxu0 0
  %1205 = vmatprep.subr.bf16.mxu0 0
  %1206 = vmatpush1.bf16.xpose.msra.mxu0 0
  %1207 = vmatprep.subr.bf16.mxu0 0
  %1208 = vmatpush1.bf16.xpose.msra.mxu0 0
  %1209 = vmatprep.subr.bf16.mxu0 0
  %1210 = vmatpush1.bf16.xpose.msra.mxu0 0
  %1211 = vmatprep.subr.bf16.mxu0 0
  %1212 = vmatpush1.bf16.xpose.msra.mxu0 0
  %1213 = vmatprep.subr.bf16.mxu0 0
  %1214 = vmatpush1.bf16.xpose.msra.mxu0 0
  %1215 = vmatprep.subr.bf16.mxu0 0
  %1216 = vmatpush1.bf16.xpose.msra.mxu0 0
  %1217 = vmatprep.subr.bf16.mxu0 0
  %1218 = vmatpush1.bf16.xpose.msra.mxu0 0
  %1219 = vmatprep.mubr.bf16.mxu0 0
  %1220 = vmatmul.mubr.bf16.gmra.mrb[0].mxu0 %v1182
  %v1221 = vpop.f32.mrb[0].mxu0
  %v1222 = vadd.f32 %v1169, %v1221
  %v1223 = vpop.f32.mrb[0].mxu0
  %v1224 = vpop.f32.mrb[0].mxu0
  %v1225 = vadd.f32 %v1170, %v1224
  %v1226 = vpop.f32.mrb[0].mxu0
  %1227 = vdwg.mxu0
  %v1230 = vunpack.c.l.b16 %v1120
  %v1231 = vunpack.c.l.b16 %v1121
  %v1232 = vpack.c.b16 %v1231, %v1230
  %v1235 = vunpack.c.l.b16 %v1137
  %v1236 = vunpack.c.l.b16 %v1138
  %v1237 = vpack.c.b16 %v1236, %v1235
  %v1239 = vsel %vm85, %v1232, 0
  %v1242 = vsel %vm85, %v1237, 0
  %1244 = vmatprep.subr.bf16.mxu0 0
  %1245 = vmatpush1.bf16.xpose.msra.mxu0 %v1242
  %1246 = vmatprep.subr.bf16.mxu0 0
  %1247 = vmatpush1.bf16.xpose.msra.mxu0 0
  %1248 = vmatprep.subr.bf16.mxu0 0
  %1249 = vmatpush1.bf16.xpose.msra.mxu0 0
  %1250 = vmatprep.subr.bf16.mxu0 0
  %1251 = vmatpush1.bf16.xpose.msra.mxu0 0
  %1252 = vmatprep.subr.bf16.mxu0 0
  %1253 = vmatpush1.bf16.xpose.msra.mxu0 0
  %1254 = vmatprep.subr.bf16.mxu0 0
  %1255 = vmatpush1.bf16.xpose.msra.mxu0 0
  %1256 = vmatprep.subr.bf16.mxu0 0
  %1257 = vmatpush1.bf16.xpose.msra.mxu0 0
  %1258 = vmatprep.subr.bf16.mxu0 0
  %1259 = vmatpush1.bf16.xpose.msra.mxu0 0
  %1260 = vmatprep.subr.bf16.mxu0 0
  %1261 = vmatpush1.bf16.xpose.msra.mxu0 0
  %1262 = vmatprep.subr.bf16.mxu0 0
  %1263 = vmatpush1.bf16.xpose.msra.mxu0 0
  %1264 = vmatprep.subr.bf16.mxu0 0
  %1265 = vmatpush1.bf16.xpose.msra.mxu0 0
  %1266 = vmatprep.subr.bf16.mxu0 0
  %1267 = vmatpush1.bf16.xpose.msra.mxu0 0
  %1268 = vmatprep.subr.bf16.mxu0 0
  %1269 = vmatpush1.bf16.xpose.msra.mxu0 0
  %1270 = vmatprep.subr.bf16.mxu0 0
  %1271 = vmatpush1.bf16.xpose.msra.mxu0 0
  %1272 = vmatprep.subr.bf16.mxu0 0
  %1273 = vmatpush1.bf16.xpose.msra.mxu0 0
  %1274 = vmatprep.subr.bf16.mxu0 0
  %1275 = vmatpush1.bf16.xpose.msra.mxu0 0
  %1276 = vmatprep.mubr.bf16.mxu0 0
  %1277 = vmatmul.mubr.bf16.gmra.mrb[0].mxu0 %v1239
  %v1278 = vpop.f32.mrb[0].mxu0
  %v1279 = vadd.f32 %v1169, %v1278
  %v1280 = vpop.f32.mrb[0].mxu0
  %v1281 = vpop.f32.mrb[0].mxu0
  %v1282 = vadd.f32 %v1170, %v1281
  %v1283 = vpop.f32.mrb[0].mxu0
  %1284 = vdwg.mxu0
  %v1287 = vunpack.c.l.b16 %v1122
  %v1288 = vunpack.c.l.b16 %v1123
  %v1289 = vpack.c.b16 %v1288, %v1287
  %v1292 = vunpack.c.l.b16 %v1139
  %v1293 = vunpack.c.l.b16 %v1140
  %v1294 = vpack.c.b16 %v1293, %v1292
  %v1296 = vsel %vm85, %v1289, 0
  %v1299 = vsel %vm85, %v1294, 0
  %1301 = vmatprep.subr.bf16.mxu0 0
  %1302 = vmatpush1.bf16.xpose.msra.mxu0 %v1299
  %1303 = vmatprep.subr.bf16.mxu0 0
  %1304 = vmatpush1.bf16.xpose.msra.mxu0 0
  %1305 = vmatprep.subr.bf16.mxu0 0
  %1306 = vmatpush1.bf16.xpose.msra.mxu0 0
  %1307 = vmatprep.subr.bf16.mxu0 0
  %1308 = vmatpush1.bf16.xpose.msra.mxu0 0
  %1309 = vmatprep.subr.bf16.mxu0 0
  %1310 = vmatpush1.bf16.xpose.msra.mxu0 0
  %1311 = vmatprep.subr.bf16.mxu0 0
  %1312 = vmatpush1.bf16.xpose.msra.mxu0 0
  %1313 = vmatprep.subr.bf16.mxu0 0
  %1314 = vmatpush1.bf16.xpose.msra.mxu0 0
  %1315 = vmatprep.subr.bf16.mxu0 0
  %1316 = vmatpush1.bf16.xpose.msra.mxu0 0
  %1317 = vmatprep.subr.bf16.mxu0 0
  %1318 = vmatpush1.bf16.xpose.msra.mxu0 0
  %1319 = vmatprep.subr.bf16.mxu0 0
  %1320 = vmatpush1.bf16.xpose.msra.mxu0 0
  %1321 = vmatprep.subr.bf16.mxu0 0
  %1322 = vmatpush1.bf16.xpose.msra.mxu0 0
  %1323 = vmatprep.subr.bf16.mxu0 0
  %1324 = vmatpush1.bf16.xpose.msra.mxu0 0
  %1325 = vmatprep.subr.bf16.mxu0 0
  %1326 = vmatpush1.bf16.xpose.msra.mxu0 0
  %1327 = vmatprep.subr.bf16.mxu0 0
  %1328 = vmatpush1.bf16.xpose.msra.mxu0 0
  %1329 = vmatprep.subr.bf16.mxu0 0
  %1330 = vmatpush1.bf16.xpose.msra.mxu0 0
  %1331 = vmatprep.subr.bf16.mxu0 0
  %1332 = vmatpush1.bf16.xpose.msra.mxu0 0
  %1333 = vmatprep.mubr.bf16.mxu0 0
  %1334 = vmatmul.mubr.bf16.gmra.mrb[0].mxu0 %v1296
  %v1335 = vpop.f32.mrb[0].mxu0
  %v1336 = vadd.f32 %v1169, %v1335
  %v1337 = vpop.f32.mrb[0].mxu0
  %v1338 = vpop.f32.mrb[0].mxu0
  %v1339 = vadd.f32 %v1170, %v1338
  %v1340 = vpop.f32.mrb[0].mxu0
  %1341 = vdwg.mxu0
  %v1344 = vunpack.c.l.b16 %v1124
  %v1345 = vunpack.c.l.b16 %v1125
  %v1346 = vpack.c.b16 %v1345, %v1344
  %v1349 = vunpack.c.l.b16 %v1141
  %v1350 = vunpack.c.l.b16 %v1142
  %v1351 = vpack.c.b16 %v1350, %v1349
  %v1353 = vsel %vm85, %v1346, 0
  %v1356 = vsel %vm85, %v1351, 0
  %1358 = vmatprep.subr.bf16.mxu0 0
  %1359 = vmatpush1.bf16.xpose.msra.mxu0 %v1356
  %1360 = vmatprep.subr.bf16.mxu0 0
  %1361 = vmatpush1.bf16.xpose.msra.mxu0 0
  %1362 = vmatprep.subr.bf16.mxu0 0
  %1363 = vmatpush1.bf16.xpose.msra.mxu0 0
  %1364 = vmatprep.subr.bf16.mxu0 0
  %1365 = vmatpush1.bf16.xpose.msra.mxu0 0
  %1366 = vmatprep.subr.bf16.mxu0 0
  %1367 = vmatpush1.bf16.xpose.msra.mxu0 0
  %1368 = vmatprep.subr.bf16.mxu0 0
  %1369 = vmatpush1.bf16.xpose.msra.mxu0 0
  %1370 = vmatprep.subr.bf16.mxu0 0
  %1371 = vmatpush1.bf16.xpose.msra.mxu0 0
  %1372 = vmatprep.subr.bf16.mxu0 0
  %1373 = vmatpush1.bf16.xpose.msra.mxu0 0
  %1374 = vmatprep.subr.bf16.mxu0 0
  %1375 = vmatpush1.bf16.xpose.msra.mxu0 0
  %1376 = vmatprep.subr.bf16.mxu0 0
  %1377 = vmatpush1.bf16.xpose.msra.mxu0 0
  %1378 = vmatprep.subr.bf16.mxu0 0
  %1379 = vmatpush1.bf16.xpose.msra.mxu0 0
  %1380 = vmatprep.subr.bf16.mxu0 0
  %1381 = vmatpush1.bf16.xpose.msra.mxu0 0
  %1382 = vmatprep.subr.bf16.mxu0 0
  %1383 = vmatpush1.bf16.xpose.msra.mxu0 0
  %1384 = vmatprep.subr.bf16.mxu0 0
  %1385 = vmatpush1.bf16.xpose.msra.mxu0 0
  %1386 = vmatprep.subr.bf16.mxu0 0
  %1387 = vmatpush1.bf16.xpose.msra.mxu0 0
  %1388 = vmatprep.subr.bf16.mxu0 0
  %1389 = vmatpush1.bf16.xpose.msra.mxu0 0
  %1390 = vmatprep.mubr.bf16.mxu0 0
  %1391 = vmatmul.mubr.bf16.gmra.mrb[0].mxu0 %v1353
  %v1392 = vpop.f32.mrb[0].mxu0
  %v1393 = vadd.f32 %v1169, %v1392
  %v1394 = vpop.f32.mrb[0].mxu0
  %v1395 = vpop.f32.mrb[0].mxu0
  %v1396 = vadd.f32 %v1170, %v1395
  %v1397 = vpop.f32.mrb[0].mxu0
  %1398 = vdwg.mxu0
  %v1401 = vunpack.c.l.b16 %v1126
  %v1402 = vunpack.c.l.b16 %v1127
  %v1403 = vpack.c.b16 %v1402, %v1401
  %v1406 = vunpack.c.l.b16 %v1143
  %v1407 = vunpack.c.l.b16 %v1144
  %v1408 = vpack.c.b16 %v1407, %v1406
  %v1410 = vsel %vm85, %v1403, 0
  %v1413 = vsel %vm85, %v1408, 0
  %1415 = vmatprep.subr.bf16.mxu0 0
  %1416 = vmatpush1.bf16.xpose.msra.mxu0 %v1413
  %1417 = vmatprep.subr.bf16.mxu0 0
  %1418 = vmatpush1.bf16.xpose.msra.mxu0 0
  %1419 = vmatprep.subr.bf16.mxu0 0
  %1420 = vmatpush1.bf16.xpose.msra.mxu0 0
  %1421 = vmatprep.subr.bf16.mxu0 0
  %1422 = vmatpush1.bf16.xpose.msra.mxu0 0
  %1423 = vmatprep.subr.bf16.mxu0 0
  %1424 = vmatpush1.bf16.xpose.msra.mxu0 0
  %1425 = vmatprep.subr.bf16.mxu0 0
  %1426 = vmatpush1.bf16.xpose.msra.mxu0 0
  %1427 = vmatprep.subr.bf16.mxu0 0
  %1428 = vmatpush1.bf16.xpose.msra.mxu0 0
  %1429 = vmatprep.subr.bf16.mxu0 0
  %1430 = vmatpush1.bf16.xpose.msra.mxu0 0
  %1431 = vmatprep.subr.bf16.mxu0 0
  %1432 = vmatpush1.bf16.xpose.msra.mxu0 0
  %1433 = vmatprep.subr.bf16.mxu0 0
  %1434 = vmatpush1.bf16.xpose.msra.mxu0 0
  %1435 = vmatprep.subr.bf16.mxu0 0
  %1436 = vmatpush1.bf16.xpose.msra.mxu0 0
  %1437 = vmatprep.subr.bf16.mxu0 0
  %1438 = vmatpush1.bf16.xpose.msra.mxu0 0
  %1439 = vmatprep.subr.bf16.mxu0 0
  %1440 = vmatpush1.bf16.xpose.msra.mxu0 0
  %1441 = vmatprep.subr.bf16.mxu0 0
  %1442 = vmatpush1.bf16.xpose.msra.mxu0 0
  %1443 = vmatprep.subr.bf16.mxu0 0
  %1444 = vmatpush1.bf16.xpose.msra.mxu0 0
  %1445 = vmatprep.subr.bf16.mxu0 0
  %1446 = vmatpush1.bf16.xpose.msra.mxu0 0
  %1447 = vmatprep.mubr.bf16.mxu0 0
  %1448 = vmatmul.mubr.bf16.gmra.mrb[0].mxu0 %v1410
  %v1449 = vpop.f32.mrb[0].mxu0
  %v1450 = vadd.f32 %v1169, %v1449
  %v1451 = vpop.f32.mrb[0].mxu0
  %v1452 = vpop.f32.mrb[0].mxu0
  %v1453 = vadd.f32 %v1170, %v1452
  %v1454 = vpop.f32.mrb[0].mxu0
  %1455 = vdwg.mxu0
  %v1458 = vunpack.c.l.b16 %v1128
  %v1459 = vunpack.c.l.b16 %v1129
  %v1460 = vpack.c.b16 %v1459, %v1458
  %v1463 = vunpack.c.l.b16 %v1145
  %v1464 = vunpack.c.l.b16 %v1146
  %v1465 = vpack.c.b16 %v1464, %v1463
  %v1467 = vsel %vm85, %v1460, 0
  %v1470 = vsel %vm85, %v1465, 0
  %1472 = vmatprep.subr.bf16.mxu0 0
  %1473 = vmatpush1.bf16.xpose.msra.mxu0 %v1470
  %1474 = vmatprep.subr.bf16.mxu0 0
  %1475 = vmatpush1.bf16.xpose.msra.mxu0 0
  %1476 = vmatprep.subr.bf16.mxu0 0
  %1477 = vmatpush1.bf16.xpose.msra.mxu0 0
  %1478 = vmatprep.subr.bf16.mxu0 0
  %1479 = vmatpush1.bf16.xpose.msra.mxu0 0
  %1480 = vmatprep.subr.bf16.mxu0 0
  %1481 = vmatpush1.bf16.xpose.msra.mxu0 0
  %1482 = vmatprep.subr.bf16.mxu0 0
  %1483 = vmatpush1.bf16.xpose.msra.mxu0 0
  %1484 = vmatprep.subr.bf16.mxu0 0
  %1485 = vmatpush1.bf16.xpose.msra.mxu0 0
  %1486 = vmatprep.subr.bf16.mxu0 0
  %1487 = vmatpush1.bf16.xpose.msra.mxu0 0
  %1488 = vmatprep.subr.bf16.mxu0 0
  %1489 = vmatpush1.bf16.xpose.msra.mxu0 0
  %1490 = vmatprep.subr.bf16.mxu0 0
  %1491 = vmatpush1.bf16.xpose.msra.mxu0 0
  %1492 = vmatprep.subr.bf16.mxu0 0
  %1493 = vmatpush1.bf16.xpose.msra.mxu0 0
  %1494 = vmatprep.subr.bf16.mxu0 0
  %1495 = vmatpush1.bf16.xpose.msra.mxu0 0
  %1496 = vmatprep.subr.bf16.mxu0 0
  %1497 = vmatpush1.bf16.xpose.msra.mxu0 0
  %1498 = vmatprep.subr.bf16.mxu0 0
  %1499 = vmatpush1.bf16.xpose.msra.mxu0 0
  %1500 = vmatprep.subr.bf16.mxu0 0
  %1501 = vmatpush1.bf16.xpose.msra.mxu0 0
  %1502 = vmatprep.subr.bf16.mxu0 0
  %1503 = vmatpush1.bf16.xpose.msra.mxu0 0
  %1504 = vmatprep.mubr.bf16.mxu0 0
  %1505 = vmatmul.mubr.bf16.gmra.mrb[0].mxu0 %v1467
  %v1506 = vpop.f32.mrb[0].mxu0
  %v1507 = vadd.f32 %v1169, %v1506
  %v1508 = vpop.f32.mrb[0].mxu0
  %v1509 = vpop.f32.mrb[0].mxu0
  %v1510 = vadd.f32 %v1170, %v1509
  %v1511 = vpop.f32.mrb[0].mxu0
  %1512 = vdwg.mxu0
  %v1515 = vunpack.c.l.b16 %v1130
  %v1516 = vunpack.c.l.b16 %v1131
  %v1517 = vpack.c.b16 %v1516, %v1515
  %v1520 = vunpack.c.l.b16 %v1147
  %v1521 = vunpack.c.l.b16 %v1148
  %v1522 = vpack.c.b16 %v1521, %v1520
  %v1524 = vsel %vm85, %v1517, 0
  %v1527 = vsel %vm85, %v1522, 0
  %1529 = vmatprep.subr.bf16.mxu0 0
  %1530 = vmatpush1.bf16.xpose.msra.mxu0 %v1527
  %1531 = vmatprep.subr.bf16.mxu0 0
  %1532 = vmatpush1.bf16.xpose.msra.mxu0 0
  %1533 = vmatprep.subr.bf16.mxu0 0
  %1534 = vmatpush1.bf16.xpose.msra.mxu0 0
  %1535 = vmatprep.subr.bf16.mxu0 0
  %1536 = vmatpush1.bf16.xpose.msra.mxu0 0
  %1537 = vmatprep.subr.bf16.mxu0 0
  %1538 = vmatpush1.bf16.xpose.msra.mxu0 0
  %1539 = vmatprep.subr.bf16.mxu0 0
  %1540 = vmatpush1.bf16.xpose.msra.mxu0 0
  %1541 = vmatprep.subr.bf16.mxu0 0
  %1542 = vmatpush1.bf16.xpose.msra.mxu0 0
  %1543 = vmatprep.subr.bf16.mxu0 0
  %1544 = vmatpush1.bf16.xpose.msra.mxu0 0
  %1545 = vmatprep.subr.bf16.mxu0 0
  %1546 = vmatpush1.bf16.xpose.msra.mxu0 0
  %1547 = vmatprep.subr.bf16.mxu0 0
  %1548 = vmatpush1.bf16.xpose.msra.mxu0 0
  %1549 = vmatprep.subr.bf16.mxu0 0
  %1550 = vmatpush1.bf16.xpose.msra.mxu0 0
  %1551 = vmatprep.subr.bf16.mxu0 0
  %1552 = vmatpush1.bf16.xpose.msra.mxu0 0
  %1553 = vmatprep.subr.bf16.mxu0 0
  %1554 = vmatpush1.bf16.xpose.msra.mxu0 0
  %1555 = vmatprep.subr.bf16.mxu0 0
  %1556 = vmatpush1.bf16.xpose.msra.mxu0 0
  %1557 = vmatprep.subr.bf16.mxu0 0
  %1558 = vmatpush1.bf16.xpose.msra.mxu0 0
  %1559 = vmatprep.subr.bf16.mxu0 0
  %1560 = vmatpush1.bf16.xpose.msra.mxu0 0
  %1561 = vmatprep.mubr.bf16.mxu0 0
  %1562 = vmatmul.mubr.bf16.gmra.mrb[0].mxu0 %v1524
  %v1563 = vpop.f32.mrb[0].mxu0
  %v1564 = vadd.f32 %v1169, %v1563
  %v1565 = vpop.f32.mrb[0].mxu0
  %v1566 = vpop.f32.mrb[0].mxu0
  %v1567 = vadd.f32 %v1170, %v1566
  %v1568 = vpop.f32.mrb[0].mxu0
  %1569 = vdwg.mxu0
  %v1572 = vunpack.c.l.b16 %v1132
  %v1573 = vunpack.c.l.b16 %v1133
  %v1574 = vpack.c.b16 %v1573, %v1572
  %v1577 = vunpack.c.l.b16 %v1149
  %v1578 = vunpack.c.l.b16 %v1150
  %v1579 = vpack.c.b16 %v1578, %v1577
  %v1581 = vsel %vm85, %v1574, 0
  %v1584 = vsel %vm85, %v1579, 0
  %1586 = vmatprep.subr.bf16.mxu0 0
  %1587 = vmatpush1.bf16.xpose.msra.mxu0 %v1584
  %1588 = vmatprep.subr.bf16.mxu0 0
  %1589 = vmatpush1.bf16.xpose.msra.mxu0 0
  %1590 = vmatprep.subr.bf16.mxu0 0
  %1591 = vmatpush1.bf16.xpose.msra.mxu0 0
  %1592 = vmatprep.subr.bf16.mxu0 0
  %1593 = vmatpush1.bf16.xpose.msra.mxu0 0
  %1594 = vmatprep.subr.bf16.mxu0 0
  %1595 = vmatpush1.bf16.xpose.msra.mxu0 0
  %1596 = vmatprep.subr.bf16.mxu0 0
  %1597 = vmatpush1.bf16.xpose.msra.mxu0 0
  %1598 = vmatprep.subr.bf16.mxu0 0
  %1599 = vmatpush1.bf16.xpose.msra.mxu0 0
  %1600 = vmatprep.subr.bf16.mxu0 0
  %1601 = vmatpush1.bf16.xpose.msra.mxu0 0
  %1602 = vmatprep.subr.bf16.mxu0 0
  %1603 = vmatpush1.bf16.xpose.msra.mxu0 0
  %1604 = vmatprep.subr.bf16.mxu0 0
  %1605 = vmatpush1.bf16.xpose.msra.mxu0 0
  %1606 = vmatprep.subr.bf16.mxu0 0
  %1607 = vmatpush1.bf16.xpose.msra.mxu0 0
  %1608 = vmatprep.subr.bf16.mxu0 0
  %1609 = vmatpush1.bf16.xpose.msra.mxu0 0
  %1610 = vmatprep.subr.bf16.mxu0 0
  %1611 = vmatpush1.bf16.xpose.msra.mxu0 0
  %1612 = vmatprep.subr.bf16.mxu0 0
  %1613 = vmatpush1.bf16.xpose.msra.mxu0 0
  %1614 = vmatprep.subr.bf16.mxu0 0
  %1615 = vmatpush1.bf16.xpose.msra.mxu0 0
  %1616 = vmatprep.subr.bf16.mxu0 0
  %1617 = vmatpush1.bf16.xpose.msra.mxu0 0
  %1618 = vmatprep.mubr.bf16.mxu0 0
  %1619 = vmatmul.mubr.bf16.gmra.mrb[0].mxu0 %v1581
  %v1620 = vpop.f32.mrb[0].mxu0
  %v1621 = vadd.f32 %v1169, %v1620
  %v1622 = vpop.f32.mrb[0].mxu0
  %v1623 = vpop.f32.mrb[0].mxu0
  %v1624 = vadd.f32 %v1170, %v1623
  %v1625 = vpop.f32.mrb[0].mxu0
  %1626 = vdwg.mxu0
  %v1627 = vsel %vm532, %v1222, -inf
  %1628 = vmax.xlane.f32.xlu0 %v1627
  %v1629 = vpop.xlane.xlu0 %1628
  %v1630 = vsel %vm532, %v1225, -inf
  %1631 = vmax.xlane.f32.xlu0 %v1630
  %v1632 = vpop.xlane.xlu0 %1631
  %v1633 = vsel %vm532, %v1279, -inf
  %1634 = vmax.xlane.f32.xlu0 %v1633
  %v1635 = vpop.xlane.xlu0 %1634
  %v1636 = vsel %vm532, %v1282, -inf
  %1637 = vmax.xlane.f32.xlu0 %v1636
  %v1638 = vpop.xlane.xlu0 %1637
  %v1639 = vsel %vm532, %v1336, -inf
  %1640 = vmax.xlane.f32.xlu0 %v1639
  %v1641 = vpop.xlane.xlu0 %1640
  %v1642 = vsel %vm532, %v1339, -inf
  %1643 = vmax.xlane.f32.xlu0 %v1642
  %v1644 = vpop.xlane.xlu0 %1643
  %v1645 = vsel %vm532, %v1393, -inf
  %1646 = vmax.xlane.f32.xlu0 %v1645
  %v1647 = vpop.xlane.xlu0 %1646
  %v1648 = vsel %vm532, %v1396, -inf
  %1649 = vmax.xlane.f32.xlu0 %v1648
  %v1650 = vpop.xlane.xlu0 %1649
  %v1651 = vsel %vm532, %v1450, -inf
  %1652 = vmax.xlane.f32.xlu0 %v1651
  %v1653 = vpop.xlane.xlu0 %1652
  %v1654 = vsel %vm532, %v1453, -inf
  %1655 = vmax.xlane.f32.xlu0 %v1654
  %v1656 = vpop.xlane.xlu0 %1655
  %v1657 = vsel %vm532, %v1507, -inf
  %1658 = vmax.xlane.f32.xlu0 %v1657
  %v1659 = vpop.xlane.xlu0 %1658
  %v1660 = vsel %vm532, %v1510, -inf
  %1661 = vmax.xlane.f32.xlu0 %v1660
  %v1662 = vpop.xlane.xlu0 %1661
  %v1663 = vsel %vm532, %v1564, -inf
  %1664 = vmax.xlane.f32.xlu0 %v1663
  %v1665 = vpop.xlane.xlu0 %1664
  %v1666 = vsel %vm532, %v1567, -inf
  %1667 = vmax.xlane.f32.xlu0 %v1666
  %v1668 = vpop.xlane.xlu0 %1667
  %v1669 = vsel %vm532, %v1621, -inf
  %1670 = vmax.xlane.f32.xlu0 %v1669
  %v1671 = vpop.xlane.xlu0 %1670
  %v1672 = vsel %vm532, %v1624, -inf
  %1673 = vmax.xlane.f32.xlu0 %v1672
  %v1674 = vpop.xlane.xlu0 %1673
  %v1675 = vsub.f32 %v1222, %v1629
  %v1676 = vsub.f32 %v1225, %v1632
  %v1677 = vsub.f32 %v1279, %v1635
  %v1678 = vsub.f32 %v1282, %v1638
  %v1679 = vsub.f32 %v1336, %v1641
  %v1680 = vsub.f32 %v1339, %v1644
  %v1681 = vsub.f32 %v1393, %v1647
  %v1682 = vsub.f32 %v1396, %v1650
  %v1683 = vsub.f32 %v1450, %v1653
  %v1684 = vsub.f32 %v1453, %v1656
  %v1685 = vsub.f32 %v1507, %v1659
  %v1686 = vsub.f32 %v1510, %v1662
  %v1687 = vsub.f32 %v1564, %v1665
  %v1688 = vsub.f32 %v1567, %v1668
  %v1689 = vsub.f32 %v1621, %v1671
  %v1690 = vsub.f32 %v1624, %v1674
  %v1691 = vmul.f32 %v1675, 1.442695
  %v1692 = vpow.pop %v1691
  %v1693 = vmul.f32 %v1676, 1.442695
  %v1694 = vpow.pop %v1693
  %v1695 = vmul.f32 %v1677, 1.442695
  %v1696 = vpow.pop %v1695
  %v1697 = vmul.f32 %v1678, 1.442695
  %v1698 = vpow.pop %v1697
  %v1699 = vmul.f32 %v1679, 1.442695
  %v1700 = vpow.pop %v1699
  %v1701 = vmul.f32 %v1680, 1.442695
  %v1702 = vpow.pop %v1701
  %v1703 = vmul.f32 %v1681, 1.442695
  %v1704 = vpow.pop %v1703
  %v1705 = vmul.f32 %v1682, 1.442695
  %v1706 = vpow.pop %v1705
  %v1707 = vmul.f32 %v1683, 1.442695
  %v1708 = vpow.pop %v1707
  %v1709 = vmul.f32 %v1684, 1.442695
  %v1710 = vpow.pop %v1709
  %v1711 = vmul.f32 %v1685, 1.442695
  %v1712 = vpow.pop %v1711
  %v1713 = vmul.f32 %v1686, 1.442695
  %v1714 = vpow.pop %v1713
  %v1715 = vmul.f32 %v1687, 1.442695
  %v1716 = vpow.pop %v1715
  %v1717 = vmul.f32 %v1688, 1.442695
  %v1718 = vpow.pop %v1717
  %v1719 = vmul.f32 %v1689, 1.442695
  %v1720 = vpow.pop %v1719
  %v1721 = vmul.f32 %v1690, 1.442695
  %v1722 = vpow.pop %v1721
  %v1723 = vsel %vm532, %v1692, 0.0
  %1724 = vadd.xlane.f32.xlu0 %v1723
  %v1725 = vpop.xlane.xlu0 %1724
  %v1726 = vsel %vm532, %v1694, 0.0
  %1727 = vadd.xlane.f32.xlu0 %v1726
  %v1728 = vpop.xlane.xlu0 %1727
  %v1729 = vsel %vm532, %v1696, 0.0
  %1730 = vadd.xlane.f32.xlu0 %v1729
  %v1731 = vpop.xlane.xlu0 %1730
  %v1732 = vsel %vm532, %v1698, 0.0
  %1733 = vadd.xlane.f32.xlu0 %v1732
  %v1734 = vpop.xlane.xlu0 %1733
  %v1735 = vsel %vm532, %v1700, 0.0
  %1736 = vadd.xlane.f32.xlu0 %v1735
  %v1737 = vpop.xlane.xlu0 %1736
  %v1738 = vsel %vm532, %v1702, 0.0
  %1739 = vadd.xlane.f32.xlu0 %v1738
  %v1740 = vpop.xlane.xlu0 %1739
  %v1741 = vsel %vm532, %v1704, 0.0
  %1742 = vadd.xlane.f32.xlu0 %v1741
  %v1743 = vpop.xlane.xlu0 %1742
  %v1744 = vsel %vm532, %v1706, 0.0
  %1745 = vadd.xlane.f32.xlu0 %v1744
  %v1746 = vpop.xlane.xlu0 %1745
  %v1747 = vsel %vm532, %v1708, 0.0
  %1748 = vadd.xlane.f32.xlu0 %v1747
  %v1749 = vpop.xlane.xlu0 %1748
  %v1750 = vsel %vm532, %v1710, 0.0
  %1751 = vadd.xlane.f32.xlu0 %v1750
  %v1752 = vpop.xlane.xlu0 %1751
  %v1753 = vsel %vm532, %v1712, 0.0
  %1754 = vadd.xlane.f32.xlu0 %v1753
  %v1755 = vpop.xlane.xlu0 %1754
  %v1756 = vsel %vm532, %v1714, 0.0
  %1757 = vadd.xlane.f32.xlu0 %v1756
  %v1758 = vpop.xlane.xlu0 %1757
  %v1759 = vsel %vm532, %v1716, 0.0
  %1760 = vadd.xlane.f32.xlu0 %v1759
  %v1761 = vpop.xlane.xlu0 %1760
  %v1762 = vsel %vm532, %v1718, 0.0
  %1763 = vadd.xlane.f32.xlu0 %v1762
  %v1764 = vpop.xlane.xlu0 %1763
  %v1765 = vsel %vm532, %v1720, 0.0
  %1766 = vadd.xlane.f32.xlu0 %v1765
  %v1767 = vpop.xlane.xlu0 %1766
  %v1768 = vsel %vm532, %v1722, 0.0
  %1769 = vadd.xlane.f32.xlu0 %v1768
  %v1770 = vpop.xlane.xlu0 %1769
  %v1771 = vrcp.pop %v1725
  %v1772 = vrcp.pop %v1728
  %v1773 = vrcp.pop %v1731
  %v1774 = vrcp.pop %v1734
  %v1775 = vrcp.pop %v1737
  %v1776 = vrcp.pop %v1740
  %v1777 = vrcp.pop %v1743
  %v1778 = vrcp.pop %v1746
  %v1779 = vrcp.pop %v1749
  %v1780 = vrcp.pop %v1752
  %v1781 = vrcp.pop %v1755
  %v1782 = vrcp.pop %v1758
  %v1783 = vrcp.pop %v1761
  %v1784 = vrcp.pop %v1764
  %v1785 = vrcp.pop %v1767
  %v1786 = vrcp.pop %v1770
  %v1787 = vmul.f32 %v1692, %v1771
  %v1788 = vmul.f32 %v1694, %v1772
  %v1789 = vmul.f32 %v1696, %v1773
  %v1790 = vmul.f32 %v1698, %v1774
  %v1791 = vmul.f32 %v1700, %v1775
  %v1792 = vmul.f32 %v1702, %v1776
  %v1793 = vmul.f32 %v1704, %v1777
  %v1794 = vmul.f32 %v1706, %v1778
  %v1795 = vmul.f32 %v1708, %v1779
  %v1796 = vmul.f32 %v1710, %v1780
  %v1797 = vmul.f32 %v1712, %v1781
  %v1798 = vmul.f32 %v1714, %v1782
  %v1799 = vmul.f32 %v1716, %v1783
  %v1800 = vmul.f32 %v1718, %v1784
  %v1801 = vmul.f32 %v1720, %v1785
  %v1802 = vmul.f32 %v1722, %v1786
  %v1803 = vpack.c.bf16 %v1788, %v1787
  %v1804 = vpack.c.bf16 %v1790, %v1789
  %v1805 = vpack.c.bf16 %v1792, %v1791
  %v1806 = vpack.c.bf16 %v1794, %v1793
  %v1807 = vpack.c.bf16 %v1796, %v1795
  %v1808 = vpack.c.bf16 %v1798, %v1797
  %v1809 = vpack.c.bf16 %v1800, %v1799
  %v1810 = vpack.c.bf16 %v1802, %v1801
  %v1813 = vunpack.c.l.b16 %v1152
  %v1814 = vunpack.c.l.b16 %v1153
  %v1815 = vpack.c.b16 %v1814, %v1813
  %v1818 = vsel %vm532, %v1803, 0
  %1820 = vmatprep.subr.bf16.mxu0 0
  %1821 = vmatpush1.bf16.msra.mxu0 %v1815
  %1822 = vmatprep.subr.bf16.mxu0 0
  %1823 = vmatpush1.bf16.msra.mxu0 0
  %1824 = vmatprep.subr.bf16.mxu0 0
  %1825 = vmatpush1.bf16.msra.mxu0 0
  %1826 = vmatprep.subr.bf16.mxu0 0
  %1827 = vmatpush1.bf16.msra.mxu0 0
  %1828 = vmatprep.subr.bf16.mxu0 0
  %1829 = vmatpush1.bf16.msra.mxu0 0
  %1830 = vmatprep.subr.bf16.mxu0 0
  %1831 = vmatpush1.bf16.msra.mxu0 0
  %1832 = vmatprep.subr.bf16.mxu0 0
  %1833 = vmatpush1.bf16.msra.mxu0 0
  %1834 = vmatprep.subr.bf16.mxu0 0
  %1835 = vmatpush1.bf16.msra.mxu0 0
  %1836 = vmatprep.subr.bf16.mxu0 0
  %1837 = vmatpush1.bf16.msra.mxu0 0
  %1838 = vmatprep.subr.bf16.mxu0 0
  %1839 = vmatpush1.bf16.msra.mxu0 0
  %1840 = vmatprep.subr.bf16.mxu0 0
  %1841 = vmatpush1.bf16.msra.mxu0 0
  %1842 = vmatprep.subr.bf16.mxu0 0
  %1843 = vmatpush1.bf16.msra.mxu0 0
  %1844 = vmatprep.subr.bf16.mxu0 0
  %1845 = vmatpush1.bf16.msra.mxu0 0
  %1846 = vmatprep.subr.bf16.mxu0 0
  %1847 = vmatpush1.bf16.msra.mxu0 0
  %1848 = vmatprep.subr.bf16.mxu0 0
  %1849 = vmatpush1.bf16.msra.mxu0 0
  %1850 = vmatprep.subr.bf16.mxu0 0
  %1851 = vmatpush1.bf16.msra.mxu0 0
  %1852 = vmatprep.mubr.bf16.mxu0 0
  %1853 = vmatmul.mubr.bf16.gmra.mrb[0].mxu0 %v1818
  %v1854 = vpop.f32.mrb[0].mxu0
  %v1855 = vadd.f32 0.0, %v1854
  %v1856 = vpop.f32.mrb[0].mxu0
  %v1857 = vpop.f32.mrb[0].mxu0
  %v1858 = vadd.f32 0.0, %v1857
  %v1859 = vpop.f32.mrb[0].mxu0
  %1860 = vdwg.mxu0
  %v1863 = vunpack.c.l.b16 %v1154
  %v1864 = vunpack.c.l.b16 %v1155
  %v1865 = vpack.c.b16 %v1864, %v1863
  %v1868 = vsel %vm532, %v1804, 0
  %1870 = vmatprep.subr.bf16.mxu0 0
  %1871 = vmatpush1.bf16.msra.mxu0 %v1865
  %1872 = vmatprep.subr.bf16.mxu0 0
  %1873 = vmatpush1.bf16.msra.mxu0 0
  %1874 = vmatprep.subr.bf16.mxu0 0
  %1875 = vmatpush1.bf16.msra.mxu0 0
  %1876 = vmatprep.subr.bf16.mxu0 0
  %1877 = vmatpush1.bf16.msra.mxu0 0
  %1878 = vmatprep.subr.bf16.mxu0 0
  %1879 = vmatpush1.bf16.msra.mxu0 0
  %1880 = vmatprep.subr.bf16.mxu0 0
  %1881 = vmatpush1.bf16.msra.mxu0 0
  %1882 = vmatprep.subr.bf16.mxu0 0
  %1883 = vmatpush1.bf16.msra.mxu0 0
  %1884 = vmatprep.subr.bf16.mxu0 0
  %1885 = vmatpush1.bf16.msra.mxu0 0
  %1886 = vmatprep.subr.bf16.mxu0 0
  %1887 = vmatpush1.bf16.msra.mxu0 0
  %1888 = vmatprep.subr.bf16.mxu0 0
  %1889 = vmatpush1.bf16.msra.mxu0 0
  %1890 = vmatprep.subr.bf16.mxu0 0
  %1891 = vmatpush1.bf16.msra.mxu0 0
  %1892 = vmatprep.subr.bf16.mxu0 0
  %1893 = vmatpush1.bf16.msra.mxu0 0
  %1894 = vmatprep.subr.bf16.mxu0 0
  %1895 = vmatpush1.bf16.msra.mxu0 0
  %1896 = vmatprep.subr.bf16.mxu0 0
  %1897 = vmatpush1.bf16.msra.mxu0 0
  %1898 = vmatprep.subr.bf16.mxu0 0
  %1899 = vmatpush1.bf16.msra.mxu0 0
  %1900 = vmatprep.subr.bf16.mxu0 0
  %1901 = vmatpush1.bf16.msra.mxu0 0
  %1902 = vmatprep.mubr.bf16.mxu0 0
  %1903 = vmatmul.mubr.bf16.gmra.mrb[0].mxu0 %v1868
  %v1904 = vpop.f32.mrb[0].mxu0
  %v1905 = vadd.f32 0.0, %v1904
  %v1906 = vpop.f32.mrb[0].mxu0
  %v1907 = vpop.f32.mrb[0].mxu0
  %v1908 = vadd.f32 0.0, %v1907
  %v1909 = vpop.f32.mrb[0].mxu0
  %1910 = vdwg.mxu0
  %v1913 = vunpack.c.l.b16 %v1156
  %v1914 = vunpack.c.l.b16 %v1157
  %v1915 = vpack.c.b16 %v1914, %v1913
  %v1918 = vsel %vm532, %v1805, 0
  %1920 = vmatprep.subr.bf16.mxu0 0
  %1921 = vmatpush1.bf16.msra.mxu0 %v1915
  %1922 = vmatprep.subr.bf16.mxu0 0
  %1923 = vmatpush1.bf16.msra.mxu0 0
  %1924 = vmatprep.subr.bf16.mxu0 0
  %1925 = vmatpush1.bf16.msra.mxu0 0
  %1926 = vmatprep.subr.bf16.mxu0 0
  %1927 = vmatpush1.bf16.msra.mxu0 0
  %1928 = vmatprep.subr.bf16.mxu0 0
  %1929 = vmatpush1.bf16.msra.mxu0 0
  %1930 = vmatprep.subr.bf16.mxu0 0
  %1931 = vmatpush1.bf16.msra.mxu0 0
  %1932 = vmatprep.subr.bf16.mxu0 0
  %1933 = vmatpush1.bf16.msra.mxu0 0
  %1934 = vmatprep.subr.bf16.mxu0 0
  %1935 = vmatpush1.bf16.msra.mxu0 0
  %1936 = vmatprep.subr.bf16.mxu0 0
  %1937 = vmatpush1.bf16.msra.mxu0 0
  %1938 = vmatprep.subr.bf16.mxu0 0
  %1939 = vmatpush1.bf16.msra.mxu0 0
  %1940 = vmatprep.subr.bf16.mxu0 0
  %1941 = vmatpush1.bf16.msra.mxu0 0
  %1942 = vmatprep.subr.bf16.mxu0 0
  %1943 = vmatpush1.bf16.msra.mxu0 0
  %1944 = vmatprep.subr.bf16.mxu0 0
  %1945 = vmatpush1.bf16.msra.mxu0 0
  %1946 = vmatprep.subr.bf16.mxu0 0
  %1947 = vmatpush1.bf16.msra.mxu0 0
  %1948 = vmatprep.subr.bf16.mxu0 0
  %1949 = vmatpush1.bf16.msra.mxu0 0
  %1950 = vmatprep.subr.bf16.mxu0 0
  %1951 = vmatpush1.bf16.msra.mxu0 0
  %1952 = vmatprep.mubr.bf16.mxu0 0
  %1953 = vmatmul.mubr.bf16.gmra.mrb[0].mxu0 %v1918
  %v1954 = vpop.f32.mrb[0].mxu0
  %v1955 = vadd.f32 0.0, %v1954
  %v1956 = vpop.f32.mrb[0].mxu0
  %v1957 = vpop.f32.mrb[0].mxu0
  %v1958 = vadd.f32 0.0, %v1957
  %v1959 = vpop.f32.mrb[0].mxu0
  %1960 = vdwg.mxu0
  %v1963 = vunpack.c.l.b16 %v1158
  %v1964 = vunpack.c.l.b16 %v1159
  %v1965 = vpack.c.b16 %v1964, %v1963
  %v1968 = vsel %vm532, %v1806, 0
  %1970 = vmatprep.subr.bf16.mxu0 0
  %1971 = vmatpush1.bf16.msra.mxu0 %v1965
  %1972 = vmatprep.subr.bf16.mxu0 0
  %1973 = vmatpush1.bf16.msra.mxu0 0
  %1974 = vmatprep.subr.bf16.mxu0 0
  %1975 = vmatpush1.bf16.msra.mxu0 0
  %1976 = vmatprep.subr.bf16.mxu0 0
  %1977 = vmatpush1.bf16.msra.mxu0 0
  %1978 = vmatprep.subr.bf16.mxu0 0
  %1979 = vmatpush1.bf16.msra.mxu0 0
  %1980 = vmatprep.subr.bf16.mxu0 0
  %1981 = vmatpush1.bf16.msra.mxu0 0
  %1982 = vmatprep.subr.bf16.mxu0 0
  %1983 = vmatpush1.bf16.msra.mxu0 0
  %1984 = vmatprep.subr.bf16.mxu0 0
  %1985 = vmatpush1.bf16.msra.mxu0 0
  %1986 = vmatprep.subr.bf16.mxu0 0
  %1987 = vmatpush1.bf16.msra.mxu0 0
  %1988 = vmatprep.subr.bf16.mxu0 0
  %1989 = vmatpush1.bf16.msra.mxu0 0
  %1990 = vmatprep.subr.bf16.mxu0 0
  %1991 = vmatpush1.bf16.msra.mxu0 0
  %1992 = vmatprep.subr.bf16.mxu0 0
  %1993 = vmatpush1.bf16.msra.mxu0 0
  %1994 = vmatprep.subr.bf16.mxu0 0
  %1995 = vmatpush1.bf16.msra.mxu0 0
  %1996 = vmatprep.subr.bf16.mxu0 0
  %1997 = vmatpush1.bf16.msra.mxu0 0
  %1998 = vmatprep.subr.bf16.mxu0 0
  %1999 = vmatpush1.bf16.msra.mxu0 0
  %2000 = vmatprep.subr.bf16.mxu0 0
  %2001 = vmatpush1.bf16.msra.mxu0 0
  %2002 = vmatprep.mubr.bf16.mxu0 0
  %2003 = vmatmul.mubr.bf16.gmra.mrb[0].mxu0 %v1968
  %v2004 = vpop.f32.mrb[0].mxu0
  %v2005 = vadd.f32 0.0, %v2004
  %v2006 = vpop.f32.mrb[0].mxu0
  %v2007 = vpop.f32.mrb[0].mxu0
  %v2008 = vadd.f32 0.0, %v2007
  %v2009 = vpop.f32.mrb[0].mxu0
  %2010 = vdwg.mxu0
  %v2013 = vunpack.c.l.b16 %v1160
  %v2014 = vunpack.c.l.b16 %v1161
  %v2015 = vpack.c.b16 %v2014, %v2013
  %v2018 = vsel %vm532, %v1807, 0
  %2020 = vmatprep.subr.bf16.mxu0 0
  %2021 = vmatpush1.bf16.msra.mxu0 %v2015
  %2022 = vmatprep.subr.bf16.mxu0 0
  %2023 = vmatpush1.bf16.msra.mxu0 0
  %2024 = vmatprep.subr.bf16.mxu0 0
  %2025 = vmatpush1.bf16.msra.mxu0 0
  %2026 = vmatprep.subr.bf16.mxu0 0
  %2027 = vmatpush1.bf16.msra.mxu0 0
  %2028 = vmatprep.subr.bf16.mxu0 0
  %2029 = vmatpush1.bf16.msra.mxu0 0
  %2030 = vmatprep.subr.bf16.mxu0 0
  %2031 = vmatpush1.bf16.msra.mxu0 0
  %2032 = vmatprep.subr.bf16.mxu0 0
  %2033 = vmatpush1.bf16.msra.mxu0 0
  %2034 = vmatprep.subr.bf16.mxu0 0
  %2035 = vmatpush1.bf16.msra.mxu0 0
  %2036 = vmatprep.subr.bf16.mxu0 0
  %2037 = vmatpush1.bf16.msra.mxu0 0
  %2038 = vmatprep.subr.bf16.mxu0 0
  %2039 = vmatpush1.bf16.msra.mxu0 0
  %2040 = vmatprep.subr.bf16.mxu0 0
  %2041 = vmatpush1.bf16.msra.mxu0 0
  %2042 = vmatprep.subr.bf16.mxu0 0
  %2043 = vmatpush1.bf16.msra.mxu0 0
  %2044 = vmatprep.subr.bf16.mxu0 0
  %2045 = vmatpush1.bf16.msra.mxu0 0
  %2046 = vmatprep.subr.bf16.mxu0 0
  %2047 = vmatpush1.bf16.msra.mxu0 0
  %2048 = vmatprep.subr.bf16.mxu0 0
  %2049 = vmatpush1.bf16.msra.mxu0 0
  %2050 = vmatprep.subr.bf16.mxu0 0
  %2051 = vmatpush1.bf16.msra.mxu0 0
  %2052 = vmatprep.mubr.bf16.mxu0 0
  %2053 = vmatmul.mubr.bf16.gmra.mrb[0].mxu0 %v2018
  %v2054 = vpop.f32.mrb[0].mxu0
  %v2055 = vadd.f32 0.0, %v2054
  %v2056 = vpop.f32.mrb[0].mxu0
  %v2057 = vpop.f32.mrb[0].mxu0
  %v2058 = vadd.f32 0.0, %v2057
  %v2059 = vpop.f32.mrb[0].mxu0
  %2060 = vdwg.mxu0
  %v2063 = vunpack.c.l.b16 %v1162
  %v2064 = vunpack.c.l.b16 %v1163
  %v2065 = vpack.c.b16 %v2064, %v2063
  %v2068 = vsel %vm532, %v1808, 0
  %2070 = vmatprep.subr.bf16.mxu0 0
  %2071 = vmatpush1.bf16.msra.mxu0 %v2065
  %2072 = vmatprep.subr.bf16.mxu0 0
  %2073 = vmatpush1.bf16.msra.mxu0 0
  %2074 = vmatprep.subr.bf16.mxu0 0
  %2075 = vmatpush1.bf16.msra.mxu0 0
  %2076 = vmatprep.subr.bf16.mxu0 0
  %2077 = vmatpush1.bf16.msra.mxu0 0
  %2078 = vmatprep.subr.bf16.mxu0 0
  %2079 = vmatpush1.bf16.msra.mxu0 0
  %2080 = vmatprep.subr.bf16.mxu0 0
  %2081 = vmatpush1.bf16.msra.mxu0 0
  %2082 = vmatprep.subr.bf16.mxu0 0
  %2083 = vmatpush1.bf16.msra.mxu0 0
  %2084 = vmatprep.subr.bf16.mxu0 0
  %2085 = vmatpush1.bf16.msra.mxu0 0
  %2086 = vmatprep.subr.bf16.mxu0 0
  %2087 = vmatpush1.bf16.msra.mxu0 0
  %2088 = vmatprep.subr.bf16.mxu0 0
  %2089 = vmatpush1.bf16.msra.mxu0 0
  %2090 = vmatprep.subr.bf16.mxu0 0
  %2091 = vmatpush1.bf16.msra.mxu0 0
  %2092 = vmatprep.subr.bf16.mxu0 0
  %2093 = vmatpush1.bf16.msra.mxu0 0
  %2094 = vmatprep.subr.bf16.mxu0 0
  %2095 = vmatpush1.bf16.msra.mxu0 0
  %2096 = vmatprep.subr.bf16.mxu0 0
  %2097 = vmatpush1.bf16.msra.mxu0 0
  %2098 = vmatprep.subr.bf16.mxu0 0
  %2099 = vmatpush1.bf16.msra.mxu0 0
  %2100 = vmatprep.subr.bf16.mxu0 0
  %2101 = vmatpush1.bf16.msra.mxu0 0
  %2102 = vmatprep.mubr.bf16.mxu0 0
  %2103 = vmatmul.mubr.bf16.gmra.mrb[0].mxu0 %v2068
  %v2104 = vpop.f32.mrb[0].mxu0
  %v2105 = vadd.f32 0.0, %v2104
  %v2106 = vpop.f32.mrb[0].mxu0
  %v2107 = vpop.f32.mrb[0].mxu0
  %v2108 = vadd.f32 0.0, %v2107
  %v2109 = vpop.f32.mrb[0].mxu0
  %2110 = vdwg.mxu0
  %v2113 = vunpack.c.l.b16 %v1164
  %v2114 = vunpack.c.l.b16 %v1165
  %v2115 = vpack.c.b16 %v2114, %v2113
  %v2118 = vsel %vm532, %v1809, 0
  %2120 = vmatprep.subr.bf16.mxu0 0
  %2121 = vmatpush1.bf16.msra.mxu0 %v2115
  %2122 = vmatprep.subr.bf16.mxu0 0
  %2123 = vmatpush1.bf16.msra.mxu0 0
  %2124 = vmatprep.subr.bf16.mxu0 0
  %2125 = vmatpush1.bf16.msra.mxu0 0
  %2126 = vmatprep.subr.bf16.mxu0 0
  %2127 = vmatpush1.bf16.msra.mxu0 0
  %2128 = vmatprep.subr.bf16.mxu0 0
  %2129 = vmatpush1.bf16.msra.mxu0 0
  %2130 = vmatprep.subr.bf16.mxu0 0
  %2131 = vmatpush1.bf16.msra.mxu0 0
  %2132 = vmatprep.subr.bf16.mxu0 0
  %2133 = vmatpush1.bf16.msra.mxu0 0
  %2134 = vmatprep.subr.bf16.mxu0 0
  %2135 = vmatpush1.bf16.msra.mxu0 0
  %2136 = vmatprep.subr.bf16.mxu0 0
  %2137 = vmatpush1.bf16.msra.mxu0 0
  %2138 = vmatprep.subr.bf16.mxu0 0
  %2139 = vmatpush1.bf16.msra.mxu0 0
  %2140 = vmatprep.subr.bf16.mxu0 0
  %2141 = vmatpush1.bf16.msra.mxu0 0
  %2142 = vmatprep.subr.bf16.mxu0 0
  %2143 = vmatpush1.bf16.msra.mxu0 0
  %2144 = vmatprep.subr.bf16.mxu0 0
  %2145 = vmatpush1.bf16.msra.mxu0 0
  %2146 = vmatprep.subr.bf16.mxu0 0
  %2147 = vmatpush1.bf16.msra.mxu0 0
  %2148 = vmatprep.subr.bf16.mxu0 0
  %2149 = vmatpush1.bf16.msra.mxu0 0
  %2150 = vmatprep.subr.bf16.mxu0 0
  %2151 = vmatpush1.bf16.msra.mxu0 0
  %2152 = vmatprep.mubr.bf16.mxu0 0
  %2153 = vmatmul.mubr.bf16.gmra.mrb[0].mxu0 %v2118
  %v2154 = vpop.f32.mrb[0].mxu0
  %v2155 = vadd.f32 0.0, %v2154
  %v2156 = vpop.f32.mrb[0].mxu0
  %v2157 = vpop.f32.mrb[0].mxu0
  %v2158 = vadd.f32 0.0, %v2157
  %v2159 = vpop.f32.mrb[0].mxu0
  %2160 = vdwg.mxu0
  %v2163 = vunpack.c.l.b16 %v1166
  %v2164 = vunpack.c.l.b16 %v1167
  %v2165 = vpack.c.b16 %v2164, %v2163
  %v2168 = vsel %vm532, %v1810, 0
  %2170 = vmatprep.subr.bf16.mxu0 0
  %2171 = vmatpush1.bf16.msra.mxu0 %v2165
  %2172 = vmatprep.subr.bf16.mxu0 0
  %2173 = vmatpush1.bf16.msra.mxu0 0
  %2174 = vmatprep.subr.bf16.mxu0 0
  %2175 = vmatpush1.bf16.msra.mxu0 0
  %2176 = vmatprep.subr.bf16.mxu0 0
  %2177 = vmatpush1.bf16.msra.mxu0 0
  %2178 = vmatprep.subr.bf16.mxu0 0
  %2179 = vmatpush1.bf16.msra.mxu0 0
  %2180 = vmatprep.subr.bf16.mxu0 0
  %2181 = vmatpush1.bf16.msra.mxu0 0
  %2182 = vmatprep.subr.bf16.mxu0 0
  %2183 = vmatpush1.bf16.msra.mxu0 0
  %2184 = vmatprep.subr.bf16.mxu0 0
  %2185 = vmatpush1.bf16.msra.mxu0 0
  %2186 = vmatprep.subr.bf16.mxu0 0
  %2187 = vmatpush1.bf16.msra.mxu0 0
  %2188 = vmatprep.subr.bf16.mxu0 0
  %2189 = vmatpush1.bf16.msra.mxu0 0
  %2190 = vmatprep.subr.bf16.mxu0 0
  %2191 = vmatpush1.bf16.msra.mxu0 0
  %2192 = vmatprep.subr.bf16.mxu0 0
  %2193 = vmatpush1.bf16.msra.mxu0 0
  %2194 = vmatprep.subr.bf16.mxu0 0
  %2195 = vmatpush1.bf16.msra.mxu0 0
  %2196 = vmatprep.subr.bf16.mxu0 0
  %2197 = vmatpush1.bf16.msra.mxu0 0
  %2198 = vmatprep.subr.bf16.mxu0 0
  %2199 = vmatpush1.bf16.msra.mxu0 0
  %2200 = vmatprep.subr.bf16.mxu0 0
  %2201 = vmatpush1.bf16.msra.mxu0 0
  %2202 = vmatprep.mubr.bf16.mxu0 0
  %2203 = vmatmul.mubr.bf16.gmra.mrb[0].mxu0 %v2168
  %v2204 = vpop.f32.mrb[0].mxu0
  %v2205 = vadd.f32 0.0, %v2204
  %v2206 = vpop.f32.mrb[0].mxu0
  %v2207 = vpop.f32.mrb[0].mxu0
  %v2208 = vadd.f32 0.0, %v2207
  %v2209 = vpop.f32.mrb[0].mxu0
  %2210 = vdwg.mxu0
  %s2211 = scalar_lea.vmem %s0, 384
  %v2212 = vld [vmem:[%s2211] sm:$0xf]
  %v2213 = vld [vmem:[%s2211 + $0x4] sm:$0xf]
  %v2214 = vld [vmem:[%s2211 + $0x8] sm:$0xf]
  %v2215 = vld [vmem:[%s2211 + $0xc] sm:$0xf]
  %v2216 = vld [vmem:[%s2211 + $0x10] sm:$0xf]
  %v2217 = vld [vmem:[%s2211 + $0x14] sm:$0xf]
  %v2218 = vld [vmem:[%s2211 + $0x18] sm:$0xf]
  %v2219 = vld [vmem:[%s2211 + $0x1c] sm:$0xf]
  %v2220 = vld [vmem:[%s2211 + $0x20] sm:$0xf]
  %v2221 = vld [vmem:[%s2211 + $0x24] sm:$0xf]
  %v2222 = vld [vmem:[%s2211 + $0x28] sm:$0xf]
  %v2223 = vld [vmem:[%s2211 + $0x2c] sm:$0xf]
  %v2224 = vld [vmem:[%s2211 + $0x30] sm:$0xf]
  %v2225 = vld [vmem:[%s2211 + $0x34] sm:$0xf]
  %v2226 = vld [vmem:[%s2211 + $0x38] sm:$0xf]
  %v2227 = vld [vmem:[%s2211 + $0x3c] sm:$0xf]
  %s2228 = scalar_lea.vmem %s0, 512
  %v2229 = vld [vmem:[%s2228] sm:$0xf]
  %v2230 = vld [vmem:[%s2228 + $0x4] sm:$0xf]
  %v2231 = vld [vmem:[%s2228 + $0x8] sm:$0xf]
  %v2232 = vld [vmem:[%s2228 + $0xc] sm:$0xf]
  %v2233 = vld [vmem:[%s2228 + $0x10] sm:$0xf]
  %v2234 = vld [vmem:[%s2228 + $0x14] sm:$0xf]
  %v2235 = vld [vmem:[%s2228 + $0x18] sm:$0xf]
  %v2236 = vld [vmem:[%s2228 + $0x1c] sm:$0xf]
  %v2237 = vld [vmem:[%s2228 + $0x20] sm:$0xf]
  %v2238 = vld [vmem:[%s2228 + $0x24] sm:$0xf]
  %v2239 = vld [vmem:[%s2228 + $0x28] sm:$0xf]
  %v2240 = vld [vmem:[%s2228 + $0x2c] sm:$0xf]
  %v2241 = vld [vmem:[%s2228 + $0x30] sm:$0xf]
  %v2242 = vld [vmem:[%s2228 + $0x34] sm:$0xf]
  %v2243 = vld [vmem:[%s2228 + $0x38] sm:$0xf]
  %v2244 = vld [vmem:[%s2228 + $0x3c] sm:$0xf]
  %s2245 = scalar_lea.vmem %s0, 640
  %v2246 = vld [vmem:[%s2245] sm:$0xf]
  %v2247 = vld [vmem:[%s2245 + $0x4] sm:$0xf]
  %v2248 = vld [vmem:[%s2245 + $0x8] sm:$0xf]
  %v2249 = vld [vmem:[%s2245 + $0xc] sm:$0xf]
  %v2250 = vld [vmem:[%s2245 + $0x10] sm:$0xf]
  %v2251 = vld [vmem:[%s2245 + $0x14] sm:$0xf]
  %v2252 = vld [vmem:[%s2245 + $0x18] sm:$0xf]
  %v2253 = vld [vmem:[%s2245 + $0x1c] sm:$0xf]
  %v2254 = vld [vmem:[%s2245 + $0x20] sm:$0xf]
  %v2255 = vld [vmem:[%s2245 + $0x24] sm:$0xf]
  %v2256 = vld [vmem:[%s2245 + $0x28] sm:$0xf]
  %v2257 = vld [vmem:[%s2245 + $0x2c] sm:$0xf]
  %v2258 = vld [vmem:[%s2245 + $0x30] sm:$0xf]
  %v2259 = vld [vmem:[%s2245 + $0x34] sm:$0xf]
  %v2260 = vld [vmem:[%s2245 + $0x38] sm:$0xf]
  %v2261 = vld [vmem:[%s2245 + $0x3c] sm:$0xf]
  %s2262 = scalar_lea.vmem %s1, 32
  %v2263 = vld [vmem:[%s2262] sm:$0xff]
  %v2264 = vld [vmem:[%s2262 + $0x8] sm:$0xff]
  %v2267 = vunpack.c.l.b16 %v2212
  %v2268 = vunpack.c.l.b16 %v2213
  %v2269 = vpack.c.b16 %v2268, %v2267
  %v2272 = vunpack.c.l.b16 %v2229
  %v2273 = vunpack.c.l.b16 %v2230
  %v2274 = vpack.c.b16 %v2273, %v2272
  %v2276 = vsel %vm85, %v2269, 0
  %v2279 = vsel %vm85, %v2274, 0
  %2281 = vmatprep.subr.bf16.mxu0 0
  %2282 = vmatpush1.bf16.xpose.msra.mxu0 %v2279
  %2283 = vmatprep.subr.bf16.mxu0 0
  %2284 = vmatpush1.bf16.xpose.msra.mxu0 0
  %2285 = vmatprep.subr.bf16.mxu0 0
  %2286 = vmatpush1.bf16.xpose.msra.mxu0 0
  %2287 = vmatprep.subr.bf16.mxu0 0
  %2288 = vmatpush1.bf16.xpose.msra.mxu0 0
  %2289 = vmatprep.subr.bf16.mxu0 0
  %2290 = vmatpush1.bf16.xpose.msra.mxu0 0
  %2291 = vmatprep.subr.bf16.mxu0 0
  %2292 = vmatpush1.bf16.xpose.msra.mxu0 0
  %2293 = vmatprep.subr.bf16.mxu0 0
  %2294 = vmatpush1.bf16.xpose.msra.mxu0 0
  %2295 = vmatprep.subr.bf16.mxu0 0
  %2296 = vmatpush1.bf16.xpose.msra.mxu0 0
  %2297 = vmatprep.subr.bf16.mxu0 0
  %2298 = vmatpush1.bf16.xpose.msra.mxu0 0
  %2299 = vmatprep.subr.bf16.mxu0 0
  %2300 = vmatpush1.bf16.xpose.msra.mxu0 0
  %2301 = vmatprep.subr.bf16.mxu0 0
  %2302 = vmatpush1.bf16.xpose.msra.mxu0 0
  %2303 = vmatprep.subr.bf16.mxu0 0
  %2304 = vmatpush1.bf16.xpose.msra.mxu0 0
  %2305 = vmatprep.subr.bf16.mxu0 0
  %2306 = vmatpush1.bf16.xpose.msra.mxu0 0
  %2307 = vmatprep.subr.bf16.mxu0 0
  %2308 = vmatpush1.bf16.xpose.msra.mxu0 0
  %2309 = vmatprep.subr.bf16.mxu0 0
  %2310 = vmatpush1.bf16.xpose.msra.mxu0 0
  %2311 = vmatprep.subr.bf16.mxu0 0
  %2312 = vmatpush1.bf16.xpose.msra.mxu0 0
  %2313 = vmatprep.mubr.bf16.mxu0 0
  %2314 = vmatmul.mubr.bf16.gmra.mrb[0].mxu0 %v2276
  %v2315 = vpop.f32.mrb[0].mxu0
  %v2316 = vadd.f32 %v2263, %v2315
  %v2317 = vpop.f32.mrb[0].mxu0
  %v2318 = vpop.f32.mrb[0].mxu0
  %v2319 = vadd.f32 %v2264, %v2318
  %v2320 = vpop.f32.mrb[0].mxu0
  %2321 = vdwg.mxu0
  %v2324 = vunpack.c.l.b16 %v2214
  %v2325 = vunpack.c.l.b16 %v2215
  %v2326 = vpack.c.b16 %v2325, %v2324
  %v2329 = vunpack.c.l.b16 %v2231
  %v2330 = vunpack.c.l.b16 %v2232
  %v2331 = vpack.c.b16 %v2330, %v2329
  %v2333 = vsel %vm85, %v2326, 0
  %v2336 = vsel %vm85, %v2331, 0
  %2338 = vmatprep.subr.bf16.mxu0 0
  %2339 = vmatpush1.bf16.xpose.msra.mxu0 %v2336
  %2340 = vmatprep.subr.bf16.mxu0 0
  %2341 = vmatpush1.bf16.xpose.msra.mxu0 0
  %2342 = vmatprep.subr.bf16.mxu0 0
  %2343 = vmatpush1.bf16.xpose.msra.mxu0 0
  %2344 = vmatprep.subr.bf16.mxu0 0
  %2345 = vmatpush1.bf16.xpose.msra.mxu0 0
  %2346 = vmatprep.subr.bf16.mxu0 0
  %2347 = vmatpush1.bf16.xpose.msra.mxu0 0
  %2348 = vmatprep.subr.bf16.mxu0 0
  %2349 = vmatpush1.bf16.xpose.msra.mxu0 0
  %2350 = vmatprep.subr.bf16.mxu0 0
  %2351 = vmatpush1.bf16.xpose.msra.mxu0 0
  %2352 = vmatprep.subr.bf16.mxu0 0
  %2353 = vmatpush1.bf16.xpose.msra.mxu0 0
  %2354 = vmatprep.subr.bf16.mxu0 0
  %2355 = vmatpush1.bf16.xpose.msra.mxu0 0
  %2356 = vmatprep.subr.bf16.mxu0 0
  %2357 = vmatpush1.bf16.xpose.msra.mxu0 0
  %2358 = vmatprep.subr.bf16.mxu0 0
  %2359 = vmatpush1.bf16.xpose.msra.mxu0 0
  %2360 = vmatprep.subr.bf16.mxu0 0
  %2361 = vmatpush1.bf16.xpose.msra.mxu0 0
  %2362 = vmatprep.subr.bf16.mxu0 0
  %2363 = vmatpush1.bf16.xpose.msra.mxu0 0
  %2364 = vmatprep.subr.bf16.mxu0 0
  %2365 = vmatpush1.bf16.xpose.msra.mxu0 0
  %2366 = vmatprep.subr.bf16.mxu0 0
  %2367 = vmatpush1.bf16.xpose.msra.mxu0 0
  %2368 = vmatprep.subr.bf16.mxu0 0
  %2369 = vmatpush1.bf16.xpose.msra.mxu0 0
  %2370 = vmatprep.mubr.bf16.mxu0 0
  %2371 = vmatmul.mubr.bf16.gmra.mrb[0].mxu0 %v2333
  %v2372 = vpop.f32.mrb[0].mxu0
  %v2373 = vadd.f32 %v2263, %v2372
  %v2374 = vpop.f32.mrb[0].mxu0
  %v2375 = vpop.f32.mrb[0].mxu0
  %v2376 = vadd.f32 %v2264, %v2375
  %v2377 = vpop.f32.mrb[0].mxu0
  %2378 = vdwg.mxu0
  %v2381 = vunpack.c.l.b16 %v2216
  %v2382 = vunpack.c.l.b16 %v2217
  %v2383 = vpack.c.b16 %v2382, %v2381
  %v2386 = vunpack.c.l.b16 %v2233
  %v2387 = vunpack.c.l.b16 %v2234
  %v2388 = vpack.c.b16 %v2387, %v2386
  %v2390 = vsel %vm85, %v2383, 0
  %v2393 = vsel %vm85, %v2388, 0
  %2395 = vmatprep.subr.bf16.mxu0 0
  %2396 = vmatpush1.bf16.xpose.msra.mxu0 %v2393
  %2397 = vmatprep.subr.bf16.mxu0 0
  %2398 = vmatpush1.bf16.xpose.msra.mxu0 0
  %2399 = vmatprep.subr.bf16.mxu0 0
  %2400 = vmatpush1.bf16.xpose.msra.mxu0 0
  %2401 = vmatprep.subr.bf16.mxu0 0
  %2402 = vmatpush1.bf16.xpose.msra.mxu0 0
  %2403 = vmatprep.subr.bf16.mxu0 0
  %2404 = vmatpush1.bf16.xpose.msra.mxu0 0
  %2405 = vmatprep.subr.bf16.mxu0 0
  %2406 = vmatpush1.bf16.xpose.msra.mxu0 0
  %2407 = vmatprep.subr.bf16.mxu0 0
  %2408 = vmatpush1.bf16.xpose.msra.mxu0 0
  %2409 = vmatprep.subr.bf16.mxu0 0
  %2410 = vmatpush1.bf16.xpose.msra.mxu0 0
  %2411 = vmatprep.subr.bf16.mxu0 0
  %2412 = vmatpush1.bf16.xpose.msra.mxu0 0
  %2413 = vmatprep.subr.bf16.mxu0 0
  %2414 = vmatpush1.bf16.xpose.msra.mxu0 0
  %2415 = vmatprep.subr.bf16.mxu0 0
  %2416 = vmatpush1.bf16.xpose.msra.mxu0 0
  %2417 = vmatprep.subr.bf16.mxu0 0
  %2418 = vmatpush1.bf16.xpose.msra.mxu0 0
  %2419 = vmatprep.subr.bf16.mxu0 0
  %2420 = vmatpush1.bf16.xpose.msra.mxu0 0
  %2421 = vmatprep.subr.bf16.mxu0 0
  %2422 = vmatpush1.bf16.xpose.msra.mxu0 0
  %2423 = vmatprep.subr.bf16.mxu0 0
  %2424 = vmatpush1.bf16.xpose.msra.mxu0 0
  %2425 = vmatprep.subr.bf16.mxu0 0
  %2426 = vmatpush1.bf16.xpose.msra.mxu0 0
  %2427 = vmatprep.mubr.bf16.mxu0 0
  %2428 = vmatmul.mubr.bf16.gmra.mrb[0].mxu0 %v2390
  %v2429 = vpop.f32.mrb[0].mxu0
  %v2430 = vadd.f32 %v2263, %v2429
  %v2431 = vpop.f32.mrb[0].mxu0
  %v2432 = vpop.f32.mrb[0].mxu0
  %v2433 = vadd.f32 %v2264, %v2432
  %v2434 = vpop.f32.mrb[0].mxu0
  %2435 = vdwg.mxu0
  %v2438 = vunpack.c.l.b16 %v2218
  %v2439 = vunpack.c.l.b16 %v2219
  %v2440 = vpack.c.b16 %v2439, %v2438
  %v2443 = vunpack.c.l.b16 %v2235
  %v2444 = vunpack.c.l.b16 %v2236
  %v2445 = vpack.c.b16 %v2444, %v2443
  %v2447 = vsel %vm85, %v2440, 0
  %v2450 = vsel %vm85, %v2445, 0
  %2452 = vmatprep.subr.bf16.mxu0 0
  %2453 = vmatpush1.bf16.xpose.msra.mxu0 %v2450
  %2454 = vmatprep.subr.bf16.mxu0 0
  %2455 = vmatpush1.bf16.xpose.msra.mxu0 0
  %2456 = vmatprep.subr.bf16.mxu0 0
  %2457 = vmatpush1.bf16.xpose.msra.mxu0 0
  %2458 = vmatprep.subr.bf16.mxu0 0
  %2459 = vmatpush1.bf16.xpose.msra.mxu0 0
  %2460 = vmatprep.subr.bf16.mxu0 0
  %2461 = vmatpush1.bf16.xpose.msra.mxu0 0
  %2462 = vmatprep.subr.bf16.mxu0 0
  %2463 = vmatpush1.bf16.xpose.msra.mxu0 0
  %2464 = vmatprep.subr.bf16.mxu0 0
  %2465 = vmatpush1.bf16.xpose.msra.mxu0 0
  %2466 = vmatprep.subr.bf16.mxu0 0
  %2467 = vmatpush1.bf16.xpose.msra.mxu0 0
  %2468 = vmatprep.subr.bf16.mxu0 0
  %2469 = vmatpush1.bf16.xpose.msra.mxu0 0
  %2470 = vmatprep.subr.bf16.mxu0 0
  %2471 = vmatpush1.bf16.xpose.msra.mxu0 0
  %2472 = vmatprep.subr.bf16.mxu0 0
  %2473 = vmatpush1.bf16.xpose.msra.mxu0 0
  %2474 = vmatprep.subr.bf16.mxu0 0
  %2475 = vmatpush1.bf16.xpose.msra.mxu0 0
  %2476 = vmatprep.subr.bf16.mxu0 0
  %2477 = vmatpush1.bf16.xpose.msra.mxu0 0
  %2478 = vmatprep.subr.bf16.mxu0 0
  %2479 = vmatpush1.bf16.xpose.msra.mxu0 0
  %2480 = vmatprep.subr.bf16.mxu0 0
  %2481 = vmatpush1.bf16.xpose.msra.mxu0 0
  %2482 = vmatprep.subr.bf16.mxu0 0
  %2483 = vmatpush1.bf16.xpose.msra.mxu0 0
  %2484 = vmatprep.mubr.bf16.mxu0 0
  %2485 = vmatmul.mubr.bf16.gmra.mrb[0].mxu0 %v2447
  %v2486 = vpop.f32.mrb[0].mxu0
  %v2487 = vadd.f32 %v2263, %v2486
  %v2488 = vpop.f32.mrb[0].mxu0
  %v2489 = vpop.f32.mrb[0].mxu0
  %v2490 = vadd.f32 %v2264, %v2489
  %v2491 = vpop.f32.mrb[0].mxu0
  %2492 = vdwg.mxu0
  %v2495 = vunpack.c.l.b16 %v2220
  %v2496 = vunpack.c.l.b16 %v2221
  %v2497 = vpack.c.b16 %v2496, %v2495
  %v2500 = vunpack.c.l.b16 %v2237
  %v2501 = vunpack.c.l.b16 %v2238
  %v2502 = vpack.c.b16 %v2501, %v2500
  %v2504 = vsel %vm85, %v2497, 0
  %v2507 = vsel %vm85, %v2502, 0
  %2509 = vmatprep.subr.bf16.mxu0 0
  %2510 = vmatpush1.bf16.xpose.msra.mxu0 %v2507
  %2511 = vmatprep.subr.bf16.mxu0 0
  %2512 = vmatpush1.bf16.xpose.msra.mxu0 0
  %2513 = vmatprep.subr.bf16.mxu0 0
  %2514 = vmatpush1.bf16.xpose.msra.mxu0 0
  %2515 = vmatprep.subr.bf16.mxu0 0
  %2516 = vmatpush1.bf16.xpose.msra.mxu0 0
  %2517 = vmatprep.subr.bf16.mxu0 0
  %2518 = vmatpush1.bf16.xpose.msra.mxu0 0
  %2519 = vmatprep.subr.bf16.mxu0 0
  %2520 = vmatpush1.bf16.xpose.msra.mxu0 0
  %2521 = vmatprep.subr.bf16.mxu0 0
  %2522 = vmatpush1.bf16.xpose.msra.mxu0 0
  %2523 = vmatprep.subr.bf16.mxu0 0
  %2524 = vmatpush1.bf16.xpose.msra.mxu0 0
  %2525 = vmatprep.subr.bf16.mxu0 0
  %2526 = vmatpush1.bf16.xpose.msra.mxu0 0
  %2527 = vmatprep.subr.bf16.mxu0 0
  %2528 = vmatpush1.bf16.xpose.msra.mxu0 0
  %2529 = vmatprep.subr.bf16.mxu0 0
  %2530 = vmatpush1.bf16.xpose.msra.mxu0 0
  %2531 = vmatprep.subr.bf16.mxu0 0
  %2532 = vmatpush1.bf16.xpose.msra.mxu0 0
  %2533 = vmatprep.subr.bf16.mxu0 0
  %2534 = vmatpush1.bf16.xpose.msra.mxu0 0
  %2535 = vmatprep.subr.bf16.mxu0 0
  %2536 = vmatpush1.bf16.xpose.msra.mxu0 0
  %2537 = vmatprep.subr.bf16.mxu0 0
  %2538 = vmatpush1.bf16.xpose.msra.mxu0 0
  %2539 = vmatprep.subr.bf16.mxu0 0
  %2540 = vmatpush1.bf16.xpose.msra.mxu0 0
  %2541 = vmatprep.mubr.bf16.mxu0 0
  %2542 = vmatmul.mubr.bf16.gmra.mrb[0].mxu0 %v2504
  %v2543 = vpop.f32.mrb[0].mxu0
  %v2544 = vadd.f32 %v2263, %v2543
  %v2545 = vpop.f32.mrb[0].mxu0
  %v2546 = vpop.f32.mrb[0].mxu0
  %v2547 = vadd.f32 %v2264, %v2546
  %v2548 = vpop.f32.mrb[0].mxu0
  %2549 = vdwg.mxu0
  %v2552 = vunpack.c.l.b16 %v2222
  %v2553 = vunpack.c.l.b16 %v2223
  %v2554 = vpack.c.b16 %v2553, %v2552
  %v2557 = vunpack.c.l.b16 %v2239
  %v2558 = vunpack.c.l.b16 %v2240
  %v2559 = vpack.c.b16 %v2558, %v2557
  %v2561 = vsel %vm85, %v2554, 0
  %v2564 = vsel %vm85, %v2559, 0
  %2566 = vmatprep.subr.bf16.mxu0 0
  %2567 = vmatpush1.bf16.xpose.msra.mxu0 %v2564
  %2568 = vmatprep.subr.bf16.mxu0 0
  %2569 = vmatpush1.bf16.xpose.msra.mxu0 0
  %2570 = vmatprep.subr.bf16.mxu0 0
  %2571 = vmatpush1.bf16.xpose.msra.mxu0 0
  %2572 = vmatprep.subr.bf16.mxu0 0
  %2573 = vmatpush1.bf16.xpose.msra.mxu0 0
  %2574 = vmatprep.subr.bf16.mxu0 0
  %2575 = vmatpush1.bf16.xpose.msra.mxu0 0
  %2576 = vmatprep.subr.bf16.mxu0 0
  %2577 = vmatpush1.bf16.xpose.msra.mxu0 0
  %2578 = vmatprep.subr.bf16.mxu0 0
  %2579 = vmatpush1.bf16.xpose.msra.mxu0 0
  %2580 = vmatprep.subr.bf16.mxu0 0
  %2581 = vmatpush1.bf16.xpose.msra.mxu0 0
  %2582 = vmatprep.subr.bf16.mxu0 0
  %2583 = vmatpush1.bf16.xpose.msra.mxu0 0
  %2584 = vmatprep.subr.bf16.mxu0 0
  %2585 = vmatpush1.bf16.xpose.msra.mxu0 0
  %2586 = vmatprep.subr.bf16.mxu0 0
  %2587 = vmatpush1.bf16.xpose.msra.mxu0 0
  %2588 = vmatprep.subr.bf16.mxu0 0
  %2589 = vmatpush1.bf16.xpose.msra.mxu0 0
  %2590 = vmatprep.subr.bf16.mxu0 0
  %2591 = vmatpush1.bf16.xpose.msra.mxu0 0
  %2592 = vmatprep.subr.bf16.mxu0 0
  %2593 = vmatpush1.bf16.xpose.msra.mxu0 0
  %2594 = vmatprep.subr.bf16.mxu0 0
  %2595 = vmatpush1.bf16.xpose.msra.mxu0 0
  %2596 = vmatprep.subr.bf16.mxu0 0
  %2597 = vmatpush1.bf16.xpose.msra.mxu0 0
  %2598 = vmatprep.mubr.bf16.mxu0 0
  %2599 = vmatmul.mubr.bf16.gmra.mrb[0].mxu0 %v2561
  %v2600 = vpop.f32.mrb[0].mxu0
  %v2601 = vadd.f32 %v2263, %v2600
  %v2602 = vpop.f32.mrb[0].mxu0
  %v2603 = vpop.f32.mrb[0].mxu0
  %v2604 = vadd.f32 %v2264, %v2603
  %v2605 = vpop.f32.mrb[0].mxu0
  %2606 = vdwg.mxu0
  %v2609 = vunpack.c.l.b16 %v2224
  %v2610 = vunpack.c.l.b16 %v2225
  %v2611 = vpack.c.b16 %v2610, %v2609
  %v2614 = vunpack.c.l.b16 %v2241
  %v2615 = vunpack.c.l.b16 %v2242
  %v2616 = vpack.c.b16 %v2615, %v2614
  %v2618 = vsel %vm85, %v2611, 0
  %v2621 = vsel %vm85, %v2616, 0
  %2623 = vmatprep.subr.bf16.mxu0 0
  %2624 = vmatpush1.bf16.xpose.msra.mxu0 %v2621
  %2625 = vmatprep.subr.bf16.mxu0 0
  %2626 = vmatpush1.bf16.xpose.msra.mxu0 0
  %2627 = vmatprep.subr.bf16.mxu0 0
  %2628 = vmatpush1.bf16.xpose.msra.mxu0 0
  %2629 = vmatprep.subr.bf16.mxu0 0
  %2630 = vmatpush1.bf16.xpose.msra.mxu0 0
  %2631 = vmatprep.subr.bf16.mxu0 0
  %2632 = vmatpush1.bf16.xpose.msra.mxu0 0
  %2633 = vmatprep.subr.bf16.mxu0 0
  %2634 = vmatpush1.bf16.xpose.msra.mxu0 0
  %2635 = vmatprep.subr.bf16.mxu0 0
  %2636 = vmatpush1.bf16.xpose.msra.mxu0 0
  %2637 = vmatprep.subr.bf16.mxu0 0
  %2638 = vmatpush1.bf16.xpose.msra.mxu0 0
  %2639 = vmatprep.subr.bf16.mxu0 0
  %2640 = vmatpush1.bf16.xpose.msra.mxu0 0
  %2641 = vmatprep.subr.bf16.mxu0 0
  %2642 = vmatpush1.bf16.xpose.msra.mxu0 0
  %2643 = vmatprep.subr.bf16.mxu0 0
  %2644 = vmatpush1.bf16.xpose.msra.mxu0 0
  %2645 = vmatprep.subr.bf16.mxu0 0
  %2646 = vmatpush1.bf16.xpose.msra.mxu0 0
  %2647 = vmatprep.subr.bf16.mxu0 0
  %2648 = vmatpush1.bf16.xpose.msra.mxu0 0
  %2649 = vmatprep.subr.bf16.mxu0 0
  %2650 = vmatpush1.bf16.xpose.msra.mxu0 0
  %2651 = vmatprep.subr.bf16.mxu0 0
  %2652 = vmatpush1.bf16.xpose.msra.mxu0 0
  %2653 = vmatprep.subr.bf16.mxu0 0
  %2654 = vmatpush1.bf16.xpose.msra.mxu0 0
  %2655 = vmatprep.mubr.bf16.mxu0 0
  %2656 = vmatmul.mubr.bf16.gmra.mrb[0].mxu0 %v2618
  %v2657 = vpop.f32.mrb[0].mxu0
  %v2658 = vadd.f32 %v2263, %v2657
  %v2659 = vpop.f32.mrb[0].mxu0
  %v2660 = vpop.f32.mrb[0].mxu0
  %v2661 = vadd.f32 %v2264, %v2660
  %v2662 = vpop.f32.mrb[0].mxu0
  %2663 = vdwg.mxu0
  %v2666 = vunpack.c.l.b16 %v2226
  %v2667 = vunpack.c.l.b16 %v2227
  %v2668 = vpack.c.b16 %v2667, %v2666
  %v2671 = vunpack.c.l.b16 %v2243
  %v2672 = vunpack.c.l.b16 %v2244
  %v2673 = vpack.c.b16 %v2672, %v2671
  %v2675 = vsel %vm85, %v2668, 0
  %v2678 = vsel %vm85, %v2673, 0
  %2680 = vmatprep.subr.bf16.mxu0 0
  %2681 = vmatpush1.bf16.xpose.msra.mxu0 %v2678
  %2682 = vmatprep.subr.bf16.mxu0 0
  %2683 = vmatpush1.bf16.xpose.msra.mxu0 0
  %2684 = vmatprep.subr.bf16.mxu0 0
  %2685 = vmatpush1.bf16.xpose.msra.mxu0 0
  %2686 = vmatprep.subr.bf16.mxu0 0
  %2687 = vmatpush1.bf16.xpose.msra.mxu0 0
  %2688 = vmatprep.subr.bf16.mxu0 0
  %2689 = vmatpush1.bf16.xpose.msra.mxu0 0
  %2690 = vmatprep.subr.bf16.mxu0 0
  %2691 = vmatpush1.bf16.xpose.msra.mxu0 0
  %2692 = vmatprep.subr.bf16.mxu0 0
  %2693 = vmatpush1.bf16.xpose.msra.mxu0 0
  %2694 = vmatprep.subr.bf16.mxu0 0
  %2695 = vmatpush1.bf16.xpose.msra.mxu0 0
  %2696 = vmatprep.subr.bf16.mxu0 0
  %2697 = vmatpush1.bf16.xpose.msra.mxu0 0
  %2698 = vmatprep.subr.bf16.mxu0 0
  %2699 = vmatpush1.bf16.xpose.msra.mxu0 0
  %2700 = vmatprep.subr.bf16.mxu0 0
  %2701 = vmatpush1.bf16.xpose.msra.mxu0 0
  %2702 = vmatprep.subr.bf16.mxu0 0
  %2703 = vmatpush1.bf16.xpose.msra.mxu0 0
  %2704 = vmatprep.subr.bf16.mxu0 0
  %2705 = vmatpush1.bf16.xpose.msra.mxu0 0
  %2706 = vmatprep.subr.bf16.mxu0 0
  %2707 = vmatpush1.bf16.xpose.msra.mxu0 0
  %2708 = vmatprep.subr.bf16.mxu0 0
  %2709 = vmatpush1.bf16.xpose.msra.mxu0 0
  %2710 = vmatprep.subr.bf16.mxu0 0
  %2711 = vmatpush1.bf16.xpose.msra.mxu0 0
  %2712 = vmatprep.mubr.bf16.mxu0 0
  %2713 = vmatmul.mubr.bf16.gmra.mrb[0].mxu0 %v2675
  %v2714 = vpop.f32.mrb[0].mxu0
  %v2715 = vadd.f32 %v2263, %v2714
  %v2716 = vpop.f32.mrb[0].mxu0
  %v2717 = vpop.f32.mrb[0].mxu0
  %v2718 = vadd.f32 %v2264, %v2717
  %v2719 = vpop.f32.mrb[0].mxu0
  %2720 = vdwg.mxu0
  %v2721 = vadd.f32 %v2316, %v15
  %v2722 = vadd.f32 %v2319, %v16
  %v2723 = vadd.f32 %v2373, %v17
  %v2724 = vadd.f32 %v2376, %v18
  %v2725 = vadd.f32 %v2430, %v19
  %v2726 = vadd.f32 %v2433, %v20
  %v2727 = vadd.f32 %v2487, %v21
  %v2728 = vadd.f32 %v2490, %v22
  %v2729 = vadd.f32 %v2544, %v15
  %v2730 = vadd.f32 %v2547, %v16
  %v2731 = vadd.f32 %v2601, %v17
  %v2732 = vadd.f32 %v2604, %v18
  %v2733 = vadd.f32 %v2658, %v19
  %v2734 = vadd.f32 %v2661, %v20
  %v2735 = vadd.f32 %v2715, %v21
  %v2736 = vadd.f32 %v2718, %v22
  %v2737 = vsel %vm532, %v2721, -inf
  %2738 = vmax.xlane.f32.xlu0 %v2737
  %v2739 = vpop.xlane.xlu0 %2738
  %v2740 = vsel %vm532, %v2722, -inf
  %2741 = vmax.xlane.f32.xlu0 %v2740
  %v2742 = vpop.xlane.xlu0 %2741
  %v2743 = vsel %vm532, %v2723, -inf
  %2744 = vmax.xlane.f32.xlu0 %v2743
  %v2745 = vpop.xlane.xlu0 %2744
  %v2746 = vsel %vm532, %v2724, -inf
  %2747 = vmax.xlane.f32.xlu0 %v2746
  %v2748 = vpop.xlane.xlu0 %2747
  %v2749 = vsel %vm532, %v2725, -inf
  %2750 = vmax.xlane.f32.xlu0 %v2749
  %v2751 = vpop.xlane.xlu0 %2750
  %v2752 = vsel %vm532, %v2726, -inf
  %2753 = vmax.xlane.f32.xlu0 %v2752
  %v2754 = vpop.xlane.xlu0 %2753
  %v2755 = vsel %vm532, %v2727, -inf
  %2756 = vmax.xlane.f32.xlu0 %v2755
  %v2757 = vpop.xlane.xlu0 %2756
  %v2758 = vsel %vm532, %v2728, -inf
  %2759 = vmax.xlane.f32.xlu0 %v2758
  %v2760 = vpop.xlane.xlu0 %2759
  %v2761 = vsel %vm532, %v2729, -inf
  %2762 = vmax.xlane.f32.xlu0 %v2761
  %v2763 = vpop.xlane.xlu0 %2762
  %v2764 = vsel %vm532, %v2730, -inf
  %2765 = vmax.xlane.f32.xlu0 %v2764
  %v2766 = vpop.xlane.xlu0 %2765
  %v2767 = vsel %vm532, %v2731, -inf
  %2768 = vmax.xlane.f32.xlu0 %v2767
  %v2769 = vpop.xlane.xlu0 %2768
  %v2770 = vsel %vm532, %v2732, -inf
  %2771 = vmax.xlane.f32.xlu0 %v2770
  %v2772 = vpop.xlane.xlu0 %2771
  %v2773 = vsel %vm532, %v2733, -inf
  %2774 = vmax.xlane.f32.xlu0 %v2773
  %v2775 = vpop.xlane.xlu0 %2774
  %v2776 = vsel %vm532, %v2734, -inf
  %2777 = vmax.xlane.f32.xlu0 %v2776
  %v2778 = vpop.xlane.xlu0 %2777
  %v2779 = vsel %vm532, %v2735, -inf
  %2780 = vmax.xlane.f32.xlu0 %v2779
  %v2781 = vpop.xlane.xlu0 %2780
  %v2782 = vsel %vm532, %v2736, -inf
  %2783 = vmax.xlane.f32.xlu0 %v2782
  %v2784 = vpop.xlane.xlu0 %2783
  %v2785 = vsub.f32 %v2721, %v2739
  %v2786 = vsub.f32 %v2722, %v2742
  %v2787 = vsub.f32 %v2723, %v2745
  %v2788 = vsub.f32 %v2724, %v2748
  %v2789 = vsub.f32 %v2725, %v2751
  %v2790 = vsub.f32 %v2726, %v2754
  %v2791 = vsub.f32 %v2727, %v2757
  %v2792 = vsub.f32 %v2728, %v2760
  %v2793 = vsub.f32 %v2729, %v2763
  %v2794 = vsub.f32 %v2730, %v2766
  %v2795 = vsub.f32 %v2731, %v2769
  %v2796 = vsub.f32 %v2732, %v2772
  %v2797 = vsub.f32 %v2733, %v2775
  %v2798 = vsub.f32 %v2734, %v2778
  %v2799 = vsub.f32 %v2735, %v2781
  %v2800 = vsub.f32 %v2736, %v2784
  %v2801 = vmul.f32 %v2785, 1.442695
  %v2802 = vpow.pop %v2801
  %v2803 = vmul.f32 %v2786, 1.442695
  %v2804 = vpow.pop %v2803
  %v2805 = vmul.f32 %v2787, 1.442695
  %v2806 = vpow.pop %v2805
  %v2807 = vmul.f32 %v2788, 1.442695
  %v2808 = vpow.pop %v2807
  %v2809 = vmul.f32 %v2789, 1.442695
  %v2810 = vpow.pop %v2809
  %v2811 = vmul.f32 %v2790, 1.442695
  %v2812 = vpow.pop %v2811
  %v2813 = vmul.f32 %v2791, 1.442695
  %v2814 = vpow.pop %v2813
  %v2815 = vmul.f32 %v2792, 1.442695
  %v2816 = vpow.pop %v2815
  %v2817 = vmul.f32 %v2793, 1.442695
  %v2818 = vpow.pop %v2817
  %v2819 = vmul.f32 %v2794, 1.442695
  %v2820 = vpow.pop %v2819
  %v2821 = vmul.f32 %v2795, 1.442695
  %v2822 = vpow.pop %v2821
  %v2823 = vmul.f32 %v2796, 1.442695
  %v2824 = vpow.pop %v2823
  %v2825 = vmul.f32 %v2797, 1.442695
  %v2826 = vpow.pop %v2825
  %v2827 = vmul.f32 %v2798, 1.442695
  %v2828 = vpow.pop %v2827
  %v2829 = vmul.f32 %v2799, 1.442695
  %v2830 = vpow.pop %v2829
  %v2831 = vmul.f32 %v2800, 1.442695
  %v2832 = vpow.pop %v2831
  %v2833 = vsel %vm532, %v2802, 0.0
  %2834 = vadd.xlane.f32.xlu0 %v2833
  %v2835 = vpop.xlane.xlu0 %2834
  %v2836 = vsel %vm532, %v2804, 0.0
  %2837 = vadd.xlane.f32.xlu0 %v2836
  %v2838 = vpop.xlane.xlu0 %2837
  %v2839 = vsel %vm532, %v2806, 0.0
  %2840 = vadd.xlane.f32.xlu0 %v2839
  %v2841 = vpop.xlane.xlu0 %2840
  %v2842 = vsel %vm532, %v2808, 0.0
  %2843 = vadd.xlane.f32.xlu0 %v2842
  %v2844 = vpop.xlane.xlu0 %2843
  %v2845 = vsel %vm532, %v2810, 0.0
  %2846 = vadd.xlane.f32.xlu0 %v2845
  %v2847 = vpop.xlane.xlu0 %2846
  %v2848 = vsel %vm532, %v2812, 0.0
  %2849 = vadd.xlane.f32.xlu0 %v2848
  %v2850 = vpop.xlane.xlu0 %2849
  %v2851 = vsel %vm532, %v2814, 0.0
  %2852 = vadd.xlane.f32.xlu0 %v2851
  %v2853 = vpop.xlane.xlu0 %2852
  %v2854 = vsel %vm532, %v2816, 0.0
  %2855 = vadd.xlane.f32.xlu0 %v2854
  %v2856 = vpop.xlane.xlu0 %2855
  %v2857 = vsel %vm532, %v2818, 0.0
  %2858 = vadd.xlane.f32.xlu0 %v2857
  %v2859 = vpop.xlane.xlu0 %2858
  %v2860 = vsel %vm532, %v2820, 0.0
  %2861 = vadd.xlane.f32.xlu0 %v2860
  %v2862 = vpop.xlane.xlu0 %2861
  %v2863 = vsel %vm532, %v2822, 0.0
  %2864 = vadd.xlane.f32.xlu0 %v2863
  %v2865 = vpop.xlane.xlu0 %2864
  %v2866 = vsel %vm532, %v2824, 0.0
  %2867 = vadd.xlane.f32.xlu0 %v2866
  %v2868 = vpop.xlane.xlu0 %2867
  %v2869 = vsel %vm532, %v2826, 0.0
  %2870 = vadd.xlane.f32.xlu0 %v2869
  %v2871 = vpop.xlane.xlu0 %2870
  %v2872 = vsel %vm532, %v2828, 0.0
  %2873 = vadd.xlane.f32.xlu0 %v2872
  %v2874 = vpop.xlane.xlu0 %2873
  %v2875 = vsel %vm532, %v2830, 0.0
  %2876 = vadd.xlane.f32.xlu0 %v2875
  %v2877 = vpop.xlane.xlu0 %2876
  %v2878 = vsel %vm532, %v2832, 0.0
  %2879 = vadd.xlane.f32.xlu0 %v2878
  %v2880 = vpop.xlane.xlu0 %2879
  %v2881 = vrcp.pop %v2835
  %v2882 = vrcp.pop %v2838
  %v2883 = vrcp.pop %v2841
  %v2884 = vrcp.pop %v2844
  %v2885 = vrcp.pop %v2847
  %v2886 = vrcp.pop %v2850
  %v2887 = vrcp.pop %v2853
  %v2888 = vrcp.pop %v2856
  %v2889 = vrcp.pop %v2859
  %v2890 = vrcp.pop %v2862
  %v2891 = vrcp.pop %v2865
  %v2892 = vrcp.pop %v2868
  %v2893 = vrcp.pop %v2871
  %v2894 = vrcp.pop %v2874
  %v2895 = vrcp.pop %v2877
  %v2896 = vrcp.pop %v2880
  %v2897 = vmul.f32 %v2802, %v2881
  %v2898 = vmul.f32 %v2804, %v2882
  %v2899 = vmul.f32 %v2806, %v2883
  %v2900 = vmul.f32 %v2808, %v2884
  %v2901 = vmul.f32 %v2810, %v2885
  %v2902 = vmul.f32 %v2812, %v2886
  %v2903 = vmul.f32 %v2814, %v2887
  %v2904 = vmul.f32 %v2816, %v2888
  %v2905 = vmul.f32 %v2818, %v2889
  %v2906 = vmul.f32 %v2820, %v2890
  %v2907 = vmul.f32 %v2822, %v2891
  %v2908 = vmul.f32 %v2824, %v2892
  %v2909 = vmul.f32 %v2826, %v2893
  %v2910 = vmul.f32 %v2828, %v2894
  %v2911 = vmul.f32 %v2830, %v2895
  %v2912 = vmul.f32 %v2832, %v2896
  %v2913 = vpack.c.bf16 %v2898, %v2897
  %v2914 = vpack.c.bf16 %v2900, %v2899
  %v2915 = vpack.c.bf16 %v2902, %v2901
  %v2916 = vpack.c.bf16 %v2904, %v2903
  %v2917 = vpack.c.bf16 %v2906, %v2905
  %v2918 = vpack.c.bf16 %v2908, %v2907
  %v2919 = vpack.c.bf16 %v2910, %v2909
  %v2920 = vpack.c.bf16 %v2912, %v2911
  %v2923 = vunpack.c.l.b16 %v2246
  %v2924 = vunpack.c.l.b16 %v2247
  %v2925 = vpack.c.b16 %v2924, %v2923
  %v2928 = vsel %vm532, %v2913, 0
  %2930 = vmatprep.subr.bf16.mxu0 0
  %2931 = vmatpush1.bf16.msra.mxu0 %v2925
  %2932 = vmatprep.subr.bf16.mxu0 0
  %2933 = vmatpush1.bf16.msra.mxu0 0
  %2934 = vmatprep.subr.bf16.mxu0 0
  %2935 = vmatpush1.bf16.msra.mxu0 0
  %2936 = vmatprep.subr.bf16.mxu0 0
  %2937 = vmatpush1.bf16.msra.mxu0 0
  %2938 = vmatprep.subr.bf16.mxu0 0
  %2939 = vmatpush1.bf16.msra.mxu0 0
  %2940 = vmatprep.subr.bf16.mxu0 0
  %2941 = vmatpush1.bf16.msra.mxu0 0
  %2942 = vmatprep.subr.bf16.mxu0 0
  %2943 = vmatpush1.bf16.msra.mxu0 0
  %2944 = vmatprep.subr.bf16.mxu0 0
  %2945 = vmatpush1.bf16.msra.mxu0 0
  %2946 = vmatprep.subr.bf16.mxu0 0
  %2947 = vmatpush1.bf16.msra.mxu0 0
  %2948 = vmatprep.subr.bf16.mxu0 0
  %2949 = vmatpush1.bf16.msra.mxu0 0
  %2950 = vmatprep.subr.bf16.mxu0 0
  %2951 = vmatpush1.bf16.msra.mxu0 0
  %2952 = vmatprep.subr.bf16.mxu0 0
  %2953 = vmatpush1.bf16.msra.mxu0 0
  %2954 = vmatprep.subr.bf16.mxu0 0
  %2955 = vmatpush1.bf16.msra.mxu0 0
  %2956 = vmatprep.subr.bf16.mxu0 0
  %2957 = vmatpush1.bf16.msra.mxu0 0
  %2958 = vmatprep.subr.bf16.mxu0 0
  %2959 = vmatpush1.bf16.msra.mxu0 0
  %2960 = vmatprep.subr.bf16.mxu0 0
  %2961 = vmatpush1.bf16.msra.mxu0 0
  %2962 = vmatprep.mubr.bf16.mxu0 0
  %2963 = vmatmul.mubr.bf16.gmra.mrb[0].mxu0 %v2928
  %v2964 = vpop.f32.mrb[0].mxu0
  %v2965 = vadd.f32 0.0, %v2964
  %v2966 = vpop.f32.mrb[0].mxu0
  %v2967 = vpop.f32.mrb[0].mxu0
  %v2968 = vadd.f32 0.0, %v2967
  %v2969 = vpop.f32.mrb[0].mxu0
  %2970 = vdwg.mxu0
  %v2973 = vunpack.c.l.b16 %v2248
  %v2974 = vunpack.c.l.b16 %v2249
  %v2975 = vpack.c.b16 %v2974, %v2973
  %v2978 = vsel %vm532, %v2914, 0
  %2980 = vmatprep.subr.bf16.mxu0 0
  %2981 = vmatpush1.bf16.msra.mxu0 %v2975
  %2982 = vmatprep.subr.bf16.mxu0 0
  %2983 = vmatpush1.bf16.msra.mxu0 0
  %2984 = vmatprep.subr.bf16.mxu0 0
  %2985 = vmatpush1.bf16.msra.mxu0 0
  %2986 = vmatprep.subr.bf16.mxu0 0
  %2987 = vmatpush1.bf16.msra.mxu0 0
  %2988 = vmatprep.subr.bf16.mxu0 0
  %2989 = vmatpush1.bf16.msra.mxu0 0
  %2990 = vmatprep.subr.bf16.mxu0 0
  %2991 = vmatpush1.bf16.msra.mxu0 0
  %2992 = vmatprep.subr.bf16.mxu0 0
  %2993 = vmatpush1.bf16.msra.mxu0 0
  %2994 = vmatprep.subr.bf16.mxu0 0
  %2995 = vmatpush1.bf16.msra.mxu0 0
  %2996 = vmatprep.subr.bf16.mxu0 0
  %2997 = vmatpush1.bf16.msra.mxu0 0
  %2998 = vmatprep.subr.bf16.mxu0 0
  %2999 = vmatpush1.bf16.msra.mxu0 0
  %3000 = vmatprep.subr.bf16.mxu0 0
  %3001 = vmatpush1.bf16.msra.mxu0 0
  %3002 = vmatprep.subr.bf16.mxu0 0
  %3003 = vmatpush1.bf16.msra.mxu0 0
  %3004 = vmatprep.subr.bf16.mxu0 0
  %3005 = vmatpush1.bf16.msra.mxu0 0
  %3006 = vmatprep.subr.bf16.mxu0 0
  %3007 = vmatpush1.bf16.msra.mxu0 0
  %3008 = vmatprep.subr.bf16.mxu0 0
  %3009 = vmatpush1.bf16.msra.mxu0 0
  %3010 = vmatprep.subr.bf16.mxu0 0
  %3011 = vmatpush1.bf16.msra.mxu0 0
  %3012 = vmatprep.mubr.bf16.mxu0 0
  %3013 = vmatmul.mubr.bf16.gmra.mrb[0].mxu0 %v2978
  %v3014 = vpop.f32.mrb[0].mxu0
  %v3015 = vadd.f32 0.0, %v3014
  %v3016 = vpop.f32.mrb[0].mxu0
  %v3017 = vpop.f32.mrb[0].mxu0
  %v3018 = vadd.f32 0.0, %v3017
  %v3019 = vpop.f32.mrb[0].mxu0
  %3020 = vdwg.mxu0
  %v3023 = vunpack.c.l.b16 %v2250
  %v3024 = vunpack.c.l.b16 %v2251
  %v3025 = vpack.c.b16 %v3024, %v3023
  %v3028 = vsel %vm532, %v2915, 0
  %3030 = vmatprep.subr.bf16.mxu0 0
  %3031 = vmatpush1.bf16.msra.mxu0 %v3025
  %3032 = vmatprep.subr.bf16.mxu0 0
  %3033 = vmatpush1.bf16.msra.mxu0 0
  %3034 = vmatprep.subr.bf16.mxu0 0
  %3035 = vmatpush1.bf16.msra.mxu0 0
  %3036 = vmatprep.subr.bf16.mxu0 0
  %3037 = vmatpush1.bf16.msra.mxu0 0
  %3038 = vmatprep.subr.bf16.mxu0 0
  %3039 = vmatpush1.bf16.msra.mxu0 0
  %3040 = vmatprep.subr.bf16.mxu0 0
  %3041 = vmatpush1.bf16.msra.mxu0 0
  %3042 = vmatprep.subr.bf16.mxu0 0
  %3043 = vmatpush1.bf16.msra.mxu0 0
  %3044 = vmatprep.subr.bf16.mxu0 0
  %3045 = vmatpush1.bf16.msra.mxu0 0
  %3046 = vmatprep.subr.bf16.mxu0 0
  %3047 = vmatpush1.bf16.msra.mxu0 0
  %3048 = vmatprep.subr.bf16.mxu0 0
  %3049 = vmatpush1.bf16.msra.mxu0 0
  %3050 = vmatprep.subr.bf16.mxu0 0
  %3051 = vmatpush1.bf16.msra.mxu0 0
  %3052 = vmatprep.subr.bf16.mxu0 0
  %3053 = vmatpush1.bf16.msra.mxu0 0
  %3054 = vmatprep.subr.bf16.mxu0 0
  %3055 = vmatpush1.bf16.msra.mxu0 0
  %3056 = vmatprep.subr.bf16.mxu0 0
  %3057 = vmatpush1.bf16.msra.mxu0 0
  %3058 = vmatprep.subr.bf16.mxu0 0
  %3059 = vmatpush1.bf16.msra.mxu0 0
  %3060 = vmatprep.subr.bf16.mxu0 0
  %3061 = vmatpush1.bf16.msra.mxu0 0
  %3062 = vmatprep.mubr.bf16.mxu0 0
  %3063 = vmatmul.mubr.bf16.gmra.mrb[0].mxu0 %v3028
  %v3064 = vpop.f32.mrb[0].mxu0
  %v3065 = vadd.f32 0.0, %v3064
  %v3066 = vpop.f32.mrb[0].mxu0
  %v3067 = vpop.f32.mrb[0].mxu0
  %v3068 = vadd.f32 0.0, %v3067
  %v3069 = vpop.f32.mrb[0].mxu0
  %3070 = vdwg.mxu0
  %v3073 = vunpack.c.l.b16 %v2252
  %v3074 = vunpack.c.l.b16 %v2253
  %v3075 = vpack.c.b16 %v3074, %v3073
  %v3078 = vsel %vm532, %v2916, 0
  %3080 = vmatprep.subr.bf16.mxu0 0
  %3081 = vmatpush1.bf16.msra.mxu0 %v3075
  %3082 = vmatprep.subr.bf16.mxu0 0
  %3083 = vmatpush1.bf16.msra.mxu0 0
  %3084 = vmatprep.subr.bf16.mxu0 0
  %3085 = vmatpush1.bf16.msra.mxu0 0
  %3086 = vmatprep.subr.bf16.mxu0 0
  %3087 = vmatpush1.bf16.msra.mxu0 0
  %3088 = vmatprep.subr.bf16.mxu0 0
  %3089 = vmatpush1.bf16.msra.mxu0 0
  %3090 = vmatprep.subr.bf16.mxu0 0
  %3091 = vmatpush1.bf16.msra.mxu0 0
  %3092 = vmatprep.subr.bf16.mxu0 0
  %3093 = vmatpush1.bf16.msra.mxu0 0
  %3094 = vmatprep.subr.bf16.mxu0 0
  %3095 = vmatpush1.bf16.msra.mxu0 0
  %3096 = vmatprep.subr.bf16.mxu0 0
  %3097 = vmatpush1.bf16.msra.mxu0 0
  %3098 = vmatprep.subr.bf16.mxu0 0
  %3099 = vmatpush1.bf16.msra.mxu0 0
  %3100 = vmatprep.subr.bf16.mxu0 0
  %3101 = vmatpush1.bf16.msra.mxu0 0
  %3102 = vmatprep.subr.bf16.mxu0 0
  %3103 = vmatpush1.bf16.msra.mxu0 0
  %3104 = vmatprep.subr.bf16.mxu0 0
  %3105 = vmatpush1.bf16.msra.mxu0 0
  %3106 = vmatprep.subr.bf16.mxu0 0
  %3107 = vmatpush1.bf16.msra.mxu0 0
  %3108 = vmatprep.subr.bf16.mxu0 0
  %3109 = vmatpush1.bf16.msra.mxu0 0
  %3110 = vmatprep.subr.bf16.mxu0 0
  %3111 = vmatpush1.bf16.msra.mxu0 0
  %3112 = vmatprep.mubr.bf16.mxu0 0
  %3113 = vmatmul.mubr.bf16.gmra.mrb[0].mxu0 %v3078
  %v3114 = vpop.f32.mrb[0].mxu0
  %v3115 = vadd.f32 0.0, %v3114
  %v3116 = vpop.f32.mrb[0].mxu0
  %v3117 = vpop.f32.mrb[0].mxu0
  %v3118 = vadd.f32 0.0, %v3117
  %v3119 = vpop.f32.mrb[0].mxu0
  %3120 = vdwg.mxu0
  %v3123 = vunpack.c.l.b16 %v2254
  %v3124 = vunpack.c.l.b16 %v2255
  %v3125 = vpack.c.b16 %v3124, %v3123
  %v3128 = vsel %vm532, %v2917, 0
  %3130 = vmatprep.subr.bf16.mxu0 0
  %3131 = vmatpush1.bf16.msra.mxu0 %v3125
  %3132 = vmatprep.subr.bf16.mxu0 0
  %3133 = vmatpush1.bf16.msra.mxu0 0
  %3134 = vmatprep.subr.bf16.mxu0 0
  %3135 = vmatpush1.bf16.msra.mxu0 0
  %3136 = vmatprep.subr.bf16.mxu0 0
  %3137 = vmatpush1.bf16.msra.mxu0 0
  %3138 = vmatprep.subr.bf16.mxu0 0
  %3139 = vmatpush1.bf16.msra.mxu0 0
  %3140 = vmatprep.subr.bf16.mxu0 0
  %3141 = vmatpush1.bf16.msra.mxu0 0
  %3142 = vmatprep.subr.bf16.mxu0 0
  %3143 = vmatpush1.bf16.msra.mxu0 0
  %3144 = vmatprep.subr.bf16.mxu0 0
  %3145 = vmatpush1.bf16.msra.mxu0 0
  %3146 = vmatprep.subr.bf16.mxu0 0
  %3147 = vmatpush1.bf16.msra.mxu0 0
  %3148 = vmatprep.subr.bf16.mxu0 0
  %3149 = vmatpush1.bf16.msra.mxu0 0
  %3150 = vmatprep.subr.bf16.mxu0 0
  %3151 = vmatpush1.bf16.msra.mxu0 0
  %3152 = vmatprep.subr.bf16.mxu0 0
  %3153 = vmatpush1.bf16.msra.mxu0 0
  %3154 = vmatprep.subr.bf16.mxu0 0
  %3155 = vmatpush1.bf16.msra.mxu0 0
  %3156 = vmatprep.subr.bf16.mxu0 0
  %3157 = vmatpush1.bf16.msra.mxu0 0
  %3158 = vmatprep.subr.bf16.mxu0 0
  %3159 = vmatpush1.bf16.msra.mxu0 0
  %3160 = vmatprep.subr.bf16.mxu0 0
  %3161 = vmatpush1.bf16.msra.mxu0 0
  %3162 = vmatprep.mubr.bf16.mxu0 0
  %3163 = vmatmul.mubr.bf16.gmra.mrb[0].mxu0 %v3128
  %v3164 = vpop.f32.mrb[0].mxu0
  %v3165 = vadd.f32 0.0, %v3164
  %v3166 = vpop.f32.mrb[0].mxu0
  %v3167 = vpop.f32.mrb[0].mxu0
  %v3168 = vadd.f32 0.0, %v3167
  %v3169 = vpop.f32.mrb[0].mxu0
  %3170 = vdwg.mxu0
  %v3173 = vunpack.c.l.b16 %v2256
  %v3174 = vunpack.c.l.b16 %v2257
  %v3175 = vpack.c.b16 %v3174, %v3173
  %v3178 = vsel %vm532, %v2918, 0
  %3180 = vmatprep.subr.bf16.mxu0 0
  %3181 = vmatpush1.bf16.msra.mxu0 %v3175
  %3182 = vmatprep.subr.bf16.mxu0 0
  %3183 = vmatpush1.bf16.msra.mxu0 0
  %3184 = vmatprep.subr.bf16.mxu0 0
  %3185 = vmatpush1.bf16.msra.mxu0 0
  %3186 = vmatprep.subr.bf16.mxu0 0
  %3187 = vmatpush1.bf16.msra.mxu0 0
  %3188 = vmatprep.subr.bf16.mxu0 0
  %3189 = vmatpush1.bf16.msra.mxu0 0
  %3190 = vmatprep.subr.bf16.mxu0 0
  %3191 = vmatpush1.bf16.msra.mxu0 0
  %3192 = vmatprep.subr.bf16.mxu0 0
  %3193 = vmatpush1.bf16.msra.mxu0 0
  %3194 = vmatprep.subr.bf16.mxu0 0
  %3195 = vmatpush1.bf16.msra.mxu0 0
  %3196 = vmatprep.subr.bf16.mxu0 0
  %3197 = vmatpush1.bf16.msra.mxu0 0
  %3198 = vmatprep.subr.bf16.mxu0 0
  %3199 = vmatpush1.bf16.msra.mxu0 0
  %3200 = vmatprep.subr.bf16.mxu0 0
  %3201 = vmatpush1.bf16.msra.mxu0 0
  %3202 = vmatprep.subr.bf16.mxu0 0
  %3203 = vmatpush1.bf16.msra.mxu0 0
  %3204 = vmatprep.subr.bf16.mxu0 0
  %3205 = vmatpush1.bf16.msra.mxu0 0
  %3206 = vmatprep.subr.bf16.mxu0 0
  %3207 = vmatpush1.bf16.msra.mxu0 0
  %3208 = vmatprep.subr.bf16.mxu0 0
  %3209 = vmatpush1.bf16.msra.mxu0 0
  %3210 = vmatprep.subr.bf16.mxu0 0
  %3211 = vmatpush1.bf16.msra.mxu0 0
  %3212 = vmatprep.mubr.bf16.mxu0 0
  %3213 = vmatmul.mubr.bf16.gmra.mrb[0].mxu0 %v3178
  %v3214 = vpop.f32.mrb[0].mxu0
  %v3215 = vadd.f32 0.0, %v3214
  %v3216 = vpop.f32.mrb[0].mxu0
  %v3217 = vpop.f32.mrb[0].mxu0
  %v3218 = vadd.f32 0.0, %v3217
  %v3219 = vpop.f32.mrb[0].mxu0
  %3220 = vdwg.mxu0
  %v3223 = vunpack.c.l.b16 %v2258
  %v3224 = vunpack.c.l.b16 %v2259
  %v3225 = vpack.c.b16 %v3224, %v3223
  %v3228 = vsel %vm532, %v2919, 0
  %3230 = vmatprep.subr.bf16.mxu0 0
  %3231 = vmatpush1.bf16.msra.mxu0 %v3225
  %3232 = vmatprep.subr.bf16.mxu0 0
  %3233 = vmatpush1.bf16.msra.mxu0 0
  %3234 = vmatprep.subr.bf16.mxu0 0
  %3235 = vmatpush1.bf16.msra.mxu0 0
  %3236 = vmatprep.subr.bf16.mxu0 0
  %3237 = vmatpush1.bf16.msra.mxu0 0
  %3238 = vmatprep.subr.bf16.mxu0 0
  %3239 = vmatpush1.bf16.msra.mxu0 0
  %3240 = vmatprep.subr.bf16.mxu0 0
  %3241 = vmatpush1.bf16.msra.mxu0 0
  %3242 = vmatprep.subr.bf16.mxu0 0
  %3243 = vmatpush1.bf16.msra.mxu0 0
  %3244 = vmatprep.subr.bf16.mxu0 0
  %3245 = vmatpush1.bf16.msra.mxu0 0
  %3246 = vmatprep.subr.bf16.mxu0 0
  %3247 = vmatpush1.bf16.msra.mxu0 0
  %3248 = vmatprep.subr.bf16.mxu0 0
  %3249 = vmatpush1.bf16.msra.mxu0 0
  %3250 = vmatprep.subr.bf16.mxu0 0
  %3251 = vmatpush1.bf16.msra.mxu0 0
  %3252 = vmatprep.subr.bf16.mxu0 0
  %3253 = vmatpush1.bf16.msra.mxu0 0
  %3254 = vmatprep.subr.bf16.mxu0 0
  %3255 = vmatpush1.bf16.msra.mxu0 0
  %3256 = vmatprep.subr.bf16.mxu0 0
  %3257 = vmatpush1.bf16.msra.mxu0 0
  %3258 = vmatprep.subr.bf16.mxu0 0
  %3259 = vmatpush1.bf16.msra.mxu0 0
  %3260 = vmatprep.subr.bf16.mxu0 0
  %3261 = vmatpush1.bf16.msra.mxu0 0
  %3262 = vmatprep.mubr.bf16.mxu0 0
  %3263 = vmatmul.mubr.bf16.gmra.mrb[0].mxu0 %v3228
  %v3264 = vpop.f32.mrb[0].mxu0
  %v3265 = vadd.f32 0.0, %v3264
  %v3266 = vpop.f32.mrb[0].mxu0
  %v3267 = vpop.f32.mrb[0].mxu0
  %v3268 = vadd.f32 0.0, %v3267
  %v3269 = vpop.f32.mrb[0].mxu0
  %3270 = vdwg.mxu0
  %v3273 = vunpack.c.l.b16 %v2260
  %v3274 = vunpack.c.l.b16 %v2261
  %v3275 = vpack.c.b16 %v3274, %v3273
  %v3278 = vsel %vm532, %v2920, 0
  %3280 = vmatprep.subr.bf16.mxu0 0
  %3281 = vmatpush1.bf16.msra.mxu0 %v3275
  %3282 = vmatprep.subr.bf16.mxu0 0
  %3283 = vmatpush1.bf16.msra.mxu0 0
  %3284 = vmatprep.subr.bf16.mxu0 0
  %3285 = vmatpush1.bf16.msra.mxu0 0
  %3286 = vmatprep.subr.bf16.mxu0 0
  %3287 = vmatpush1.bf16.msra.mxu0 0
  %3288 = vmatprep.subr.bf16.mxu0 0
  %3289 = vmatpush1.bf16.msra.mxu0 0
  %3290 = vmatprep.subr.bf16.mxu0 0
  %3291 = vmatpush1.bf16.msra.mxu0 0
  %3292 = vmatprep.subr.bf16.mxu0 0
  %3293 = vmatpush1.bf16.msra.mxu0 0
  %3294 = vmatprep.subr.bf16.mxu0 0
  %3295 = vmatpush1.bf16.msra.mxu0 0
  %3296 = vmatprep.subr.bf16.mxu0 0
  %3297 = vmatpush1.bf16.msra.mxu0 0
  %3298 = vmatprep.subr.bf16.mxu0 0
  %3299 = vmatpush1.bf16.msra.mxu0 0
  %3300 = vmatprep.subr.bf16.mxu0 0
  %3301 = vmatpush1.bf16.msra.mxu0 0
  %3302 = vmatprep.subr.bf16.mxu0 0
  %3303 = vmatpush1.bf16.msra.mxu0 0
  %3304 = vmatprep.subr.bf16.mxu0 0
  %3305 = vmatpush1.bf16.msra.mxu0 0
  %3306 = vmatprep.subr.bf16.mxu0 0
  %3307 = vmatpush1.bf16.msra.mxu0 0
  %3308 = vmatprep.subr.bf16.mxu0 0
  %3309 = vmatpush1.bf16.msra.mxu0 0
  %3310 = vmatprep.subr.bf16.mxu0 0
  %3311 = vmatpush1.bf16.msra.mxu0 0
  %3312 = vmatprep.mubr.bf16.mxu0 0
  %3313 = vmatmul.mubr.bf16.gmra.mrb[0].mxu0 %v3278
  %v3314 = vpop.f32.mrb[0].mxu0
  %v3315 = vadd.f32 0.0, %v3314
  %v3316 = vpop.f32.mrb[0].mxu0
  %v3317 = vpop.f32.mrb[0].mxu0
  %v3318 = vadd.f32 0.0, %v3317
  %v3319 = vpop.f32.mrb[0].mxu0
  %3320 = vdwg.mxu0
  %s3321 = scalar_lea.vmem %s0, 448
  %v3322 = vld [vmem:[%s3321] sm:$0xf]
  %v3323 = vld [vmem:[%s3321 + $0x4] sm:$0xf]
  %v3324 = vld [vmem:[%s3321 + $0x8] sm:$0xf]
  %v3325 = vld [vmem:[%s3321 + $0xc] sm:$0xf]
  %v3326 = vld [vmem:[%s3321 + $0x10] sm:$0xf]
  %v3327 = vld [vmem:[%s3321 + $0x14] sm:$0xf]
  %v3328 = vld [vmem:[%s3321 + $0x18] sm:$0xf]
  %v3329 = vld [vmem:[%s3321 + $0x1c] sm:$0xf]
  %v3330 = vld [vmem:[%s3321 + $0x20] sm:$0xf]
  %v3331 = vld [vmem:[%s3321 + $0x24] sm:$0xf]
  %v3332 = vld [vmem:[%s3321 + $0x28] sm:$0xf]
  %v3333 = vld [vmem:[%s3321 + $0x2c] sm:$0xf]
  %v3334 = vld [vmem:[%s3321 + $0x30] sm:$0xf]
  %v3335 = vld [vmem:[%s3321 + $0x34] sm:$0xf]
  %v3336 = vld [vmem:[%s3321 + $0x38] sm:$0xf]
  %v3337 = vld [vmem:[%s3321 + $0x3c] sm:$0xf]
  %s3338 = scalar_lea.vmem %s0, 576
  %v3339 = vld [vmem:[%s3338] sm:$0xf]
  %v3340 = vld [vmem:[%s3338 + $0x4] sm:$0xf]
  %v3341 = vld [vmem:[%s3338 + $0x8] sm:$0xf]
  %v3342 = vld [vmem:[%s3338 + $0xc] sm:$0xf]
  %v3343 = vld [vmem:[%s3338 + $0x10] sm:$0xf]
  %v3344 = vld [vmem:[%s3338 + $0x14] sm:$0xf]
  %v3345 = vld [vmem:[%s3338 + $0x18] sm:$0xf]
  %v3346 = vld [vmem:[%s3338 + $0x1c] sm:$0xf]
  %v3347 = vld [vmem:[%s3338 + $0x20] sm:$0xf]
  %v3348 = vld [vmem:[%s3338 + $0x24] sm:$0xf]
  %v3349 = vld [vmem:[%s3338 + $0x28] sm:$0xf]
  %v3350 = vld [vmem:[%s3338 + $0x2c] sm:$0xf]
  %v3351 = vld [vmem:[%s3338 + $0x30] sm:$0xf]
  %v3352 = vld [vmem:[%s3338 + $0x34] sm:$0xf]
  %v3353 = vld [vmem:[%s3338 + $0x38] sm:$0xf]
  %v3354 = vld [vmem:[%s3338 + $0x3c] sm:$0xf]
  %s3355 = scalar_lea.vmem %s0, 704
  %v3356 = vld [vmem:[%s3355] sm:$0xf]
  %v3357 = vld [vmem:[%s3355 + $0x4] sm:$0xf]
  %v3358 = vld [vmem:[%s3355 + $0x8] sm:$0xf]
  %v3359 = vld [vmem:[%s3355 + $0xc] sm:$0xf]
  %v3360 = vld [vmem:[%s3355 + $0x10] sm:$0xf]
  %v3361 = vld [vmem:[%s3355 + $0x14] sm:$0xf]
  %v3362 = vld [vmem:[%s3355 + $0x18] sm:$0xf]
  %v3363 = vld [vmem:[%s3355 + $0x1c] sm:$0xf]
  %v3364 = vld [vmem:[%s3355 + $0x20] sm:$0xf]
  %v3365 = vld [vmem:[%s3355 + $0x24] sm:$0xf]
  %v3366 = vld [vmem:[%s3355 + $0x28] sm:$0xf]
  %v3367 = vld [vmem:[%s3355 + $0x2c] sm:$0xf]
  %v3368 = vld [vmem:[%s3355 + $0x30] sm:$0xf]
  %v3369 = vld [vmem:[%s3355 + $0x34] sm:$0xf]
  %v3370 = vld [vmem:[%s3355 + $0x38] sm:$0xf]
  %v3371 = vld [vmem:[%s3355 + $0x3c] sm:$0xf]
  %s3372 = scalar_lea.vmem %s1, 48
  %v3373 = vld [vmem:[%s3372] sm:$0xff]
  %v3374 = vld [vmem:[%s3372 + $0x8] sm:$0xff]
  %v3377 = vunpack.c.l.b16 %v3322
  %v3378 = vunpack.c.l.b16 %v3323
  %v3379 = vpack.c.b16 %v3378, %v3377
  %v3382 = vunpack.c.l.b16 %v3339
  %v3383 = vunpack.c.l.b16 %v3340
  %v3384 = vpack.c.b16 %v3383, %v3382
  %v3386 = vsel %vm85, %v3379, 0
  %v3389 = vsel %vm85, %v3384, 0
  %3391 = vmatprep.subr.bf16.mxu0 0
  %3392 = vmatpush1.bf16.xpose.msra.mxu0 %v3389
  %3393 = vmatprep.subr.bf16.mxu0 0
  %3394 = vmatpush1.bf16.xpose.msra.mxu0 0
  %3395 = vmatprep.subr.bf16.mxu0 0
  %3396 = vmatpush1.bf16.xpose.msra.mxu0 0
  %3397 = vmatprep.subr.bf16.mxu0 0
  %3398 = vmatpush1.bf16.xpose.msra.mxu0 0
  %3399 = vmatprep.subr.bf16.mxu0 0
  %3400 = vmatpush1.bf16.xpose.msra.mxu0 0
  %3401 = vmatprep.subr.bf16.mxu0 0
  %3402 = vmatpush1.bf16.xpose.msra.mxu0 0
  %3403 = vmatprep.subr.bf16.mxu0 0
  %3404 = vmatpush1.bf16.xpose.msra.mxu0 0
  %3405 = vmatprep.subr.bf16.mxu0 0
  %3406 = vmatpush1.bf16.xpose.msra.mxu0 0
  %3407 = vmatprep.subr.bf16.mxu0 0
  %3408 = vmatpush1.bf16.xpose.msra.mxu0 0
  %3409 = vmatprep.subr.bf16.mxu0 0
  %3410 = vmatpush1.bf16.xpose.msra.mxu0 0
  %3411 = vmatprep.subr.bf16.mxu0 0
  %3412 = vmatpush1.bf16.xpose.msra.mxu0 0
  %3413 = vmatprep.subr.bf16.mxu0 0
  %3414 = vmatpush1.bf16.xpose.msra.mxu0 0
  %3415 = vmatprep.subr.bf16.mxu0 0
  %3416 = vmatpush1.bf16.xpose.msra.mxu0 0
  %3417 = vmatprep.subr.bf16.mxu0 0
  %3418 = vmatpush1.bf16.xpose.msra.mxu0 0
  %3419 = vmatprep.subr.bf16.mxu0 0
  %3420 = vmatpush1.bf16.xpose.msra.mxu0 0
  %3421 = vmatprep.subr.bf16.mxu0 0
  %3422 = vmatpush1.bf16.xpose.msra.mxu0 0
  %3423 = vmatprep.mubr.bf16.mxu0 0
  %3424 = vmatmul.mubr.bf16.gmra.mrb[0].mxu0 %v3386
  %v3425 = vpop.f32.mrb[0].mxu0
  %v3426 = vadd.f32 %v3373, %v3425
  %v3427 = vpop.f32.mrb[0].mxu0
  %v3428 = vpop.f32.mrb[0].mxu0
  %v3429 = vadd.f32 %v3374, %v3428
  %v3430 = vpop.f32.mrb[0].mxu0
  %3431 = vdwg.mxu0
  %v3434 = vunpack.c.l.b16 %v3324
  %v3435 = vunpack.c.l.b16 %v3325
  %v3436 = vpack.c.b16 %v3435, %v3434
  %v3439 = vunpack.c.l.b16 %v3341
  %v3440 = vunpack.c.l.b16 %v3342
  %v3441 = vpack.c.b16 %v3440, %v3439
  %v3443 = vsel %vm85, %v3436, 0
  %v3446 = vsel %vm85, %v3441, 0
  %3448 = vmatprep.subr.bf16.mxu0 0
  %3449 = vmatpush1.bf16.xpose.msra.mxu0 %v3446
  %3450 = vmatprep.subr.bf16.mxu0 0
  %3451 = vmatpush1.bf16.xpose.msra.mxu0 0
  %3452 = vmatprep.subr.bf16.mxu0 0
  %3453 = vmatpush1.bf16.xpose.msra.mxu0 0
  %3454 = vmatprep.subr.bf16.mxu0 0
  %3455 = vmatpush1.bf16.xpose.msra.mxu0 0
  %3456 = vmatprep.subr.bf16.mxu0 0
  %3457 = vmatpush1.bf16.xpose.msra.mxu0 0
  %3458 = vmatprep.subr.bf16.mxu0 0
  %3459 = vmatpush1.bf16.xpose.msra.mxu0 0
  %3460 = vmatprep.subr.bf16.mxu0 0
  %3461 = vmatpush1.bf16.xpose.msra.mxu0 0
  %3462 = vmatprep.subr.bf16.mxu0 0
  %3463 = vmatpush1.bf16.xpose.msra.mxu0 0
  %3464 = vmatprep.subr.bf16.mxu0 0
  %3465 = vmatpush1.bf16.xpose.msra.mxu0 0
  %3466 = vmatprep.subr.bf16.mxu0 0
  %3467 = vmatpush1.bf16.xpose.msra.mxu0 0
  %3468 = vmatprep.subr.bf16.mxu0 0
  %3469 = vmatpush1.bf16.xpose.msra.mxu0 0
  %3470 = vmatprep.subr.bf16.mxu0 0
  %3471 = vmatpush1.bf16.xpose.msra.mxu0 0
  %3472 = vmatprep.subr.bf16.mxu0 0
  %3473 = vmatpush1.bf16.xpose.msra.mxu0 0
  %3474 = vmatprep.subr.bf16.mxu0 0
  %3475 = vmatpush1.bf16.xpose.msra.mxu0 0
  %3476 = vmatprep.subr.bf16.mxu0 0
  %3477 = vmatpush1.bf16.xpose.msra.mxu0 0
  %3478 = vmatprep.subr.bf16.mxu0 0
  %3479 = vmatpush1.bf16.xpose.msra.mxu0 0
  %3480 = vmatprep.mubr.bf16.mxu0 0
  %3481 = vmatmul.mubr.bf16.gmra.mrb[0].mxu0 %v3443
  %v3482 = vpop.f32.mrb[0].mxu0
  %v3483 = vadd.f32 %v3373, %v3482
  %v3484 = vpop.f32.mrb[0].mxu0
  %v3485 = vpop.f32.mrb[0].mxu0
  %v3486 = vadd.f32 %v3374, %v3485
  %v3487 = vpop.f32.mrb[0].mxu0
  %3488 = vdwg.mxu0
  %v3491 = vunpack.c.l.b16 %v3326
  %v3492 = vunpack.c.l.b16 %v3327
  %v3493 = vpack.c.b16 %v3492, %v3491
  %v3496 = vunpack.c.l.b16 %v3343
  %v3497 = vunpack.c.l.b16 %v3344
  %v3498 = vpack.c.b16 %v3497, %v3496
  %v3500 = vsel %vm85, %v3493, 0
  %v3503 = vsel %vm85, %v3498, 0
  %3505 = vmatprep.subr.bf16.mxu0 0
  %3506 = vmatpush1.bf16.xpose.msra.mxu0 %v3503
  %3507 = vmatprep.subr.bf16.mxu0 0
  %3508 = vmatpush1.bf16.xpose.msra.mxu0 0
  %3509 = vmatprep.subr.bf16.mxu0 0
  %3510 = vmatpush1.bf16.xpose.msra.mxu0 0
  %3511 = vmatprep.subr.bf16.mxu0 0
  %3512 = vmatpush1.bf16.xpose.msra.mxu0 0
  %3513 = vmatprep.subr.bf16.mxu0 0
  %3514 = vmatpush1.bf16.xpose.msra.mxu0 0
  %3515 = vmatprep.subr.bf16.mxu0 0
  %3516 = vmatpush1.bf16.xpose.msra.mxu0 0
  %3517 = vmatprep.subr.bf16.mxu0 0
  %3518 = vmatpush1.bf16.xpose.msra.mxu0 0
  %3519 = vmatprep.subr.bf16.mxu0 0
  %3520 = vmatpush1.bf16.xpose.msra.mxu0 0
  %3521 = vmatprep.subr.bf16.mxu0 0
  %3522 = vmatpush1.bf16.xpose.msra.mxu0 0
  %3523 = vmatprep.subr.bf16.mxu0 0
  %3524 = vmatpush1.bf16.xpose.msra.mxu0 0
  %3525 = vmatprep.subr.bf16.mxu0 0
  %3526 = vmatpush1.bf16.xpose.msra.mxu0 0
  %3527 = vmatprep.subr.bf16.mxu0 0
  %3528 = vmatpush1.bf16.xpose.msra.mxu0 0
  %3529 = vmatprep.subr.bf16.mxu0 0
  %3530 = vmatpush1.bf16.xpose.msra.mxu0 0
  %3531 = vmatprep.subr.bf16.mxu0 0
  %3532 = vmatpush1.bf16.xpose.msra.mxu0 0
  %3533 = vmatprep.subr.bf16.mxu0 0
  %3534 = vmatpush1.bf16.xpose.msra.mxu0 0
  %3535 = vmatprep.subr.bf16.mxu0 0
  %3536 = vmatpush1.bf16.xpose.msra.mxu0 0
  %3537 = vmatprep.mubr.bf16.mxu0 0
  %3538 = vmatmul.mubr.bf16.gmra.mrb[0].mxu0 %v3500
  %v3539 = vpop.f32.mrb[0].mxu0
  %v3540 = vadd.f32 %v3373, %v3539
  %v3541 = vpop.f32.mrb[0].mxu0
  %v3542 = vpop.f32.mrb[0].mxu0
  %v3543 = vadd.f32 %v3374, %v3542
  %v3544 = vpop.f32.mrb[0].mxu0
  %3545 = vdwg.mxu0
  %v3548 = vunpack.c.l.b16 %v3328
  %v3549 = vunpack.c.l.b16 %v3329
  %v3550 = vpack.c.b16 %v3549, %v3548
  %v3553 = vunpack.c.l.b16 %v3345
  %v3554 = vunpack.c.l.b16 %v3346
  %v3555 = vpack.c.b16 %v3554, %v3553
  %v3557 = vsel %vm85, %v3550, 0
  %v3560 = vsel %vm85, %v3555, 0
  %3562 = vmatprep.subr.bf16.mxu0 0
  %3563 = vmatpush1.bf16.xpose.msra.mxu0 %v3560
  %3564 = vmatprep.subr.bf16.mxu0 0
  %3565 = vmatpush1.bf16.xpose.msra.mxu0 0
  %3566 = vmatprep.subr.bf16.mxu0 0
  %3567 = vmatpush1.bf16.xpose.msra.mxu0 0
  %3568 = vmatprep.subr.bf16.mxu0 0
  %3569 = vmatpush1.bf16.xpose.msra.mxu0 0
  %3570 = vmatprep.subr.bf16.mxu0 0
  %3571 = vmatpush1.bf16.xpose.msra.mxu0 0
  %3572 = vmatprep.subr.bf16.mxu0 0
  %3573 = vmatpush1.bf16.xpose.msra.mxu0 0
  %3574 = vmatprep.subr.bf16.mxu0 0
  %3575 = vmatpush1.bf16.xpose.msra.mxu0 0
  %3576 = vmatprep.subr.bf16.mxu0 0
  %3577 = vmatpush1.bf16.xpose.msra.mxu0 0
  %3578 = vmatprep.subr.bf16.mxu0 0
  %3579 = vmatpush1.bf16.xpose.msra.mxu0 0
  %3580 = vmatprep.subr.bf16.mxu0 0
  %3581 = vmatpush1.bf16.xpose.msra.mxu0 0
  %3582 = vmatprep.subr.bf16.mxu0 0
  %3583 = vmatpush1.bf16.xpose.msra.mxu0 0
  %3584 = vmatprep.subr.bf16.mxu0 0
  %3585 = vmatpush1.bf16.xpose.msra.mxu0 0
  %3586 = vmatprep.subr.bf16.mxu0 0
  %3587 = vmatpush1.bf16.xpose.msra.mxu0 0
  %3588 = vmatprep.subr.bf16.mxu0 0
  %3589 = vmatpush1.bf16.xpose.msra.mxu0 0
  %3590 = vmatprep.subr.bf16.mxu0 0
  %3591 = vmatpush1.bf16.xpose.msra.mxu0 0
  %3592 = vmatprep.subr.bf16.mxu0 0
  %3593 = vmatpush1.bf16.xpose.msra.mxu0 0
  %3594 = vmatprep.mubr.bf16.mxu0 0
  %3595 = vmatmul.mubr.bf16.gmra.mrb[0].mxu0 %v3557
  %v3596 = vpop.f32.mrb[0].mxu0
  %v3597 = vadd.f32 %v3373, %v3596
  %v3598 = vpop.f32.mrb[0].mxu0
  %v3599 = vpop.f32.mrb[0].mxu0
  %v3600 = vadd.f32 %v3374, %v3599
  %v3601 = vpop.f32.mrb[0].mxu0
  %3602 = vdwg.mxu0
  %v3605 = vunpack.c.l.b16 %v3330
  %v3606 = vunpack.c.l.b16 %v3331
  %v3607 = vpack.c.b16 %v3606, %v3605
  %v3610 = vunpack.c.l.b16 %v3347
  %v3611 = vunpack.c.l.b16 %v3348
  %v3612 = vpack.c.b16 %v3611, %v3610
  %v3614 = vsel %vm85, %v3607, 0
  %v3617 = vsel %vm85, %v3612, 0
  %3619 = vmatprep.subr.bf16.mxu0 0
  %3620 = vmatpush1.bf16.xpose.msra.mxu0 %v3617
  %3621 = vmatprep.subr.bf16.mxu0 0
  %3622 = vmatpush1.bf16.xpose.msra.mxu0 0
  %3623 = vmatprep.subr.bf16.mxu0 0
  %3624 = vmatpush1.bf16.xpose.msra.mxu0 0
  %3625 = vmatprep.subr.bf16.mxu0 0
  %3626 = vmatpush1.bf16.xpose.msra.mxu0 0
  %3627 = vmatprep.subr.bf16.mxu0 0
  %3628 = vmatpush1.bf16.xpose.msra.mxu0 0
  %3629 = vmatprep.subr.bf16.mxu0 0
  %3630 = vmatpush1.bf16.xpose.msra.mxu0 0
  %3631 = vmatprep.subr.bf16.mxu0 0
  %3632 = vmatpush1.bf16.xpose.msra.mxu0 0
  %3633 = vmatprep.subr.bf16.mxu0 0
  %3634 = vmatpush1.bf16.xpose.msra.mxu0 0
  %3635 = vmatprep.subr.bf16.mxu0 0
  %3636 = vmatpush1.bf16.xpose.msra.mxu0 0
  %3637 = vmatprep.subr.bf16.mxu0 0
  %3638 = vmatpush1.bf16.xpose.msra.mxu0 0
  %3639 = vmatprep.subr.bf16.mxu0 0
  %3640 = vmatpush1.bf16.xpose.msra.mxu0 0
  %3641 = vmatprep.subr.bf16.mxu0 0
  %3642 = vmatpush1.bf16.xpose.msra.mxu0 0
  %3643 = vmatprep.subr.bf16.mxu0 0
  %3644 = vmatpush1.bf16.xpose.msra.mxu0 0
  %3645 = vmatprep.subr.bf16.mxu0 0
  %3646 = vmatpush1.bf16.xpose.msra.mxu0 0
  %3647 = vmatprep.subr.bf16.mxu0 0
  %3648 = vmatpush1.bf16.xpose.msra.mxu0 0
  %3649 = vmatprep.subr.bf16.mxu0 0
  %3650 = vmatpush1.bf16.xpose.msra.mxu0 0
  %3651 = vmatprep.mubr.bf16.mxu0 0
  %3652 = vmatmul.mubr.bf16.gmra.mrb[0].mxu0 %v3614
  %v3653 = vpop.f32.mrb[0].mxu0
  %v3654 = vadd.f32 %v3373, %v3653
  %v3655 = vpop.f32.mrb[0].mxu0
  %v3656 = vpop.f32.mrb[0].mxu0
  %v3657 = vadd.f32 %v3374, %v3656
  %v3658 = vpop.f32.mrb[0].mxu0
  %3659 = vdwg.mxu0
  %v3662 = vunpack.c.l.b16 %v3332
  %v3663 = vunpack.c.l.b16 %v3333
  %v3664 = vpack.c.b16 %v3663, %v3662
  %v3667 = vunpack.c.l.b16 %v3349
  %v3668 = vunpack.c.l.b16 %v3350
  %v3669 = vpack.c.b16 %v3668, %v3667
  %v3671 = vsel %vm85, %v3664, 0
  %v3674 = vsel %vm85, %v3669, 0
  %3676 = vmatprep.subr.bf16.mxu0 0
  %3677 = vmatpush1.bf16.xpose.msra.mxu0 %v3674
  %3678 = vmatprep.subr.bf16.mxu0 0
  %3679 = vmatpush1.bf16.xpose.msra.mxu0 0
  %3680 = vmatprep.subr.bf16.mxu0 0
  %3681 = vmatpush1.bf16.xpose.msra.mxu0 0
  %3682 = vmatprep.subr.bf16.mxu0 0
  %3683 = vmatpush1.bf16.xpose.msra.mxu0 0
  %3684 = vmatprep.subr.bf16.mxu0 0
  %3685 = vmatpush1.bf16.xpose.msra.mxu0 0
  %3686 = vmatprep.subr.bf16.mxu0 0
  %3687 = vmatpush1.bf16.xpose.msra.mxu0 0
  %3688 = vmatprep.subr.bf16.mxu0 0
  %3689 = vmatpush1.bf16.xpose.msra.mxu0 0
  %3690 = vmatprep.subr.bf16.mxu0 0
  %3691 = vmatpush1.bf16.xpose.msra.mxu0 0
  %3692 = vmatprep.subr.bf16.mxu0 0
  %3693 = vmatpush1.bf16.xpose.msra.mxu0 0
  %3694 = vmatprep.subr.bf16.mxu0 0
  %3695 = vmatpush1.bf16.xpose.msra.mxu0 0
  %3696 = vmatprep.subr.bf16.mxu0 0
  %3697 = vmatpush1.bf16.xpose.msra.mxu0 0
  %3698 = vmatprep.subr.bf16.mxu0 0
  %3699 = vmatpush1.bf16.xpose.msra.mxu0 0
  %3700 = vmatprep.subr.bf16.mxu0 0
  %3701 = vmatpush1.bf16.xpose.msra.mxu0 0
  %3702 = vmatprep.subr.bf16.mxu0 0
  %3703 = vmatpush1.bf16.xpose.msra.mxu0 0
  %3704 = vmatprep.subr.bf16.mxu0 0
  %3705 = vmatpush1.bf16.xpose.msra.mxu0 0
  %3706 = vmatprep.subr.bf16.mxu0 0
  %3707 = vmatpush1.bf16.xpose.msra.mxu0 0
  %3708 = vmatprep.mubr.bf16.mxu0 0
  %3709 = vmatmul.mubr.bf16.gmra.mrb[0].mxu0 %v3671
  %v3710 = vpop.f32.mrb[0].mxu0
  %v3711 = vadd.f32 %v3373, %v3710
  %v3712 = vpop.f32.mrb[0].mxu0
  %v3713 = vpop.f32.mrb[0].mxu0
  %v3714 = vadd.f32 %v3374, %v3713
  %v3715 = vpop.f32.mrb[0].mxu0
  %3716 = vdwg.mxu0
  %v3719 = vunpack.c.l.b16 %v3334
  %v3720 = vunpack.c.l.b16 %v3335
  %v3721 = vpack.c.b16 %v3720, %v3719
  %v3724 = vunpack.c.l.b16 %v3351
  %v3725 = vunpack.c.l.b16 %v3352
  %v3726 = vpack.c.b16 %v3725, %v3724
  %v3728 = vsel %vm85, %v3721, 0
  %v3731 = vsel %vm85, %v3726, 0
  %3733 = vmatprep.subr.bf16.mxu0 0
  %3734 = vmatpush1.bf16.xpose.msra.mxu0 %v3731
  %3735 = vmatprep.subr.bf16.mxu0 0
  %3736 = vmatpush1.bf16.xpose.msra.mxu0 0
  %3737 = vmatprep.subr.bf16.mxu0 0
  %3738 = vmatpush1.bf16.xpose.msra.mxu0 0
  %3739 = vmatprep.subr.bf16.mxu0 0
  %3740 = vmatpush1.bf16.xpose.msra.mxu0 0
  %3741 = vmatprep.subr.bf16.mxu0 0
  %3742 = vmatpush1.bf16.xpose.msra.mxu0 0
  %3743 = vmatprep.subr.bf16.mxu0 0
  %3744 = vmatpush1.bf16.xpose.msra.mxu0 0
  %3745 = vmatprep.subr.bf16.mxu0 0
  %3746 = vmatpush1.bf16.xpose.msra.mxu0 0
  %3747 = vmatprep.subr.bf16.mxu0 0
  %3748 = vmatpush1.bf16.xpose.msra.mxu0 0
  %3749 = vmatprep.subr.bf16.mxu0 0
  %3750 = vmatpush1.bf16.xpose.msra.mxu0 0
  %3751 = vmatprep.subr.bf16.mxu0 0
  %3752 = vmatpush1.bf16.xpose.msra.mxu0 0
  %3753 = vmatprep.subr.bf16.mxu0 0
  %3754 = vmatpush1.bf16.xpose.msra.mxu0 0
  %3755 = vmatprep.subr.bf16.mxu0 0
  %3756 = vmatpush1.bf16.xpose.msra.mxu0 0
  %3757 = vmatprep.subr.bf16.mxu0 0
  %3758 = vmatpush1.bf16.xpose.msra.mxu0 0
  %3759 = vmatprep.subr.bf16.mxu0 0
  %3760 = vmatpush1.bf16.xpose.msra.mxu0 0
  %3761 = vmatprep.subr.bf16.mxu0 0
  %3762 = vmatpush1.bf16.xpose.msra.mxu0 0
  %3763 = vmatprep.subr.bf16.mxu0 0
  %3764 = vmatpush1.bf16.xpose.msra.mxu0 0
  %3765 = vmatprep.mubr.bf16.mxu0 0
  %3766 = vmatmul.mubr.bf16.gmra.mrb[0].mxu0 %v3728
  %v3767 = vpop.f32.mrb[0].mxu0
  %v3768 = vadd.f32 %v3373, %v3767
  %v3769 = vpop.f32.mrb[0].mxu0
  %v3770 = vpop.f32.mrb[0].mxu0
  %v3771 = vadd.f32 %v3374, %v3770
  %v3772 = vpop.f32.mrb[0].mxu0
  %3773 = vdwg.mxu0
  %v3776 = vunpack.c.l.b16 %v3336
  %v3777 = vunpack.c.l.b16 %v3337
  %v3778 = vpack.c.b16 %v3777, %v3776
  %v3781 = vunpack.c.l.b16 %v3353
  %v3782 = vunpack.c.l.b16 %v3354
  %v3783 = vpack.c.b16 %v3782, %v3781
  %v3785 = vsel %vm85, %v3778, 0
  %v3788 = vsel %vm85, %v3783, 0
  %3790 = vmatprep.subr.bf16.mxu0 0
  %3791 = vmatpush1.bf16.xpose.msra.mxu0 %v3788
  %3792 = vmatprep.subr.bf16.mxu0 0
  %3793 = vmatpush1.bf16.xpose.msra.mxu0 0
  %3794 = vmatprep.subr.bf16.mxu0 0
  %3795 = vmatpush1.bf16.xpose.msra.mxu0 0
  %3796 = vmatprep.subr.bf16.mxu0 0
  %3797 = vmatpush1.bf16.xpose.msra.mxu0 0
  %3798 = vmatprep.subr.bf16.mxu0 0
  %3799 = vmatpush1.bf16.xpose.msra.mxu0 0
  %3800 = vmatprep.subr.bf16.mxu0 0
  %3801 = vmatpush1.bf16.xpose.msra.mxu0 0
  %3802 = vmatprep.subr.bf16.mxu0 0
  %3803 = vmatpush1.bf16.xpose.msra.mxu0 0
  %3804 = vmatprep.subr.bf16.mxu0 0
  %3805 = vmatpush1.bf16.xpose.msra.mxu0 0
  %3806 = vmatprep.subr.bf16.mxu0 0
  %3807 = vmatpush1.bf16.xpose.msra.mxu0 0
  %3808 = vmatprep.subr.bf16.mxu0 0
  %3809 = vmatpush1.bf16.xpose.msra.mxu0 0
  %3810 = vmatprep.subr.bf16.mxu0 0
  %3811 = vmatpush1.bf16.xpose.msra.mxu0 0
  %3812 = vmatprep.subr.bf16.mxu0 0
  %3813 = vmatpush1.bf16.xpose.msra.mxu0 0
  %3814 = vmatprep.subr.bf16.mxu0 0
  %3815 = vmatpush1.bf16.xpose.msra.mxu0 0
  %3816 = vmatprep.subr.bf16.mxu0 0
  %3817 = vmatpush1.bf16.xpose.msra.mxu0 0
  %3818 = vmatprep.subr.bf16.mxu0 0
  %3819 = vmatpush1.bf16.xpose.msra.mxu0 0
  %3820 = vmatprep.subr.bf16.mxu0 0
  %3821 = vmatpush1.bf16.xpose.msra.mxu0 0
  %3822 = vmatprep.mubr.bf16.mxu0 0
  %3823 = vmatmul.mubr.bf16.gmra.mrb[0].mxu0 %v3785
  %v3824 = vpop.f32.mrb[0].mxu0
  %v3825 = vadd.f32 %v3373, %v3824
  %v3826 = vpop.f32.mrb[0].mxu0
  %v3827 = vpop.f32.mrb[0].mxu0
  %v3828 = vadd.f32 %v3374, %v3827
  %v3829 = vpop.f32.mrb[0].mxu0
  %3830 = vdwg.mxu0
  %v3831 = vadd.f32 %v3426, %v15
  %v3832 = vadd.f32 %v3429, %v16
  %v3833 = vadd.f32 %v3483, %v17
  %v3834 = vadd.f32 %v3486, %v18
  %v3835 = vadd.f32 %v3540, %v19
  %v3836 = vadd.f32 %v3543, %v20
  %v3837 = vadd.f32 %v3597, %v21
  %v3838 = vadd.f32 %v3600, %v22
  %v3839 = vadd.f32 %v3654, %v15
  %v3840 = vadd.f32 %v3657, %v16
  %v3841 = vadd.f32 %v3711, %v17
  %v3842 = vadd.f32 %v3714, %v18
  %v3843 = vadd.f32 %v3768, %v19
  %v3844 = vadd.f32 %v3771, %v20
  %v3845 = vadd.f32 %v3825, %v21
  %v3846 = vadd.f32 %v3828, %v22
  %v3847 = vsel %vm532, %v3831, -inf
  %3848 = vmax.xlane.f32.xlu0 %v3847
  %v3849 = vpop.xlane.xlu0 %3848
  %v3850 = vsel %vm532, %v3832, -inf
  %3851 = vmax.xlane.f32.xlu0 %v3850
  %v3852 = vpop.xlane.xlu0 %3851
  %v3853 = vsel %vm532, %v3833, -inf
  %3854 = vmax.xlane.f32.xlu0 %v3853
  %v3855 = vpop.xlane.xlu0 %3854
  %v3856 = vsel %vm532, %v3834, -inf
  %3857 = vmax.xlane.f32.xlu0 %v3856
  %v3858 = vpop.xlane.xlu0 %3857
  %v3859 = vsel %vm532, %v3835, -inf
  %3860 = vmax.xlane.f32.xlu0 %v3859
  %v3861 = vpop.xlane.xlu0 %3860
  %v3862 = vsel %vm532, %v3836, -inf
  %3863 = vmax.xlane.f32.xlu0 %v3862
  %v3864 = vpop.xlane.xlu0 %3863
  %v3865 = vsel %vm532, %v3837, -inf
  %3866 = vmax.xlane.f32.xlu0 %v3865
  %v3867 = vpop.xlane.xlu0 %3866
  %v3868 = vsel %vm532, %v3838, -inf
  %3869 = vmax.xlane.f32.xlu0 %v3868
  %v3870 = vpop.xlane.xlu0 %3869
  %v3871 = vsel %vm532, %v3839, -inf
  %3872 = vmax.xlane.f32.xlu0 %v3871
  %v3873 = vpop.xlane.xlu0 %3872
  %v3874 = vsel %vm532, %v3840, -inf
  %3875 = vmax.xlane.f32.xlu0 %v3874
  %v3876 = vpop.xlane.xlu0 %3875
  %v3877 = vsel %vm532, %v3841, -inf
  %3878 = vmax.xlane.f32.xlu0 %v3877
  %v3879 = vpop.xlane.xlu0 %3878
  %v3880 = vsel %vm532, %v3842, -inf
  %3881 = vmax.xlane.f32.xlu0 %v3880
  %v3882 = vpop.xlane.xlu0 %3881
  %v3883 = vsel %vm532, %v3843, -inf
  %3884 = vmax.xlane.f32.xlu0 %v3883
  %v3885 = vpop.xlane.xlu0 %3884
  %v3886 = vsel %vm532, %v3844, -inf
  %3887 = vmax.xlane.f32.xlu0 %v3886
  %v3888 = vpop.xlane.xlu0 %3887
  %v3889 = vsel %vm532, %v3845, -inf
  %3890 = vmax.xlane.f32.xlu0 %v3889
  %v3891 = vpop.xlane.xlu0 %3890
  %v3892 = vsel %vm532, %v3846, -inf
  %3893 = vmax.xlane.f32.xlu0 %v3892
  %v3894 = vpop.xlane.xlu0 %3893
  %v3895 = vsub.f32 %v3831, %v3849
  %v3896 = vsub.f32 %v3832, %v3852
  %v3897 = vsub.f32 %v3833, %v3855
  %v3898 = vsub.f32 %v3834, %v3858
  %v3899 = vsub.f32 %v3835, %v3861
  %v3900 = vsub.f32 %v3836, %v3864
  %v3901 = vsub.f32 %v3837, %v3867
  %v3902 = vsub.f32 %v3838, %v3870
  %v3903 = vsub.f32 %v3839, %v3873
  %v3904 = vsub.f32 %v3840, %v3876
  %v3905 = vsub.f32 %v3841, %v3879
  %v3906 = vsub.f32 %v3842, %v3882
  %v3907 = vsub.f32 %v3843, %v3885
  %v3908 = vsub.f32 %v3844, %v3888
  %v3909 = vsub.f32 %v3845, %v3891
  %v3910 = vsub.f32 %v3846, %v3894
  %v3911 = vmul.f32 %v3895, 1.442695
  %v3912 = vpow.pop %v3911
  %v3913 = vmul.f32 %v3896, 1.442695
  %v3914 = vpow.pop %v3913
  %v3915 = vmul.f32 %v3897, 1.442695
  %v3916 = vpow.pop %v3915
  %v3917 = vmul.f32 %v3898, 1.442695
  %v3918 = vpow.pop %v3917
  %v3919 = vmul.f32 %v3899, 1.442695
  %v3920 = vpow.pop %v3919
  %v3921 = vmul.f32 %v3900, 1.442695
  %v3922 = vpow.pop %v3921
  %v3923 = vmul.f32 %v3901, 1.442695
  %v3924 = vpow.pop %v3923
  %v3925 = vmul.f32 %v3902, 1.442695
  %v3926 = vpow.pop %v3925
  %v3927 = vmul.f32 %v3903, 1.442695
  %v3928 = vpow.pop %v3927
  %v3929 = vmul.f32 %v3904, 1.442695
  %v3930 = vpow.pop %v3929
  %v3931 = vmul.f32 %v3905, 1.442695
  %v3932 = vpow.pop %v3931
  %v3933 = vmul.f32 %v3906, 1.442695
  %v3934 = vpow.pop %v3933
  %v3935 = vmul.f32 %v3907, 1.442695
  %v3936 = vpow.pop %v3935
  %v3937 = vmul.f32 %v3908, 1.442695
  %v3938 = vpow.pop %v3937
  %v3939 = vmul.f32 %v3909, 1.442695
  %v3940 = vpow.pop %v3939
  %v3941 = vmul.f32 %v3910, 1.442695
  %v3942 = vpow.pop %v3941
  %v3943 = vsel %vm532, %v3912, 0.0
  %3944 = vadd.xlane.f32.xlu0 %v3943
  %v3945 = vpop.xlane.xlu0 %3944
  %v3946 = vsel %vm532, %v3914, 0.0
  %3947 = vadd.xlane.f32.xlu0 %v3946
  %v3948 = vpop.xlane.xlu0 %3947
  %v3949 = vsel %vm532, %v3916, 0.0
  %3950 = vadd.xlane.f32.xlu0 %v3949
  %v3951 = vpop.xlane.xlu0 %3950
  %v3952 = vsel %vm532, %v3918, 0.0
  %3953 = vadd.xlane.f32.xlu0 %v3952
  %v3954 = vpop.xlane.xlu0 %3953
  %v3955 = vsel %vm532, %v3920, 0.0
  %3956 = vadd.xlane.f32.xlu0 %v3955
  %v3957 = vpop.xlane.xlu0 %3956
  %v3958 = vsel %vm532, %v3922, 0.0
  %3959 = vadd.xlane.f32.xlu0 %v3958
  %v3960 = vpop.xlane.xlu0 %3959
  %v3961 = vsel %vm532, %v3924, 0.0
  %3962 = vadd.xlane.f32.xlu0 %v3961
  %v3963 = vpop.xlane.xlu0 %3962
  %v3964 = vsel %vm532, %v3926, 0.0
  %3965 = vadd.xlane.f32.xlu0 %v3964
  %v3966 = vpop.xlane.xlu0 %3965
  %v3967 = vsel %vm532, %v3928, 0.0
  %3968 = vadd.xlane.f32.xlu0 %v3967
  %v3969 = vpop.xlane.xlu0 %3968
  %v3970 = vsel %vm532, %v3930, 0.0
  %3971 = vadd.xlane.f32.xlu0 %v3970
  %v3972 = vpop.xlane.xlu0 %3971
  %v3973 = vsel %vm532, %v3932, 0.0
  %3974 = vadd.xlane.f32.xlu0 %v3973
  %v3975 = vpop.xlane.xlu0 %3974
  %v3976 = vsel %vm532, %v3934, 0.0
  %3977 = vadd.xlane.f32.xlu0 %v3976
  %v3978 = vpop.xlane.xlu0 %3977
  %v3979 = vsel %vm532, %v3936, 0.0
  %3980 = vadd.xlane.f32.xlu0 %v3979
  %v3981 = vpop.xlane.xlu0 %3980
  %v3982 = vsel %vm532, %v3938, 0.0
  %3983 = vadd.xlane.f32.xlu0 %v3982
  %v3984 = vpop.xlane.xlu0 %3983
  %v3985 = vsel %vm532, %v3940, 0.0
  %3986 = vadd.xlane.f32.xlu0 %v3985
  %v3987 = vpop.xlane.xlu0 %3986
  %v3988 = vsel %vm532, %v3942, 0.0
  %3989 = vadd.xlane.f32.xlu0 %v3988
  %v3990 = vpop.xlane.xlu0 %3989
  %v3991 = vrcp.pop %v3945
  %v3992 = vrcp.pop %v3948
  %v3993 = vrcp.pop %v3951
  %v3994 = vrcp.pop %v3954
  %v3995 = vrcp.pop %v3957
  %v3996 = vrcp.pop %v3960
  %v3997 = vrcp.pop %v3963
  %v3998 = vrcp.pop %v3966
  %v3999 = vrcp.pop %v3969
  %v4000 = vrcp.pop %v3972
  %v4001 = vrcp.pop %v3975
  %v4002 = vrcp.pop %v3978
  %v4003 = vrcp.pop %v3981
  %v4004 = vrcp.pop %v3984
  %v4005 = vrcp.pop %v3987
  %v4006 = vrcp.pop %v3990
  %v4007 = vmul.f32 %v3912, %v3991
  %v4008 = vmul.f32 %v3914, %v3992
  %v4009 = vmul.f32 %v3916, %v3993
  %v4010 = vmul.f32 %v3918, %v3994
  %v4011 = vmul.f32 %v3920, %v3995
  %v4012 = vmul.f32 %v3922, %v3996
  %v4013 = vmul.f32 %v3924, %v3997
  %v4014 = vmul.f32 %v3926, %v3998
  %v4015 = vmul.f32 %v3928, %v3999
  %v4016 = vmul.f32 %v3930, %v4000
  %v4017 = vmul.f32 %v3932, %v4001
  %v4018 = vmul.f32 %v3934, %v4002
  %v4019 = vmul.f32 %v3936, %v4003
  %v4020 = vmul.f32 %v3938, %v4004
  %v4021 = vmul.f32 %v3940, %v4005
  %v4022 = vmul.f32 %v3942, %v4006
  %v4023 = vpack.c.bf16 %v4008, %v4007
  %v4024 = vpack.c.bf16 %v4010, %v4009
  %v4025 = vpack.c.bf16 %v4012, %v4011
  %v4026 = vpack.c.bf16 %v4014, %v4013
  %v4027 = vpack.c.bf16 %v4016, %v4015
  %v4028 = vpack.c.bf16 %v4018, %v4017
  %v4029 = vpack.c.bf16 %v4020, %v4019
  %v4030 = vpack.c.bf16 %v4022, %v4021
  %v4033 = vunpack.c.l.b16 %v3356
  %v4034 = vunpack.c.l.b16 %v3357
  %v4035 = vpack.c.b16 %v4034, %v4033
  %v4038 = vsel %vm532, %v4023, 0
  %4040 = vmatprep.subr.bf16.mxu0 0
  %4041 = vmatpush1.bf16.msra.mxu0 %v4035
  %4042 = vmatprep.subr.bf16.mxu0 0
  %4043 = vmatpush1.bf16.msra.mxu0 0
  %4044 = vmatprep.subr.bf16.mxu0 0
  %4045 = vmatpush1.bf16.msra.mxu0 0
  %4046 = vmatprep.subr.bf16.mxu0 0
  %4047 = vmatpush1.bf16.msra.mxu0 0
  %4048 = vmatprep.subr.bf16.mxu0 0
  %4049 = vmatpush1.bf16.msra.mxu0 0
  %4050 = vmatprep.subr.bf16.mxu0 0
  %4051 = vmatpush1.bf16.msra.mxu0 0
  %4052 = vmatprep.subr.bf16.mxu0 0
  %4053 = vmatpush1.bf16.msra.mxu0 0
  %4054 = vmatprep.subr.bf16.mxu0 0
  %4055 = vmatpush1.bf16.msra.mxu0 0
  %4056 = vmatprep.subr.bf16.mxu0 0
  %4057 = vmatpush1.bf16.msra.mxu0 0
  %4058 = vmatprep.subr.bf16.mxu0 0
  %4059 = vmatpush1.bf16.msra.mxu0 0
  %4060 = vmatprep.subr.bf16.mxu0 0
  %4061 = vmatpush1.bf16.msra.mxu0 0
  %4062 = vmatprep.subr.bf16.mxu0 0
  %4063 = vmatpush1.bf16.msra.mxu0 0
  %4064 = vmatprep.subr.bf16.mxu0 0
  %4065 = vmatpush1.bf16.msra.mxu0 0
  %4066 = vmatprep.subr.bf16.mxu0 0
  %4067 = vmatpush1.bf16.msra.mxu0 0
  %4068 = vmatprep.subr.bf16.mxu0 0
  %4069 = vmatpush1.bf16.msra.mxu0 0
  %4070 = vmatprep.subr.bf16.mxu0 0
  %4071 = vmatpush1.bf16.msra.mxu0 0
  %4072 = vmatprep.mubr.bf16.mxu0 0
  %4073 = vmatmul.mubr.bf16.gmra.mrb[0].mxu0 %v4038
  %v4074 = vpop.f32.mrb[0].mxu0
  %v4075 = vadd.f32 0.0, %v4074
  %v4076 = vpop.f32.mrb[0].mxu0
  %v4077 = vpop.f32.mrb[0].mxu0
  %v4078 = vadd.f32 0.0, %v4077
  %v4079 = vpop.f32.mrb[0].mxu0
  %4080 = vdwg.mxu0
  %v4083 = vunpack.c.l.b16 %v3358
  %v4084 = vunpack.c.l.b16 %v3359
  %v4085 = vpack.c.b16 %v4084, %v4083
  %v4088 = vsel %vm532, %v4024, 0
  %4090 = vmatprep.subr.bf16.mxu0 0
  %4091 = vmatpush1.bf16.msra.mxu0 %v4085
  %4092 = vmatprep.subr.bf16.mxu0 0
  %4093 = vmatpush1.bf16.msra.mxu0 0
  %4094 = vmatprep.subr.bf16.mxu0 0
  %4095 = vmatpush1.bf16.msra.mxu0 0
  %4096 = vmatprep.subr.bf16.mxu0 0
  %4097 = vmatpush1.bf16.msra.mxu0 0
  %4098 = vmatprep.subr.bf16.mxu0 0
  %4099 = vmatpush1.bf16.msra.mxu0 0
  %4100 = vmatprep.subr.bf16.mxu0 0
  %4101 = vmatpush1.bf16.msra.mxu0 0
  %4102 = vmatprep.subr.bf16.mxu0 0
  %4103 = vmatpush1.bf16.msra.mxu0 0
  %4104 = vmatprep.subr.bf16.mxu0 0
  %4105 = vmatpush1.bf16.msra.mxu0 0
  %4106 = vmatprep.subr.bf16.mxu0 0
  %4107 = vmatpush1.bf16.msra.mxu0 0
  %4108 = vmatprep.subr.bf16.mxu0 0
  %4109 = vmatpush1.bf16.msra.mxu0 0
  %4110 = vmatprep.subr.bf16.mxu0 0
  %4111 = vmatpush1.bf16.msra.mxu0 0
  %4112 = vmatprep.subr.bf16.mxu0 0
  %4113 = vmatpush1.bf16.msra.mxu0 0
  %4114 = vmatprep.subr.bf16.mxu0 0
  %4115 = vmatpush1.bf16.msra.mxu0 0
  %4116 = vmatprep.subr.bf16.mxu0 0
  %4117 = vmatpush1.bf16.msra.mxu0 0
  %4118 = vmatprep.subr.bf16.mxu0 0
  %4119 = vmatpush1.bf16.msra.mxu0 0
  %4120 = vmatprep.subr.bf16.mxu0 0
  %4121 = vmatpush1.bf16.msra.mxu0 0
  %4122 = vmatprep.mubr.bf16.mxu0 0
  %4123 = vmatmul.mubr.bf16.gmra.mrb[0].mxu0 %v4088
  %v4124 = vpop.f32.mrb[0].mxu0
  %v4125 = vadd.f32 0.0, %v4124
  %v4126 = vpop.f32.mrb[0].mxu0
  %v4127 = vpop.f32.mrb[0].mxu0
  %v4128 = vadd.f32 0.0, %v4127
  %v4129 = vpop.f32.mrb[0].mxu0
  %4130 = vdwg.mxu0
  %v4133 = vunpack.c.l.b16 %v3360
  %v4134 = vunpack.c.l.b16 %v3361
  %v4135 = vpack.c.b16 %v4134, %v4133
  %v4138 = vsel %vm532, %v4025, 0
  %4140 = vmatprep.subr.bf16.mxu0 0
  %4141 = vmatpush1.bf16.msra.mxu0 %v4135
  %4142 = vmatprep.subr.bf16.mxu0 0
  %4143 = vmatpush1.bf16.msra.mxu0 0
  %4144 = vmatprep.subr.bf16.mxu0 0
  %4145 = vmatpush1.bf16.msra.mxu0 0
  %4146 = vmatprep.subr.bf16.mxu0 0
  %4147 = vmatpush1.bf16.msra.mxu0 0
  %4148 = vmatprep.subr.bf16.mxu0 0
  %4149 = vmatpush1.bf16.msra.mxu0 0
  %4150 = vmatprep.subr.bf16.mxu0 0
  %4151 = vmatpush1.bf16.msra.mxu0 0
  %4152 = vmatprep.subr.bf16.mxu0 0
  %4153 = vmatpush1.bf16.msra.mxu0 0
  %4154 = vmatprep.subr.bf16.mxu0 0
  %4155 = vmatpush1.bf16.msra.mxu0 0
  %4156 = vmatprep.subr.bf16.mxu0 0
  %4157 = vmatpush1.bf16.msra.mxu0 0
  %4158 = vmatprep.subr.bf16.mxu0 0
  %4159 = vmatpush1.bf16.msra.mxu0 0
  %4160 = vmatprep.subr.bf16.mxu0 0
  %4161 = vmatpush1.bf16.msra.mxu0 0
  %4162 = vmatprep.subr.bf16.mxu0 0
  %4163 = vmatpush1.bf16.msra.mxu0 0
  %4164 = vmatprep.subr.bf16.mxu0 0
  %4165 = vmatpush1.bf16.msra.mxu0 0
  %4166 = vmatprep.subr.bf16.mxu0 0
  %4167 = vmatpush1.bf16.msra.mxu0 0
  %4168 = vmatprep.subr.bf16.mxu0 0
  %4169 = vmatpush1.bf16.msra.mxu0 0
  %4170 = vmatprep.subr.bf16.mxu0 0
  %4171 = vmatpush1.bf16.msra.mxu0 0
  %4172 = vmatprep.mubr.bf16.mxu0 0
  %4173 = vmatmul.mubr.bf16.gmra.mrb[0].mxu0 %v4138
  %v4174 = vpop.f32.mrb[0].mxu0
  %v4175 = vadd.f32 0.0, %v4174
  %v4176 = vpop.f32.mrb[0].mxu0
  %v4177 = vpop.f32.mrb[0].mxu0
  %v4178 = vadd.f32 0.0, %v4177
  %v4179 = vpop.f32.mrb[0].mxu0
  %4180 = vdwg.mxu0
  %v4183 = vunpack.c.l.b16 %v3362
  %v4184 = vunpack.c.l.b16 %v3363
  %v4185 = vpack.c.b16 %v4184, %v4183
  %v4188 = vsel %vm532, %v4026, 0
  %4190 = vmatprep.subr.bf16.mxu0 0
  %4191 = vmatpush1.bf16.msra.mxu0 %v4185
  %4192 = vmatprep.subr.bf16.mxu0 0
  %4193 = vmatpush1.bf16.msra.mxu0 0
  %4194 = vmatprep.subr.bf16.mxu0 0
  %4195 = vmatpush1.bf16.msra.mxu0 0
  %4196 = vmatprep.subr.bf16.mxu0 0
  %4197 = vmatpush1.bf16.msra.mxu0 0
  %4198 = vmatprep.subr.bf16.mxu0 0
  %4199 = vmatpush1.bf16.msra.mxu0 0
  %4200 = vmatprep.subr.bf16.mxu0 0
  %4201 = vmatpush1.bf16.msra.mxu0 0
  %4202 = vmatprep.subr.bf16.mxu0 0
  %4203 = vmatpush1.bf16.msra.mxu0 0
  %4204 = vmatprep.subr.bf16.mxu0 0
  %4205 = vmatpush1.bf16.msra.mxu0 0
  %4206 = vmatprep.subr.bf16.mxu0 0
  %4207 = vmatpush1.bf16.msra.mxu0 0
  %4208 = vmatprep.subr.bf16.mxu0 0
  %4209 = vmatpush1.bf16.msra.mxu0 0
  %4210 = vmatprep.subr.bf16.mxu0 0
  %4211 = vmatpush1.bf16.msra.mxu0 0
  %4212 = vmatprep.subr.bf16.mxu0 0
  %4213 = vmatpush1.bf16.msra.mxu0 0
  %4214 = vmatprep.subr.bf16.mxu0 0
  %4215 = vmatpush1.bf16.msra.mxu0 0
  %4216 = vmatprep.subr.bf16.mxu0 0
  %4217 = vmatpush1.bf16.msra.mxu0 0
  %4218 = vmatprep.subr.bf16.mxu0 0
  %4219 = vmatpush1.bf16.msra.mxu0 0
  %4220 = vmatprep.subr.bf16.mxu0 0
  %4221 = vmatpush1.bf16.msra.mxu0 0
  %4222 = vmatprep.mubr.bf16.mxu0 0
  %4223 = vmatmul.mubr.bf16.gmra.mrb[0].mxu0 %v4188
  %v4224 = vpop.f32.mrb[0].mxu0
  %v4225 = vadd.f32 0.0, %v4224
  %v4226 = vpop.f32.mrb[0].mxu0
  %v4227 = vpop.f32.mrb[0].mxu0
  %v4228 = vadd.f32 0.0, %v4227
  %v4229 = vpop.f32.mrb[0].mxu0
  %4230 = vdwg.mxu0
  %v4233 = vunpack.c.l.b16 %v3364
  %v4234 = vunpack.c.l.b16 %v3365
  %v4235 = vpack.c.b16 %v4234, %v4233
  %v4238 = vsel %vm532, %v4027, 0
  %4240 = vmatprep.subr.bf16.mxu0 0
  %4241 = vmatpush1.bf16.msra.mxu0 %v4235
  %4242 = vmatprep.subr.bf16.mxu0 0
  %4243 = vmatpush1.bf16.msra.mxu0 0
  %4244 = vmatprep.subr.bf16.mxu0 0
  %4245 = vmatpush1.bf16.msra.mxu0 0
  %4246 = vmatprep.subr.bf16.mxu0 0
  %4247 = vmatpush1.bf16.msra.mxu0 0
  %4248 = vmatprep.subr.bf16.mxu0 0
  %4249 = vmatpush1.bf16.msra.mxu0 0
  %4250 = vmatprep.subr.bf16.mxu0 0
  %4251 = vmatpush1.bf16.msra.mxu0 0
  %4252 = vmatprep.subr.bf16.mxu0 0
  %4253 = vmatpush1.bf16.msra.mxu0 0
  %4254 = vmatprep.subr.bf16.mxu0 0
  %4255 = vmatpush1.bf16.msra.mxu0 0
  %4256 = vmatprep.subr.bf16.mxu0 0
  %4257 = vmatpush1.bf16.msra.mxu0 0
  %4258 = vmatprep.subr.bf16.mxu0 0
  %4259 = vmatpush1.bf16.msra.mxu0 0
  %4260 = vmatprep.subr.bf16.mxu0 0
  %4261 = vmatpush1.bf16.msra.mxu0 0
  %4262 = vmatprep.subr.bf16.mxu0 0
  %4263 = vmatpush1.bf16.msra.mxu0 0
  %4264 = vmatprep.subr.bf16.mxu0 0
  %4265 = vmatpush1.bf16.msra.mxu0 0
  %4266 = vmatprep.subr.bf16.mxu0 0
  %4267 = vmatpush1.bf16.msra.mxu0 0
  %4268 = vmatprep.subr.bf16.mxu0 0
  %4269 = vmatpush1.bf16.msra.mxu0 0
  %4270 = vmatprep.subr.bf16.mxu0 0
  %4271 = vmatpush1.bf16.msra.mxu0 0
  %4272 = vmatprep.mubr.bf16.mxu0 0
  %4273 = vmatmul.mubr.bf16.gmra.mrb[0].mxu0 %v4238
  %v4274 = vpop.f32.mrb[0].mxu0
  %v4275 = vadd.f32 0.0, %v4274
  %v4276 = vpop.f32.mrb[0].mxu0
  %v4277 = vpop.f32.mrb[0].mxu0
  %v4278 = vadd.f32 0.0, %v4277
  %v4279 = vpop.f32.mrb[0].mxu0
  %4280 = vdwg.mxu0
  %v4283 = vunpack.c.l.b16 %v3366
  %v4284 = vunpack.c.l.b16 %v3367
  %v4285 = vpack.c.b16 %v4284, %v4283
  %v4288 = vsel %vm532, %v4028, 0
  %4290 = vmatprep.subr.bf16.mxu0 0
  %4291 = vmatpush1.bf16.msra.mxu0 %v4285
  %4292 = vmatprep.subr.bf16.mxu0 0
  %4293 = vmatpush1.bf16.msra.mxu0 0
  %4294 = vmatprep.subr.bf16.mxu0 0
  %4295 = vmatpush1.bf16.msra.mxu0 0
  %4296 = vmatprep.subr.bf16.mxu0 0
  %4297 = vmatpush1.bf16.msra.mxu0 0
  %4298 = vmatprep.subr.bf16.mxu0 0
  %4299 = vmatpush1.bf16.msra.mxu0 0
  %4300 = vmatprep.subr.bf16.mxu0 0
  %4301 = vmatpush1.bf16.msra.mxu0 0
  %4302 = vmatprep.subr.bf16.mxu0 0
  %4303 = vmatpush1.bf16.msra.mxu0 0
  %4304 = vmatprep.subr.bf16.mxu0 0
  %4305 = vmatpush1.bf16.msra.mxu0 0
  %4306 = vmatprep.subr.bf16.mxu0 0
  %4307 = vmatpush1.bf16.msra.mxu0 0
  %4308 = vmatprep.subr.bf16.mxu0 0
  %4309 = vmatpush1.bf16.msra.mxu0 0
  %4310 = vmatprep.subr.bf16.mxu0 0
  %4311 = vmatpush1.bf16.msra.mxu0 0
  %4312 = vmatprep.subr.bf16.mxu0 0
  %4313 = vmatpush1.bf16.msra.mxu0 0
  %4314 = vmatprep.subr.bf16.mxu0 0
  %4315 = vmatpush1.bf16.msra.mxu0 0
  %4316 = vmatprep.subr.bf16.mxu0 0
  %4317 = vmatpush1.bf16.msra.mxu0 0
  %4318 = vmatprep.subr.bf16.mxu0 0
  %4319 = vmatpush1.bf16.msra.mxu0 0
  %4320 = vmatprep.subr.bf16.mxu0 0
  %4321 = vmatpush1.bf16.msra.mxu0 0
  %4322 = vmatprep.mubr.bf16.mxu0 0
  %4323 = vmatmul.mubr.bf16.gmra.mrb[0].mxu0 %v4288
  %v4324 = vpop.f32.mrb[0].mxu0
  %v4325 = vadd.f32 0.0, %v4324
  %v4326 = vpop.f32.mrb[0].mxu0
  %v4327 = vpop.f32.mrb[0].mxu0
  %v4328 = vadd.f32 0.0, %v4327
  %v4329 = vpop.f32.mrb[0].mxu0
  %4330 = vdwg.mxu0
  %v4333 = vunpack.c.l.b16 %v3368
  %v4334 = vunpack.c.l.b16 %v3369
  %v4335 = vpack.c.b16 %v4334, %v4333
  %v4338 = vsel %vm532, %v4029, 0
  %4340 = vmatprep.subr.bf16.mxu0 0
  %4341 = vmatpush1.bf16.msra.mxu0 %v4335
  %4342 = vmatprep.subr.bf16.mxu0 0
  %4343 = vmatpush1.bf16.msra.mxu0 0
  %4344 = vmatprep.subr.bf16.mxu0 0
  %4345 = vmatpush1.bf16.msra.mxu0 0
  %4346 = vmatprep.subr.bf16.mxu0 0
  %4347 = vmatpush1.bf16.msra.mxu0 0
  %4348 = vmatprep.subr.bf16.mxu0 0
  %4349 = vmatpush1.bf16.msra.mxu0 0
  %4350 = vmatprep.subr.bf16.mxu0 0
  %4351 = vmatpush1.bf16.msra.mxu0 0
  %4352 = vmatprep.subr.bf16.mxu0 0
  %4353 = vmatpush1.bf16.msra.mxu0 0
  %4354 = vmatprep.subr.bf16.mxu0 0
  %4355 = vmatpush1.bf16.msra.mxu0 0
  %4356 = vmatprep.subr.bf16.mxu0 0
  %4357 = vmatpush1.bf16.msra.mxu0 0
  %4358 = vmatprep.subr.bf16.mxu0 0
  %4359 = vmatpush1.bf16.msra.mxu0 0
  %4360 = vmatprep.subr.bf16.mxu0 0
  %4361 = vmatpush1.bf16.msra.mxu0 0
  %4362 = vmatprep.subr.bf16.mxu0 0
  %4363 = vmatpush1.bf16.msra.mxu0 0
  %4364 = vmatprep.subr.bf16.mxu0 0
  %4365 = vmatpush1.bf16.msra.mxu0 0
  %4366 = vmatprep.subr.bf16.mxu0 0
  %4367 = vmatpush1.bf16.msra.mxu0 0
  %4368 = vmatprep.subr.bf16.mxu0 0
  %4369 = vmatpush1.bf16.msra.mxu0 0
  %4370 = vmatprep.subr.bf16.mxu0 0
  %4371 = vmatpush1.bf16.msra.mxu0 0
  %4372 = vmatprep.mubr.bf16.mxu0 0
  %4373 = vmatmul.mubr.bf16.gmra.mrb[0].mxu0 %v4338
  %v4374 = vpop.f32.mrb[0].mxu0
  %v4375 = vadd.f32 0.0, %v4374
  %v4376 = vpop.f32.mrb[0].mxu0
  %v4377 = vpop.f32.mrb[0].mxu0
  %v4378 = vadd.f32 0.0, %v4377
  %v4379 = vpop.f32.mrb[0].mxu0
  %4380 = vdwg.mxu0
  %v4383 = vunpack.c.l.b16 %v3370
  %v4384 = vunpack.c.l.b16 %v3371
  %v4385 = vpack.c.b16 %v4384, %v4383
  %v4388 = vsel %vm532, %v4030, 0
  %4390 = vmatprep.subr.bf16.mxu0 0
  %4391 = vmatpush1.bf16.msra.mxu0 %v4385
  %4392 = vmatprep.subr.bf16.mxu0 0
  %4393 = vmatpush1.bf16.msra.mxu0 0
  %4394 = vmatprep.subr.bf16.mxu0 0
  %4395 = vmatpush1.bf16.msra.mxu0 0
  %4396 = vmatprep.subr.bf16.mxu0 0
  %4397 = vmatpush1.bf16.msra.mxu0 0
  %4398 = vmatprep.subr.bf16.mxu0 0
  %4399 = vmatpush1.bf16.msra.mxu0 0
  %4400 = vmatprep.subr.bf16.mxu0 0
  %4401 = vmatpush1.bf16.msra.mxu0 0
  %4402 = vmatprep.subr.bf16.mxu0 0
  %4403 = vmatpush1.bf16.msra.mxu0 0
  %4404 = vmatprep.subr.bf16.mxu0 0
  %4405 = vmatpush1.bf16.msra.mxu0 0
  %4406 = vmatprep.subr.bf16.mxu0 0
  %4407 = vmatpush1.bf16.msra.mxu0 0
  %4408 = vmatprep.subr.bf16.mxu0 0
  %4409 = vmatpush1.bf16.msra.mxu0 0
  %4410 = vmatprep.subr.bf16.mxu0 0
  %4411 = vmatpush1.bf16.msra.mxu0 0
  %4412 = vmatprep.subr.bf16.mxu0 0
  %4413 = vmatpush1.bf16.msra.mxu0 0
  %4414 = vmatprep.subr.bf16.mxu0 0
  %4415 = vmatpush1.bf16.msra.mxu0 0
  %4416 = vmatprep.subr.bf16.mxu0 0
  %4417 = vmatpush1.bf16.msra.mxu0 0
  %4418 = vmatprep.subr.bf16.mxu0 0
  %4419 = vmatpush1.bf16.msra.mxu0 0
  %4420 = vmatprep.subr.bf16.mxu0 0
  %4421 = vmatpush1.bf16.msra.mxu0 0
  %4422 = vmatprep.mubr.bf16.mxu0 0
  %4423 = vmatmul.mubr.bf16.gmra.mrb[0].mxu0 %v4388
  %v4424 = vpop.f32.mrb[0].mxu0
  %v4425 = vadd.f32 0.0, %v4424
  %v4426 = vpop.f32.mrb[0].mxu0
  %v4427 = vpop.f32.mrb[0].mxu0
  %v4428 = vadd.f32 0.0, %v4427
  %v4429 = vpop.f32.mrb[0].mxu0
  %4430 = vdwg.mxu0
  %4447 = vrot.lane.b32.xlu0 %v1855, 8
  %v4448 = vpop.permute.xlu0 %4447
  %4449 = vrot.lane.b32.xlu0 %v1858, 8
  %v4450 = vpop.permute.xlu0 %4449
  %4451 = vrot.lane.b32.xlu0 %v1905, 8
  %v4452 = vpop.permute.xlu0 %4451
  %4453 = vrot.lane.b32.xlu0 %v1908, 8
  %v4454 = vpop.permute.xlu0 %4453
  %4455 = vrot.lane.b32.xlu0 %v1955, 8
  %v4456 = vpop.permute.xlu0 %4455
  %4457 = vrot.lane.b32.xlu0 %v1958, 8
  %v4458 = vpop.permute.xlu0 %4457
  %4459 = vrot.lane.b32.xlu0 %v2005, 8
  %v4460 = vpop.permute.xlu0 %4459
  %4461 = vrot.lane.b32.xlu0 %v2008, 8
  %v4462 = vpop.permute.xlu0 %4461
  %4463 = vrot.lane.b32.xlu0 %v2055, 8
  %v4464 = vpop.permute.xlu0 %4463
  %4465 = vrot.lane.b32.xlu0 %v2058, 8
  %v4466 = vpop.permute.xlu0 %4465
  %4467 = vrot.lane.b32.xlu0 %v2105, 8
  %v4468 = vpop.permute.xlu0 %4467
  %4469 = vrot.lane.b32.xlu0 %v2108, 8
  %v4470 = vpop.permute.xlu0 %4469
  %4471 = vrot.lane.b32.xlu0 %v2155, 8
  %v4472 = vpop.permute.xlu0 %4471
  %4473 = vrot.lane.b32.xlu0 %v2158, 8
  %v4474 = vpop.permute.xlu0 %4473
  %4475 = vrot.lane.b32.xlu0 %v2205, 8
  %v4476 = vpop.permute.xlu0 %4475
  %4477 = vrot.lane.b32.xlu0 %v2208, 8
  %v4478 = vpop.permute.xlu0 %4477
  %4511 = vrot.lane.b32.xlu0 %v2965, 16
  %v4512 = vpop.permute.xlu0 %4511
  %4513 = vrot.lane.b32.xlu0 %v2968, 16
  %v4514 = vpop.permute.xlu0 %4513
  %4515 = vrot.lane.b32.xlu0 %v3015, 16
  %v4516 = vpop.permute.xlu0 %4515
  %4517 = vrot.lane.b32.xlu0 %v3018, 16
  %v4518 = vpop.permute.xlu0 %4517
  %4519 = vrot.lane.b32.xlu0 %v3065, 16
  %v4520 = vpop.permute.xlu0 %4519
  %4521 = vrot.lane.b32.xlu0 %v3068, 16
  %v4522 = vpop.permute.xlu0 %4521
  %4523 = vrot.lane.b32.xlu0 %v3115, 16
  %v4524 = vpop.permute.xlu0 %4523
  %4525 = vrot.lane.b32.xlu0 %v3118, 16
  %v4526 = vpop.permute.xlu0 %4525
  %4527 = vrot.lane.b32.xlu0 %v3165, 16
  %v4528 = vpop.permute.xlu0 %4527
  %4529 = vrot.lane.b32.xlu0 %v3168, 16
  %v4530 = vpop.permute.xlu0 %4529
  %4531 = vrot.lane.b32.xlu0 %v3215, 16
  %v4532 = vpop.permute.xlu0 %4531
  %4533 = vrot.lane.b32.xlu0 %v3218, 16
  %v4534 = vpop.permute.xlu0 %4533
  %4535 = vrot.lane.b32.xlu0 %v3265, 16
  %v4536 = vpop.permute.xlu0 %4535
  %4537 = vrot.lane.b32.xlu0 %v3268, 16
  %v4538 = vpop.permute.xlu0 %4537
  %4539 = vrot.lane.b32.xlu0 %v3315, 16
  %v4540 = vpop.permute.xlu0 %4539
  %4541 = vrot.lane.b32.xlu0 %v3318, 16
  %v4542 = vpop.permute.xlu0 %4541
  %4575 = vrot.lane.b32.xlu0 %v4075, 24
  %v4576 = vpop.permute.xlu0 %4575
  %4577 = vrot.lane.b32.xlu0 %v4078, 24
  %v4578 = vpop.permute.xlu0 %4577
  %4579 = vrot.lane.b32.xlu0 %v4125, 24
  %v4580 = vpop.permute.xlu0 %4579
  %4581 = vrot.lane.b32.xlu0 %v4128, 24
  %v4582 = vpop.permute.xlu0 %4581
  %4583 = vrot.lane.b32.xlu0 %v4175, 24
  %v4584 = vpop.permute.xlu0 %4583
  %4585 = vrot.lane.b32.xlu0 %v4178, 24
  %v4586 = vpop.permute.xlu0 %4585
  %4587 = vrot.lane.b32.xlu0 %v4225, 24
  %v4588 = vpop.permute.xlu0 %4587
  %4589 = vrot.lane.b32.xlu0 %v4228, 24
  %v4590 = vpop.permute.xlu0 %4589
  %4591 = vrot.lane.b32.xlu0 %v4275, 24
  %v4592 = vpop.permute.xlu0 %4591
  %4593 = vrot.lane.b32.xlu0 %v4278, 24
  %v4594 = vpop.permute.xlu0 %4593
  %4595 = vrot.lane.b32.xlu0 %v4325, 24
  %v4596 = vpop.permute.xlu0 %4595
  %4597 = vrot.lane.b32.xlu0 %v4328, 24
  %v4598 = vpop.permute.xlu0 %4597
  %4599 = vrot.lane.b32.xlu0 %v4375, 24
  %v4600 = vpop.permute.xlu0 %4599
  %4601 = vrot.lane.b32.xlu0 %v4378, 24
  %v4602 = vpop.permute.xlu0 %4601
  %4603 = vrot.lane.b32.xlu0 %v4425, 24
  %v4604 = vpop.permute.xlu0 %4603
  %4605 = vrot.lane.b32.xlu0 %v4428, 24
  %v4606 = vpop.permute.xlu0 %4605
  %v4623 = vsel %vm85, %v761, %v4448
  %v4624 = vsel %vm85, %v764, %v4450
  %v4625 = vsel %vm85, %v811, %v4452
  %v4626 = vsel %vm85, %v814, %v4454
  %v4627 = vsel %vm85, %v861, %v4456
  %v4628 = vsel %vm85, %v864, %v4458
  %v4629 = vsel %vm85, %v911, %v4460
  %v4630 = vsel %vm85, %v914, %v4462
  %v4631 = vsel %vm85, %v961, %v4464
  %v4632 = vsel %vm85, %v964, %v4466
  %v4633 = vsel %vm85, %v1011, %v4468
  %v4634 = vsel %vm85, %v1014, %v4470
  %v4635 = vsel %vm85, %v1061, %v4472
  %v4636 = vsel %vm85, %v1064, %v4474
  %v4637 = vsel %vm85, %v1111, %v4476
  %v4638 = vsel %vm85, %v1114, %v4478
  %v4639 = vsel %vm532, %v4623, %v4512
  %v4640 = vsel %vm532, %v4624, %v4514
  %v4641 = vsel %vm532, %v4625, %v4516
  %v4642 = vsel %vm532, %v4626, %v4518
  %v4643 = vsel %vm532, %v4627, %v4520
  %v4644 = vsel %vm532, %v4628, %v4522
  %v4645 = vsel %vm532, %v4629, %v4524
  %v4646 = vsel %vm532, %v4630, %v4526
  %v4647 = vsel %vm532, %v4631, %v4528
  %v4648 = vsel %vm532, %v4632, %v4530
  %v4649 = vsel %vm532, %v4633, %v4532
  %v4650 = vsel %vm532, %v4634, %v4534
  %v4651 = vsel %vm532, %v4635, %v4536
  %v4652 = vsel %vm532, %v4636, %v4538
  %v4653 = vsel %vm532, %v4637, %v4540
  %v4654 = vsel %vm532, %v4638, %v4542
  %vm4655 = vcmask 195584
  %v4656 = vsel %vm4655, %v4639, %v4576
  %v4657 = vsel %vm4655, %v4640, %v4578
  %v4658 = vsel %vm4655, %v4641, %v4580
  %v4659 = vsel %vm4655, %v4642, %v4582
  %v4660 = vsel %vm4655, %v4643, %v4584
  %v4661 = vsel %vm4655, %v4644, %v4586
  %v4662 = vsel %vm4655, %v4645, %v4588
  %v4663 = vsel %vm4655, %v4646, %v4590
  %v4664 = vsel %vm4655, %v4647, %v4592
  %v4665 = vsel %vm4655, %v4648, %v4594
  %v4666 = vsel %vm4655, %v4649, %v4596
  %v4667 = vsel %vm4655, %v4650, %v4598
  %v4668 = vsel %vm4655, %v4651, %v4600
  %v4669 = vsel %vm4655, %v4652, %v4602
  %v4670 = vsel %vm4655, %v4653, %v4604
  %v4671 = vsel %vm4655, %v4654, %v4606
  %v4672 = vpack.c.bf16 %v4657, %v4656
  %v4673 = vpack.c.bf16 %v4659, %v4658
  %v4674 = vpack.c.bf16 %v4661, %v4660
  %v4675 = vpack.c.bf16 %v4663, %v4662
  %v4676 = vpack.c.bf16 %v4665, %v4664
  %v4677 = vpack.c.bf16 %v4667, %v4666
  %v4678 = vpack.c.bf16 %v4669, %v4668
  %v4679 = vpack.c.bf16 %v4671, %v4670
  %v4688 = vunpack.c.l.b16 %v4672
  %v4689 = vunpack.c.h.b16 %v4672
  %v4690 = vunpack.c.l.b16 %v4673
  %v4691 = vunpack.c.h.b16 %v4673
  %v4692 = vunpack.c.l.b16 %v4674
  %v4693 = vunpack.c.h.b16 %v4674
  %v4694 = vunpack.c.l.b16 %v4675
  %v4695 = vunpack.c.h.b16 %v4675
  %v4696 = vunpack.c.l.b16 %v4676
  %v4697 = vunpack.c.h.b16 %v4676
  %v4698 = vunpack.c.l.b16 %v4677
  %v4699 = vunpack.c.h.b16 %v4677
  %v4700 = vunpack.c.l.b16 %v4678
  %v4701 = vunpack.c.h.b16 %v4678
  %v4702 = vunpack.c.l.b16 %v4679
  %v4703 = vunpack.c.h.b16 %v4679
  %v4704 = vpack.c.b16 %v4688, %v4688
  %v4705 = vpack.c.b16 %v4689, %v4689
  %v4706 = vpack.c.b16 %v4690, %v4690
  %v4707 = vpack.c.b16 %v4691, %v4691
  %v4708 = vpack.c.b16 %v4692, %v4692
  %v4709 = vpack.c.b16 %v4693, %v4693
  %v4710 = vpack.c.b16 %v4694, %v4694
  %v4711 = vpack.c.b16 %v4695, %v4695
  %v4712 = vpack.c.b16 %v4696, %v4696
  %v4713 = vpack.c.b16 %v4697, %v4697
  %v4714 = vpack.c.b16 %v4698, %v4698
  %v4715 = vpack.c.b16 %v4699, %v4699
  %v4716 = vpack.c.b16 %v4700, %v4700
  %v4717 = vpack.c.b16 %v4701, %v4701
  %v4718 = vpack.c.b16 %v4702, %v4702
  %v4719 = vpack.c.b16 %v4703, %v4703
  %vm4736 = vcmask 257024
  %4737 = vst.msk [vmem:[%s3] sm:$0xf] %vm4736, %v4704
  %4738 = vst.msk [vmem:[%s3 + $0x4] sm:$0xf] %vm4736, %v4705
  %4739 = vst.msk [vmem:[%s3 + $0x8] sm:$0xf] %vm4736, %v4706
  %4740 = vst.msk [vmem:[%s3 + $0xc] sm:$0xf] %vm4736, %v4707
  %4741 = vst.msk [vmem:[%s3 + $0x10] sm:$0xf] %vm4736, %v4708
  %4742 = vst.msk [vmem:[%s3 + $0x14] sm:$0xf] %vm4736, %v4709
  %4743 = vst.msk [vmem:[%s3 + $0x18] sm:$0xf] %vm4736, %v4710
  %4744 = vst.msk [vmem:[%s3 + $0x1c] sm:$0xf] %vm4736, %v4711
  %4745 = vst.msk [vmem:[%s3 + $0x20] sm:$0xf] %vm4736, %v4712
  %4746 = vst.msk [vmem:[%s3 + $0x24] sm:$0xf] %vm4736, %v4713
  %4747 = vst.msk [vmem:[%s3 + $0x28] sm:$0xf] %vm4736, %v4714
  %4748 = vst.msk [vmem:[%s3 + $0x2c] sm:$0xf] %vm4736, %v4715
  %4749 = vst.msk [vmem:[%s3 + $0x30] sm:$0xf] %vm4736, %v4716
  %4750 = vst.msk [vmem:[%s3 + $0x34] sm:$0xf] %vm4736, %v4717
  %4751 = vst.msk [vmem:[%s3 + $0x38] sm:$0xf] %vm4736, %v4718
  %4752 = vst.msk [vmem:[%s3 + $0x3c] sm:$0xf] %vm4736, %v4719
  // Predicated region
  $region14: #{basic_layer_forward.7} parent=0 // pred_check
    _
  $region15: #{basic_layer_forward.7} parent=0 // pred_check_branch
    %4754 = sbr.rel (0) target = $region17
  $region16: #{basic_layer_forward.7} parent=0 // pred_region
    _
  $region17: #{basic_layer_forward.7} parent=0 // pred_fallthru
    _
  // Predicated region
  $region18: #{basic_layer_forward.7} parent=0 // pred_check
    _
  $region19: #{basic_layer_forward.7} parent=0 // pred_check_branch
    %4756 = sbr.rel (0) target = $region21
  $region20: #{basic_layer_forward.7} parent=0 // pred_region
    _
  $region21: #{basic_layer_forward.7} parent=0 // pred_fallthru
    _

</llo_original>
